<compile_context>
chip_gen: v6e
topology: v6e:2x2x1
jax: 0.10.0
libtpu: 0.0.40
codegen_flags: <defaults>
</compile_context>

<pallas_src>
import jax
import jax.numpy as jnp
from jax.experimental import pallas as pl
from jax.experimental.pallas import tpu as pltpu


def ida_kernel(x_ref, w_ref, out_ref, proxy_ref):
    x = x_ref[...]          # (B, D)   -- part dim squeezed by the BlockSpec
    w = w_ref[...]          # (TC, D)  -- one class tile, lane-dense in D

    # F.linear(x, w): contract the feature axis directly; w stays in its
    # native (C, D) layout so no transpose hits the XLU before the MXU.
    out = jax.lax.dot_general(
        x, w,
        dimension_numbers=(((1,), (1,)), ((), ())),
        preferred_element_type=jnp.float32,
        precision=jax.lax.Precision.HIGHEST)
    out_ref[...] = out.astype(out_ref.dtype)

    # Normalize(power=2): proxy = w * rsqrt(sum(w^2, axis=-1)).
    # No epsilon, matching the reference Normalize module exactly
    # (weights are N(0, 0.001)-initialized, never an all-zero row).
    sumsq = jnp.sum(w * w, axis=1, keepdims=True)            # (TC, 1)
    proxy_ref[...] = (w * jax.lax.rsqrt(sumsq)).astype(proxy_ref.dtype)


def _class_tile(class_num):
    """Class-axis tile size.

    Must be a multiple of 128 (lane dim of the (B, tc) out block) unless it
    covers the full class axis.  >=128 rows (0.5 MiB of f32 weights at
    D=2048) keeps the ~0.35us/step pipeline overhead negligible on v5e;
    <=256 keeps double-buffered w+proxy blocks ~8 MiB, well inside v7x's
    32 MiB default scoped VMEM.
    """
    if class_num <= 128:
        return class_num
    if class_num >= 1024:
        return 256
    return 128


def ida_classifier(x, w):
    """x: (P, B, D) per-part features, w: (P, C, D) per-part weights."""
    P, B, D = x.shape
    Pw, C, Dw = w.shape
    assert P == Pw and D == Dw

    tc = _class_tile(C)
    nc = pl.cdiv(C, tc)        # ragged last class block: reads padded,
                               # output writeback masked by Pallas.
    grid = (P, nc)             # class axis innermost -> x stays resident.

    cost = pl.CostEstimate(
        flops=2 * P * B * C * D,
        transcendentals=P * C,
        bytes_accessed=4 * (P * B * D + 2 * P * C * D + P * B * C))

    out, proxy = pl.pallas_call(
        ida_kernel,
        out_shape=(jax.ShapeDtypeStruct((P, B, C), x.dtype),
                   jax.ShapeDtypeStruct((P, C, D), w.dtype)),
        grid_spec=pltpu.PrefetchScalarGridSpec(
            num_scalar_prefetch=0,
            grid=grid,
            in_specs=[
                # x: one part per step; index_map ignores the class tile j so
                # the (B, D) block is not re-fetched as j advances.
                pl.BlockSpec((None, B, D), lambda i, j: (i, 0, 0)),
                # w: lane-dense (tc, D) tile streamed per class block.
                pl.BlockSpec((None, tc, D), lambda i, j: (i, j, 0)),
            ],
            out_specs=[
                pl.BlockSpec((None, B, tc), lambda i, j: (i, 0, j)),
                pl.BlockSpec((None, tc, D), lambda i, j: (i, j, 0)),
            ],
        ),
        compiler_params=pltpu.CompilerParams(
            dimension_semantics=("parallel", "parallel")),
        cost_estimate=cost,
    )(x, w)

    # Mirror the PyTorch module's dict-of-parts return convention.
    out_dict = {i: out[i] for i in range(P)}
    proxy_dict = {i: proxy[i] for i in range(P)}
    return out_dict, proxy_dict


if __name__ == "__main__":
    num_part = 2          # P
    class_num = 192       # C -- deliberately not a multiple of 128 to
                          # exercise the cdiv / masked-writeback path.
    batch = 8             # B
    input_dim = 2048      # D (fixed by the module)

    key = jax.random.PRNGKey(0)
    kx, kw = jax.random.split(key)
    x = jax.random.normal(kx, (num_part, batch, input_dim), dtype=jnp.float32)
    # nn.init.normal_(weight, 0, 0.001)
    w = 0.001 * jax.random.normal(kw, (num_part, class_num, input_dim),
                                  dtype=jnp.float32)

    out_dict, proxy_dict = ida_classifier(x, w)
    jax.block_until_ready(out_dict[num_part - 1])
    jax.block_until_ready(proxy_dict[num_part - 1])

    # Reference check in plain JAX (same semantics as the PyTorch forward).
    ok = True
    for i in range(num_part):
        ref_out = jnp.matmul(x[i], w[i].T,
                             precision=jax.lax.Precision.HIGHEST)
        ref_proxy = w[i] / jnp.sqrt(jnp.sum(w[i] ** 2, axis=1, keepdims=True))
        ok &= bool(jnp.allclose(out_dict[i], ref_out, atol=1e-4, rtol=1e-4))
        ok &= bool(jnp.allclose(proxy_dict[i], ref_proxy, atol=1e-5, rtol=1e-5))
    assert ok, "mismatch vs reference"

    print("KERNEL_OK")
</pallas_src>

<mosaic_0001>
module attributes {stable_mosaic.version = 11 : i64} {
  func.func @ida_kernel(%arg0: i32, %arg1: i32, %arg2: memref<1x8x2048xf32, #tpu.memory_space<vmem>>, %arg3: memref<1x128x2048xf32, #tpu.memory_space<vmem>>, %arg4: memref<1x8x128xf32, #tpu.memory_space<vmem>>, %arg5: memref<1x128x2048xf32, #tpu.memory_space<vmem>>) attributes {dimension_semantics = [#tpu.dimension_semantics<parallel>, #tpu.dimension_semantics<parallel>], iteration_bounds = array<i64: 2, 2>, scalar_prefetch = 0 : i64, scratch_operands = 0 : i64, tpu.core_type = #tpu.core_type<tc>, window_params = [{transform_indices = @transform_0, window_bounds = array<i64: 1, 8, 2048>}, {transform_indices = @transform_1, window_bounds = array<i64: 1, 128, 2048>}, {transform_indices = @transform_2, window_bounds = array<i64: 1, 8, 128>}, {transform_indices = @transform_3, window_bounds = array<i64: 1, 128, 2048>}]} {
    %c0 = arith.constant 0 : index
    %c0_0 = arith.constant 0 : index
    %c0_1 = arith.constant 0 : index
    %0 = vector.load %arg2[%c0, %c0_0, %c0_1] : memref<1x8x2048xf32, #tpu.memory_space<vmem>>, vector<1x8x2048xf32>
    %1 = vector.shape_cast %0 : vector<1x8x2048xf32> to vector<8x2048xf32>
    %c0_2 = arith.constant 0 : index
    %c0_3 = arith.constant 0 : index
    %c0_4 = arith.constant 0 : index
    %2 = vector.load %arg3[%c0_2, %c0_3, %c0_4] : memref<1x128x2048xf32, #tpu.memory_space<vmem>>, vector<1x128x2048xf32>
    %3 = vector.shape_cast %2 : vector<1x128x2048xf32> to vector<128x2048xf32>
    %cst = arith.constant dense<0.000000e+00> : vector<8x128xf32>
    %4 = tpu.matmul %1, %3, %cst {dimension_numbers = #tpu.dot_dimension_numbers<[1], [1], [0], [0], [0, 0, 1, 0], [], []>, precision = #tpu.contract_precision<fp32>} : vector<8x2048xf32>, vector<128x2048xf32>, vector<8x128xf32> -> vector<8x128xf32>
    %c0_5 = arith.constant 0 : index
    %c0_6 = arith.constant 0 : index
    %c0_7 = arith.constant 0 : index
    %5 = vector.load %arg4[%c0_5, %c0_6, %c0_7] : memref<1x8x128xf32, #tpu.memory_space<vmem>>, vector<1x8x128xf32>
    %6 = vector.shape_cast %5 : vector<1x8x128xf32> to vector<8x128xf32>
    %7 = vector.shape_cast %4 : vector<8x128xf32> to vector<1x8x128xf32>
    tpu.vector_store %arg4[%c0_5, %c0_6, %c0_7], %7 {strides = array<i32>} : memref<1x8x128xf32, #tpu.memory_space<vmem>>, vector<1x8x128xf32>,
    %8 = arith.mulf %3, %3 : vector<128x2048xf32>
    %cst_8 = arith.constant dense<0.000000e+00> : vector<128xf32>
    %9 = vector.multi_reduction <add>, %8, %cst_8 [1] : vector<128x2048xf32> to vector<128xf32>
    %10 = vector.shape_cast %9 : vector<128xf32> to vector<128x1xf32>
    %11 = math.rsqrt %10 : vector<128x1xf32>
    %12 = vector.broadcast %11 : vector<128x1xf32> to vector<128x2048xf32>
    %13 = arith.mulf %3, %12 : vector<128x2048xf32>
    %c0_9 = arith.constant 0 : index
    %c0_10 = arith.constant 0 : index
    %c0_11 = arith.constant 0 : index
    %14 = vector.load %arg5[%c0_9, %c0_10, %c0_11] : memref<1x128x2048xf32, #tpu.memory_space<vmem>>, vector<1x128x2048xf32>
    %15 = vector.shape_cast %14 : vector<1x128x2048xf32> to vector<128x2048xf32>
    %16 = vector.shape_cast %13 : vector<128x2048xf32> to vector<1x128x2048xf32>
    tpu.vector_store %arg5[%c0_9, %c0_10, %c0_11], %16 {strides = array<i32>} : memref<1x128x2048xf32, #tpu.memory_space<vmem>>, vector<1x128x2048xf32>,
    return
  }
  func.func @transform_0(%arg0: i32, %arg1: i32) -> (i32, i32, i32) {
    %c0_i32 = arith.constant 0 : i32
    %c0_i32_0 = arith.constant 0 : i32
    %c0_i32_1 = arith.constant 0 : i32
    return %arg0, %c0_i32, %c0_i32_0 : i32, i32, i32
  }
  func.func @transform_1(%arg0: i32, %arg1: i32) -> (i32, i32, i32) {
    %c0_i32 = arith.constant 0 : i32
    %c0_i32_0 = arith.constant 0 : i32
    return %arg0, %arg1, %c0_i32 : i32, i32, i32
  }
  func.func @transform_2(%arg0: i32, %arg1: i32) -> (i32, i32, i32) {
    %c0_i32 = arith.constant 0 : i32
    %c0_i32_0 = arith.constant 0 : i32
    return %arg0, %c0_i32, %arg1 : i32, i32, i32
  }
  func.func @transform_3(%arg0: i32, %arg1: i32) -> (i32, i32, i32) {
    %c0_i32 = arith.constant 0 : i32
    %c0_i32_0 = arith.constant 0 : i32
    return %arg0, %arg1, %c0_i32 : i32, i32, i32
  }
}

</mosaic_0001>

<llo_original>
// kernel: tpu_custom_call.1
$region0: #{tpu_custom_call.1}
  #allocation0 [shape = 'u32[]', space=smem, size = 0x4, offset = 0x4, fixed_abs, tag = 'smem constant byte address 0x4 - core index']
  #allocation1 [shape = 'u32[144,128]{1,0:T(1,128)}', space=vmem, size = 0x12000, scoped, tag = 'internal scratch']
  %s0 = inlined_call_operand.hbm [shape: f32[2,8,2048], index: 0, kind: input, shape index: {}]
  %s1 = inlined_call_operand.hbm [shape: f32[2,192,2048], index: 1, kind: input, shape index: {}]
  %s2 = inlined_call_operand.hbm [shape: f32[2,8,192], index: 2, kind: output, shape index: {0}]
  %s3 = inlined_call_operand.hbm [shape: f32[2,192,2048], index: 3, kind: output, shape index: {1}]
  %4 = xla_tuple %s2, %s3
  %s5 = sld [smem:[#allocation0]]
  $region57: #{tpu_custom_call.1} parent=0
    _
  %s7 = ssub.s32 1, %s5
  %s8 = scalar_select 0, %s7, %s5
  $region1: #{tpu_custom_call.1} parent=0
    #allocation2 [shape = 'u8[131072]{0}', space=vmem, size = 0x20000, scoped, tag = 'input window, operand 0']
    #allocation3 [shape = 's32[2]{0}', space=sflag, size = 0x8, scoped, tag = 'scoped memory for tpu_custom_call.1']
    #allocation4 [shape = 's32[2]{0}', space=sflag, size = 0x8, scoped, tag = 'scoped memory for tpu_custom_call.1']
    #allocation5 [shape = 'u8[2097152]{0}', space=vmem, size = 0x200000, scoped, tag = 'input window, operand 1']
    #allocation6 [shape = 's32[2]{0}', space=sflag, size = 0x8, scoped, tag = 'scoped memory for tpu_custom_call.1']
    #allocation7 [shape = 'u8[8192]{0}', space=vmem, size = 0x2000, scoped, tag = 'output window, operand 0']
    #allocation8 [shape = 'u8[2097152]{0}', space=vmem, size = 0x200000, scoped, tag = 'output window, operand 1']
    #allocation9 [shape = 's32[2]{0}', space=sflag, size = 0x8, scoped, tag = 'scoped memory for tpu_custom_call.1']
    %9 = vsyncpa [#allocation3], 0
    %s10 = scalar_lea.sflag [#allocation3], 1
    %11 = vsyncpa %s10, 0
    %12 = vsyncpa [#allocation6], 0
    %s13 = scalar_lea.sflag [#allocation6], 1
    %14 = vsyncpa %s13, 0
    %15 = vsyncpa [#allocation4], 0
    %s16 = scalar_lea.sflag [#allocation4], 1
    %17 = vsyncpa %s16, 0
    %18 = vsyncpa [#allocation9], 0
    %s19 = scalar_lea.sflag [#allocation9], 1
    %20 = vsyncpa %s19, 0
    loop: start=0, step=1, limit=6
    $region2: #{tpu_custom_call.1} parent=1 // loop_pre_header
      _
    $region3: #{tpu_custom_call.1} parent=1 // loop_header
      %s22 = sphi 0, %s26
      %p23 = scmp.ge.s32.totalorder %s22, 6
      %s29 = sphi 0, %s41
      %s30 = sphi 0, %s37
      %s31 = sphi 0, %s29
      %s32 = sphi 0, %s30
      %s33 = sphi 0, %s31
      %s34 = sphi 0, %s32
      %s44 = sphi 0, %s46
      %s47 = sphi 0, %s44
      %s48 = sphi 0, %s47
      %s64 = sphi 0, %s48
      %s72 = sphi 0, %s74
      %s75 = sphi 0, %s72
      %s76 = sphi 0, %s75
      %s92 = sphi 0, %s76
      %s100 = sphi 0, %s102
      %s103 = sphi 0, %s100
      %s104 = sphi 0, %s103
      %s120 = sphi 0, %s104
      %s128 = sphi 0, %s130
      %s131 = sphi 0, %s128
      %s132 = sphi 0, %s131
      %s148 = sphi 0, %s132
    $region4: #{tpu_custom_call.1} parent=1 // loop_header_branch
      %25 = sbr.rel (%p23) target = $region8
    $region5: #{tpu_custom_call.1} parent=1 // loop_body
      %s27 = ssub.s32 %s22, 1
      %s28 = ssub.s32 %s22, 2
      %s35 = sadd.s32 1, %s30
      %p36 = scmp.ge.s32.totalorder %s35, 2
      %s37 = scalar_select %p36, 0, %s35
      %s38 = sadd.s32 1, %s29
      %s39 = scalar_select %p36, %s38, %s29
      %p40 = scmp.ge.s32.totalorder %s39, 2
      %s41 = scalar_select %p40, 0, %s39
      %s42 = ssub.s32 %s29, %s41
      %p43 = scmp.eq.s32.totalorder %s42, 0
      %s45 = sadd.s32 %s44, 1
      %s46 = scalar_select %p43, %s44, %s45
      %p49 = pneg %p43
      %p50 = scmp.eq.s32.totalorder %s22, 3
      %p51 = por %p49, %p50
      %p52 = scmp.ne.s32.totalorder %s44, %s47
      %p53 = scmp.eq.s32.totalorder %s22, 0
      %p54 = por %p52, %p53
      %p55 = scmp.ne.s32.totalorder %s44, %s47
      %p56 = scmp.eq.s32.totalorder %s27, 3
      %p57 = por %p55, %p56
      %p58 = scmp.ne.s32.totalorder %s47, %s48
      %p59 = scmp.eq.s32.totalorder %s27, 0
      %p60 = por %p58, %p59
      %p61 = scmp.ne.s32.totalorder %s47, %s48
      %p62 = scmp.eq.s32.totalorder %s28, 3
      %p63 = por %p61, %p62
      %p65 = scmp.ne.s32.totalorder %s48, %s64
      %p66 = scmp.eq.s32.totalorder %s28, 0
      %p67 = por %p65, %p66
      %s68 = ssub.s32 %s29, %s41
      %s69 = ssub.s32 %s30, %s37
      %s70 = sor.u32 %s68, %s69
      %p71 = scmp.eq.s32.totalorder %s70, 0
      %s73 = sadd.s32 %s72, 1
      %s74 = scalar_select %p71, %s72, %s73
      %p77 = pneg %p71
      %p78 = scmp.eq.s32.totalorder %s22, 3
      %p79 = por %p77, %p78
      %p80 = scmp.ne.s32.totalorder %s72, %s75
      %p81 = scmp.eq.s32.totalorder %s22, 0
      %p82 = por %p80, %p81
      %p83 = scmp.ne.s32.totalorder %s72, %s75
      %p84 = scmp.eq.s32.totalorder %s27, 3
      %p85 = por %p83, %p84
      %p86 = scmp.ne.s32.totalorder %s75, %s76
      %p87 = scmp.eq.s32.totalorder %s27, 0
      %p88 = por %p86, %p87
      %p89 = scmp.ne.s32.totalorder %s75, %s76
      %p90 = scmp.eq.s32.totalorder %s28, 3
      %p91 = por %p89, %p90
      %p93 = scmp.ne.s32.totalorder %s76, %s92
      %p94 = scmp.eq.s32.totalorder %s28, 0
      %p95 = por %p93, %p94
      %s96 = ssub.s32 %s29, %s41
      %s97 = ssub.s32 %s30, %s37
      %s98 = sor.u32 %s96, %s97
      %p99 = scmp.eq.s32.totalorder %s98, 0
      %s101 = sadd.s32 %s100, 1
      %s102 = scalar_select %p99, %s100, %s101
      %p105 = pneg %p99
      %p106 = scmp.eq.s32.totalorder %s22, 3
      %p107 = por %p105, %p106
      %p108 = scmp.ne.s32.totalorder %s100, %s103
      %p109 = scmp.eq.s32.totalorder %s22, 0
      %p110 = por %p108, %p109
      %p111 = scmp.ne.s32.totalorder %s100, %s103
      %p112 = scmp.eq.s32.totalorder %s27, 3
      %p113 = por %p111, %p112
      %p114 = scmp.ne.s32.totalorder %s103, %s104
      %p115 = scmp.eq.s32.totalorder %s27, 0
      %p116 = por %p114, %p115
      %p117 = scmp.ne.s32.totalorder %s103, %s104
      %p118 = scmp.eq.s32.totalorder %s28, 3
      %p119 = por %p117, %p118
      %p121 = scmp.ne.s32.totalorder %s104, %s120
      %p122 = scmp.eq.s32.totalorder %s28, 0
      %p123 = por %p121, %p122
      %s124 = ssub.s32 %s29, %s41
      %s125 = ssub.s32 %s30, %s37
      %s126 = sor.u32 %s124, %s125
      %p127 = scmp.eq.s32.totalorder %s126, 0
      %s129 = sadd.s32 %s128, 1
      %s130 = scalar_select %p127, %s128, %s129
      %p133 = pneg %p127
      %p134 = scmp.eq.s32.totalorder %s22, 3
      %p135 = por %p133, %p134
      %p136 = scmp.ne.s32.totalorder %s128, %s131
      %p137 = scmp.eq.s32.totalorder %s22, 0
      %p138 = por %p136, %p137
      %p139 = scmp.ne.s32.totalorder %s128, %s131
      %p140 = scmp.eq.s32.totalorder %s27, 3
      %p141 = por %p139, %p140
      %p142 = scmp.ne.s32.totalorder %s131, %s132
      %p143 = scmp.eq.s32.totalorder %s27, 0
      %p144 = por %p142, %p143
      %p145 = scmp.ne.s32.totalorder %s131, %s132
      %p146 = scmp.eq.s32.totalorder %s28, 3
      %p147 = por %p145, %p146
      %p149 = scmp.ne.s32.totalorder %s132, %s148
      %p150 = scmp.eq.s32.totalorder %s28, 0
      %p151 = por %p149, %p150
      %p152 = scmp.le.s32.totalorder 1, %s22
      %p153 = scmp.lt.s32.totalorder %s22, 5
      %p154 = pnand %p152, %p153
      %p155 = pneg %p154
      // Predicated region
      $region9: #{tpu_custom_call.1} parent=5 // pred_check
        _
      $region10: #{tpu_custom_call.1} parent=5 // pred_check_branch
        %157 = sbr.rel (%p154) target = $region12
      $region11: #{tpu_custom_call.1} parent=5 // pred_region
        %s158 = ssub.s32 %s22, 1
      $region12: #{tpu_custom_call.1} parent=5 // pred_fallthru
        _
      %p159 = scmp.lt.s32.totalorder %s22, 4
      // Predicated region
      $region13: #{tpu_custom_call.1} parent=5 // pred_check
        %p160 = pneg %p159
      $region14: #{tpu_custom_call.1} parent=5 // pred_check_branch
        %162 = sbr.rel (%p160) target = $region16
      $region15: #{tpu_custom_call.1} parent=5 // pred_region
        // Predicated region
        $region17: #{tpu_custom_call.1} parent=15 // pred_check
          %p163 = pneg %p54
        $region18: #{tpu_custom_call.1} parent=15 // pred_check_branch
          %165 = sbr.rel (%p163) target = $region20
        $region19: #{tpu_custom_call.1} parent=15 // pred_region
          %s166 = sand.u32 %s44, 1
          %s167 = scalar_lea.sflag [#allocation3], %s166
          %s168 = sand.u32 %s44, 1
          %s169 = smul.addr %s168, 128
          %s170 = scalar_lea.vmem [#allocation2], %s169
          %s172 = ssub.s32 2048, 2048
          %173 = vsyncadd %s167, %s172
          %s174 = smul.addr %s29, 16
          %s175 = smul.addr %s174, 128
          %s176 = scalar_lea.hbm %s0, %s175
          %s178 = sshll.u32 %s170, 4
          %s179 = int_to_ptr.vmem [resolvable:$true] %s178
          %181 = dma.hbm_to_vmem [thread:$0]  %s176, 2048, %s179, %s167
        $region20: #{tpu_custom_call.1} parent=15 // pred_fallthru
          _
        // Predicated region
        $region21: #{tpu_custom_call.1} parent=15 // pred_check
          %p182 = pneg %p82
        $region22: #{tpu_custom_call.1} parent=15 // pred_check_branch
          %184 = sbr.rel (%p182) target = $region24
        $region23: #{tpu_custom_call.1} parent=15 // pred_region
          %s185 = sand.u32 %s72, 1
          %s186 = scalar_lea.sflag [#allocation6], %s185
          %s187 = sand.u32 %s72, 1
          %s188 = smul.addr %s187, 2048
          %s189 = scalar_lea.vmem [#allocation5], %s188
          %s190 = smul.u32 16, %s30
          %s191 = ssub.s32 24, %s190
          %p192 = scmp.lt.s32.totalorder %s191, 16
          %s193 = scalar_select %p192, %s191, 16
          %s194 = smul.u32 128, %s193
          %s195 = smul.u32 %s194, 16
          %s197 = ssub.s32 32768, %s195
          %198 = vsyncadd %s186, %s197
          %p199 = scmp.ne.s32.totalorder 0, %s195
          %s200 = smul.addr %s190, 16
          %s201 = smul.addr %s29, 384
          %s202 = sadd.s32 %s200, %s201
          %s203 = smul.addr %s202, 128
          %s204 = scalar_lea.hbm %s1, %s203
          %s205 = smul.u32 128, %s193
          %s206 = sshll.u32 %s189, 4
          %s207 = int_to_ptr.vmem [resolvable:$true] %s206
          %s208 = sshll.u32 %s205, 4
          %212 = dma.hbm_to_vmem [thread:$0]  (%p199), %s204, %s208, %s207, %s186, 2048, 2048, 128
        $region24: #{tpu_custom_call.1} parent=15 // pred_fallthru
          _
      $region16: #{tpu_custom_call.1} parent=5 // pred_fallthru
        _
      %p213 = scmp.le.s32.totalorder 1, %s22
      %p214 = scmp.lt.s32.totalorder %s22, 5
      %p215 = pnand %p213, %p214
      %p216 = pneg %p215
      // Predicated region
      $region25: #{tpu_custom_call.1} parent=5 // pred_check
        _
      $region26: #{tpu_custom_call.1} parent=5 // pred_check_branch
        %218 = sbr.rel (%p215) target = $region28
      $region27: #{tpu_custom_call.1} parent=5 // pred_region
        %s219 = ssub.s32 %s22, 1
        %s220 = sand.u32 %s47, 1
        %s221 = scalar_lea.sflag [#allocation3], %s220
        %s222 = sand.u32 %s47, 1
        %s223 = smul.addr %s222, 128
        %s224 = scalar_lea.vmem [#allocation2], %s223
        // Predicated region
        $region29: #{tpu_custom_call.1} parent=27 // pred_check
          %p225 = pneg %p60
        $region30: #{tpu_custom_call.1} parent=27 // pred_check_branch
          %227 = sbr.rel (%p225) target = $region32
        $region31: #{tpu_custom_call.1} parent=27 // pred_region
          %228 = dma.done %s221, 2048
        $region32: #{tpu_custom_call.1} parent=27 // pred_fallthru
          _
        %s229 = sand.u32 %s75, 1
        %s230 = scalar_lea.sflag [#allocation6], %s229
        %s231 = sand.u32 %s75, 1
        %s232 = smul.addr %s231, 2048
        %s233 = scalar_lea.vmem [#allocation5], %s232
        // Predicated region
        $region33: #{tpu_custom_call.1} parent=27 // pred_check
          %p234 = pneg %p88
        $region34: #{tpu_custom_call.1} parent=27 // pred_check_branch
          %236 = sbr.rel (%p234) target = $region36
        $region35: #{tpu_custom_call.1} parent=27 // pred_region
          %237 = dma.done %s230, 32768
        $region36: #{tpu_custom_call.1} parent=27 // pred_fallthru
          _
        %s238 = sand.u32 %s47, 1
        %s239 = scalar_lea.sflag [#allocation3], %s238
        %s240 = sand.u32 %s47, 1
        %s241 = smul.addr %s240, 128
        %s242 = scalar_lea.vmem [#allocation2], %s241
        %p243 = pneg %p60
        %p244 = pneg %p57
        %s245 = sand.u32 %s75, 1
        %s246 = scalar_lea.sflag [#allocation6], %s245
        %s247 = sand.u32 %s75, 1
        %s248 = smul.addr %s247, 2048
        %s249 = scalar_lea.vmem [#allocation5], %s248
        %p250 = pneg %p88
        %p251 = pneg %p85
        %p252 = pneg %p116
        %p253 = pneg %p113
        %s254 = sand.u32 %s103, 1
        %s255 = scalar_lea.sflag [#allocation4], %s254
        %s256 = sand.u32 %s103, 1
        %s257 = smul.addr %s256, 8
        %s258 = scalar_lea.vmem [#allocation7], %s257
        %p259 = pneg %p144
        %p260 = pneg %p141
        %s261 = sand.u32 %s131, 1
        %s262 = scalar_lea.sflag [#allocation9], %s261
        %s263 = sand.u32 %s131, 1
        %s264 = smul.addr %s263, 2048
        %s265 = scalar_lea.vmem [#allocation8], %s264
        %s266 = smul.u32 16, %s32
        %s267 = ssub.s32 24, %s266
        %p268 = scmp.lt.s32.totalorder %s267, 16
        %s269 = scalar_select %p268, %s267, 16
        %s270 = smul.u32 128, %s269
        %s271 = smul.u32 %s270, 16
        %s272 = smul.u32 16, %s32
        %s273 = ssub.s32 24, %s272
        %p274 = scmp.lt.s32.totalorder %s273, 16
        %s275 = scalar_select %p274, %s273, 16
        %s276 = smul.u32 128, %s275
        %s277 = smul.u32 %s276, 16
        %v278 = vld [vmem:[%s224] sm:$0xff]
        %v279 = vld [vmem:[%s224 + $0x8] sm:$0xff]
        %v280 = vld [vmem:[%s224 + $0x10] sm:$0xff]
        %v281 = vld [vmem:[%s224 + $0x18] sm:$0xff]
        %v282 = vld [vmem:[%s224 + $0x20] sm:$0xff]
        %v283 = vld [vmem:[%s224 + $0x28] sm:$0xff]
        %v284 = vld [vmem:[%s224 + $0x30] sm:$0xff]
        %v285 = vld [vmem:[%s224 + $0x38] sm:$0xff]
        %v286 = vld [vmem:[%s224 + $0x40] sm:$0xff]
        %v287 = vld [vmem:[%s224 + $0x48] sm:$0xff]
        %v288 = vld [vmem:[%s224 + $0x50] sm:$0xff]
        %v289 = vld [vmem:[%s224 + $0x58] sm:$0xff]
        %v290 = vld [vmem:[%s224 + $0x60] sm:$0xff]
        %v291 = vld [vmem:[%s224 + $0x68] sm:$0xff]
        %v292 = vld [vmem:[%s224 + $0x70] sm:$0xff]
        %v293 = vld [vmem:[%s224 + $0x78] sm:$0xff]
        %v294 = vld [vmem:[%s233] sm:$0xff]
        %v295 = vld [vmem:[%s233 + $0x8] sm:$0xff]
        %v296 = vld [vmem:[%s233 + $0x10] sm:$0xff]
        %v297 = vld [vmem:[%s233 + $0x18] sm:$0xff]
        %v298 = vld [vmem:[%s233 + $0x20] sm:$0xff]
        %v299 = vld [vmem:[%s233 + $0x28] sm:$0xff]
        %v300 = vld [vmem:[%s233 + $0x30] sm:$0xff]
        %v301 = vld [vmem:[%s233 + $0x38] sm:$0xff]
        %v302 = vld [vmem:[%s233 + $0x40] sm:$0xff]
        %v303 = vld [vmem:[%s233 + $0x48] sm:$0xff]
        %v304 = vld [vmem:[%s233 + $0x50] sm:$0xff]
        %v305 = vld [vmem:[%s233 + $0x58] sm:$0xff]
        %v306 = vld [vmem:[%s233 + $0x60] sm:$0xff]
        %v307 = vld [vmem:[%s233 + $0x68] sm:$0xff]
        %v308 = vld [vmem:[%s233 + $0x70] sm:$0xff]
        %v309 = vld [vmem:[%s233 + $0x78] sm:$0xff]
        %v310 = vld [vmem:[%s233 + $0x80] sm:$0xff]
        %v311 = vld [vmem:[%s233 + $0x88] sm:$0xff]
        %v312 = vld [vmem:[%s233 + $0x90] sm:$0xff]
        %v313 = vld [vmem:[%s233 + $0x98] sm:$0xff]
        %v314 = vld [vmem:[%s233 + $0xa0] sm:$0xff]
        %v315 = vld [vmem:[%s233 + $0xa8] sm:$0xff]
        %v316 = vld [vmem:[%s233 + $0xb0] sm:$0xff]
        %v317 = vld [vmem:[%s233 + $0xb8] sm:$0xff]
        %v318 = vld [vmem:[%s233 + $0xc0] sm:$0xff]
        %v319 = vld [vmem:[%s233 + $0xc8] sm:$0xff]
        %v320 = vld [vmem:[%s233 + $0xd0] sm:$0xff]
        %v321 = vld [vmem:[%s233 + $0xd8] sm:$0xff]
        %v322 = vld [vmem:[%s233 + $0xe0] sm:$0xff]
        %v323 = vld [vmem:[%s233 + $0xe8] sm:$0xff]
        %v324 = vld [vmem:[%s233 + $0xf0] sm:$0xff]
        %v325 = vld [vmem:[%s233 + $0xf8] sm:$0xff]
        %v326 = vld [vmem:[%s233 + $0x100] sm:$0xff]
        %v327 = vld [vmem:[%s233 + $0x108] sm:$0xff]
        %v328 = vld [vmem:[%s233 + $0x110] sm:$0xff]
        %v329 = vld [vmem:[%s233 + $0x118] sm:$0xff]
        %v330 = vld [vmem:[%s233 + $0x120] sm:$0xff]
        %v331 = vld [vmem:[%s233 + $0x128] sm:$0xff]
        %v332 = vld [vmem:[%s233 + $0x130] sm:$0xff]
        %v333 = vld [vmem:[%s233 + $0x138] sm:$0xff]
        %v334 = vld [vmem:[%s233 + $0x140] sm:$0xff]
        %v335 = vld [vmem:[%s233 + $0x148] sm:$0xff]
        %v336 = vld [vmem:[%s233 + $0x150] sm:$0xff]
        %v337 = vld [vmem:[%s233 + $0x158] sm:$0xff]
        %v338 = vld [vmem:[%s233 + $0x160] sm:$0xff]
        %v339 = vld [vmem:[%s233 + $0x168] sm:$0xff]
        %v340 = vld [vmem:[%s233 + $0x170] sm:$0xff]
        %v341 = vld [vmem:[%s233 + $0x178] sm:$0xff]
        %v342 = vld [vmem:[%s233 + $0x180] sm:$0xff]
        %v343 = vld [vmem:[%s233 + $0x188] sm:$0xff]
        %v344 = vld [vmem:[%s233 + $0x190] sm:$0xff]
        %v345 = vld [vmem:[%s233 + $0x198] sm:$0xff]
        %v346 = vld [vmem:[%s233 + $0x1a0] sm:$0xff]
        %v347 = vld [vmem:[%s233 + $0x1a8] sm:$0xff]
        %v348 = vld [vmem:[%s233 + $0x1b0] sm:$0xff]
        %v349 = vld [vmem:[%s233 + $0x1b8] sm:$0xff]
        %v350 = vld [vmem:[%s233 + $0x1c0] sm:$0xff]
        %v351 = vld [vmem:[%s233 + $0x1c8] sm:$0xff]
        %v352 = vld [vmem:[%s233 + $0x1d0] sm:$0xff]
        %v353 = vld [vmem:[%s233 + $0x1d8] sm:$0xff]
        %v354 = vld [vmem:[%s233 + $0x1e0] sm:$0xff]
        %v355 = vld [vmem:[%s233 + $0x1e8] sm:$0xff]
        %v356 = vld [vmem:[%s233 + $0x1f0] sm:$0xff]
        %v357 = vld [vmem:[%s233 + $0x1f8] sm:$0xff]
        %v358 = vld [vmem:[%s233 + $0x200] sm:$0xff]
        %v359 = vld [vmem:[%s233 + $0x208] sm:$0xff]
        %v360 = vld [vmem:[%s233 + $0x210] sm:$0xff]
        %v361 = vld [vmem:[%s233 + $0x218] sm:$0xff]
        %v362 = vld [vmem:[%s233 + $0x220] sm:$0xff]
        %v363 = vld [vmem:[%s233 + $0x228] sm:$0xff]
        %v364 = vld [vmem:[%s233 + $0x230] sm:$0xff]
        %v365 = vld [vmem:[%s233 + $0x238] sm:$0xff]
        %v366 = vld [vmem:[%s233 + $0x240] sm:$0xff]
        %v367 = vld [vmem:[%s233 + $0x248] sm:$0xff]
        %v368 = vld [vmem:[%s233 + $0x250] sm:$0xff]
        %v369 = vld [vmem:[%s233 + $0x258] sm:$0xff]
        %v370 = vld [vmem:[%s233 + $0x260] sm:$0xff]
        %v371 = vld [vmem:[%s233 + $0x268] sm:$0xff]
        %v372 = vld [vmem:[%s233 + $0x270] sm:$0xff]
        %v373 = vld [vmem:[%s233 + $0x278] sm:$0xff]
        %v374 = vld [vmem:[%s233 + $0x280] sm:$0xff]
        %v375 = vld [vmem:[%s233 + $0x288] sm:$0xff]
        %v376 = vld [vmem:[%s233 + $0x290] sm:$0xff]
        %v377 = vld [vmem:[%s233 + $0x298] sm:$0xff]
        %v378 = vld [vmem:[%s233 + $0x2a0] sm:$0xff]
        %v379 = vld [vmem:[%s233 + $0x2a8] sm:$0xff]
        %v380 = vld [vmem:[%s233 + $0x2b0] sm:$0xff]
        %v381 = vld [vmem:[%s233 + $0x2b8] sm:$0xff]
        %v382 = vld [vmem:[%s233 + $0x2c0] sm:$0xff]
        %v383 = vld [vmem:[%s233 + $0x2c8] sm:$0xff]
        %v384 = vld [vmem:[%s233 + $0x2d0] sm:$0xff]
        %v385 = vld [vmem:[%s233 + $0x2d8] sm:$0xff]
        %v386 = vld [vmem:[%s233 + $0x2e0] sm:$0xff]
        %v387 = vld [vmem:[%s233 + $0x2e8] sm:$0xff]
        %v388 = vld [vmem:[%s233 + $0x2f0] sm:$0xff]
        %v389 = vld [vmem:[%s233 + $0x2f8] sm:$0xff]
        %v390 = vld [vmem:[%s233 + $0x300] sm:$0xff]
        %v391 = vld [vmem:[%s233 + $0x308] sm:$0xff]
        %v392 = vld [vmem:[%s233 + $0x310] sm:$0xff]
        %v393 = vld [vmem:[%s233 + $0x318] sm:$0xff]
        %v394 = vld [vmem:[%s233 + $0x320] sm:$0xff]
        %v395 = vld [vmem:[%s233 + $0x328] sm:$0xff]
        %v396 = vld [vmem:[%s233 + $0x330] sm:$0xff]
        %v397 = vld [vmem:[%s233 + $0x338] sm:$0xff]
        %v398 = vld [vmem:[%s233 + $0x340] sm:$0xff]
        %v399 = vld [vmem:[%s233 + $0x348] sm:$0xff]
        %v400 = vld [vmem:[%s233 + $0x350] sm:$0xff]
        %v401 = vld [vmem:[%s233 + $0x358] sm:$0xff]
        %v402 = vld [vmem:[%s233 + $0x360] sm:$0xff]
        %v403 = vld [vmem:[%s233 + $0x368] sm:$0xff]
        %v404 = vld [vmem:[%s233 + $0x370] sm:$0xff]
        %v405 = vld [vmem:[%s233 + $0x378] sm:$0xff]
        %v406 = vld [vmem:[%s233 + $0x380] sm:$0xff]
        %v407 = vld [vmem:[%s233 + $0x388] sm:$0xff]
        %v408 = vld [vmem:[%s233 + $0x390] sm:$0xff]
        %v409 = vld [vmem:[%s233 + $0x398] sm:$0xff]
        %v410 = vld [vmem:[%s233 + $0x3a0] sm:$0xff]
        %v411 = vld [vmem:[%s233 + $0x3a8] sm:$0xff]
        %v412 = vld [vmem:[%s233 + $0x3b0] sm:$0xff]
        %v413 = vld [vmem:[%s233 + $0x3b8] sm:$0xff]
        %v414 = vld [vmem:[%s233 + $0x3c0] sm:$0xff]
        %v415 = vld [vmem:[%s233 + $0x3c8] sm:$0xff]
        %v416 = vld [vmem:[%s233 + $0x3d0] sm:$0xff]
        %v417 = vld [vmem:[%s233 + $0x3d8] sm:$0xff]
        %v418 = vld [vmem:[%s233 + $0x3e0] sm:$0xff]
        %v419 = vld [vmem:[%s233 + $0x3e8] sm:$0xff]
        %v420 = vld [vmem:[%s233 + $0x3f0] sm:$0xff]
        %v421 = vld [vmem:[%s233 + $0x3f8] sm:$0xff]
        %v422 = vld [vmem:[%s233 + $0x400] sm:$0xff]
        %v423 = vld [vmem:[%s233 + $0x408] sm:$0xff]
        %v424 = vld [vmem:[%s233 + $0x410] sm:$0xff]
        %v425 = vld [vmem:[%s233 + $0x418] sm:$0xff]
        %v426 = vld [vmem:[%s233 + $0x420] sm:$0xff]
        %v427 = vld [vmem:[%s233 + $0x428] sm:$0xff]
        %v428 = vld [vmem:[%s233 + $0x430] sm:$0xff]
        %v429 = vld [vmem:[%s233 + $0x438] sm:$0xff]
        %v430 = vld [vmem:[%s233 + $0x440] sm:$0xff]
        %v431 = vld [vmem:[%s233 + $0x448] sm:$0xff]
        %v432 = vld [vmem:[%s233 + $0x450] sm:$0xff]
        %v433 = vld [vmem:[%s233 + $0x458] sm:$0xff]
        %v434 = vld [vmem:[%s233 + $0x460] sm:$0xff]
        %v435 = vld [vmem:[%s233 + $0x468] sm:$0xff]
        %v436 = vld [vmem:[%s233 + $0x470] sm:$0xff]
        %v437 = vld [vmem:[%s233 + $0x478] sm:$0xff]
        %v438 = vld [vmem:[%s233 + $0x480] sm:$0xff]
        %v439 = vld [vmem:[%s233 + $0x488] sm:$0xff]
        %v440 = vld [vmem:[%s233 + $0x490] sm:$0xff]
        %v441 = vld [vmem:[%s233 + $0x498] sm:$0xff]
        %v442 = vld [vmem:[%s233 + $0x4a0] sm:$0xff]
        %v443 = vld [vmem:[%s233 + $0x4a8] sm:$0xff]
        %v444 = vld [vmem:[%s233 + $0x4b0] sm:$0xff]
        %v445 = vld [vmem:[%s233 + $0x4b8] sm:$0xff]
        %v446 = vld [vmem:[%s233 + $0x4c0] sm:$0xff]
        %v447 = vld [vmem:[%s233 + $0x4c8] sm:$0xff]
        %v448 = vld [vmem:[%s233 + $0x4d0] sm:$0xff]
        %v449 = vld [vmem:[%s233 + $0x4d8] sm:$0xff]
        %v450 = vld [vmem:[%s233 + $0x4e0] sm:$0xff]
        %v451 = vld [vmem:[%s233 + $0x4e8] sm:$0xff]
        %v452 = vld [vmem:[%s233 + $0x4f0] sm:$0xff]
        %v453 = vld [vmem:[%s233 + $0x4f8] sm:$0xff]
        %v454 = vld [vmem:[%s233 + $0x500] sm:$0xff]
        %v455 = vld [vmem:[%s233 + $0x508] sm:$0xff]
        %v456 = vld [vmem:[%s233 + $0x510] sm:$0xff]
        %v457 = vld [vmem:[%s233 + $0x518] sm:$0xff]
        %v458 = vld [vmem:[%s233 + $0x520] sm:$0xff]
        %v459 = vld [vmem:[%s233 + $0x528] sm:$0xff]
        %v460 = vld [vmem:[%s233 + $0x530] sm:$0xff]
        %v461 = vld [vmem:[%s233 + $0x538] sm:$0xff]
        %v462 = vld [vmem:[%s233 + $0x540] sm:$0xff]
        %v463 = vld [vmem:[%s233 + $0x548] sm:$0xff]
        %v464 = vld [vmem:[%s233 + $0x550] sm:$0xff]
        %v465 = vld [vmem:[%s233 + $0x558] sm:$0xff]
        %v466 = vld [vmem:[%s233 + $0x560] sm:$0xff]
        %v467 = vld [vmem:[%s233 + $0x568] sm:$0xff]
        %v468 = vld [vmem:[%s233 + $0x570] sm:$0xff]
        %v469 = vld [vmem:[%s233 + $0x578] sm:$0xff]
        %v470 = vld [vmem:[%s233 + $0x580] sm:$0xff]
        %v471 = vld [vmem:[%s233 + $0x588] sm:$0xff]
        %v472 = vld [vmem:[%s233 + $0x590] sm:$0xff]
        %v473 = vld [vmem:[%s233 + $0x598] sm:$0xff]
        %v474 = vld [vmem:[%s233 + $0x5a0] sm:$0xff]
        %v475 = vld [vmem:[%s233 + $0x5a8] sm:$0xff]
        %v476 = vld [vmem:[%s233 + $0x5b0] sm:$0xff]
        %v477 = vld [vmem:[%s233 + $0x5b8] sm:$0xff]
        %v478 = vld [vmem:[%s233 + $0x5c0] sm:$0xff]
        %v479 = vld [vmem:[%s233 + $0x5c8] sm:$0xff]
        %v480 = vld [vmem:[%s233 + $0x5d0] sm:$0xff]
        %v481 = vld [vmem:[%s233 + $0x5d8] sm:$0xff]
        %v482 = vld [vmem:[%s233 + $0x5e0] sm:$0xff]
        %v483 = vld [vmem:[%s233 + $0x5e8] sm:$0xff]
        %v484 = vld [vmem:[%s233 + $0x5f0] sm:$0xff]
        %v485 = vld [vmem:[%s233 + $0x5f8] sm:$0xff]
        %v486 = vld [vmem:[%s233 + $0x600] sm:$0xff]
        %v487 = vld [vmem:[%s233 + $0x608] sm:$0xff]
        %v488 = vld [vmem:[%s233 + $0x610] sm:$0xff]
        %v489 = vld [vmem:[%s233 + $0x618] sm:$0xff]
        %v490 = vld [vmem:[%s233 + $0x620] sm:$0xff]
        %v491 = vld [vmem:[%s233 + $0x628] sm:$0xff]
        %v492 = vld [vmem:[%s233 + $0x630] sm:$0xff]
        %v493 = vld [vmem:[%s233 + $0x638] sm:$0xff]
        %v494 = vld [vmem:[%s233 + $0x640] sm:$0xff]
        %v495 = vld [vmem:[%s233 + $0x648] sm:$0xff]
        %v496 = vld [vmem:[%s233 + $0x650] sm:$0xff]
        %v497 = vld [vmem:[%s233 + $0x658] sm:$0xff]
        %v498 = vld [vmem:[%s233 + $0x660] sm:$0xff]
        %v499 = vld [vmem:[%s233 + $0x668] sm:$0xff]
        %v500 = vld [vmem:[%s233 + $0x670] sm:$0xff]
        %v501 = vld [vmem:[%s233 + $0x678] sm:$0xff]
        %v502 = vld [vmem:[%s233 + $0x680] sm:$0xff]
        %v503 = vld [vmem:[%s233 + $0x688] sm:$0xff]
        %v504 = vld [vmem:[%s233 + $0x690] sm:$0xff]
        %v505 = vld [vmem:[%s233 + $0x698] sm:$0xff]
        %v506 = vld [vmem:[%s233 + $0x6a0] sm:$0xff]
        %v507 = vld [vmem:[%s233 + $0x6a8] sm:$0xff]
        %v508 = vld [vmem:[%s233 + $0x6b0] sm:$0xff]
        %v509 = vld [vmem:[%s233 + $0x6b8] sm:$0xff]
        %v510 = vld [vmem:[%s233 + $0x6c0] sm:$0xff]
        %v511 = vld [vmem:[%s233 + $0x6c8] sm:$0xff]
        %v512 = vld [vmem:[%s233 + $0x6d0] sm:$0xff]
        %v513 = vld [vmem:[%s233 + $0x6d8] sm:$0xff]
        %v514 = vld [vmem:[%s233 + $0x6e0] sm:$0xff]
        %v515 = vld [vmem:[%s233 + $0x6e8] sm:$0xff]
        %v516 = vld [vmem:[%s233 + $0x6f0] sm:$0xff]
        %v517 = vld [vmem:[%s233 + $0x6f8] sm:$0xff]
        %v518 = vld [vmem:[%s233 + $0x700] sm:$0xff]
        %v519 = vld [vmem:[%s233 + $0x708] sm:$0xff]
        %v520 = vld [vmem:[%s233 + $0x710] sm:$0xff]
        %v521 = vld [vmem:[%s233 + $0x718] sm:$0xff]
        %v522 = vld [vmem:[%s233 + $0x720] sm:$0xff]
        %v523 = vld [vmem:[%s233 + $0x728] sm:$0xff]
        %v524 = vld [vmem:[%s233 + $0x730] sm:$0xff]
        %v525 = vld [vmem:[%s233 + $0x738] sm:$0xff]
        %v526 = vld [vmem:[%s233 + $0x740] sm:$0xff]
        %v527 = vld [vmem:[%s233 + $0x748] sm:$0xff]
        %v528 = vld [vmem:[%s233 + $0x750] sm:$0xff]
        %v529 = vld [vmem:[%s233 + $0x758] sm:$0xff]
        %v530 = vld [vmem:[%s233 + $0x760] sm:$0xff]
        %v531 = vld [vmem:[%s233 + $0x768] sm:$0xff]
        %v532 = vld [vmem:[%s233 + $0x770] sm:$0xff]
        %v533 = vld [vmem:[%s233 + $0x778] sm:$0xff]
        %v534 = vld [vmem:[%s233 + $0x780] sm:$0xff]
        %v535 = vld [vmem:[%s233 + $0x788] sm:$0xff]
        %v536 = vld [vmem:[%s233 + $0x790] sm:$0xff]
        %v537 = vld [vmem:[%s233 + $0x798] sm:$0xff]
        %v538 = vld [vmem:[%s233 + $0x7a0] sm:$0xff]
        %v539 = vld [vmem:[%s233 + $0x7a8] sm:$0xff]
        %v540 = vld [vmem:[%s233 + $0x7b0] sm:$0xff]
        %v541 = vld [vmem:[%s233 + $0x7b8] sm:$0xff]
        %v542 = vld [vmem:[%s233 + $0x7c0] sm:$0xff]
        %v543 = vld [vmem:[%s233 + $0x7c8] sm:$0xff]
        %v544 = vld [vmem:[%s233 + $0x7d0] sm:$0xff]
        %v545 = vld [vmem:[%s233 + $0x7d8] sm:$0xff]
        %v546 = vld [vmem:[%s233 + $0x7e0] sm:$0xff]
        %v547 = vld [vmem:[%s233 + $0x7e8] sm:$0xff]
        %v548 = vld [vmem:[%s233 + $0x7f0] sm:$0xff]
        %v549 = vld [vmem:[%s233 + $0x7f8] sm:$0xff]
        %v550 = vand.u32 %v535, 4294901760
        %551 = vmatprep.subr.mxu0 %v550
        %v552 = vand.u32 %v534, 4294901760
        %553 = vmatpush1.xpose.msra.mxu0 %v552
        %v554 = vand.u32 %v519, 4294901760
        %555 = vmatprep.subr.mxu0 %v554
        %v556 = vand.u32 %v518, 4294901760
        %557 = vmatpush1.xpose.msra.mxu0 %v556
        %v558 = vand.u32 %v503, 4294901760
        %559 = vmatprep.subr.mxu0 %v558
        %v560 = vand.u32 %v502, 4294901760
        %561 = vmatpush1.xpose.msra.mxu0 %v560
        %v562 = vand.u32 %v487, 4294901760
        %563 = vmatprep.subr.mxu0 %v562
        %v564 = vand.u32 %v486, 4294901760
        %565 = vmatpush1.xpose.msra.mxu0 %v564
        %v566 = vand.u32 %v471, 4294901760
        %567 = vmatprep.subr.mxu0 %v566
        %v568 = vand.u32 %v470, 4294901760
        %569 = vmatpush1.xpose.msra.mxu0 %v568
        %v570 = vand.u32 %v455, 4294901760
        %571 = vmatprep.subr.mxu0 %v570
        %v572 = vand.u32 %v454, 4294901760
        %573 = vmatpush1.xpose.msra.mxu0 %v572
        %v574 = vand.u32 %v439, 4294901760
        %575 = vmatprep.subr.mxu0 %v574
        %v576 = vand.u32 %v438, 4294901760
        %577 = vmatpush1.xpose.msra.mxu0 %v576
        %v578 = vand.u32 %v423, 4294901760
        %579 = vmatprep.subr.mxu0 %v578
        %v580 = vand.u32 %v422, 4294901760
        %581 = vmatpush1.xpose.msra.mxu0 %v580
        %v582 = vand.u32 %v407, 4294901760
        %583 = vmatprep.subr.mxu0 %v582
        %v584 = vand.u32 %v406, 4294901760
        %585 = vmatpush1.xpose.msra.mxu0 %v584
        %v586 = vand.u32 %v391, 4294901760
        %587 = vmatprep.subr.mxu0 %v586
        %v588 = vand.u32 %v390, 4294901760
        %589 = vmatpush1.xpose.msra.mxu0 %v588
        %v590 = vand.u32 %v375, 4294901760
        %591 = vmatprep.subr.mxu0 %v590
        %v592 = vand.u32 %v374, 4294901760
        %593 = vmatpush1.xpose.msra.mxu0 %v592
        %v594 = vand.u32 %v359, 4294901760
        %595 = vmatprep.subr.mxu0 %v594
        %v596 = vand.u32 %v358, 4294901760
        %597 = vmatpush1.xpose.msra.mxu0 %v596
        %v598 = vand.u32 %v343, 4294901760
        %599 = vmatprep.subr.mxu0 %v598
        %v600 = vand.u32 %v342, 4294901760
        %601 = vmatpush1.xpose.msra.mxu0 %v600
        %v602 = vand.u32 %v327, 4294901760
        %603 = vmatprep.subr.mxu0 %v602
        %v604 = vand.u32 %v326, 4294901760
        %605 = vmatpush1.xpose.msra.mxu0 %v604
        %v606 = vand.u32 %v311, 4294901760
        %607 = vmatprep.subr.mxu0 %v606
        %v608 = vand.u32 %v310, 4294901760
        %609 = vmatpush1.xpose.msra.mxu0 %v608
        %v610 = vand.u32 %v295, 4294901760
        %611 = vmatprep.subr.mxu0 %v610
        %v612 = vand.u32 %v294, 4294901760
        %613 = vmatpush1.xpose.msra.mxu0 %v612
        %614 = vmatprep.subr.mxu0 0.0
        %615 = vmatpush2.xpose.msra.mxu0 0.0
        %616 = vmatprep.subr.mxu0 0.0
        %617 = vmatpush2.xpose.msra.mxu0 0.0
        %618 = vmatprep.subr.mxu0 0.0
        %619 = vmatpush2.xpose.msra.mxu0 0.0
        %620 = vmatprep.subr.mxu0 0.0
        %621 = vmatpush2.xpose.msra.mxu0 0.0
        %622 = vmatprep.subr.mxu0 0.0
        %623 = vmatpush2.xpose.msra.mxu0 0.0
        %624 = vmatprep.subr.mxu0 0.0
        %625 = vmatpush2.xpose.msra.mxu0 0.0
        %626 = vmatprep.subr.mxu0 0.0
        %627 = vmatpush2.xpose.msra.mxu0 0.0
        %628 = vmatprep.subr.mxu0 0.0
        %629 = vmatpush2.xpose.msra.mxu0 0.0
        %630 = vmatprep.subr.mxu0 0.0
        %631 = vmatpush2.xpose.msra.mxu0 0.0
        %632 = vmatprep.subr.mxu0 0.0
        %633 = vmatpush2.xpose.msra.mxu0 0.0
        %634 = vmatprep.subr.mxu0 0.0
        %635 = vmatpush2.xpose.msra.mxu0 0.0
        %636 = vmatprep.subr.mxu0 0.0
        %637 = vmatpush2.xpose.msra.mxu0 0.0
        %638 = vmatprep.subr.mxu0 0.0
        %639 = vmatpush2.xpose.msra.mxu0 0.0
        %640 = vmatprep.subr.mxu0 0.0
        %641 = vmatpush2.xpose.msra.mxu0 0.0
        %642 = vmatprep.subr.mxu0 0.0
        %643 = vmatpush2.xpose.msra.mxu0 0.0
        %644 = vmatprep.subr.mxu0 0.0
        %645 = vmatpush2.xpose.msra.mxu0 0.0
        %v646 = vand.u32 %v279, 4294901760
        %v647 = vsub.f32 %v279, %v646
        %v648 = vand.u32 %v647, 4294901760
        %v649 = vsub.f32 %v647, %v648
        %v650 = vand.u32 %v649, 4294901760
        %651 = vmatprep.mubr.f32.mxu0 %v650
        %v652 = vand.u32 %v278, 4294901760
        %v653 = vsub.f32 %v278, %v652
        %v654 = vand.u32 %v653, 4294901760
        %v655 = vsub.f32 %v653, %v654
        %v656 = vand.u32 %v655, 4294901760
        %657 = vmatmul.mubr.f32.gmra.mxu0 %v656
        %v658 = vpop.f32.mrf.mxu0
        %v659 = vadd.f32 0.0, %v658
        %v660 = vpop.f32.mrf.mxu0
        %661 = vdwg.mxu0
        %v662 = vand.u32 %v535, 4294901760
        %v663 = vsub.f32 %v535, %v662
        %v664 = vand.u32 %v663, 4294901760
        %v665 = vsub.f32 %v663, %v664
        %v666 = vand.u32 %v665, 4294901760
        %667 = vmatprep.subr.mxu0 %v666
        %v668 = vand.u32 %v534, 4294901760
        %v669 = vsub.f32 %v534, %v668
        %v670 = vand.u32 %v669, 4294901760
        %v671 = vsub.f32 %v669, %v670
        %v672 = vand.u32 %v671, 4294901760
        %673 = vmatpush1.xpose.msra.mxu0 %v672
        %v674 = vand.u32 %v519, 4294901760
        %v675 = vsub.f32 %v519, %v674
        %v676 = vand.u32 %v675, 4294901760
        %v677 = vsub.f32 %v675, %v676
        %v678 = vand.u32 %v677, 4294901760
        %679 = vmatprep.subr.mxu0 %v678
        %v680 = vand.u32 %v518, 4294901760
        %v681 = vsub.f32 %v518, %v680
        %v682 = vand.u32 %v681, 4294901760
        %v683 = vsub.f32 %v681, %v682
        %v684 = vand.u32 %v683, 4294901760
        %685 = vmatpush1.xpose.msra.mxu0 %v684
        %v686 = vand.u32 %v503, 4294901760
        %v687 = vsub.f32 %v503, %v686
        %v688 = vand.u32 %v687, 4294901760
        %v689 = vsub.f32 %v687, %v688
        %v690 = vand.u32 %v689, 4294901760
        %691 = vmatprep.subr.mxu0 %v690
        %v692 = vand.u32 %v502, 4294901760
        %v693 = vsub.f32 %v502, %v692
        %v694 = vand.u32 %v693, 4294901760
        %v695 = vsub.f32 %v693, %v694
        %v696 = vand.u32 %v695, 4294901760
        %697 = vmatpush1.xpose.msra.mxu0 %v696
        %v698 = vand.u32 %v487, 4294901760
        %v699 = vsub.f32 %v487, %v698
        %v700 = vand.u32 %v699, 4294901760
        %v701 = vsub.f32 %v699, %v700
        %v702 = vand.u32 %v701, 4294901760
        %703 = vmatprep.subr.mxu0 %v702
        %v704 = vand.u32 %v486, 4294901760
        %v705 = vsub.f32 %v486, %v704
        %v706 = vand.u32 %v705, 4294901760
        %v707 = vsub.f32 %v705, %v706
        %v708 = vand.u32 %v707, 4294901760
        %709 = vmatpush1.xpose.msra.mxu0 %v708
        %v710 = vand.u32 %v471, 4294901760
        %v711 = vsub.f32 %v471, %v710
        %v712 = vand.u32 %v711, 4294901760
        %v713 = vsub.f32 %v711, %v712
        %v714 = vand.u32 %v713, 4294901760
        %715 = vmatprep.subr.mxu0 %v714
        %v716 = vand.u32 %v470, 4294901760
        %v717 = vsub.f32 %v470, %v716
        %v718 = vand.u32 %v717, 4294901760
        %v719 = vsub.f32 %v717, %v718
        %v720 = vand.u32 %v719, 4294901760
        %721 = vmatpush1.xpose.msra.mxu0 %v720
        %v722 = vand.u32 %v455, 4294901760
        %v723 = vsub.f32 %v455, %v722
        %v724 = vand.u32 %v723, 4294901760
        %v725 = vsub.f32 %v723, %v724
        %v726 = vand.u32 %v725, 4294901760
        %727 = vmatprep.subr.mxu0 %v726
        %v728 = vand.u32 %v454, 4294901760
        %v729 = vsub.f32 %v454, %v728
        %v730 = vand.u32 %v729, 4294901760
        %v731 = vsub.f32 %v729, %v730
        %v732 = vand.u32 %v731, 4294901760
        %733 = vmatpush1.xpose.msra.mxu0 %v732
        %v734 = vand.u32 %v439, 4294901760
        %v735 = vsub.f32 %v439, %v734
        %v736 = vand.u32 %v735, 4294901760
        %v737 = vsub.f32 %v735, %v736
        %v738 = vand.u32 %v737, 4294901760
        %739 = vmatprep.subr.mxu0 %v738
        %v740 = vand.u32 %v438, 4294901760
        %v741 = vsub.f32 %v438, %v740
        %v742 = vand.u32 %v741, 4294901760
        %v743 = vsub.f32 %v741, %v742
        %v744 = vand.u32 %v743, 4294901760
        %745 = vmatpush1.xpose.msra.mxu0 %v744
        %v746 = vand.u32 %v423, 4294901760
        %v747 = vsub.f32 %v423, %v746
        %v748 = vand.u32 %v747, 4294901760
        %v749 = vsub.f32 %v747, %v748
        %v750 = vand.u32 %v749, 4294901760
        %751 = vmatprep.subr.mxu0 %v750
        %v752 = vand.u32 %v422, 4294901760
        %v753 = vsub.f32 %v422, %v752
        %v754 = vand.u32 %v753, 4294901760
        %v755 = vsub.f32 %v753, %v754
        %v756 = vand.u32 %v755, 4294901760
        %757 = vmatpush1.xpose.msra.mxu0 %v756
        %v758 = vand.u32 %v407, 4294901760
        %v759 = vsub.f32 %v407, %v758
        %v760 = vand.u32 %v759, 4294901760
        %v761 = vsub.f32 %v759, %v760
        %v762 = vand.u32 %v761, 4294901760
        %763 = vmatprep.subr.mxu0 %v762
        %v764 = vand.u32 %v406, 4294901760
        %v765 = vsub.f32 %v406, %v764
        %v766 = vand.u32 %v765, 4294901760
        %v767 = vsub.f32 %v765, %v766
        %v768 = vand.u32 %v767, 4294901760
        %769 = vmatpush1.xpose.msra.mxu0 %v768
        %v770 = vand.u32 %v391, 4294901760
        %v771 = vsub.f32 %v391, %v770
        %v772 = vand.u32 %v771, 4294901760
        %v773 = vsub.f32 %v771, %v772
        %v774 = vand.u32 %v773, 4294901760
        %775 = vmatprep.subr.mxu0 %v774
        %v776 = vand.u32 %v390, 4294901760
        %v777 = vsub.f32 %v390, %v776
        %v778 = vand.u32 %v777, 4294901760
        %v779 = vsub.f32 %v777, %v778
        %v780 = vand.u32 %v779, 4294901760
        %781 = vmatpush1.xpose.msra.mxu0 %v780
        %v782 = vand.u32 %v375, 4294901760
        %v783 = vsub.f32 %v375, %v782
        %v784 = vand.u32 %v783, 4294901760
        %v785 = vsub.f32 %v783, %v784
        %v786 = vand.u32 %v785, 4294901760
        %787 = vmatprep.subr.mxu0 %v786
        %v788 = vand.u32 %v374, 4294901760
        %v789 = vsub.f32 %v374, %v788
        %v790 = vand.u32 %v789, 4294901760
        %v791 = vsub.f32 %v789, %v790
        %v792 = vand.u32 %v791, 4294901760
        %793 = vmatpush1.xpose.msra.mxu0 %v792
        %v794 = vand.u32 %v359, 4294901760
        %v795 = vsub.f32 %v359, %v794
        %v796 = vand.u32 %v795, 4294901760
        %v797 = vsub.f32 %v795, %v796
        %v798 = vand.u32 %v797, 4294901760
        %799 = vmatprep.subr.mxu0 %v798
        %v800 = vand.u32 %v358, 4294901760
        %v801 = vsub.f32 %v358, %v800
        %v802 = vand.u32 %v801, 4294901760
        %v803 = vsub.f32 %v801, %v802
        %v804 = vand.u32 %v803, 4294901760
        %805 = vmatpush1.xpose.msra.mxu0 %v804
        %v806 = vand.u32 %v343, 4294901760
        %v807 = vsub.f32 %v343, %v806
        %v808 = vand.u32 %v807, 4294901760
        %v809 = vsub.f32 %v807, %v808
        %v810 = vand.u32 %v809, 4294901760
        %811 = vmatprep.subr.mxu0 %v810
        %v812 = vand.u32 %v342, 4294901760
        %v813 = vsub.f32 %v342, %v812
        %v814 = vand.u32 %v813, 4294901760
        %v815 = vsub.f32 %v813, %v814
        %v816 = vand.u32 %v815, 4294901760
        %817 = vmatpush1.xpose.msra.mxu0 %v816
        %v818 = vand.u32 %v327, 4294901760
        %v819 = vsub.f32 %v327, %v818
        %v820 = vand.u32 %v819, 4294901760
        %v821 = vsub.f32 %v819, %v820
        %v822 = vand.u32 %v821, 4294901760
        %823 = vmatprep.subr.mxu0 %v822
        %v824 = vand.u32 %v326, 4294901760
        %v825 = vsub.f32 %v326, %v824
        %v826 = vand.u32 %v825, 4294901760
        %v827 = vsub.f32 %v825, %v826
        %v828 = vand.u32 %v827, 4294901760
        %829 = vmatpush1.xpose.msra.mxu0 %v828
        %v830 = vand.u32 %v311, 4294901760
        %v831 = vsub.f32 %v311, %v830
        %v832 = vand.u32 %v831, 4294901760
        %v833 = vsub.f32 %v831, %v832
        %v834 = vand.u32 %v833, 4294901760
        %835 = vmatprep.subr.mxu0 %v834
        %v836 = vand.u32 %v310, 4294901760
        %v837 = vsub.f32 %v310, %v836
        %v838 = vand.u32 %v837, 4294901760
        %v839 = vsub.f32 %v837, %v838
        %v840 = vand.u32 %v839, 4294901760
        %841 = vmatpush1.xpose.msra.mxu0 %v840
        %v842 = vand.u32 %v295, 4294901760
        %v843 = vsub.f32 %v295, %v842
        %v844 = vand.u32 %v843, 4294901760
        %v845 = vsub.f32 %v843, %v844
        %v846 = vand.u32 %v845, 4294901760
        %847 = vmatprep.subr.mxu0 %v846
        %v848 = vand.u32 %v294, 4294901760
        %v849 = vsub.f32 %v294, %v848
        %v850 = vand.u32 %v849, 4294901760
        %v851 = vsub.f32 %v849, %v850
        %v852 = vand.u32 %v851, 4294901760
        %853 = vmatpush1.xpose.msra.mxu0 %v852
        %854 = vmatprep.subr.mxu0 0.0
        %855 = vmatpush2.xpose.msra.mxu0 0.0
        %856 = vmatprep.subr.mxu0 0.0
        %857 = vmatpush2.xpose.msra.mxu0 0.0
        %858 = vmatprep.subr.mxu0 0.0
        %859 = vmatpush2.xpose.msra.mxu0 0.0
        %860 = vmatprep.subr.mxu0 0.0
        %861 = vmatpush2.xpose.msra.mxu0 0.0
        %862 = vmatprep.subr.mxu0 0.0
        %863 = vmatpush2.xpose.msra.mxu0 0.0
        %864 = vmatprep.subr.mxu0 0.0
        %865 = vmatpush2.xpose.msra.mxu0 0.0
        %866 = vmatprep.subr.mxu0 0.0
        %867 = vmatpush2.xpose.msra.mxu0 0.0
        %868 = vmatprep.subr.mxu0 0.0
        %869 = vmatpush2.xpose.msra.mxu0 0.0
        %870 = vmatprep.subr.mxu0 0.0
        %871 = vmatpush2.xpose.msra.mxu0 0.0
        %872 = vmatprep.subr.mxu0 0.0
        %873 = vmatpush2.xpose.msra.mxu0 0.0
        %874 = vmatprep.subr.mxu0 0.0
        %875 = vmatpush2.xpose.msra.mxu0 0.0
        %876 = vmatprep.subr.mxu0 0.0
        %877 = vmatpush2.xpose.msra.mxu0 0.0
        %878 = vmatprep.subr.mxu0 0.0
        %879 = vmatpush2.xpose.msra.mxu0 0.0
        %880 = vmatprep.subr.mxu0 0.0
        %881 = vmatpush2.xpose.msra.mxu0 0.0
        %882 = vmatprep.subr.mxu0 0.0
        %883 = vmatpush2.xpose.msra.mxu0 0.0
        %884 = vmatprep.subr.mxu0 0.0
        %885 = vmatpush2.xpose.msra.mxu0 0.0
        %v886 = vand.u32 %v279, 4294901760
        %887 = vmatprep.mubr.f32.mxu0 %v886
        %v888 = vand.u32 %v278, 4294901760
        %889 = vmatmul.mubr.f32.gmra.mxu0 %v888
        %v890 = vpop.f32.mrf.mxu0
        %v891 = vadd.f32 %v659, %v890
        %v892 = vpop.f32.mrf.mxu0
        %893 = vdwg.mxu0
        %v894 = vand.u32 %v535, 4294901760
        %v895 = vsub.f32 %v535, %v894
        %896 = vmatprep.subr.mxu0 %v895
        %v897 = vand.u32 %v534, 4294901760
        %v898 = vsub.f32 %v534, %v897
        %899 = vmatpush1.xpose.msra.mxu0 %v898
        %v900 = vand.u32 %v519, 4294901760
        %v901 = vsub.f32 %v519, %v900
        %902 = vmatprep.subr.mxu0 %v901
        %v903 = vand.u32 %v518, 4294901760
        %v904 = vsub.f32 %v518, %v903
        %905 = vmatpush1.xpose.msra.mxu0 %v904
        %v906 = vand.u32 %v503, 4294901760
        %v907 = vsub.f32 %v503, %v906
        %908 = vmatprep.subr.mxu0 %v907
        %v909 = vand.u32 %v502, 4294901760
        %v910 = vsub.f32 %v502, %v909
        %911 = vmatpush1.xpose.msra.mxu0 %v910
        %v912 = vand.u32 %v487, 4294901760
        %v913 = vsub.f32 %v487, %v912
        %914 = vmatprep.subr.mxu0 %v913
        %v915 = vand.u32 %v486, 4294901760
        %v916 = vsub.f32 %v486, %v915
        %917 = vmatpush1.xpose.msra.mxu0 %v916
        %v918 = vand.u32 %v471, 4294901760
        %v919 = vsub.f32 %v471, %v918
        %920 = vmatprep.subr.mxu0 %v919
        %v921 = vand.u32 %v470, 4294901760
        %v922 = vsub.f32 %v470, %v921
        %923 = vmatpush1.xpose.msra.mxu0 %v922
        %v924 = vand.u32 %v455, 4294901760
        %v925 = vsub.f32 %v455, %v924
        %926 = vmatprep.subr.mxu0 %v925
        %v927 = vand.u32 %v454, 4294901760
        %v928 = vsub.f32 %v454, %v927
        %929 = vmatpush1.xpose.msra.mxu0 %v928
        %v930 = vand.u32 %v439, 4294901760
        %v931 = vsub.f32 %v439, %v930
        %932 = vmatprep.subr.mxu0 %v931
        %v933 = vand.u32 %v438, 4294901760
        %v934 = vsub.f32 %v438, %v933
        %935 = vmatpush1.xpose.msra.mxu0 %v934
        %v936 = vand.u32 %v423, 4294901760
        %v937 = vsub.f32 %v423, %v936
        %938 = vmatprep.subr.mxu0 %v937
        %v939 = vand.u32 %v422, 4294901760
        %v940 = vsub.f32 %v422, %v939
        %941 = vmatpush1.xpose.msra.mxu0 %v940
        %v942 = vand.u32 %v407, 4294901760
        %v943 = vsub.f32 %v407, %v942
        %944 = vmatprep.subr.mxu0 %v943
        %v945 = vand.u32 %v406, 4294901760
        %v946 = vsub.f32 %v406, %v945
        %947 = vmatpush1.xpose.msra.mxu0 %v946
        %v948 = vand.u32 %v391, 4294901760
        %v949 = vsub.f32 %v391, %v948
        %950 = vmatprep.subr.mxu0 %v949
        %v951 = vand.u32 %v390, 4294901760
        %v952 = vsub.f32 %v390, %v951
        %953 = vmatpush1.xpose.msra.mxu0 %v952
        %v954 = vand.u32 %v375, 4294901760
        %v955 = vsub.f32 %v375, %v954
        %956 = vmatprep.subr.mxu0 %v955
        %v957 = vand.u32 %v374, 4294901760
        %v958 = vsub.f32 %v374, %v957
        %959 = vmatpush1.xpose.msra.mxu0 %v958
        %v960 = vand.u32 %v359, 4294901760
        %v961 = vsub.f32 %v359, %v960
        %962 = vmatprep.subr.mxu0 %v961
        %v963 = vand.u32 %v358, 4294901760
        %v964 = vsub.f32 %v358, %v963
        %965 = vmatpush1.xpose.msra.mxu0 %v964
        %v966 = vand.u32 %v343, 4294901760
        %v967 = vsub.f32 %v343, %v966
        %968 = vmatprep.subr.mxu0 %v967
        %v969 = vand.u32 %v342, 4294901760
        %v970 = vsub.f32 %v342, %v969
        %971 = vmatpush1.xpose.msra.mxu0 %v970
        %v972 = vand.u32 %v327, 4294901760
        %v973 = vsub.f32 %v327, %v972
        %974 = vmatprep.subr.mxu0 %v973
        %v975 = vand.u32 %v326, 4294901760
        %v976 = vsub.f32 %v326, %v975
        %977 = vmatpush1.xpose.msra.mxu0 %v976
        %v978 = vand.u32 %v311, 4294901760
        %v979 = vsub.f32 %v311, %v978
        %980 = vmatprep.subr.mxu0 %v979
        %v981 = vand.u32 %v310, 4294901760
        %v982 = vsub.f32 %v310, %v981
        %983 = vmatpush1.xpose.msra.mxu0 %v982
        %v984 = vand.u32 %v295, 4294901760
        %v985 = vsub.f32 %v295, %v984
        %986 = vmatprep.subr.mxu0 %v985
        %v987 = vand.u32 %v294, 4294901760
        %v988 = vsub.f32 %v294, %v987
        %989 = vmatpush1.xpose.msra.mxu0 %v988
        %990 = vmatprep.subr.mxu0 0.0
        %991 = vmatpush2.xpose.msra.mxu0 0.0
        %992 = vmatprep.subr.mxu0 0.0
        %993 = vmatpush2.xpose.msra.mxu0 0.0
        %994 = vmatprep.subr.mxu0 0.0
        %995 = vmatpush2.xpose.msra.mxu0 0.0
        %996 = vmatprep.subr.mxu0 0.0
        %997 = vmatpush2.xpose.msra.mxu0 0.0
        %998 = vmatprep.subr.mxu0 0.0
        %999 = vmatpush2.xpose.msra.mxu0 0.0
        %1000 = vmatprep.subr.mxu0 0.0
        %1001 = vmatpush2.xpose.msra.mxu0 0.0
        %1002 = vmatprep.subr.mxu0 0.0
        %1003 = vmatpush2.xpose.msra.mxu0 0.0
        %1004 = vmatprep.subr.mxu0 0.0
        %1005 = vmatpush2.xpose.msra.mxu0 0.0
        %1006 = vmatprep.subr.mxu0 0.0
        %1007 = vmatpush2.xpose.msra.mxu0 0.0
        %1008 = vmatprep.subr.mxu0 0.0
        %1009 = vmatpush2.xpose.msra.mxu0 0.0
        %1010 = vmatprep.subr.mxu0 0.0
        %1011 = vmatpush2.xpose.msra.mxu0 0.0
        %1012 = vmatprep.subr.mxu0 0.0
        %1013 = vmatpush2.xpose.msra.mxu0 0.0
        %1014 = vmatprep.subr.mxu0 0.0
        %1015 = vmatpush2.xpose.msra.mxu0 0.0
        %1016 = vmatprep.subr.mxu0 0.0
        %1017 = vmatpush2.xpose.msra.mxu0 0.0
        %1018 = vmatprep.subr.mxu0 0.0
        %1019 = vmatpush2.xpose.msra.mxu0 0.0
        %1020 = vmatprep.subr.mxu0 0.0
        %1021 = vmatpush2.xpose.msra.mxu0 0.0
        %v1022 = vand.u32 %v279, 4294901760
        %v1023 = vsub.f32 %v279, %v1022
        %1024 = vmatprep.mubr.f32.mxu0 %v1023
        %v1025 = vand.u32 %v278, 4294901760
        %v1026 = vsub.f32 %v278, %v1025
        %1027 = vmatmul.mubr.f32.gmra.mxu0 %v1026
        %v1028 = vpop.f32.mrf.mxu0
        %v1029 = vadd.f32 %v891, %v1028
        %v1030 = vpop.f32.mrf.mxu0
        %1031 = vdwg.mxu0
        %v1032 = vand.u32 %v535, 4294901760
        %1033 = vmatprep.subr.mxu0 %v1032
        %v1034 = vand.u32 %v534, 4294901760
        %1035 = vmatpush1.xpose.msra.mxu0 %v1034
        %v1036 = vand.u32 %v519, 4294901760
        %1037 = vmatprep.subr.mxu0 %v1036
        %v1038 = vand.u32 %v518, 4294901760
        %1039 = vmatpush1.xpose.msra.mxu0 %v1038
        %v1040 = vand.u32 %v503, 4294901760
        %1041 = vmatprep.subr.mxu0 %v1040
        %v1042 = vand.u32 %v502, 4294901760
        %1043 = vmatpush1.xpose.msra.mxu0 %v1042
        %v1044 = vand.u32 %v487, 4294901760
        %1045 = vmatprep.subr.mxu0 %v1044
        %v1046 = vand.u32 %v486, 4294901760
        %1047 = vmatpush1.xpose.msra.mxu0 %v1046
        %v1048 = vand.u32 %v471, 4294901760
        %1049 = vmatprep.subr.mxu0 %v1048
        %v1050 = vand.u32 %v470, 4294901760
        %1051 = vmatpush1.xpose.msra.mxu0 %v1050
        %v1052 = vand.u32 %v455, 4294901760
        %1053 = vmatprep.subr.mxu0 %v1052
        %v1054 = vand.u32 %v454, 4294901760
        %1055 = vmatpush1.xpose.msra.mxu0 %v1054
        %v1056 = vand.u32 %v439, 4294901760
        %1057 = vmatprep.subr.mxu0 %v1056
        %v1058 = vand.u32 %v438, 4294901760
        %1059 = vmatpush1.xpose.msra.mxu0 %v1058
        %v1060 = vand.u32 %v423, 4294901760
        %1061 = vmatprep.subr.mxu0 %v1060
        %v1062 = vand.u32 %v422, 4294901760
        %1063 = vmatpush1.xpose.msra.mxu0 %v1062
        %v1064 = vand.u32 %v407, 4294901760
        %1065 = vmatprep.subr.mxu0 %v1064
        %v1066 = vand.u32 %v406, 4294901760
        %1067 = vmatpush1.xpose.msra.mxu0 %v1066
        %v1068 = vand.u32 %v391, 4294901760
        %1069 = vmatprep.subr.mxu0 %v1068
        %v1070 = vand.u32 %v390, 4294901760
        %1071 = vmatpush1.xpose.msra.mxu0 %v1070
        %v1072 = vand.u32 %v375, 4294901760
        %1073 = vmatprep.subr.mxu0 %v1072
        %v1074 = vand.u32 %v374, 4294901760
        %1075 = vmatpush1.xpose.msra.mxu0 %v1074
        %v1076 = vand.u32 %v359, 4294901760
        %1077 = vmatprep.subr.mxu0 %v1076
        %v1078 = vand.u32 %v358, 4294901760
        %1079 = vmatpush1.xpose.msra.mxu0 %v1078
        %v1080 = vand.u32 %v343, 4294901760
        %1081 = vmatprep.subr.mxu0 %v1080
        %v1082 = vand.u32 %v342, 4294901760
        %1083 = vmatpush1.xpose.msra.mxu0 %v1082
        %v1084 = vand.u32 %v327, 4294901760
        %1085 = vmatprep.subr.mxu0 %v1084
        %v1086 = vand.u32 %v326, 4294901760
        %1087 = vmatpush1.xpose.msra.mxu0 %v1086
        %v1088 = vand.u32 %v311, 4294901760
        %1089 = vmatprep.subr.mxu0 %v1088
        %v1090 = vand.u32 %v310, 4294901760
        %1091 = vmatpush1.xpose.msra.mxu0 %v1090
        %v1092 = vand.u32 %v295, 4294901760
        %1093 = vmatprep.subr.mxu0 %v1092
        %v1094 = vand.u32 %v294, 4294901760
        %1095 = vmatpush1.xpose.msra.mxu0 %v1094
        %1096 = vmatprep.subr.mxu0 0.0
        %1097 = vmatpush2.xpose.msra.mxu0 0.0
        %1098 = vmatprep.subr.mxu0 0.0
        %1099 = vmatpush2.xpose.msra.mxu0 0.0
        %1100 = vmatprep.subr.mxu0 0.0
        %1101 = vmatpush2.xpose.msra.mxu0 0.0
        %1102 = vmatprep.subr.mxu0 0.0
        %1103 = vmatpush2.xpose.msra.mxu0 0.0
        %1104 = vmatprep.subr.mxu0 0.0
        %1105 = vmatpush2.xpose.msra.mxu0 0.0
        %1106 = vmatprep.subr.mxu0 0.0
        %1107 = vmatpush2.xpose.msra.mxu0 0.0
        %1108 = vmatprep.subr.mxu0 0.0
        %1109 = vmatpush2.xpose.msra.mxu0 0.0
        %1110 = vmatprep.subr.mxu0 0.0
        %1111 = vmatpush2.xpose.msra.mxu0 0.0
        %1112 = vmatprep.subr.mxu0 0.0
        %1113 = vmatpush2.xpose.msra.mxu0 0.0
        %1114 = vmatprep.subr.mxu0 0.0
        %1115 = vmatpush2.xpose.msra.mxu0 0.0
        %1116 = vmatprep.subr.mxu0 0.0
        %1117 = vmatpush2.xpose.msra.mxu0 0.0
        %1118 = vmatprep.subr.mxu0 0.0
        %1119 = vmatpush2.xpose.msra.mxu0 0.0
        %1120 = vmatprep.subr.mxu0 0.0
        %1121 = vmatpush2.xpose.msra.mxu0 0.0
        %1122 = vmatprep.subr.mxu0 0.0
        %1123 = vmatpush2.xpose.msra.mxu0 0.0
        %1124 = vmatprep.subr.mxu0 0.0
        %1125 = vmatpush2.xpose.msra.mxu0 0.0
        %1126 = vmatprep.subr.mxu0 0.0
        %1127 = vmatpush2.xpose.msra.mxu0 0.0
        %v1128 = vand.u32 %v279, 4294901760
        %v1129 = vsub.f32 %v279, %v1128
        %v1130 = vand.u32 %v1129, 4294901760
        %1131 = vmatprep.mubr.f32.mxu0 %v1130
        %v1132 = vand.u32 %v278, 4294901760
        %v1133 = vsub.f32 %v278, %v1132
        %v1134 = vand.u32 %v1133, 4294901760
        %1135 = vmatmul.mubr.f32.gmra.mxu0 %v1134
        %v1136 = vpop.f32.mrf.mxu0
        %v1137 = vadd.f32 %v1029, %v1136
        %v1138 = vpop.f32.mrf.mxu0
        %1139 = vdwg.mxu0
        %v1140 = vand.u32 %v535, 4294901760
        %v1141 = vsub.f32 %v535, %v1140
        %v1142 = vand.u32 %v1141, 4294901760
        %1143 = vmatprep.subr.mxu0 %v1142
        %v1144 = vand.u32 %v534, 4294901760
        %v1145 = vsub.f32 %v534, %v1144
        %v1146 = vand.u32 %v1145, 4294901760
        %1147 = vmatpush1.xpose.msra.mxu0 %v1146
        %v1148 = vand.u32 %v519, 4294901760
        %v1149 = vsub.f32 %v519, %v1148
        %v1150 = vand.u32 %v1149, 4294901760
        %1151 = vmatprep.subr.mxu0 %v1150
        %v1152 = vand.u32 %v518, 4294901760
        %v1153 = vsub.f32 %v518, %v1152
        %v1154 = vand.u32 %v1153, 4294901760
        %1155 = vmatpush1.xpose.msra.mxu0 %v1154
        %v1156 = vand.u32 %v503, 4294901760
        %v1157 = vsub.f32 %v503, %v1156
        %v1158 = vand.u32 %v1157, 4294901760
        %1159 = vmatprep.subr.mxu0 %v1158
        %v1160 = vand.u32 %v502, 4294901760
        %v1161 = vsub.f32 %v502, %v1160
        %v1162 = vand.u32 %v1161, 4294901760
        %1163 = vmatpush1.xpose.msra.mxu0 %v1162
        %v1164 = vand.u32 %v487, 4294901760
        %v1165 = vsub.f32 %v487, %v1164
        %v1166 = vand.u32 %v1165, 4294901760
        %1167 = vmatprep.subr.mxu0 %v1166
        %v1168 = vand.u32 %v486, 4294901760
        %v1169 = vsub.f32 %v486, %v1168
        %v1170 = vand.u32 %v1169, 4294901760
        %1171 = vmatpush1.xpose.msra.mxu0 %v1170
        %v1172 = vand.u32 %v471, 4294901760
        %v1173 = vsub.f32 %v471, %v1172
        %v1174 = vand.u32 %v1173, 4294901760
        %1175 = vmatprep.subr.mxu0 %v1174
        %v1176 = vand.u32 %v470, 4294901760
        %v1177 = vsub.f32 %v470, %v1176
        %v1178 = vand.u32 %v1177, 4294901760
        %1179 = vmatpush1.xpose.msra.mxu0 %v1178
        %v1180 = vand.u32 %v455, 4294901760
        %v1181 = vsub.f32 %v455, %v1180
        %v1182 = vand.u32 %v1181, 4294901760
        %1183 = vmatprep.subr.mxu0 %v1182
        %v1184 = vand.u32 %v454, 4294901760
        %v1185 = vsub.f32 %v454, %v1184
        %v1186 = vand.u32 %v1185, 4294901760
        %1187 = vmatpush1.xpose.msra.mxu0 %v1186
        %v1188 = vand.u32 %v439, 4294901760
        %v1189 = vsub.f32 %v439, %v1188
        %v1190 = vand.u32 %v1189, 4294901760
        %1191 = vmatprep.subr.mxu0 %v1190
        %v1192 = vand.u32 %v438, 4294901760
        %v1193 = vsub.f32 %v438, %v1192
        %v1194 = vand.u32 %v1193, 4294901760
        %1195 = vmatpush1.xpose.msra.mxu0 %v1194
        %v1196 = vand.u32 %v423, 4294901760
        %v1197 = vsub.f32 %v423, %v1196
        %v1198 = vand.u32 %v1197, 4294901760
        %1199 = vmatprep.subr.mxu0 %v1198
        %v1200 = vand.u32 %v422, 4294901760
        %v1201 = vsub.f32 %v422, %v1200
        %v1202 = vand.u32 %v1201, 4294901760
        %1203 = vmatpush1.xpose.msra.mxu0 %v1202
        %v1204 = vand.u32 %v407, 4294901760
        %v1205 = vsub.f32 %v407, %v1204
        %v1206 = vand.u32 %v1205, 4294901760
        %1207 = vmatprep.subr.mxu0 %v1206
        %v1208 = vand.u32 %v406, 4294901760
        %v1209 = vsub.f32 %v406, %v1208
        %v1210 = vand.u32 %v1209, 4294901760
        %1211 = vmatpush1.xpose.msra.mxu0 %v1210
        %v1212 = vand.u32 %v391, 4294901760
        %v1213 = vsub.f32 %v391, %v1212
        %v1214 = vand.u32 %v1213, 4294901760
        %1215 = vmatprep.subr.mxu0 %v1214
        %v1216 = vand.u32 %v390, 4294901760
        %v1217 = vsub.f32 %v390, %v1216
        %v1218 = vand.u32 %v1217, 4294901760
        %1219 = vmatpush1.xpose.msra.mxu0 %v1218
        %v1220 = vand.u32 %v375, 4294901760
        %v1221 = vsub.f32 %v375, %v1220
        %v1222 = vand.u32 %v1221, 4294901760
        %1223 = vmatprep.subr.mxu0 %v1222
        %v1224 = vand.u32 %v374, 4294901760
        %v1225 = vsub.f32 %v374, %v1224
        %v1226 = vand.u32 %v1225, 4294901760
        %1227 = vmatpush1.xpose.msra.mxu0 %v1226
        %v1228 = vand.u32 %v359, 4294901760
        %v1229 = vsub.f32 %v359, %v1228
        %v1230 = vand.u32 %v1229, 4294901760
        %1231 = vmatprep.subr.mxu0 %v1230
        %v1232 = vand.u32 %v358, 4294901760
        %v1233 = vsub.f32 %v358, %v1232
        %v1234 = vand.u32 %v1233, 4294901760
        %1235 = vmatpush1.xpose.msra.mxu0 %v1234
        %v1236 = vand.u32 %v343, 4294901760
        %v1237 = vsub.f32 %v343, %v1236
        %v1238 = vand.u32 %v1237, 4294901760
        %1239 = vmatprep.subr.mxu0 %v1238
        %v1240 = vand.u32 %v342, 4294901760
        %v1241 = vsub.f32 %v342, %v1240
        %v1242 = vand.u32 %v1241, 4294901760
        %1243 = vmatpush1.xpose.msra.mxu0 %v1242
        %v1244 = vand.u32 %v327, 4294901760
        %v1245 = vsub.f32 %v327, %v1244
        %v1246 = vand.u32 %v1245, 4294901760
        %1247 = vmatprep.subr.mxu0 %v1246
        %v1248 = vand.u32 %v326, 4294901760
        %v1249 = vsub.f32 %v326, %v1248
        %v1250 = vand.u32 %v1249, 4294901760
        %1251 = vmatpush1.xpose.msra.mxu0 %v1250
        %v1252 = vand.u32 %v311, 4294901760
        %v1253 = vsub.f32 %v311, %v1252
        %v1254 = vand.u32 %v1253, 4294901760
        %1255 = vmatprep.subr.mxu0 %v1254
        %v1256 = vand.u32 %v310, 4294901760
        %v1257 = vsub.f32 %v310, %v1256
        %v1258 = vand.u32 %v1257, 4294901760
        %1259 = vmatpush1.xpose.msra.mxu0 %v1258
        %v1260 = vand.u32 %v295, 4294901760
        %v1261 = vsub.f32 %v295, %v1260
        %v1262 = vand.u32 %v1261, 4294901760
        %1263 = vmatprep.subr.mxu0 %v1262
        %v1264 = vand.u32 %v294, 4294901760
        %v1265 = vsub.f32 %v294, %v1264
        %v1266 = vand.u32 %v1265, 4294901760
        %1267 = vmatpush1.xpose.msra.mxu0 %v1266
        %1268 = vmatprep.subr.mxu0 0.0
        %1269 = vmatpush2.xpose.msra.mxu0 0.0
        %1270 = vmatprep.subr.mxu0 0.0
        %1271 = vmatpush2.xpose.msra.mxu0 0.0
        %1272 = vmatprep.subr.mxu0 0.0
        %1273 = vmatpush2.xpose.msra.mxu0 0.0
        %1274 = vmatprep.subr.mxu0 0.0
        %1275 = vmatpush2.xpose.msra.mxu0 0.0
        %1276 = vmatprep.subr.mxu0 0.0
        %1277 = vmatpush2.xpose.msra.mxu0 0.0
        %1278 = vmatprep.subr.mxu0 0.0
        %1279 = vmatpush2.xpose.msra.mxu0 0.0
        %1280 = vmatprep.subr.mxu0 0.0
        %1281 = vmatpush2.xpose.msra.mxu0 0.0
        %1282 = vmatprep.subr.mxu0 0.0
        %1283 = vmatpush2.xpose.msra.mxu0 0.0
        %1284 = vmatprep.subr.mxu0 0.0
        %1285 = vmatpush2.xpose.msra.mxu0 0.0
        %1286 = vmatprep.subr.mxu0 0.0
        %1287 = vmatpush2.xpose.msra.mxu0 0.0
        %1288 = vmatprep.subr.mxu0 0.0
        %1289 = vmatpush2.xpose.msra.mxu0 0.0
        %1290 = vmatprep.subr.mxu0 0.0
        %1291 = vmatpush2.xpose.msra.mxu0 0.0
        %1292 = vmatprep.subr.mxu0 0.0
        %1293 = vmatpush2.xpose.msra.mxu0 0.0
        %1294 = vmatprep.subr.mxu0 0.0
        %1295 = vmatpush2.xpose.msra.mxu0 0.0
        %1296 = vmatprep.subr.mxu0 0.0
        %1297 = vmatpush2.xpose.msra.mxu0 0.0
        %1298 = vmatprep.subr.mxu0 0.0
        %1299 = vmatpush2.xpose.msra.mxu0 0.0
        %v1300 = vand.u32 %v279, 4294901760
        %1301 = vmatprep.mubr.f32.mxu0 %v1300
        %v1302 = vand.u32 %v278, 4294901760
        %1303 = vmatmul.mubr.f32.gmra.mxu0 %v1302
        %v1304 = vpop.f32.mrf.mxu0
        %v1305 = vadd.f32 %v1137, %v1304
        %v1306 = vpop.f32.mrf.mxu0
        %1307 = vdwg.mxu0
        %v1308 = vand.u32 %v535, 4294901760
        %1309 = vmatprep.subr.mxu0 %v1308
        %v1310 = vand.u32 %v534, 4294901760
        %1311 = vmatpush1.xpose.msra.mxu0 %v1310
        %v1312 = vand.u32 %v519, 4294901760
        %1313 = vmatprep.subr.mxu0 %v1312
        %v1314 = vand.u32 %v518, 4294901760
        %1315 = vmatpush1.xpose.msra.mxu0 %v1314
        %v1316 = vand.u32 %v503, 4294901760
        %1317 = vmatprep.subr.mxu0 %v1316
        %v1318 = vand.u32 %v502, 4294901760
        %1319 = vmatpush1.xpose.msra.mxu0 %v1318
        %v1320 = vand.u32 %v487, 4294901760
        %1321 = vmatprep.subr.mxu0 %v1320
        %v1322 = vand.u32 %v486, 4294901760
        %1323 = vmatpush1.xpose.msra.mxu0 %v1322
        %v1324 = vand.u32 %v471, 4294901760
        %1325 = vmatprep.subr.mxu0 %v1324
        %v1326 = vand.u32 %v470, 4294901760
        %1327 = vmatpush1.xpose.msra.mxu0 %v1326
        %v1328 = vand.u32 %v455, 4294901760
        %1329 = vmatprep.subr.mxu0 %v1328
        %v1330 = vand.u32 %v454, 4294901760
        %1331 = vmatpush1.xpose.msra.mxu0 %v1330
        %v1332 = vand.u32 %v439, 4294901760
        %1333 = vmatprep.subr.mxu0 %v1332
        %v1334 = vand.u32 %v438, 4294901760
        %1335 = vmatpush1.xpose.msra.mxu0 %v1334
        %v1336 = vand.u32 %v423, 4294901760
        %1337 = vmatprep.subr.mxu0 %v1336
        %v1338 = vand.u32 %v422, 4294901760
        %1339 = vmatpush1.xpose.msra.mxu0 %v1338
        %v1340 = vand.u32 %v407, 4294901760
        %1341 = vmatprep.subr.mxu0 %v1340
        %v1342 = vand.u32 %v406, 4294901760
        %1343 = vmatpush1.xpose.msra.mxu0 %v1342
        %v1344 = vand.u32 %v391, 4294901760
        %1345 = vmatprep.subr.mxu0 %v1344
        %v1346 = vand.u32 %v390, 4294901760
        %1347 = vmatpush1.xpose.msra.mxu0 %v1346
        %v1348 = vand.u32 %v375, 4294901760
        %1349 = vmatprep.subr.mxu0 %v1348
        %v1350 = vand.u32 %v374, 4294901760
        %1351 = vmatpush1.xpose.msra.mxu0 %v1350
        %v1352 = vand.u32 %v359, 4294901760
        %1353 = vmatprep.subr.mxu0 %v1352
        %v1354 = vand.u32 %v358, 4294901760
        %1355 = vmatpush1.xpose.msra.mxu0 %v1354
        %v1356 = vand.u32 %v343, 4294901760
        %1357 = vmatprep.subr.mxu0 %v1356
        %v1358 = vand.u32 %v342, 4294901760
        %1359 = vmatpush1.xpose.msra.mxu0 %v1358
        %v1360 = vand.u32 %v327, 4294901760
        %1361 = vmatprep.subr.mxu0 %v1360
        %v1362 = vand.u32 %v326, 4294901760
        %1363 = vmatpush1.xpose.msra.mxu0 %v1362
        %v1364 = vand.u32 %v311, 4294901760
        %1365 = vmatprep.subr.mxu0 %v1364
        %v1366 = vand.u32 %v310, 4294901760
        %1367 = vmatpush1.xpose.msra.mxu0 %v1366
        %v1368 = vand.u32 %v295, 4294901760
        %1369 = vmatprep.subr.mxu0 %v1368
        %v1370 = vand.u32 %v294, 4294901760
        %1371 = vmatpush1.xpose.msra.mxu0 %v1370
        %1372 = vmatprep.subr.mxu0 0.0
        %1373 = vmatpush2.xpose.msra.mxu0 0.0
        %1374 = vmatprep.subr.mxu0 0.0
        %1375 = vmatpush2.xpose.msra.mxu0 0.0
        %1376 = vmatprep.subr.mxu0 0.0
        %1377 = vmatpush2.xpose.msra.mxu0 0.0
        %1378 = vmatprep.subr.mxu0 0.0
        %1379 = vmatpush2.xpose.msra.mxu0 0.0
        %1380 = vmatprep.subr.mxu0 0.0
        %1381 = vmatpush2.xpose.msra.mxu0 0.0
        %1382 = vmatprep.subr.mxu0 0.0
        %1383 = vmatpush2.xpose.msra.mxu0 0.0
        %1384 = vmatprep.subr.mxu0 0.0
        %1385 = vmatpush2.xpose.msra.mxu0 0.0
        %1386 = vmatprep.subr.mxu0 0.0
        %1387 = vmatpush2.xpose.msra.mxu0 0.0
        %1388 = vmatprep.subr.mxu0 0.0
        %1389 = vmatpush2.xpose.msra.mxu0 0.0
        %1390 = vmatprep.subr.mxu0 0.0
        %1391 = vmatpush2.xpose.msra.mxu0 0.0
        %1392 = vmatprep.subr.mxu0 0.0
        %1393 = vmatpush2.xpose.msra.mxu0 0.0
        %1394 = vmatprep.subr.mxu0 0.0
        %1395 = vmatpush2.xpose.msra.mxu0 0.0
        %1396 = vmatprep.subr.mxu0 0.0
        %1397 = vmatpush2.xpose.msra.mxu0 0.0
        %1398 = vmatprep.subr.mxu0 0.0
        %1399 = vmatpush2.xpose.msra.mxu0 0.0
        %1400 = vmatprep.subr.mxu0 0.0
        %1401 = vmatpush2.xpose.msra.mxu0 0.0
        %1402 = vmatprep.subr.mxu0 0.0
        %1403 = vmatpush2.xpose.msra.mxu0 0.0
        %v1404 = vand.u32 %v279, 4294901760
        %1405 = vmatprep.mubr.f32.mxu0 %v1404
        %v1406 = vand.u32 %v278, 4294901760
        %1407 = vmatmul.mubr.f32.gmra.mxu0 %v1406
        %v1408 = vpop.f32.mrf.mxu0
        %v1409 = vadd.f32 %v1305, %v1408
        %v1410 = vpop.f32.mrf.mxu0
        %1411 = vdwg.mxu0
        %v1412 = vand.u32 %v537, 4294901760
        %1413 = vmatprep.subr.mxu0 %v1412
        %v1414 = vand.u32 %v536, 4294901760
        %1415 = vmatpush1.xpose.msra.mxu0 %v1414
        %v1416 = vand.u32 %v521, 4294901760
        %1417 = vmatprep.subr.mxu0 %v1416
        %v1418 = vand.u32 %v520, 4294901760
        %1419 = vmatpush1.xpose.msra.mxu0 %v1418
        %v1420 = vand.u32 %v505, 4294901760
        %1421 = vmatprep.subr.mxu0 %v1420
        %v1422 = vand.u32 %v504, 4294901760
        %1423 = vmatpush1.xpose.msra.mxu0 %v1422
        %v1424 = vand.u32 %v489, 4294901760
        %1425 = vmatprep.subr.mxu0 %v1424
        %v1426 = vand.u32 %v488, 4294901760
        %1427 = vmatpush1.xpose.msra.mxu0 %v1426
        %v1428 = vand.u32 %v473, 4294901760
        %1429 = vmatprep.subr.mxu0 %v1428
        %v1430 = vand.u32 %v472, 4294901760
        %1431 = vmatpush1.xpose.msra.mxu0 %v1430
        %v1432 = vand.u32 %v457, 4294901760
        %1433 = vmatprep.subr.mxu0 %v1432
        %v1434 = vand.u32 %v456, 4294901760
        %1435 = vmatpush1.xpose.msra.mxu0 %v1434
        %v1436 = vand.u32 %v441, 4294901760
        %1437 = vmatprep.subr.mxu0 %v1436
        %v1438 = vand.u32 %v440, 4294901760
        %1439 = vmatpush1.xpose.msra.mxu0 %v1438
        %v1440 = vand.u32 %v425, 4294901760
        %1441 = vmatprep.subr.mxu0 %v1440
        %v1442 = vand.u32 %v424, 4294901760
        %1443 = vmatpush1.xpose.msra.mxu0 %v1442
        %v1444 = vand.u32 %v409, 4294901760
        %1445 = vmatprep.subr.mxu0 %v1444
        %v1446 = vand.u32 %v408, 4294901760
        %1447 = vmatpush1.xpose.msra.mxu0 %v1446
        %v1448 = vand.u32 %v393, 4294901760
        %1449 = vmatprep.subr.mxu0 %v1448
        %v1450 = vand.u32 %v392, 4294901760
        %1451 = vmatpush1.xpose.msra.mxu0 %v1450
        %v1452 = vand.u32 %v377, 4294901760
        %1453 = vmatprep.subr.mxu0 %v1452
        %v1454 = vand.u32 %v376, 4294901760
        %1455 = vmatpush1.xpose.msra.mxu0 %v1454
        %v1456 = vand.u32 %v361, 4294901760
        %1457 = vmatprep.subr.mxu0 %v1456
        %v1458 = vand.u32 %v360, 4294901760
        %1459 = vmatpush1.xpose.msra.mxu0 %v1458
        %v1460 = vand.u32 %v345, 4294901760
        %1461 = vmatprep.subr.mxu0 %v1460
        %v1462 = vand.u32 %v344, 4294901760
        %1463 = vmatpush1.xpose.msra.mxu0 %v1462
        %v1464 = vand.u32 %v329, 4294901760
        %1465 = vmatprep.subr.mxu0 %v1464
        %v1466 = vand.u32 %v328, 4294901760
        %1467 = vmatpush1.xpose.msra.mxu0 %v1466
        %v1468 = vand.u32 %v313, 4294901760
        %1469 = vmatprep.subr.mxu0 %v1468
        %v1470 = vand.u32 %v312, 4294901760
        %1471 = vmatpush1.xpose.msra.mxu0 %v1470
        %v1472 = vand.u32 %v297, 4294901760
        %1473 = vmatprep.subr.mxu0 %v1472
        %v1474 = vand.u32 %v296, 4294901760
        %1475 = vmatpush1.xpose.msra.mxu0 %v1474
        %1476 = vmatprep.subr.mxu0 0.0
        %1477 = vmatpush2.xpose.msra.mxu0 0.0
        %1478 = vmatprep.subr.mxu0 0.0
        %1479 = vmatpush2.xpose.msra.mxu0 0.0
        %1480 = vmatprep.subr.mxu0 0.0
        %1481 = vmatpush2.xpose.msra.mxu0 0.0
        %1482 = vmatprep.subr.mxu0 0.0
        %1483 = vmatpush2.xpose.msra.mxu0 0.0
        %1484 = vmatprep.subr.mxu0 0.0
        %1485 = vmatpush2.xpose.msra.mxu0 0.0
        %1486 = vmatprep.subr.mxu0 0.0
        %1487 = vmatpush2.xpose.msra.mxu0 0.0
        %1488 = vmatprep.subr.mxu0 0.0
        %1489 = vmatpush2.xpose.msra.mxu0 0.0
        %1490 = vmatprep.subr.mxu0 0.0
        %1491 = vmatpush2.xpose.msra.mxu0 0.0
        %1492 = vmatprep.subr.mxu0 0.0
        %1493 = vmatpush2.xpose.msra.mxu0 0.0
        %1494 = vmatprep.subr.mxu0 0.0
        %1495 = vmatpush2.xpose.msra.mxu0 0.0
        %1496 = vmatprep.subr.mxu0 0.0
        %1497 = vmatpush2.xpose.msra.mxu0 0.0
        %1498 = vmatprep.subr.mxu0 0.0
        %1499 = vmatpush2.xpose.msra.mxu0 0.0
        %1500 = vmatprep.subr.mxu0 0.0
        %1501 = vmatpush2.xpose.msra.mxu0 0.0
        %1502 = vmatprep.subr.mxu0 0.0
        %1503 = vmatpush2.xpose.msra.mxu0 0.0
        %1504 = vmatprep.subr.mxu0 0.0
        %1505 = vmatpush2.xpose.msra.mxu0 0.0
        %1506 = vmatprep.subr.mxu0 0.0
        %1507 = vmatpush2.xpose.msra.mxu0 0.0
        %v1508 = vand.u32 %v281, 4294901760
        %v1509 = vsub.f32 %v281, %v1508
        %v1510 = vand.u32 %v1509, 4294901760
        %v1511 = vsub.f32 %v1509, %v1510
        %v1512 = vand.u32 %v1511, 4294901760
        %1513 = vmatprep.mubr.f32.mxu0 %v1512
        %v1514 = vand.u32 %v280, 4294901760
        %v1515 = vsub.f32 %v280, %v1514
        %v1516 = vand.u32 %v1515, 4294901760
        %v1517 = vsub.f32 %v1515, %v1516
        %v1518 = vand.u32 %v1517, 4294901760
        %1519 = vmatmul.mubr.f32.gmra.mxu0 %v1518
        %v1520 = vpop.f32.mrf.mxu0
        %v1521 = vadd.f32 %v1409, %v1520
        %v1522 = vpop.f32.mrf.mxu0
        %1523 = vdwg.mxu0
        %v1524 = vand.u32 %v537, 4294901760
        %v1525 = vsub.f32 %v537, %v1524
        %v1526 = vand.u32 %v1525, 4294901760
        %v1527 = vsub.f32 %v1525, %v1526
        %v1528 = vand.u32 %v1527, 4294901760
        %1529 = vmatprep.subr.mxu0 %v1528
        %v1530 = vand.u32 %v536, 4294901760
        %v1531 = vsub.f32 %v536, %v1530
        %v1532 = vand.u32 %v1531, 4294901760
        %v1533 = vsub.f32 %v1531, %v1532
        %v1534 = vand.u32 %v1533, 4294901760
        %1535 = vmatpush1.xpose.msra.mxu0 %v1534
        %v1536 = vand.u32 %v521, 4294901760
        %v1537 = vsub.f32 %v521, %v1536
        %v1538 = vand.u32 %v1537, 4294901760
        %v1539 = vsub.f32 %v1537, %v1538
        %v1540 = vand.u32 %v1539, 4294901760
        %1541 = vmatprep.subr.mxu0 %v1540
        %v1542 = vand.u32 %v520, 4294901760
        %v1543 = vsub.f32 %v520, %v1542
        %v1544 = vand.u32 %v1543, 4294901760
        %v1545 = vsub.f32 %v1543, %v1544
        %v1546 = vand.u32 %v1545, 4294901760
        %1547 = vmatpush1.xpose.msra.mxu0 %v1546
        %v1548 = vand.u32 %v505, 4294901760
        %v1549 = vsub.f32 %v505, %v1548
        %v1550 = vand.u32 %v1549, 4294901760
        %v1551 = vsub.f32 %v1549, %v1550
        %v1552 = vand.u32 %v1551, 4294901760
        %1553 = vmatprep.subr.mxu0 %v1552
        %v1554 = vand.u32 %v504, 4294901760
        %v1555 = vsub.f32 %v504, %v1554
        %v1556 = vand.u32 %v1555, 4294901760
        %v1557 = vsub.f32 %v1555, %v1556
        %v1558 = vand.u32 %v1557, 4294901760
        %1559 = vmatpush1.xpose.msra.mxu0 %v1558
        %v1560 = vand.u32 %v489, 4294901760
        %v1561 = vsub.f32 %v489, %v1560
        %v1562 = vand.u32 %v1561, 4294901760
        %v1563 = vsub.f32 %v1561, %v1562
        %v1564 = vand.u32 %v1563, 4294901760
        %1565 = vmatprep.subr.mxu0 %v1564
        %v1566 = vand.u32 %v488, 4294901760
        %v1567 = vsub.f32 %v488, %v1566
        %v1568 = vand.u32 %v1567, 4294901760
        %v1569 = vsub.f32 %v1567, %v1568
        %v1570 = vand.u32 %v1569, 4294901760
        %1571 = vmatpush1.xpose.msra.mxu0 %v1570
        %v1572 = vand.u32 %v473, 4294901760
        %v1573 = vsub.f32 %v473, %v1572
        %v1574 = vand.u32 %v1573, 4294901760
        %v1575 = vsub.f32 %v1573, %v1574
        %v1576 = vand.u32 %v1575, 4294901760
        %1577 = vmatprep.subr.mxu0 %v1576
        %v1578 = vand.u32 %v472, 4294901760
        %v1579 = vsub.f32 %v472, %v1578
        %v1580 = vand.u32 %v1579, 4294901760
        %v1581 = vsub.f32 %v1579, %v1580
        %v1582 = vand.u32 %v1581, 4294901760
        %1583 = vmatpush1.xpose.msra.mxu0 %v1582
        %v1584 = vand.u32 %v457, 4294901760
        %v1585 = vsub.f32 %v457, %v1584
        %v1586 = vand.u32 %v1585, 4294901760
        %v1587 = vsub.f32 %v1585, %v1586
        %v1588 = vand.u32 %v1587, 4294901760
        %1589 = vmatprep.subr.mxu0 %v1588
        %v1590 = vand.u32 %v456, 4294901760
        %v1591 = vsub.f32 %v456, %v1590
        %v1592 = vand.u32 %v1591, 4294901760
        %v1593 = vsub.f32 %v1591, %v1592
        %v1594 = vand.u32 %v1593, 4294901760
        %1595 = vmatpush1.xpose.msra.mxu0 %v1594
        %v1596 = vand.u32 %v441, 4294901760
        %v1597 = vsub.f32 %v441, %v1596
        %v1598 = vand.u32 %v1597, 4294901760
        %v1599 = vsub.f32 %v1597, %v1598
        %v1600 = vand.u32 %v1599, 4294901760
        %1601 = vmatprep.subr.mxu0 %v1600
        %v1602 = vand.u32 %v440, 4294901760
        %v1603 = vsub.f32 %v440, %v1602
        %v1604 = vand.u32 %v1603, 4294901760
        %v1605 = vsub.f32 %v1603, %v1604
        %v1606 = vand.u32 %v1605, 4294901760
        %1607 = vmatpush1.xpose.msra.mxu0 %v1606
        %v1608 = vand.u32 %v425, 4294901760
        %v1609 = vsub.f32 %v425, %v1608
        %v1610 = vand.u32 %v1609, 4294901760
        %v1611 = vsub.f32 %v1609, %v1610
        %v1612 = vand.u32 %v1611, 4294901760
        %1613 = vmatprep.subr.mxu0 %v1612
        %v1614 = vand.u32 %v424, 4294901760
        %v1615 = vsub.f32 %v424, %v1614
        %v1616 = vand.u32 %v1615, 4294901760
        %v1617 = vsub.f32 %v1615, %v1616
        %v1618 = vand.u32 %v1617, 4294901760
        %1619 = vmatpush1.xpose.msra.mxu0 %v1618
        %v1620 = vand.u32 %v409, 4294901760
        %v1621 = vsub.f32 %v409, %v1620
        %v1622 = vand.u32 %v1621, 4294901760
        %v1623 = vsub.f32 %v1621, %v1622
        %v1624 = vand.u32 %v1623, 4294901760
        %1625 = vmatprep.subr.mxu0 %v1624
        %v1626 = vand.u32 %v408, 4294901760
        %v1627 = vsub.f32 %v408, %v1626
        %v1628 = vand.u32 %v1627, 4294901760
        %v1629 = vsub.f32 %v1627, %v1628
        %v1630 = vand.u32 %v1629, 4294901760
        %1631 = vmatpush1.xpose.msra.mxu0 %v1630
        %v1632 = vand.u32 %v393, 4294901760
        %v1633 = vsub.f32 %v393, %v1632
        %v1634 = vand.u32 %v1633, 4294901760
        %v1635 = vsub.f32 %v1633, %v1634
        %v1636 = vand.u32 %v1635, 4294901760
        %1637 = vmatprep.subr.mxu0 %v1636
        %v1638 = vand.u32 %v392, 4294901760
        %v1639 = vsub.f32 %v392, %v1638
        %v1640 = vand.u32 %v1639, 4294901760
        %v1641 = vsub.f32 %v1639, %v1640
        %v1642 = vand.u32 %v1641, 4294901760
        %1643 = vmatpush1.xpose.msra.mxu0 %v1642
        %v1644 = vand.u32 %v377, 4294901760
        %v1645 = vsub.f32 %v377, %v1644
        %v1646 = vand.u32 %v1645, 4294901760
        %v1647 = vsub.f32 %v1645, %v1646
        %v1648 = vand.u32 %v1647, 4294901760
        %1649 = vmatprep.subr.mxu0 %v1648
        %v1650 = vand.u32 %v376, 4294901760
        %v1651 = vsub.f32 %v376, %v1650
        %v1652 = vand.u32 %v1651, 4294901760
        %v1653 = vsub.f32 %v1651, %v1652
        %v1654 = vand.u32 %v1653, 4294901760
        %1655 = vmatpush1.xpose.msra.mxu0 %v1654
        %v1656 = vand.u32 %v361, 4294901760
        %v1657 = vsub.f32 %v361, %v1656
        %v1658 = vand.u32 %v1657, 4294901760
        %v1659 = vsub.f32 %v1657, %v1658
        %v1660 = vand.u32 %v1659, 4294901760
        %1661 = vmatprep.subr.mxu0 %v1660
        %v1662 = vand.u32 %v360, 4294901760
        %v1663 = vsub.f32 %v360, %v1662
        %v1664 = vand.u32 %v1663, 4294901760
        %v1665 = vsub.f32 %v1663, %v1664
        %v1666 = vand.u32 %v1665, 4294901760
        %1667 = vmatpush1.xpose.msra.mxu0 %v1666
        %v1668 = vand.u32 %v345, 4294901760
        %v1669 = vsub.f32 %v345, %v1668
        %v1670 = vand.u32 %v1669, 4294901760
        %v1671 = vsub.f32 %v1669, %v1670
        %v1672 = vand.u32 %v1671, 4294901760
        %1673 = vmatprep.subr.mxu0 %v1672
        %v1674 = vand.u32 %v344, 4294901760
        %v1675 = vsub.f32 %v344, %v1674
        %v1676 = vand.u32 %v1675, 4294901760
        %v1677 = vsub.f32 %v1675, %v1676
        %v1678 = vand.u32 %v1677, 4294901760
        %1679 = vmatpush1.xpose.msra.mxu0 %v1678
        %v1680 = vand.u32 %v329, 4294901760
        %v1681 = vsub.f32 %v329, %v1680
        %v1682 = vand.u32 %v1681, 4294901760
        %v1683 = vsub.f32 %v1681, %v1682
        %v1684 = vand.u32 %v1683, 4294901760
        %1685 = vmatprep.subr.mxu0 %v1684
        %v1686 = vand.u32 %v328, 4294901760
        %v1687 = vsub.f32 %v328, %v1686
        %v1688 = vand.u32 %v1687, 4294901760
        %v1689 = vsub.f32 %v1687, %v1688
        %v1690 = vand.u32 %v1689, 4294901760
        %1691 = vmatpush1.xpose.msra.mxu0 %v1690
        %v1692 = vand.u32 %v313, 4294901760
        %v1693 = vsub.f32 %v313, %v1692
        %v1694 = vand.u32 %v1693, 4294901760
        %v1695 = vsub.f32 %v1693, %v1694
        %v1696 = vand.u32 %v1695, 4294901760
        %1697 = vmatprep.subr.mxu0 %v1696
        %v1698 = vand.u32 %v312, 4294901760
        %v1699 = vsub.f32 %v312, %v1698
        %v1700 = vand.u32 %v1699, 4294901760
        %v1701 = vsub.f32 %v1699, %v1700
        %v1702 = vand.u32 %v1701, 4294901760
        %1703 = vmatpush1.xpose.msra.mxu0 %v1702
        %v1704 = vand.u32 %v297, 4294901760
        %v1705 = vsub.f32 %v297, %v1704
        %v1706 = vand.u32 %v1705, 4294901760
        %v1707 = vsub.f32 %v1705, %v1706
        %v1708 = vand.u32 %v1707, 4294901760
        %1709 = vmatprep.subr.mxu0 %v1708
        %v1710 = vand.u32 %v296, 4294901760
        %v1711 = vsub.f32 %v296, %v1710
        %v1712 = vand.u32 %v1711, 4294901760
        %v1713 = vsub.f32 %v1711, %v1712
        %v1714 = vand.u32 %v1713, 4294901760
        %1715 = vmatpush1.xpose.msra.mxu0 %v1714
        %1716 = vmatprep.subr.mxu0 0.0
        %1717 = vmatpush2.xpose.msra.mxu0 0.0
        %1718 = vmatprep.subr.mxu0 0.0
        %1719 = vmatpush2.xpose.msra.mxu0 0.0
        %1720 = vmatprep.subr.mxu0 0.0
        %1721 = vmatpush2.xpose.msra.mxu0 0.0
        %1722 = vmatprep.subr.mxu0 0.0
        %1723 = vmatpush2.xpose.msra.mxu0 0.0
        %1724 = vmatprep.subr.mxu0 0.0
        %1725 = vmatpush2.xpose.msra.mxu0 0.0
        %1726 = vmatprep.subr.mxu0 0.0
        %1727 = vmatpush2.xpose.msra.mxu0 0.0
        %1728 = vmatprep.subr.mxu0 0.0
        %1729 = vmatpush2.xpose.msra.mxu0 0.0
        %1730 = vmatprep.subr.mxu0 0.0
        %1731 = vmatpush2.xpose.msra.mxu0 0.0
        %1732 = vmatprep.subr.mxu0 0.0
        %1733 = vmatpush2.xpose.msra.mxu0 0.0
        %1734 = vmatprep.subr.mxu0 0.0
        %1735 = vmatpush2.xpose.msra.mxu0 0.0
        %1736 = vmatprep.subr.mxu0 0.0
        %1737 = vmatpush2.xpose.msra.mxu0 0.0
        %1738 = vmatprep.subr.mxu0 0.0
        %1739 = vmatpush2.xpose.msra.mxu0 0.0
        %1740 = vmatprep.subr.mxu0 0.0
        %1741 = vmatpush2.xpose.msra.mxu0 0.0
        %1742 = vmatprep.subr.mxu0 0.0
        %1743 = vmatpush2.xpose.msra.mxu0 0.0
        %1744 = vmatprep.subr.mxu0 0.0
        %1745 = vmatpush2.xpose.msra.mxu0 0.0
        %1746 = vmatprep.subr.mxu0 0.0
        %1747 = vmatpush2.xpose.msra.mxu0 0.0
        %v1748 = vand.u32 %v281, 4294901760
        %1749 = vmatprep.mubr.f32.mxu0 %v1748
        %v1750 = vand.u32 %v280, 4294901760
        %1751 = vmatmul.mubr.f32.gmra.mxu0 %v1750
        %v1752 = vpop.f32.mrf.mxu0
        %v1753 = vadd.f32 %v1521, %v1752
        %v1754 = vpop.f32.mrf.mxu0
        %1755 = vdwg.mxu0
        %v1756 = vand.u32 %v537, 4294901760
        %v1757 = vsub.f32 %v537, %v1756
        %1758 = vmatprep.subr.mxu0 %v1757
        %v1759 = vand.u32 %v536, 4294901760
        %v1760 = vsub.f32 %v536, %v1759
        %1761 = vmatpush1.xpose.msra.mxu0 %v1760
        %v1762 = vand.u32 %v521, 4294901760
        %v1763 = vsub.f32 %v521, %v1762
        %1764 = vmatprep.subr.mxu0 %v1763
        %v1765 = vand.u32 %v520, 4294901760
        %v1766 = vsub.f32 %v520, %v1765
        %1767 = vmatpush1.xpose.msra.mxu0 %v1766
        %v1768 = vand.u32 %v505, 4294901760
        %v1769 = vsub.f32 %v505, %v1768
        %1770 = vmatprep.subr.mxu0 %v1769
        %v1771 = vand.u32 %v504, 4294901760
        %v1772 = vsub.f32 %v504, %v1771
        %1773 = vmatpush1.xpose.msra.mxu0 %v1772
        %v1774 = vand.u32 %v489, 4294901760
        %v1775 = vsub.f32 %v489, %v1774
        %1776 = vmatprep.subr.mxu0 %v1775
        %v1777 = vand.u32 %v488, 4294901760
        %v1778 = vsub.f32 %v488, %v1777
        %1779 = vmatpush1.xpose.msra.mxu0 %v1778
        %v1780 = vand.u32 %v473, 4294901760
        %v1781 = vsub.f32 %v473, %v1780
        %1782 = vmatprep.subr.mxu0 %v1781
        %v1783 = vand.u32 %v472, 4294901760
        %v1784 = vsub.f32 %v472, %v1783
        %1785 = vmatpush1.xpose.msra.mxu0 %v1784
        %v1786 = vand.u32 %v457, 4294901760
        %v1787 = vsub.f32 %v457, %v1786
        %1788 = vmatprep.subr.mxu0 %v1787
        %v1789 = vand.u32 %v456, 4294901760
        %v1790 = vsub.f32 %v456, %v1789
        %1791 = vmatpush1.xpose.msra.mxu0 %v1790
        %v1792 = vand.u32 %v441, 4294901760
        %v1793 = vsub.f32 %v441, %v1792
        %1794 = vmatprep.subr.mxu0 %v1793
        %v1795 = vand.u32 %v440, 4294901760
        %v1796 = vsub.f32 %v440, %v1795
        %1797 = vmatpush1.xpose.msra.mxu0 %v1796
        %v1798 = vand.u32 %v425, 4294901760
        %v1799 = vsub.f32 %v425, %v1798
        %1800 = vmatprep.subr.mxu0 %v1799
        %v1801 = vand.u32 %v424, 4294901760
        %v1802 = vsub.f32 %v424, %v1801
        %1803 = vmatpush1.xpose.msra.mxu0 %v1802
        %v1804 = vand.u32 %v409, 4294901760
        %v1805 = vsub.f32 %v409, %v1804
        %1806 = vmatprep.subr.mxu0 %v1805
        %v1807 = vand.u32 %v408, 4294901760
        %v1808 = vsub.f32 %v408, %v1807
        %1809 = vmatpush1.xpose.msra.mxu0 %v1808
        %v1810 = vand.u32 %v393, 4294901760
        %v1811 = vsub.f32 %v393, %v1810
        %1812 = vmatprep.subr.mxu0 %v1811
        %v1813 = vand.u32 %v392, 4294901760
        %v1814 = vsub.f32 %v392, %v1813
        %1815 = vmatpush1.xpose.msra.mxu0 %v1814
        %v1816 = vand.u32 %v377, 4294901760
        %v1817 = vsub.f32 %v377, %v1816
        %1818 = vmatprep.subr.mxu0 %v1817
        %v1819 = vand.u32 %v376, 4294901760
        %v1820 = vsub.f32 %v376, %v1819
        %1821 = vmatpush1.xpose.msra.mxu0 %v1820
        %v1822 = vand.u32 %v361, 4294901760
        %v1823 = vsub.f32 %v361, %v1822
        %1824 = vmatprep.subr.mxu0 %v1823
        %v1825 = vand.u32 %v360, 4294901760
        %v1826 = vsub.f32 %v360, %v1825
        %1827 = vmatpush1.xpose.msra.mxu0 %v1826
        %v1828 = vand.u32 %v345, 4294901760
        %v1829 = vsub.f32 %v345, %v1828
        %1830 = vmatprep.subr.mxu0 %v1829
        %v1831 = vand.u32 %v344, 4294901760
        %v1832 = vsub.f32 %v344, %v1831
        %1833 = vmatpush1.xpose.msra.mxu0 %v1832
        %v1834 = vand.u32 %v329, 4294901760
        %v1835 = vsub.f32 %v329, %v1834
        %1836 = vmatprep.subr.mxu0 %v1835
        %v1837 = vand.u32 %v328, 4294901760
        %v1838 = vsub.f32 %v328, %v1837
        %1839 = vmatpush1.xpose.msra.mxu0 %v1838
        %v1840 = vand.u32 %v313, 4294901760
        %v1841 = vsub.f32 %v313, %v1840
        %1842 = vmatprep.subr.mxu0 %v1841
        %v1843 = vand.u32 %v312, 4294901760
        %v1844 = vsub.f32 %v312, %v1843
        %1845 = vmatpush1.xpose.msra.mxu0 %v1844
        %v1846 = vand.u32 %v297, 4294901760
        %v1847 = vsub.f32 %v297, %v1846
        %1848 = vmatprep.subr.mxu0 %v1847
        %v1849 = vand.u32 %v296, 4294901760
        %v1850 = vsub.f32 %v296, %v1849
        %1851 = vmatpush1.xpose.msra.mxu0 %v1850
        %1852 = vmatprep.subr.mxu0 0.0
        %1853 = vmatpush2.xpose.msra.mxu0 0.0
        %1854 = vmatprep.subr.mxu0 0.0
        %1855 = vmatpush2.xpose.msra.mxu0 0.0
        %1856 = vmatprep.subr.mxu0 0.0
        %1857 = vmatpush2.xpose.msra.mxu0 0.0
        %1858 = vmatprep.subr.mxu0 0.0
        %1859 = vmatpush2.xpose.msra.mxu0 0.0
        %1860 = vmatprep.subr.mxu0 0.0
        %1861 = vmatpush2.xpose.msra.mxu0 0.0
        %1862 = vmatprep.subr.mxu0 0.0
        %1863 = vmatpush2.xpose.msra.mxu0 0.0
        %1864 = vmatprep.subr.mxu0 0.0
        %1865 = vmatpush2.xpose.msra.mxu0 0.0
        %1866 = vmatprep.subr.mxu0 0.0
        %1867 = vmatpush2.xpose.msra.mxu0 0.0
        %1868 = vmatprep.subr.mxu0 0.0
        %1869 = vmatpush2.xpose.msra.mxu0 0.0
        %1870 = vmatprep.subr.mxu0 0.0
        %1871 = vmatpush2.xpose.msra.mxu0 0.0
        %1872 = vmatprep.subr.mxu0 0.0
        %1873 = vmatpush2.xpose.msra.mxu0 0.0
        %1874 = vmatprep.subr.mxu0 0.0
        %1875 = vmatpush2.xpose.msra.mxu0 0.0
        %1876 = vmatprep.subr.mxu0 0.0
        %1877 = vmatpush2.xpose.msra.mxu0 0.0
        %1878 = vmatprep.subr.mxu0 0.0
        %1879 = vmatpush2.xpose.msra.mxu0 0.0
        %1880 = vmatprep.subr.mxu0 0.0
        %1881 = vmatpush2.xpose.msra.mxu0 0.0
        %1882 = vmatprep.subr.mxu0 0.0
        %1883 = vmatpush2.xpose.msra.mxu0 0.0
        %v1884 = vand.u32 %v281, 4294901760
        %v1885 = vsub.f32 %v281, %v1884
        %1886 = vmatprep.mubr.f32.mxu0 %v1885
        %v1887 = vand.u32 %v280, 4294901760
        %v1888 = vsub.f32 %v280, %v1887
        %1889 = vmatmul.mubr.f32.gmra.mxu0 %v1888
        %v1890 = vpop.f32.mrf.mxu0
        %v1891 = vadd.f32 %v1753, %v1890
        %v1892 = vpop.f32.mrf.mxu0
        %1893 = vdwg.mxu0
        %v1894 = vand.u32 %v537, 4294901760
        %1895 = vmatprep.subr.mxu0 %v1894
        %v1896 = vand.u32 %v536, 4294901760
        %1897 = vmatpush1.xpose.msra.mxu0 %v1896
        %v1898 = vand.u32 %v521, 4294901760
        %1899 = vmatprep.subr.mxu0 %v1898
        %v1900 = vand.u32 %v520, 4294901760
        %1901 = vmatpush1.xpose.msra.mxu0 %v1900
        %v1902 = vand.u32 %v505, 4294901760
        %1903 = vmatprep.subr.mxu0 %v1902
        %v1904 = vand.u32 %v504, 4294901760
        %1905 = vmatpush1.xpose.msra.mxu0 %v1904
        %v1906 = vand.u32 %v489, 4294901760
        %1907 = vmatprep.subr.mxu0 %v1906
        %v1908 = vand.u32 %v488, 4294901760
        %1909 = vmatpush1.xpose.msra.mxu0 %v1908
        %v1910 = vand.u32 %v473, 4294901760
        %1911 = vmatprep.subr.mxu0 %v1910
        %v1912 = vand.u32 %v472, 4294901760
        %1913 = vmatpush1.xpose.msra.mxu0 %v1912
        %v1914 = vand.u32 %v457, 4294901760
        %1915 = vmatprep.subr.mxu0 %v1914
        %v1916 = vand.u32 %v456, 4294901760
        %1917 = vmatpush1.xpose.msra.mxu0 %v1916
        %v1918 = vand.u32 %v441, 4294901760
        %1919 = vmatprep.subr.mxu0 %v1918
        %v1920 = vand.u32 %v440, 4294901760
        %1921 = vmatpush1.xpose.msra.mxu0 %v1920
        %v1922 = vand.u32 %v425, 4294901760
        %1923 = vmatprep.subr.mxu0 %v1922
        %v1924 = vand.u32 %v424, 4294901760
        %1925 = vmatpush1.xpose.msra.mxu0 %v1924
        %v1926 = vand.u32 %v409, 4294901760
        %1927 = vmatprep.subr.mxu0 %v1926
        %v1928 = vand.u32 %v408, 4294901760
        %1929 = vmatpush1.xpose.msra.mxu0 %v1928
        %v1930 = vand.u32 %v393, 4294901760
        %1931 = vmatprep.subr.mxu0 %v1930
        %v1932 = vand.u32 %v392, 4294901760
        %1933 = vmatpush1.xpose.msra.mxu0 %v1932
        %v1934 = vand.u32 %v377, 4294901760
        %1935 = vmatprep.subr.mxu0 %v1934
        %v1936 = vand.u32 %v376, 4294901760
        %1937 = vmatpush1.xpose.msra.mxu0 %v1936
        %v1938 = vand.u32 %v361, 4294901760
        %1939 = vmatprep.subr.mxu0 %v1938
        %v1940 = vand.u32 %v360, 4294901760
        %1941 = vmatpush1.xpose.msra.mxu0 %v1940
        %v1942 = vand.u32 %v345, 4294901760
        %1943 = vmatprep.subr.mxu0 %v1942
        %v1944 = vand.u32 %v344, 4294901760
        %1945 = vmatpush1.xpose.msra.mxu0 %v1944
        %v1946 = vand.u32 %v329, 4294901760
        %1947 = vmatprep.subr.mxu0 %v1946
        %v1948 = vand.u32 %v328, 4294901760
        %1949 = vmatpush1.xpose.msra.mxu0 %v1948
        %v1950 = vand.u32 %v313, 4294901760
        %1951 = vmatprep.subr.mxu0 %v1950
        %v1952 = vand.u32 %v312, 4294901760
        %1953 = vmatpush1.xpose.msra.mxu0 %v1952
        %v1954 = vand.u32 %v297, 4294901760
        %1955 = vmatprep.subr.mxu0 %v1954
        %v1956 = vand.u32 %v296, 4294901760
        %1957 = vmatpush1.xpose.msra.mxu0 %v1956
        %1958 = vmatprep.subr.mxu0 0.0
        %1959 = vmatpush2.xpose.msra.mxu0 0.0
        %1960 = vmatprep.subr.mxu0 0.0
        %1961 = vmatpush2.xpose.msra.mxu0 0.0
        %1962 = vmatprep.subr.mxu0 0.0
        %1963 = vmatpush2.xpose.msra.mxu0 0.0
        %1964 = vmatprep.subr.mxu0 0.0
        %1965 = vmatpush2.xpose.msra.mxu0 0.0
        %1966 = vmatprep.subr.mxu0 0.0
        %1967 = vmatpush2.xpose.msra.mxu0 0.0
        %1968 = vmatprep.subr.mxu0 0.0
        %1969 = vmatpush2.xpose.msra.mxu0 0.0
        %1970 = vmatprep.subr.mxu0 0.0
        %1971 = vmatpush2.xpose.msra.mxu0 0.0
        %1972 = vmatprep.subr.mxu0 0.0
        %1973 = vmatpush2.xpose.msra.mxu0 0.0
        %1974 = vmatprep.subr.mxu0 0.0
        %1975 = vmatpush2.xpose.msra.mxu0 0.0
        %1976 = vmatprep.subr.mxu0 0.0
        %1977 = vmatpush2.xpose.msra.mxu0 0.0
        %1978 = vmatprep.subr.mxu0 0.0
        %1979 = vmatpush2.xpose.msra.mxu0 0.0
        %1980 = vmatprep.subr.mxu0 0.0
        %1981 = vmatpush2.xpose.msra.mxu0 0.0
        %1982 = vmatprep.subr.mxu0 0.0
        %1983 = vmatpush2.xpose.msra.mxu0 0.0
        %1984 = vmatprep.subr.mxu0 0.0
        %1985 = vmatpush2.xpose.msra.mxu0 0.0
        %1986 = vmatprep.subr.mxu0 0.0
        %1987 = vmatpush2.xpose.msra.mxu0 0.0
        %1988 = vmatprep.subr.mxu0 0.0
        %1989 = vmatpush2.xpose.msra.mxu0 0.0
        %v1990 = vand.u32 %v281, 4294901760
        %v1991 = vsub.f32 %v281, %v1990
        %v1992 = vand.u32 %v1991, 4294901760
        %1993 = vmatprep.mubr.f32.mxu0 %v1992
        %v1994 = vand.u32 %v280, 4294901760
        %v1995 = vsub.f32 %v280, %v1994
        %v1996 = vand.u32 %v1995, 4294901760
        %1997 = vmatmul.mubr.f32.gmra.mxu0 %v1996
        %v1998 = vpop.f32.mrf.mxu0
        %v1999 = vadd.f32 %v1891, %v1998
        %v2000 = vpop.f32.mrf.mxu0
        %2001 = vdwg.mxu0
        %v2002 = vand.u32 %v537, 4294901760
        %v2003 = vsub.f32 %v537, %v2002
        %v2004 = vand.u32 %v2003, 4294901760
        %2005 = vmatprep.subr.mxu0 %v2004
        %v2006 = vand.u32 %v536, 4294901760
        %v2007 = vsub.f32 %v536, %v2006
        %v2008 = vand.u32 %v2007, 4294901760
        %2009 = vmatpush1.xpose.msra.mxu0 %v2008
        %v2010 = vand.u32 %v521, 4294901760
        %v2011 = vsub.f32 %v521, %v2010
        %v2012 = vand.u32 %v2011, 4294901760
        %2013 = vmatprep.subr.mxu0 %v2012
        %v2014 = vand.u32 %v520, 4294901760
        %v2015 = vsub.f32 %v520, %v2014
        %v2016 = vand.u32 %v2015, 4294901760
        %2017 = vmatpush1.xpose.msra.mxu0 %v2016
        %v2018 = vand.u32 %v505, 4294901760
        %v2019 = vsub.f32 %v505, %v2018
        %v2020 = vand.u32 %v2019, 4294901760
        %2021 = vmatprep.subr.mxu0 %v2020
        %v2022 = vand.u32 %v504, 4294901760
        %v2023 = vsub.f32 %v504, %v2022
        %v2024 = vand.u32 %v2023, 4294901760
        %2025 = vmatpush1.xpose.msra.mxu0 %v2024
        %v2026 = vand.u32 %v489, 4294901760
        %v2027 = vsub.f32 %v489, %v2026
        %v2028 = vand.u32 %v2027, 4294901760
        %2029 = vmatprep.subr.mxu0 %v2028
        %v2030 = vand.u32 %v488, 4294901760
        %v2031 = vsub.f32 %v488, %v2030
        %v2032 = vand.u32 %v2031, 4294901760
        %2033 = vmatpush1.xpose.msra.mxu0 %v2032
        %v2034 = vand.u32 %v473, 4294901760
        %v2035 = vsub.f32 %v473, %v2034
        %v2036 = vand.u32 %v2035, 4294901760
        %2037 = vmatprep.subr.mxu0 %v2036
        %v2038 = vand.u32 %v472, 4294901760
        %v2039 = vsub.f32 %v472, %v2038
        %v2040 = vand.u32 %v2039, 4294901760
        %2041 = vmatpush1.xpose.msra.mxu0 %v2040
        %v2042 = vand.u32 %v457, 4294901760
        %v2043 = vsub.f32 %v457, %v2042
        %v2044 = vand.u32 %v2043, 4294901760
        %2045 = vmatprep.subr.mxu0 %v2044
        %v2046 = vand.u32 %v456, 4294901760
        %v2047 = vsub.f32 %v456, %v2046
        %v2048 = vand.u32 %v2047, 4294901760
        %2049 = vmatpush1.xpose.msra.mxu0 %v2048
        %v2050 = vand.u32 %v441, 4294901760
        %v2051 = vsub.f32 %v441, %v2050
        %v2052 = vand.u32 %v2051, 4294901760
        %2053 = vmatprep.subr.mxu0 %v2052
        %v2054 = vand.u32 %v440, 4294901760
        %v2055 = vsub.f32 %v440, %v2054
        %v2056 = vand.u32 %v2055, 4294901760
        %2057 = vmatpush1.xpose.msra.mxu0 %v2056
        %v2058 = vand.u32 %v425, 4294901760
        %v2059 = vsub.f32 %v425, %v2058
        %v2060 = vand.u32 %v2059, 4294901760
        %2061 = vmatprep.subr.mxu0 %v2060
        %v2062 = vand.u32 %v424, 4294901760
        %v2063 = vsub.f32 %v424, %v2062
        %v2064 = vand.u32 %v2063, 4294901760
        %2065 = vmatpush1.xpose.msra.mxu0 %v2064
        %v2066 = vand.u32 %v409, 4294901760
        %v2067 = vsub.f32 %v409, %v2066
        %v2068 = vand.u32 %v2067, 4294901760
        %2069 = vmatprep.subr.mxu0 %v2068
        %v2070 = vand.u32 %v408, 4294901760
        %v2071 = vsub.f32 %v408, %v2070
        %v2072 = vand.u32 %v2071, 4294901760
        %2073 = vmatpush1.xpose.msra.mxu0 %v2072
        %v2074 = vand.u32 %v393, 4294901760
        %v2075 = vsub.f32 %v393, %v2074
        %v2076 = vand.u32 %v2075, 4294901760
        %2077 = vmatprep.subr.mxu0 %v2076
        %v2078 = vand.u32 %v392, 4294901760
        %v2079 = vsub.f32 %v392, %v2078
        %v2080 = vand.u32 %v2079, 4294901760
        %2081 = vmatpush1.xpose.msra.mxu0 %v2080
        %v2082 = vand.u32 %v377, 4294901760
        %v2083 = vsub.f32 %v377, %v2082
        %v2084 = vand.u32 %v2083, 4294901760
        %2085 = vmatprep.subr.mxu0 %v2084
        %v2086 = vand.u32 %v376, 4294901760
        %v2087 = vsub.f32 %v376, %v2086
        %v2088 = vand.u32 %v2087, 4294901760
        %2089 = vmatpush1.xpose.msra.mxu0 %v2088
        %v2090 = vand.u32 %v361, 4294901760
        %v2091 = vsub.f32 %v361, %v2090
        %v2092 = vand.u32 %v2091, 4294901760
        %2093 = vmatprep.subr.mxu0 %v2092
        %v2094 = vand.u32 %v360, 4294901760
        %v2095 = vsub.f32 %v360, %v2094
        %v2096 = vand.u32 %v2095, 4294901760
        %2097 = vmatpush1.xpose.msra.mxu0 %v2096
        %v2098 = vand.u32 %v345, 4294901760
        %v2099 = vsub.f32 %v345, %v2098
        %v2100 = vand.u32 %v2099, 4294901760
        %2101 = vmatprep.subr.mxu0 %v2100
        %v2102 = vand.u32 %v344, 4294901760
        %v2103 = vsub.f32 %v344, %v2102
        %v2104 = vand.u32 %v2103, 4294901760
        %2105 = vmatpush1.xpose.msra.mxu0 %v2104
        %v2106 = vand.u32 %v329, 4294901760
        %v2107 = vsub.f32 %v329, %v2106
        %v2108 = vand.u32 %v2107, 4294901760
        %2109 = vmatprep.subr.mxu0 %v2108
        %v2110 = vand.u32 %v328, 4294901760
        %v2111 = vsub.f32 %v328, %v2110
        %v2112 = vand.u32 %v2111, 4294901760
        %2113 = vmatpush1.xpose.msra.mxu0 %v2112
        %v2114 = vand.u32 %v313, 4294901760
        %v2115 = vsub.f32 %v313, %v2114
        %v2116 = vand.u32 %v2115, 4294901760
        %2117 = vmatprep.subr.mxu0 %v2116
        %v2118 = vand.u32 %v312, 4294901760
        %v2119 = vsub.f32 %v312, %v2118
        %v2120 = vand.u32 %v2119, 4294901760
        %2121 = vmatpush1.xpose.msra.mxu0 %v2120
        %v2122 = vand.u32 %v297, 4294901760
        %v2123 = vsub.f32 %v297, %v2122
        %v2124 = vand.u32 %v2123, 4294901760
        %2125 = vmatprep.subr.mxu0 %v2124
        %v2126 = vand.u32 %v296, 4294901760
        %v2127 = vsub.f32 %v296, %v2126
        %v2128 = vand.u32 %v2127, 4294901760
        %2129 = vmatpush1.xpose.msra.mxu0 %v2128
        %2130 = vmatprep.subr.mxu0 0.0
        %2131 = vmatpush2.xpose.msra.mxu0 0.0
        %2132 = vmatprep.subr.mxu0 0.0
        %2133 = vmatpush2.xpose.msra.mxu0 0.0
        %2134 = vmatprep.subr.mxu0 0.0
        %2135 = vmatpush2.xpose.msra.mxu0 0.0
        %2136 = vmatprep.subr.mxu0 0.0
        %2137 = vmatpush2.xpose.msra.mxu0 0.0
        %2138 = vmatprep.subr.mxu0 0.0
        %2139 = vmatpush2.xpose.msra.mxu0 0.0
        %2140 = vmatprep.subr.mxu0 0.0
        %2141 = vmatpush2.xpose.msra.mxu0 0.0
        %2142 = vmatprep.subr.mxu0 0.0
        %2143 = vmatpush2.xpose.msra.mxu0 0.0
        %2144 = vmatprep.subr.mxu0 0.0
        %2145 = vmatpush2.xpose.msra.mxu0 0.0
        %2146 = vmatprep.subr.mxu0 0.0
        %2147 = vmatpush2.xpose.msra.mxu0 0.0
        %2148 = vmatprep.subr.mxu0 0.0
        %2149 = vmatpush2.xpose.msra.mxu0 0.0
        %2150 = vmatprep.subr.mxu0 0.0
        %2151 = vmatpush2.xpose.msra.mxu0 0.0
        %2152 = vmatprep.subr.mxu0 0.0
        %2153 = vmatpush2.xpose.msra.mxu0 0.0
        %2154 = vmatprep.subr.mxu0 0.0
        %2155 = vmatpush2.xpose.msra.mxu0 0.0
        %2156 = vmatprep.subr.mxu0 0.0
        %2157 = vmatpush2.xpose.msra.mxu0 0.0
        %2158 = vmatprep.subr.mxu0 0.0
        %2159 = vmatpush2.xpose.msra.mxu0 0.0
        %2160 = vmatprep.subr.mxu0 0.0
        %2161 = vmatpush2.xpose.msra.mxu0 0.0
        %v2162 = vand.u32 %v281, 4294901760
        %2163 = vmatprep.mubr.f32.mxu0 %v2162
        %v2164 = vand.u32 %v280, 4294901760
        %2165 = vmatmul.mubr.f32.gmra.mxu0 %v2164
        %v2166 = vpop.f32.mrf.mxu0
        %v2167 = vadd.f32 %v1999, %v2166
        %v2168 = vpop.f32.mrf.mxu0
        %2169 = vdwg.mxu0
        %v2170 = vand.u32 %v537, 4294901760
        %2171 = vmatprep.subr.mxu0 %v2170
        %v2172 = vand.u32 %v536, 4294901760
        %2173 = vmatpush1.xpose.msra.mxu0 %v2172
        %v2174 = vand.u32 %v521, 4294901760
        %2175 = vmatprep.subr.mxu0 %v2174
        %v2176 = vand.u32 %v520, 4294901760
        %2177 = vmatpush1.xpose.msra.mxu0 %v2176
        %v2178 = vand.u32 %v505, 4294901760
        %2179 = vmatprep.subr.mxu0 %v2178
        %v2180 = vand.u32 %v504, 4294901760
        %2181 = vmatpush1.xpose.msra.mxu0 %v2180
        %v2182 = vand.u32 %v489, 4294901760
        %2183 = vmatprep.subr.mxu0 %v2182
        %v2184 = vand.u32 %v488, 4294901760
        %2185 = vmatpush1.xpose.msra.mxu0 %v2184
        %v2186 = vand.u32 %v473, 4294901760
        %2187 = vmatprep.subr.mxu0 %v2186
        %v2188 = vand.u32 %v472, 4294901760
        %2189 = vmatpush1.xpose.msra.mxu0 %v2188
        %v2190 = vand.u32 %v457, 4294901760
        %2191 = vmatprep.subr.mxu0 %v2190
        %v2192 = vand.u32 %v456, 4294901760
        %2193 = vmatpush1.xpose.msra.mxu0 %v2192
        %v2194 = vand.u32 %v441, 4294901760
        %2195 = vmatprep.subr.mxu0 %v2194
        %v2196 = vand.u32 %v440, 4294901760
        %2197 = vmatpush1.xpose.msra.mxu0 %v2196
        %v2198 = vand.u32 %v425, 4294901760
        %2199 = vmatprep.subr.mxu0 %v2198
        %v2200 = vand.u32 %v424, 4294901760
        %2201 = vmatpush1.xpose.msra.mxu0 %v2200
        %v2202 = vand.u32 %v409, 4294901760
        %2203 = vmatprep.subr.mxu0 %v2202
        %v2204 = vand.u32 %v408, 4294901760
        %2205 = vmatpush1.xpose.msra.mxu0 %v2204
        %v2206 = vand.u32 %v393, 4294901760
        %2207 = vmatprep.subr.mxu0 %v2206
        %v2208 = vand.u32 %v392, 4294901760
        %2209 = vmatpush1.xpose.msra.mxu0 %v2208
        %v2210 = vand.u32 %v377, 4294901760
        %2211 = vmatprep.subr.mxu0 %v2210
        %v2212 = vand.u32 %v376, 4294901760
        %2213 = vmatpush1.xpose.msra.mxu0 %v2212
        %v2214 = vand.u32 %v361, 4294901760
        %2215 = vmatprep.subr.mxu0 %v2214
        %v2216 = vand.u32 %v360, 4294901760
        %2217 = vmatpush1.xpose.msra.mxu0 %v2216
        %v2218 = vand.u32 %v345, 4294901760
        %2219 = vmatprep.subr.mxu0 %v2218
        %v2220 = vand.u32 %v344, 4294901760
        %2221 = vmatpush1.xpose.msra.mxu0 %v2220
        %v2222 = vand.u32 %v329, 4294901760
        %2223 = vmatprep.subr.mxu0 %v2222
        %v2224 = vand.u32 %v328, 4294901760
        %2225 = vmatpush1.xpose.msra.mxu0 %v2224
        %v2226 = vand.u32 %v313, 4294901760
        %2227 = vmatprep.subr.mxu0 %v2226
        %v2228 = vand.u32 %v312, 4294901760
        %2229 = vmatpush1.xpose.msra.mxu0 %v2228
        %v2230 = vand.u32 %v297, 4294901760
        %2231 = vmatprep.subr.mxu0 %v2230
        %v2232 = vand.u32 %v296, 4294901760
        %2233 = vmatpush1.xpose.msra.mxu0 %v2232
        %2234 = vmatprep.subr.mxu0 0.0
        %2235 = vmatpush2.xpose.msra.mxu0 0.0
        %2236 = vmatprep.subr.mxu0 0.0
        %2237 = vmatpush2.xpose.msra.mxu0 0.0
        %2238 = vmatprep.subr.mxu0 0.0
        %2239 = vmatpush2.xpose.msra.mxu0 0.0
        %2240 = vmatprep.subr.mxu0 0.0
        %2241 = vmatpush2.xpose.msra.mxu0 0.0
        %2242 = vmatprep.subr.mxu0 0.0
        %2243 = vmatpush2.xpose.msra.mxu0 0.0
        %2244 = vmatprep.subr.mxu0 0.0
        %2245 = vmatpush2.xpose.msra.mxu0 0.0
        %2246 = vmatprep.subr.mxu0 0.0
        %2247 = vmatpush2.xpose.msra.mxu0 0.0
        %2248 = vmatprep.subr.mxu0 0.0
        %2249 = vmatpush2.xpose.msra.mxu0 0.0
        %2250 = vmatprep.subr.mxu0 0.0
        %2251 = vmatpush2.xpose.msra.mxu0 0.0
        %2252 = vmatprep.subr.mxu0 0.0
        %2253 = vmatpush2.xpose.msra.mxu0 0.0
        %2254 = vmatprep.subr.mxu0 0.0
        %2255 = vmatpush2.xpose.msra.mxu0 0.0
        %2256 = vmatprep.subr.mxu0 0.0
        %2257 = vmatpush2.xpose.msra.mxu0 0.0
        %2258 = vmatprep.subr.mxu0 0.0
        %2259 = vmatpush2.xpose.msra.mxu0 0.0
        %2260 = vmatprep.subr.mxu0 0.0
        %2261 = vmatpush2.xpose.msra.mxu0 0.0
        %2262 = vmatprep.subr.mxu0 0.0
        %2263 = vmatpush2.xpose.msra.mxu0 0.0
        %2264 = vmatprep.subr.mxu0 0.0
        %2265 = vmatpush2.xpose.msra.mxu0 0.0
        %v2266 = vand.u32 %v281, 4294901760
        %2267 = vmatprep.mubr.f32.mxu0 %v2266
        %v2268 = vand.u32 %v280, 4294901760
        %2269 = vmatmul.mubr.f32.gmra.mxu0 %v2268
        %v2270 = vpop.f32.mrf.mxu0
        %v2271 = vadd.f32 %v2167, %v2270
        %v2272 = vpop.f32.mrf.mxu0
        %2273 = vdwg.mxu0
        %v2274 = vand.u32 %v539, 4294901760
        %2275 = vmatprep.subr.mxu0 %v2274
        %v2276 = vand.u32 %v538, 4294901760
        %2277 = vmatpush1.xpose.msra.mxu0 %v2276
        %v2278 = vand.u32 %v523, 4294901760
        %2279 = vmatprep.subr.mxu0 %v2278
        %v2280 = vand.u32 %v522, 4294901760
        %2281 = vmatpush1.xpose.msra.mxu0 %v2280
        %v2282 = vand.u32 %v507, 4294901760
        %2283 = vmatprep.subr.mxu0 %v2282
        %v2284 = vand.u32 %v506, 4294901760
        %2285 = vmatpush1.xpose.msra.mxu0 %v2284
        %v2286 = vand.u32 %v491, 4294901760
        %2287 = vmatprep.subr.mxu0 %v2286
        %v2288 = vand.u32 %v490, 4294901760
        %2289 = vmatpush1.xpose.msra.mxu0 %v2288
        %v2290 = vand.u32 %v475, 4294901760
        %2291 = vmatprep.subr.mxu0 %v2290
        %v2292 = vand.u32 %v474, 4294901760
        %2293 = vmatpush1.xpose.msra.mxu0 %v2292
        %v2294 = vand.u32 %v459, 4294901760
        %2295 = vmatprep.subr.mxu0 %v2294
        %v2296 = vand.u32 %v458, 4294901760
        %2297 = vmatpush1.xpose.msra.mxu0 %v2296
        %v2298 = vand.u32 %v443, 4294901760
        %2299 = vmatprep.subr.mxu0 %v2298
        %v2300 = vand.u32 %v442, 4294901760
        %2301 = vmatpush1.xpose.msra.mxu0 %v2300
        %v2302 = vand.u32 %v427, 4294901760
        %2303 = vmatprep.subr.mxu0 %v2302
        %v2304 = vand.u32 %v426, 4294901760
        %2305 = vmatpush1.xpose.msra.mxu0 %v2304
        %v2306 = vand.u32 %v411, 4294901760
        %2307 = vmatprep.subr.mxu0 %v2306
        %v2308 = vand.u32 %v410, 4294901760
        %2309 = vmatpush1.xpose.msra.mxu0 %v2308
        %v2310 = vand.u32 %v395, 4294901760
        %2311 = vmatprep.subr.mxu0 %v2310
        %v2312 = vand.u32 %v394, 4294901760
        %2313 = vmatpush1.xpose.msra.mxu0 %v2312
        %v2314 = vand.u32 %v379, 4294901760
        %2315 = vmatprep.subr.mxu0 %v2314
        %v2316 = vand.u32 %v378, 4294901760
        %2317 = vmatpush1.xpose.msra.mxu0 %v2316
        %v2318 = vand.u32 %v363, 4294901760
        %2319 = vmatprep.subr.mxu0 %v2318
        %v2320 = vand.u32 %v362, 4294901760
        %2321 = vmatpush1.xpose.msra.mxu0 %v2320
        %v2322 = vand.u32 %v347, 4294901760
        %2323 = vmatprep.subr.mxu0 %v2322
        %v2324 = vand.u32 %v346, 4294901760
        %2325 = vmatpush1.xpose.msra.mxu0 %v2324
        %v2326 = vand.u32 %v331, 4294901760
        %2327 = vmatprep.subr.mxu0 %v2326
        %v2328 = vand.u32 %v330, 4294901760
        %2329 = vmatpush1.xpose.msra.mxu0 %v2328
        %v2330 = vand.u32 %v315, 4294901760
        %2331 = vmatprep.subr.mxu0 %v2330
        %v2332 = vand.u32 %v314, 4294901760
        %2333 = vmatpush1.xpose.msra.mxu0 %v2332
        %v2334 = vand.u32 %v299, 4294901760
        %2335 = vmatprep.subr.mxu0 %v2334
        %v2336 = vand.u32 %v298, 4294901760
        %2337 = vmatpush1.xpose.msra.mxu0 %v2336
        %2338 = vmatprep.subr.mxu0 0.0
        %2339 = vmatpush2.xpose.msra.mxu0 0.0
        %2340 = vmatprep.subr.mxu0 0.0
        %2341 = vmatpush2.xpose.msra.mxu0 0.0
        %2342 = vmatprep.subr.mxu0 0.0
        %2343 = vmatpush2.xpose.msra.mxu0 0.0
        %2344 = vmatprep.subr.mxu0 0.0
        %2345 = vmatpush2.xpose.msra.mxu0 0.0
        %2346 = vmatprep.subr.mxu0 0.0
        %2347 = vmatpush2.xpose.msra.mxu0 0.0
        %2348 = vmatprep.subr.mxu0 0.0
        %2349 = vmatpush2.xpose.msra.mxu0 0.0
        %2350 = vmatprep.subr.mxu0 0.0
        %2351 = vmatpush2.xpose.msra.mxu0 0.0
        %2352 = vmatprep.subr.mxu0 0.0
        %2353 = vmatpush2.xpose.msra.mxu0 0.0
        %2354 = vmatprep.subr.mxu0 0.0
        %2355 = vmatpush2.xpose.msra.mxu0 0.0
        %2356 = vmatprep.subr.mxu0 0.0
        %2357 = vmatpush2.xpose.msra.mxu0 0.0
        %2358 = vmatprep.subr.mxu0 0.0
        %2359 = vmatpush2.xpose.msra.mxu0 0.0
        %2360 = vmatprep.subr.mxu0 0.0
        %2361 = vmatpush2.xpose.msra.mxu0 0.0
        %2362 = vmatprep.subr.mxu0 0.0
        %2363 = vmatpush2.xpose.msra.mxu0 0.0
        %2364 = vmatprep.subr.mxu0 0.0
        %2365 = vmatpush2.xpose.msra.mxu0 0.0
        %2366 = vmatprep.subr.mxu0 0.0
        %2367 = vmatpush2.xpose.msra.mxu0 0.0
        %2368 = vmatprep.subr.mxu0 0.0
        %2369 = vmatpush2.xpose.msra.mxu0 0.0
        %v2370 = vand.u32 %v283, 4294901760
        %v2371 = vsub.f32 %v283, %v2370
        %v2372 = vand.u32 %v2371, 4294901760
        %v2373 = vsub.f32 %v2371, %v2372
        %v2374 = vand.u32 %v2373, 4294901760
        %2375 = vmatprep.mubr.f32.mxu0 %v2374
        %v2376 = vand.u32 %v282, 4294901760
        %v2377 = vsub.f32 %v282, %v2376
        %v2378 = vand.u32 %v2377, 4294901760
        %v2379 = vsub.f32 %v2377, %v2378
        %v2380 = vand.u32 %v2379, 4294901760
        %2381 = vmatmul.mubr.f32.gmra.mxu0 %v2380
        %v2382 = vpop.f32.mrf.mxu0
        %v2383 = vadd.f32 %v2271, %v2382
        %v2384 = vpop.f32.mrf.mxu0
        %2385 = vdwg.mxu0
        %v2386 = vand.u32 %v539, 4294901760
        %v2387 = vsub.f32 %v539, %v2386
        %v2388 = vand.u32 %v2387, 4294901760
        %v2389 = vsub.f32 %v2387, %v2388
        %v2390 = vand.u32 %v2389, 4294901760
        %2391 = vmatprep.subr.mxu0 %v2390
        %v2392 = vand.u32 %v538, 4294901760
        %v2393 = vsub.f32 %v538, %v2392
        %v2394 = vand.u32 %v2393, 4294901760
        %v2395 = vsub.f32 %v2393, %v2394
        %v2396 = vand.u32 %v2395, 4294901760
        %2397 = vmatpush1.xpose.msra.mxu0 %v2396
        %v2398 = vand.u32 %v523, 4294901760
        %v2399 = vsub.f32 %v523, %v2398
        %v2400 = vand.u32 %v2399, 4294901760
        %v2401 = vsub.f32 %v2399, %v2400
        %v2402 = vand.u32 %v2401, 4294901760
        %2403 = vmatprep.subr.mxu0 %v2402
        %v2404 = vand.u32 %v522, 4294901760
        %v2405 = vsub.f32 %v522, %v2404
        %v2406 = vand.u32 %v2405, 4294901760
        %v2407 = vsub.f32 %v2405, %v2406
        %v2408 = vand.u32 %v2407, 4294901760
        %2409 = vmatpush1.xpose.msra.mxu0 %v2408
        %v2410 = vand.u32 %v507, 4294901760
        %v2411 = vsub.f32 %v507, %v2410
        %v2412 = vand.u32 %v2411, 4294901760
        %v2413 = vsub.f32 %v2411, %v2412
        %v2414 = vand.u32 %v2413, 4294901760
        %2415 = vmatprep.subr.mxu0 %v2414
        %v2416 = vand.u32 %v506, 4294901760
        %v2417 = vsub.f32 %v506, %v2416
        %v2418 = vand.u32 %v2417, 4294901760
        %v2419 = vsub.f32 %v2417, %v2418
        %v2420 = vand.u32 %v2419, 4294901760
        %2421 = vmatpush1.xpose.msra.mxu0 %v2420
        %v2422 = vand.u32 %v491, 4294901760
        %v2423 = vsub.f32 %v491, %v2422
        %v2424 = vand.u32 %v2423, 4294901760
        %v2425 = vsub.f32 %v2423, %v2424
        %v2426 = vand.u32 %v2425, 4294901760
        %2427 = vmatprep.subr.mxu0 %v2426
        %v2428 = vand.u32 %v490, 4294901760
        %v2429 = vsub.f32 %v490, %v2428
        %v2430 = vand.u32 %v2429, 4294901760
        %v2431 = vsub.f32 %v2429, %v2430
        %v2432 = vand.u32 %v2431, 4294901760
        %2433 = vmatpush1.xpose.msra.mxu0 %v2432
        %v2434 = vand.u32 %v475, 4294901760
        %v2435 = vsub.f32 %v475, %v2434
        %v2436 = vand.u32 %v2435, 4294901760
        %v2437 = vsub.f32 %v2435, %v2436
        %v2438 = vand.u32 %v2437, 4294901760
        %2439 = vmatprep.subr.mxu0 %v2438
        %v2440 = vand.u32 %v474, 4294901760
        %v2441 = vsub.f32 %v474, %v2440
        %v2442 = vand.u32 %v2441, 4294901760
        %v2443 = vsub.f32 %v2441, %v2442
        %v2444 = vand.u32 %v2443, 4294901760
        %2445 = vmatpush1.xpose.msra.mxu0 %v2444
        %v2446 = vand.u32 %v459, 4294901760
        %v2447 = vsub.f32 %v459, %v2446
        %v2448 = vand.u32 %v2447, 4294901760
        %v2449 = vsub.f32 %v2447, %v2448
        %v2450 = vand.u32 %v2449, 4294901760
        %2451 = vmatprep.subr.mxu0 %v2450
        %v2452 = vand.u32 %v458, 4294901760
        %v2453 = vsub.f32 %v458, %v2452
        %v2454 = vand.u32 %v2453, 4294901760
        %v2455 = vsub.f32 %v2453, %v2454
        %v2456 = vand.u32 %v2455, 4294901760
        %2457 = vmatpush1.xpose.msra.mxu0 %v2456
        %v2458 = vand.u32 %v443, 4294901760
        %v2459 = vsub.f32 %v443, %v2458
        %v2460 = vand.u32 %v2459, 4294901760
        %v2461 = vsub.f32 %v2459, %v2460
        %v2462 = vand.u32 %v2461, 4294901760
        %2463 = vmatprep.subr.mxu0 %v2462
        %v2464 = vand.u32 %v442, 4294901760
        %v2465 = vsub.f32 %v442, %v2464
        %v2466 = vand.u32 %v2465, 4294901760
        %v2467 = vsub.f32 %v2465, %v2466
        %v2468 = vand.u32 %v2467, 4294901760
        %2469 = vmatpush1.xpose.msra.mxu0 %v2468
        %v2470 = vand.u32 %v427, 4294901760
        %v2471 = vsub.f32 %v427, %v2470
        %v2472 = vand.u32 %v2471, 4294901760
        %v2473 = vsub.f32 %v2471, %v2472
        %v2474 = vand.u32 %v2473, 4294901760
        %2475 = vmatprep.subr.mxu0 %v2474
        %v2476 = vand.u32 %v426, 4294901760
        %v2477 = vsub.f32 %v426, %v2476
        %v2478 = vand.u32 %v2477, 4294901760
        %v2479 = vsub.f32 %v2477, %v2478
        %v2480 = vand.u32 %v2479, 4294901760
        %2481 = vmatpush1.xpose.msra.mxu0 %v2480
        %v2482 = vand.u32 %v411, 4294901760
        %v2483 = vsub.f32 %v411, %v2482
        %v2484 = vand.u32 %v2483, 4294901760
        %v2485 = vsub.f32 %v2483, %v2484
        %v2486 = vand.u32 %v2485, 4294901760
        %2487 = vmatprep.subr.mxu0 %v2486
        %v2488 = vand.u32 %v410, 4294901760
        %v2489 = vsub.f32 %v410, %v2488
        %v2490 = vand.u32 %v2489, 4294901760
        %v2491 = vsub.f32 %v2489, %v2490
        %v2492 = vand.u32 %v2491, 4294901760
        %2493 = vmatpush1.xpose.msra.mxu0 %v2492
        %v2494 = vand.u32 %v395, 4294901760
        %v2495 = vsub.f32 %v395, %v2494
        %v2496 = vand.u32 %v2495, 4294901760
        %v2497 = vsub.f32 %v2495, %v2496
        %v2498 = vand.u32 %v2497, 4294901760
        %2499 = vmatprep.subr.mxu0 %v2498
        %v2500 = vand.u32 %v394, 4294901760
        %v2501 = vsub.f32 %v394, %v2500
        %v2502 = vand.u32 %v2501, 4294901760
        %v2503 = vsub.f32 %v2501, %v2502
        %v2504 = vand.u32 %v2503, 4294901760
        %2505 = vmatpush1.xpose.msra.mxu0 %v2504
        %v2506 = vand.u32 %v379, 4294901760
        %v2507 = vsub.f32 %v379, %v2506
        %v2508 = vand.u32 %v2507, 4294901760
        %v2509 = vsub.f32 %v2507, %v2508
        %v2510 = vand.u32 %v2509, 4294901760
        %2511 = vmatprep.subr.mxu0 %v2510
        %v2512 = vand.u32 %v378, 4294901760
        %v2513 = vsub.f32 %v378, %v2512
        %v2514 = vand.u32 %v2513, 4294901760
        %v2515 = vsub.f32 %v2513, %v2514
        %v2516 = vand.u32 %v2515, 4294901760
        %2517 = vmatpush1.xpose.msra.mxu0 %v2516
        %v2518 = vand.u32 %v363, 4294901760
        %v2519 = vsub.f32 %v363, %v2518
        %v2520 = vand.u32 %v2519, 4294901760
        %v2521 = vsub.f32 %v2519, %v2520
        %v2522 = vand.u32 %v2521, 4294901760
        %2523 = vmatprep.subr.mxu0 %v2522
        %v2524 = vand.u32 %v362, 4294901760
        %v2525 = vsub.f32 %v362, %v2524
        %v2526 = vand.u32 %v2525, 4294901760
        %v2527 = vsub.f32 %v2525, %v2526
        %v2528 = vand.u32 %v2527, 4294901760
        %2529 = vmatpush1.xpose.msra.mxu0 %v2528
        %v2530 = vand.u32 %v347, 4294901760
        %v2531 = vsub.f32 %v347, %v2530
        %v2532 = vand.u32 %v2531, 4294901760
        %v2533 = vsub.f32 %v2531, %v2532
        %v2534 = vand.u32 %v2533, 4294901760
        %2535 = vmatprep.subr.mxu0 %v2534
        %v2536 = vand.u32 %v346, 4294901760
        %v2537 = vsub.f32 %v346, %v2536
        %v2538 = vand.u32 %v2537, 4294901760
        %v2539 = vsub.f32 %v2537, %v2538
        %v2540 = vand.u32 %v2539, 4294901760
        %2541 = vmatpush1.xpose.msra.mxu0 %v2540
        %v2542 = vand.u32 %v331, 4294901760
        %v2543 = vsub.f32 %v331, %v2542
        %v2544 = vand.u32 %v2543, 4294901760
        %v2545 = vsub.f32 %v2543, %v2544
        %v2546 = vand.u32 %v2545, 4294901760
        %2547 = vmatprep.subr.mxu0 %v2546
        %v2548 = vand.u32 %v330, 4294901760
        %v2549 = vsub.f32 %v330, %v2548
        %v2550 = vand.u32 %v2549, 4294901760
        %v2551 = vsub.f32 %v2549, %v2550
        %v2552 = vand.u32 %v2551, 4294901760
        %2553 = vmatpush1.xpose.msra.mxu0 %v2552
        %v2554 = vand.u32 %v315, 4294901760
        %v2555 = vsub.f32 %v315, %v2554
        %v2556 = vand.u32 %v2555, 4294901760
        %v2557 = vsub.f32 %v2555, %v2556
        %v2558 = vand.u32 %v2557, 4294901760
        %2559 = vmatprep.subr.mxu0 %v2558
        %v2560 = vand.u32 %v314, 4294901760
        %v2561 = vsub.f32 %v314, %v2560
        %v2562 = vand.u32 %v2561, 4294901760
        %v2563 = vsub.f32 %v2561, %v2562
        %v2564 = vand.u32 %v2563, 4294901760
        %2565 = vmatpush1.xpose.msra.mxu0 %v2564
        %v2566 = vand.u32 %v299, 4294901760
        %v2567 = vsub.f32 %v299, %v2566
        %v2568 = vand.u32 %v2567, 4294901760
        %v2569 = vsub.f32 %v2567, %v2568
        %v2570 = vand.u32 %v2569, 4294901760
        %2571 = vmatprep.subr.mxu0 %v2570
        %v2572 = vand.u32 %v298, 4294901760
        %v2573 = vsub.f32 %v298, %v2572
        %v2574 = vand.u32 %v2573, 4294901760
        %v2575 = vsub.f32 %v2573, %v2574
        %v2576 = vand.u32 %v2575, 4294901760
        %2577 = vmatpush1.xpose.msra.mxu0 %v2576
        %2578 = vmatprep.subr.mxu0 0.0
        %2579 = vmatpush2.xpose.msra.mxu0 0.0
        %2580 = vmatprep.subr.mxu0 0.0
        %2581 = vmatpush2.xpose.msra.mxu0 0.0
        %2582 = vmatprep.subr.mxu0 0.0
        %2583 = vmatpush2.xpose.msra.mxu0 0.0
        %2584 = vmatprep.subr.mxu0 0.0
        %2585 = vmatpush2.xpose.msra.mxu0 0.0
        %2586 = vmatprep.subr.mxu0 0.0
        %2587 = vmatpush2.xpose.msra.mxu0 0.0
        %2588 = vmatprep.subr.mxu0 0.0
        %2589 = vmatpush2.xpose.msra.mxu0 0.0
        %2590 = vmatprep.subr.mxu0 0.0
        %2591 = vmatpush2.xpose.msra.mxu0 0.0
        %2592 = vmatprep.subr.mxu0 0.0
        %2593 = vmatpush2.xpose.msra.mxu0 0.0
        %2594 = vmatprep.subr.mxu0 0.0
        %2595 = vmatpush2.xpose.msra.mxu0 0.0
        %2596 = vmatprep.subr.mxu0 0.0
        %2597 = vmatpush2.xpose.msra.mxu0 0.0
        %2598 = vmatprep.subr.mxu0 0.0
        %2599 = vmatpush2.xpose.msra.mxu0 0.0
        %2600 = vmatprep.subr.mxu0 0.0
        %2601 = vmatpush2.xpose.msra.mxu0 0.0
        %2602 = vmatprep.subr.mxu0 0.0
        %2603 = vmatpush2.xpose.msra.mxu0 0.0
        %2604 = vmatprep.subr.mxu0 0.0
        %2605 = vmatpush2.xpose.msra.mxu0 0.0
        %2606 = vmatprep.subr.mxu0 0.0
        %2607 = vmatpush2.xpose.msra.mxu0 0.0
        %2608 = vmatprep.subr.mxu0 0.0
        %2609 = vmatpush2.xpose.msra.mxu0 0.0
        %v2610 = vand.u32 %v283, 4294901760
        %2611 = vmatprep.mubr.f32.mxu0 %v2610
        %v2612 = vand.u32 %v282, 4294901760
        %2613 = vmatmul.mubr.f32.gmra.mxu0 %v2612
        %v2614 = vpop.f32.mrf.mxu0
        %v2615 = vadd.f32 %v2383, %v2614
        %v2616 = vpop.f32.mrf.mxu0
        %2617 = vdwg.mxu0
        %v2618 = vand.u32 %v539, 4294901760
        %v2619 = vsub.f32 %v539, %v2618
        %2620 = vmatprep.subr.mxu0 %v2619
        %v2621 = vand.u32 %v538, 4294901760
        %v2622 = vsub.f32 %v538, %v2621
        %2623 = vmatpush1.xpose.msra.mxu0 %v2622
        %v2624 = vand.u32 %v523, 4294901760
        %v2625 = vsub.f32 %v523, %v2624
        %2626 = vmatprep.subr.mxu0 %v2625
        %v2627 = vand.u32 %v522, 4294901760
        %v2628 = vsub.f32 %v522, %v2627
        %2629 = vmatpush1.xpose.msra.mxu0 %v2628
        %v2630 = vand.u32 %v507, 4294901760
        %v2631 = vsub.f32 %v507, %v2630
        %2632 = vmatprep.subr.mxu0 %v2631
        %v2633 = vand.u32 %v506, 4294901760
        %v2634 = vsub.f32 %v506, %v2633
        %2635 = vmatpush1.xpose.msra.mxu0 %v2634
        %v2636 = vand.u32 %v491, 4294901760
        %v2637 = vsub.f32 %v491, %v2636
        %2638 = vmatprep.subr.mxu0 %v2637
        %v2639 = vand.u32 %v490, 4294901760
        %v2640 = vsub.f32 %v490, %v2639
        %2641 = vmatpush1.xpose.msra.mxu0 %v2640
        %v2642 = vand.u32 %v475, 4294901760
        %v2643 = vsub.f32 %v475, %v2642
        %2644 = vmatprep.subr.mxu0 %v2643
        %v2645 = vand.u32 %v474, 4294901760
        %v2646 = vsub.f32 %v474, %v2645
        %2647 = vmatpush1.xpose.msra.mxu0 %v2646
        %v2648 = vand.u32 %v459, 4294901760
        %v2649 = vsub.f32 %v459, %v2648
        %2650 = vmatprep.subr.mxu0 %v2649
        %v2651 = vand.u32 %v458, 4294901760
        %v2652 = vsub.f32 %v458, %v2651
        %2653 = vmatpush1.xpose.msra.mxu0 %v2652
        %v2654 = vand.u32 %v443, 4294901760
        %v2655 = vsub.f32 %v443, %v2654
        %2656 = vmatprep.subr.mxu0 %v2655
        %v2657 = vand.u32 %v442, 4294901760
        %v2658 = vsub.f32 %v442, %v2657
        %2659 = vmatpush1.xpose.msra.mxu0 %v2658
        %v2660 = vand.u32 %v427, 4294901760
        %v2661 = vsub.f32 %v427, %v2660
        %2662 = vmatprep.subr.mxu0 %v2661
        %v2663 = vand.u32 %v426, 4294901760
        %v2664 = vsub.f32 %v426, %v2663
        %2665 = vmatpush1.xpose.msra.mxu0 %v2664
        %v2666 = vand.u32 %v411, 4294901760
        %v2667 = vsub.f32 %v411, %v2666
        %2668 = vmatprep.subr.mxu0 %v2667
        %v2669 = vand.u32 %v410, 4294901760
        %v2670 = vsub.f32 %v410, %v2669
        %2671 = vmatpush1.xpose.msra.mxu0 %v2670
        %v2672 = vand.u32 %v395, 4294901760
        %v2673 = vsub.f32 %v395, %v2672
        %2674 = vmatprep.subr.mxu0 %v2673
        %v2675 = vand.u32 %v394, 4294901760
        %v2676 = vsub.f32 %v394, %v2675
        %2677 = vmatpush1.xpose.msra.mxu0 %v2676
        %v2678 = vand.u32 %v379, 4294901760
        %v2679 = vsub.f32 %v379, %v2678
        %2680 = vmatprep.subr.mxu0 %v2679
        %v2681 = vand.u32 %v378, 4294901760
        %v2682 = vsub.f32 %v378, %v2681
        %2683 = vmatpush1.xpose.msra.mxu0 %v2682
        %v2684 = vand.u32 %v363, 4294901760
        %v2685 = vsub.f32 %v363, %v2684
        %2686 = vmatprep.subr.mxu0 %v2685
        %v2687 = vand.u32 %v362, 4294901760
        %v2688 = vsub.f32 %v362, %v2687
        %2689 = vmatpush1.xpose.msra.mxu0 %v2688
        %v2690 = vand.u32 %v347, 4294901760
        %v2691 = vsub.f32 %v347, %v2690
        %2692 = vmatprep.subr.mxu0 %v2691
        %v2693 = vand.u32 %v346, 4294901760
        %v2694 = vsub.f32 %v346, %v2693
        %2695 = vmatpush1.xpose.msra.mxu0 %v2694
        %v2696 = vand.u32 %v331, 4294901760
        %v2697 = vsub.f32 %v331, %v2696
        %2698 = vmatprep.subr.mxu0 %v2697
        %v2699 = vand.u32 %v330, 4294901760
        %v2700 = vsub.f32 %v330, %v2699
        %2701 = vmatpush1.xpose.msra.mxu0 %v2700
        %v2702 = vand.u32 %v315, 4294901760
        %v2703 = vsub.f32 %v315, %v2702
        %2704 = vmatprep.subr.mxu0 %v2703
        %v2705 = vand.u32 %v314, 4294901760
        %v2706 = vsub.f32 %v314, %v2705
        %2707 = vmatpush1.xpose.msra.mxu0 %v2706
        %v2708 = vand.u32 %v299, 4294901760
        %v2709 = vsub.f32 %v299, %v2708
        %2710 = vmatprep.subr.mxu0 %v2709
        %v2711 = vand.u32 %v298, 4294901760
        %v2712 = vsub.f32 %v298, %v2711
        %2713 = vmatpush1.xpose.msra.mxu0 %v2712
        %2714 = vmatprep.subr.mxu0 0.0
        %2715 = vmatpush2.xpose.msra.mxu0 0.0
        %2716 = vmatprep.subr.mxu0 0.0
        %2717 = vmatpush2.xpose.msra.mxu0 0.0
        %2718 = vmatprep.subr.mxu0 0.0
        %2719 = vmatpush2.xpose.msra.mxu0 0.0
        %2720 = vmatprep.subr.mxu0 0.0
        %2721 = vmatpush2.xpose.msra.mxu0 0.0
        %2722 = vmatprep.subr.mxu0 0.0
        %2723 = vmatpush2.xpose.msra.mxu0 0.0
        %2724 = vmatprep.subr.mxu0 0.0
        %2725 = vmatpush2.xpose.msra.mxu0 0.0
        %2726 = vmatprep.subr.mxu0 0.0
        %2727 = vmatpush2.xpose.msra.mxu0 0.0
        %2728 = vmatprep.subr.mxu0 0.0
        %2729 = vmatpush2.xpose.msra.mxu0 0.0
        %2730 = vmatprep.subr.mxu0 0.0
        %2731 = vmatpush2.xpose.msra.mxu0 0.0
        %2732 = vmatprep.subr.mxu0 0.0
        %2733 = vmatpush2.xpose.msra.mxu0 0.0
        %2734 = vmatprep.subr.mxu0 0.0
        %2735 = vmatpush2.xpose.msra.mxu0 0.0
        %2736 = vmatprep.subr.mxu0 0.0
        %2737 = vmatpush2.xpose.msra.mxu0 0.0
        %2738 = vmatprep.subr.mxu0 0.0
        %2739 = vmatpush2.xpose.msra.mxu0 0.0
        %2740 = vmatprep.subr.mxu0 0.0
        %2741 = vmatpush2.xpose.msra.mxu0 0.0
        %2742 = vmatprep.subr.mxu0 0.0
        %2743 = vmatpush2.xpose.msra.mxu0 0.0
        %2744 = vmatprep.subr.mxu0 0.0
        %2745 = vmatpush2.xpose.msra.mxu0 0.0
        %v2746 = vand.u32 %v283, 4294901760
        %v2747 = vsub.f32 %v283, %v2746
        %2748 = vmatprep.mubr.f32.mxu0 %v2747
        %v2749 = vand.u32 %v282, 4294901760
        %v2750 = vsub.f32 %v282, %v2749
        %2751 = vmatmul.mubr.f32.gmra.mxu0 %v2750
        %v2752 = vpop.f32.mrf.mxu0
        %v2753 = vadd.f32 %v2615, %v2752
        %v2754 = vpop.f32.mrf.mxu0
        %2755 = vdwg.mxu0
        %v2756 = vand.u32 %v539, 4294901760
        %2757 = vmatprep.subr.mxu0 %v2756
        %v2758 = vand.u32 %v538, 4294901760
        %2759 = vmatpush1.xpose.msra.mxu0 %v2758
        %v2760 = vand.u32 %v523, 4294901760
        %2761 = vmatprep.subr.mxu0 %v2760
        %v2762 = vand.u32 %v522, 4294901760
        %2763 = vmatpush1.xpose.msra.mxu0 %v2762
        %v2764 = vand.u32 %v507, 4294901760
        %2765 = vmatprep.subr.mxu0 %v2764
        %v2766 = vand.u32 %v506, 4294901760
        %2767 = vmatpush1.xpose.msra.mxu0 %v2766
        %v2768 = vand.u32 %v491, 4294901760
        %2769 = vmatprep.subr.mxu0 %v2768
        %v2770 = vand.u32 %v490, 4294901760
        %2771 = vmatpush1.xpose.msra.mxu0 %v2770
        %v2772 = vand.u32 %v475, 4294901760
        %2773 = vmatprep.subr.mxu0 %v2772
        %v2774 = vand.u32 %v474, 4294901760
        %2775 = vmatpush1.xpose.msra.mxu0 %v2774
        %v2776 = vand.u32 %v459, 4294901760
        %2777 = vmatprep.subr.mxu0 %v2776
        %v2778 = vand.u32 %v458, 4294901760
        %2779 = vmatpush1.xpose.msra.mxu0 %v2778
        %v2780 = vand.u32 %v443, 4294901760
        %2781 = vmatprep.subr.mxu0 %v2780
        %v2782 = vand.u32 %v442, 4294901760
        %2783 = vmatpush1.xpose.msra.mxu0 %v2782
        %v2784 = vand.u32 %v427, 4294901760
        %2785 = vmatprep.subr.mxu0 %v2784
        %v2786 = vand.u32 %v426, 4294901760
        %2787 = vmatpush1.xpose.msra.mxu0 %v2786
        %v2788 = vand.u32 %v411, 4294901760
        %2789 = vmatprep.subr.mxu0 %v2788
        %v2790 = vand.u32 %v410, 4294901760
        %2791 = vmatpush1.xpose.msra.mxu0 %v2790
        %v2792 = vand.u32 %v395, 4294901760
        %2793 = vmatprep.subr.mxu0 %v2792
        %v2794 = vand.u32 %v394, 4294901760
        %2795 = vmatpush1.xpose.msra.mxu0 %v2794
        %v2796 = vand.u32 %v379, 4294901760
        %2797 = vmatprep.subr.mxu0 %v2796
        %v2798 = vand.u32 %v378, 4294901760
        %2799 = vmatpush1.xpose.msra.mxu0 %v2798
        %v2800 = vand.u32 %v363, 4294901760
        %2801 = vmatprep.subr.mxu0 %v2800
        %v2802 = vand.u32 %v362, 4294901760
        %2803 = vmatpush1.xpose.msra.mxu0 %v2802
        %v2804 = vand.u32 %v347, 4294901760
        %2805 = vmatprep.subr.mxu0 %v2804
        %v2806 = vand.u32 %v346, 4294901760
        %2807 = vmatpush1.xpose.msra.mxu0 %v2806
        %v2808 = vand.u32 %v331, 4294901760
        %2809 = vmatprep.subr.mxu0 %v2808
        %v2810 = vand.u32 %v330, 4294901760
        %2811 = vmatpush1.xpose.msra.mxu0 %v2810
        %v2812 = vand.u32 %v315, 4294901760
        %2813 = vmatprep.subr.mxu0 %v2812
        %v2814 = vand.u32 %v314, 4294901760
        %2815 = vmatpush1.xpose.msra.mxu0 %v2814
        %v2816 = vand.u32 %v299, 4294901760
        %2817 = vmatprep.subr.mxu0 %v2816
        %v2818 = vand.u32 %v298, 4294901760
        %2819 = vmatpush1.xpose.msra.mxu0 %v2818
        %2820 = vmatprep.subr.mxu0 0.0
        %2821 = vmatpush2.xpose.msra.mxu0 0.0
        %2822 = vmatprep.subr.mxu0 0.0
        %2823 = vmatpush2.xpose.msra.mxu0 0.0
        %2824 = vmatprep.subr.mxu0 0.0
        %2825 = vmatpush2.xpose.msra.mxu0 0.0
        %2826 = vmatprep.subr.mxu0 0.0
        %2827 = vmatpush2.xpose.msra.mxu0 0.0
        %2828 = vmatprep.subr.mxu0 0.0
        %2829 = vmatpush2.xpose.msra.mxu0 0.0
        %2830 = vmatprep.subr.mxu0 0.0
        %2831 = vmatpush2.xpose.msra.mxu0 0.0
        %2832 = vmatprep.subr.mxu0 0.0
        %2833 = vmatpush2.xpose.msra.mxu0 0.0
        %2834 = vmatprep.subr.mxu0 0.0
        %2835 = vmatpush2.xpose.msra.mxu0 0.0
        %2836 = vmatprep.subr.mxu0 0.0
        %2837 = vmatpush2.xpose.msra.mxu0 0.0
        %2838 = vmatprep.subr.mxu0 0.0
        %2839 = vmatpush2.xpose.msra.mxu0 0.0
        %2840 = vmatprep.subr.mxu0 0.0
        %2841 = vmatpush2.xpose.msra.mxu0 0.0
        %2842 = vmatprep.subr.mxu0 0.0
        %2843 = vmatpush2.xpose.msra.mxu0 0.0
        %2844 = vmatprep.subr.mxu0 0.0
        %2845 = vmatpush2.xpose.msra.mxu0 0.0
        %2846 = vmatprep.subr.mxu0 0.0
        %2847 = vmatpush2.xpose.msra.mxu0 0.0
        %2848 = vmatprep.subr.mxu0 0.0
        %2849 = vmatpush2.xpose.msra.mxu0 0.0
        %2850 = vmatprep.subr.mxu0 0.0
        %2851 = vmatpush2.xpose.msra.mxu0 0.0
        %v2852 = vand.u32 %v283, 4294901760
        %v2853 = vsub.f32 %v283, %v2852
        %v2854 = vand.u32 %v2853, 4294901760
        %2855 = vmatprep.mubr.f32.mxu0 %v2854
        %v2856 = vand.u32 %v282, 4294901760
        %v2857 = vsub.f32 %v282, %v2856
        %v2858 = vand.u32 %v2857, 4294901760
        %2859 = vmatmul.mubr.f32.gmra.mxu0 %v2858
        %v2860 = vpop.f32.mrf.mxu0
        %v2861 = vadd.f32 %v2753, %v2860
        %v2862 = vpop.f32.mrf.mxu0
        %2863 = vdwg.mxu0
        %v2864 = vand.u32 %v539, 4294901760
        %v2865 = vsub.f32 %v539, %v2864
        %v2866 = vand.u32 %v2865, 4294901760
        %2867 = vmatprep.subr.mxu0 %v2866
        %v2868 = vand.u32 %v538, 4294901760
        %v2869 = vsub.f32 %v538, %v2868
        %v2870 = vand.u32 %v2869, 4294901760
        %2871 = vmatpush1.xpose.msra.mxu0 %v2870
        %v2872 = vand.u32 %v523, 4294901760
        %v2873 = vsub.f32 %v523, %v2872
        %v2874 = vand.u32 %v2873, 4294901760
        %2875 = vmatprep.subr.mxu0 %v2874
        %v2876 = vand.u32 %v522, 4294901760
        %v2877 = vsub.f32 %v522, %v2876
        %v2878 = vand.u32 %v2877, 4294901760
        %2879 = vmatpush1.xpose.msra.mxu0 %v2878
        %v2880 = vand.u32 %v507, 4294901760
        %v2881 = vsub.f32 %v507, %v2880
        %v2882 = vand.u32 %v2881, 4294901760
        %2883 = vmatprep.subr.mxu0 %v2882
        %v2884 = vand.u32 %v506, 4294901760
        %v2885 = vsub.f32 %v506, %v2884
        %v2886 = vand.u32 %v2885, 4294901760
        %2887 = vmatpush1.xpose.msra.mxu0 %v2886
        %v2888 = vand.u32 %v491, 4294901760
        %v2889 = vsub.f32 %v491, %v2888
        %v2890 = vand.u32 %v2889, 4294901760
        %2891 = vmatprep.subr.mxu0 %v2890
        %v2892 = vand.u32 %v490, 4294901760
        %v2893 = vsub.f32 %v490, %v2892
        %v2894 = vand.u32 %v2893, 4294901760
        %2895 = vmatpush1.xpose.msra.mxu0 %v2894
        %v2896 = vand.u32 %v475, 4294901760
        %v2897 = vsub.f32 %v475, %v2896
        %v2898 = vand.u32 %v2897, 4294901760
        %2899 = vmatprep.subr.mxu0 %v2898
        %v2900 = vand.u32 %v474, 4294901760
        %v2901 = vsub.f32 %v474, %v2900
        %v2902 = vand.u32 %v2901, 4294901760
        %2903 = vmatpush1.xpose.msra.mxu0 %v2902
        %v2904 = vand.u32 %v459, 4294901760
        %v2905 = vsub.f32 %v459, %v2904
        %v2906 = vand.u32 %v2905, 4294901760
        %2907 = vmatprep.subr.mxu0 %v2906
        %v2908 = vand.u32 %v458, 4294901760
        %v2909 = vsub.f32 %v458, %v2908
        %v2910 = vand.u32 %v2909, 4294901760
        %2911 = vmatpush1.xpose.msra.mxu0 %v2910
        %v2912 = vand.u32 %v443, 4294901760
        %v2913 = vsub.f32 %v443, %v2912
        %v2914 = vand.u32 %v2913, 4294901760
        %2915 = vmatprep.subr.mxu0 %v2914
        %v2916 = vand.u32 %v442, 4294901760
        %v2917 = vsub.f32 %v442, %v2916
        %v2918 = vand.u32 %v2917, 4294901760
        %2919 = vmatpush1.xpose.msra.mxu0 %v2918
        %v2920 = vand.u32 %v427, 4294901760
        %v2921 = vsub.f32 %v427, %v2920
        %v2922 = vand.u32 %v2921, 4294901760
        %2923 = vmatprep.subr.mxu0 %v2922
        %v2924 = vand.u32 %v426, 4294901760
        %v2925 = vsub.f32 %v426, %v2924
        %v2926 = vand.u32 %v2925, 4294901760
        %2927 = vmatpush1.xpose.msra.mxu0 %v2926
        %v2928 = vand.u32 %v411, 4294901760
        %v2929 = vsub.f32 %v411, %v2928
        %v2930 = vand.u32 %v2929, 4294901760
        %2931 = vmatprep.subr.mxu0 %v2930
        %v2932 = vand.u32 %v410, 4294901760
        %v2933 = vsub.f32 %v410, %v2932
        %v2934 = vand.u32 %v2933, 4294901760
        %2935 = vmatpush1.xpose.msra.mxu0 %v2934
        %v2936 = vand.u32 %v395, 4294901760
        %v2937 = vsub.f32 %v395, %v2936
        %v2938 = vand.u32 %v2937, 4294901760
        %2939 = vmatprep.subr.mxu0 %v2938
        %v2940 = vand.u32 %v394, 4294901760
        %v2941 = vsub.f32 %v394, %v2940
        %v2942 = vand.u32 %v2941, 4294901760
        %2943 = vmatpush1.xpose.msra.mxu0 %v2942
        %v2944 = vand.u32 %v379, 4294901760
        %v2945 = vsub.f32 %v379, %v2944
        %v2946 = vand.u32 %v2945, 4294901760
        %2947 = vmatprep.subr.mxu0 %v2946
        %v2948 = vand.u32 %v378, 4294901760
        %v2949 = vsub.f32 %v378, %v2948
        %v2950 = vand.u32 %v2949, 4294901760
        %2951 = vmatpush1.xpose.msra.mxu0 %v2950
        %v2952 = vand.u32 %v363, 4294901760
        %v2953 = vsub.f32 %v363, %v2952
        %v2954 = vand.u32 %v2953, 4294901760
        %2955 = vmatprep.subr.mxu0 %v2954
        %v2956 = vand.u32 %v362, 4294901760
        %v2957 = vsub.f32 %v362, %v2956
        %v2958 = vand.u32 %v2957, 4294901760
        %2959 = vmatpush1.xpose.msra.mxu0 %v2958
        %v2960 = vand.u32 %v347, 4294901760
        %v2961 = vsub.f32 %v347, %v2960
        %v2962 = vand.u32 %v2961, 4294901760
        %2963 = vmatprep.subr.mxu0 %v2962
        %v2964 = vand.u32 %v346, 4294901760
        %v2965 = vsub.f32 %v346, %v2964
        %v2966 = vand.u32 %v2965, 4294901760
        %2967 = vmatpush1.xpose.msra.mxu0 %v2966
        %v2968 = vand.u32 %v331, 4294901760
        %v2969 = vsub.f32 %v331, %v2968
        %v2970 = vand.u32 %v2969, 4294901760
        %2971 = vmatprep.subr.mxu0 %v2970
        %v2972 = vand.u32 %v330, 4294901760
        %v2973 = vsub.f32 %v330, %v2972
        %v2974 = vand.u32 %v2973, 4294901760
        %2975 = vmatpush1.xpose.msra.mxu0 %v2974
        %v2976 = vand.u32 %v315, 4294901760
        %v2977 = vsub.f32 %v315, %v2976
        %v2978 = vand.u32 %v2977, 4294901760
        %2979 = vmatprep.subr.mxu0 %v2978
        %v2980 = vand.u32 %v314, 4294901760
        %v2981 = vsub.f32 %v314, %v2980
        %v2982 = vand.u32 %v2981, 4294901760
        %2983 = vmatpush1.xpose.msra.mxu0 %v2982
        %v2984 = vand.u32 %v299, 4294901760
        %v2985 = vsub.f32 %v299, %v2984
        %v2986 = vand.u32 %v2985, 4294901760
        %2987 = vmatprep.subr.mxu0 %v2986
        %v2988 = vand.u32 %v298, 4294901760
        %v2989 = vsub.f32 %v298, %v2988
        %v2990 = vand.u32 %v2989, 4294901760
        %2991 = vmatpush1.xpose.msra.mxu0 %v2990
        %2992 = vmatprep.subr.mxu0 0.0
        %2993 = vmatpush2.xpose.msra.mxu0 0.0
        %2994 = vmatprep.subr.mxu0 0.0
        %2995 = vmatpush2.xpose.msra.mxu0 0.0
        %2996 = vmatprep.subr.mxu0 0.0
        %2997 = vmatpush2.xpose.msra.mxu0 0.0
        %2998 = vmatprep.subr.mxu0 0.0
        %2999 = vmatpush2.xpose.msra.mxu0 0.0
        %3000 = vmatprep.subr.mxu0 0.0
        %3001 = vmatpush2.xpose.msra.mxu0 0.0
        %3002 = vmatprep.subr.mxu0 0.0
        %3003 = vmatpush2.xpose.msra.mxu0 0.0
        %3004 = vmatprep.subr.mxu0 0.0
        %3005 = vmatpush2.xpose.msra.mxu0 0.0
        %3006 = vmatprep.subr.mxu0 0.0
        %3007 = vmatpush2.xpose.msra.mxu0 0.0
        %3008 = vmatprep.subr.mxu0 0.0
        %3009 = vmatpush2.xpose.msra.mxu0 0.0
        %3010 = vmatprep.subr.mxu0 0.0
        %3011 = vmatpush2.xpose.msra.mxu0 0.0
        %3012 = vmatprep.subr.mxu0 0.0
        %3013 = vmatpush2.xpose.msra.mxu0 0.0
        %3014 = vmatprep.subr.mxu0 0.0
        %3015 = vmatpush2.xpose.msra.mxu0 0.0
        %3016 = vmatprep.subr.mxu0 0.0
        %3017 = vmatpush2.xpose.msra.mxu0 0.0
        %3018 = vmatprep.subr.mxu0 0.0
        %3019 = vmatpush2.xpose.msra.mxu0 0.0
        %3020 = vmatprep.subr.mxu0 0.0
        %3021 = vmatpush2.xpose.msra.mxu0 0.0
        %3022 = vmatprep.subr.mxu0 0.0
        %3023 = vmatpush2.xpose.msra.mxu0 0.0
        %v3024 = vand.u32 %v283, 4294901760
        %3025 = vmatprep.mubr.f32.mxu0 %v3024
        %v3026 = vand.u32 %v282, 4294901760
        %3027 = vmatmul.mubr.f32.gmra.mxu0 %v3026
        %v3028 = vpop.f32.mrf.mxu0
        %v3029 = vadd.f32 %v2861, %v3028
        %v3030 = vpop.f32.mrf.mxu0
        %3031 = vdwg.mxu0
        %v3032 = vand.u32 %v539, 4294901760
        %3033 = vmatprep.subr.mxu0 %v3032
        %v3034 = vand.u32 %v538, 4294901760
        %3035 = vmatpush1.xpose.msra.mxu0 %v3034
        %v3036 = vand.u32 %v523, 4294901760
        %3037 = vmatprep.subr.mxu0 %v3036
        %v3038 = vand.u32 %v522, 4294901760
        %3039 = vmatpush1.xpose.msra.mxu0 %v3038
        %v3040 = vand.u32 %v507, 4294901760
        %3041 = vmatprep.subr.mxu0 %v3040
        %v3042 = vand.u32 %v506, 4294901760
        %3043 = vmatpush1.xpose.msra.mxu0 %v3042
        %v3044 = vand.u32 %v491, 4294901760
        %3045 = vmatprep.subr.mxu0 %v3044
        %v3046 = vand.u32 %v490, 4294901760
        %3047 = vmatpush1.xpose.msra.mxu0 %v3046
        %v3048 = vand.u32 %v475, 4294901760
        %3049 = vmatprep.subr.mxu0 %v3048
        %v3050 = vand.u32 %v474, 4294901760
        %3051 = vmatpush1.xpose.msra.mxu0 %v3050
        %v3052 = vand.u32 %v459, 4294901760
        %3053 = vmatprep.subr.mxu0 %v3052
        %v3054 = vand.u32 %v458, 4294901760
        %3055 = vmatpush1.xpose.msra.mxu0 %v3054
        %v3056 = vand.u32 %v443, 4294901760
        %3057 = vmatprep.subr.mxu0 %v3056
        %v3058 = vand.u32 %v442, 4294901760
        %3059 = vmatpush1.xpose.msra.mxu0 %v3058
        %v3060 = vand.u32 %v427, 4294901760
        %3061 = vmatprep.subr.mxu0 %v3060
        %v3062 = vand.u32 %v426, 4294901760
        %3063 = vmatpush1.xpose.msra.mxu0 %v3062
        %v3064 = vand.u32 %v411, 4294901760
        %3065 = vmatprep.subr.mxu0 %v3064
        %v3066 = vand.u32 %v410, 4294901760
        %3067 = vmatpush1.xpose.msra.mxu0 %v3066
        %v3068 = vand.u32 %v395, 4294901760
        %3069 = vmatprep.subr.mxu0 %v3068
        %v3070 = vand.u32 %v394, 4294901760
        %3071 = vmatpush1.xpose.msra.mxu0 %v3070
        %v3072 = vand.u32 %v379, 4294901760
        %3073 = vmatprep.subr.mxu0 %v3072
        %v3074 = vand.u32 %v378, 4294901760
        %3075 = vmatpush1.xpose.msra.mxu0 %v3074
        %v3076 = vand.u32 %v363, 4294901760
        %3077 = vmatprep.subr.mxu0 %v3076
        %v3078 = vand.u32 %v362, 4294901760
        %3079 = vmatpush1.xpose.msra.mxu0 %v3078
        %v3080 = vand.u32 %v347, 4294901760
        %3081 = vmatprep.subr.mxu0 %v3080
        %v3082 = vand.u32 %v346, 4294901760
        %3083 = vmatpush1.xpose.msra.mxu0 %v3082
        %v3084 = vand.u32 %v331, 4294901760
        %3085 = vmatprep.subr.mxu0 %v3084
        %v3086 = vand.u32 %v330, 4294901760
        %3087 = vmatpush1.xpose.msra.mxu0 %v3086
        %v3088 = vand.u32 %v315, 4294901760
        %3089 = vmatprep.subr.mxu0 %v3088
        %v3090 = vand.u32 %v314, 4294901760
        %3091 = vmatpush1.xpose.msra.mxu0 %v3090
        %v3092 = vand.u32 %v299, 4294901760
        %3093 = vmatprep.subr.mxu0 %v3092
        %v3094 = vand.u32 %v298, 4294901760
        %3095 = vmatpush1.xpose.msra.mxu0 %v3094
        %3096 = vmatprep.subr.mxu0 0.0
        %3097 = vmatpush2.xpose.msra.mxu0 0.0
        %3098 = vmatprep.subr.mxu0 0.0
        %3099 = vmatpush2.xpose.msra.mxu0 0.0
        %3100 = vmatprep.subr.mxu0 0.0
        %3101 = vmatpush2.xpose.msra.mxu0 0.0
        %3102 = vmatprep.subr.mxu0 0.0
        %3103 = vmatpush2.xpose.msra.mxu0 0.0
        %3104 = vmatprep.subr.mxu0 0.0
        %3105 = vmatpush2.xpose.msra.mxu0 0.0
        %3106 = vmatprep.subr.mxu0 0.0
        %3107 = vmatpush2.xpose.msra.mxu0 0.0
        %3108 = vmatprep.subr.mxu0 0.0
        %3109 = vmatpush2.xpose.msra.mxu0 0.0
        %3110 = vmatprep.subr.mxu0 0.0
        %3111 = vmatpush2.xpose.msra.mxu0 0.0
        %3112 = vmatprep.subr.mxu0 0.0
        %3113 = vmatpush2.xpose.msra.mxu0 0.0
        %3114 = vmatprep.subr.mxu0 0.0
        %3115 = vmatpush2.xpose.msra.mxu0 0.0
        %3116 = vmatprep.subr.mxu0 0.0
        %3117 = vmatpush2.xpose.msra.mxu0 0.0
        %3118 = vmatprep.subr.mxu0 0.0
        %3119 = vmatpush2.xpose.msra.mxu0 0.0
        %3120 = vmatprep.subr.mxu0 0.0
        %3121 = vmatpush2.xpose.msra.mxu0 0.0
        %3122 = vmatprep.subr.mxu0 0.0
        %3123 = vmatpush2.xpose.msra.mxu0 0.0
        %3124 = vmatprep.subr.mxu0 0.0
        %3125 = vmatpush2.xpose.msra.mxu0 0.0
        %3126 = vmatprep.subr.mxu0 0.0
        %3127 = vmatpush2.xpose.msra.mxu0 0.0
        %v3128 = vand.u32 %v283, 4294901760
        %3129 = vmatprep.mubr.f32.mxu0 %v3128
        %v3130 = vand.u32 %v282, 4294901760
        %3131 = vmatmul.mubr.f32.gmra.mxu0 %v3130
        %v3132 = vpop.f32.mrf.mxu0
        %v3133 = vadd.f32 %v3029, %v3132
        %v3134 = vpop.f32.mrf.mxu0
        %3135 = vdwg.mxu0
        %v3136 = vand.u32 %v541, 4294901760
        %3137 = vmatprep.subr.mxu0 %v3136
        %v3138 = vand.u32 %v540, 4294901760
        %3139 = vmatpush1.xpose.msra.mxu0 %v3138
        %v3140 = vand.u32 %v525, 4294901760
        %3141 = vmatprep.subr.mxu0 %v3140
        %v3142 = vand.u32 %v524, 4294901760
        %3143 = vmatpush1.xpose.msra.mxu0 %v3142
        %v3144 = vand.u32 %v509, 4294901760
        %3145 = vmatprep.subr.mxu0 %v3144
        %v3146 = vand.u32 %v508, 4294901760
        %3147 = vmatpush1.xpose.msra.mxu0 %v3146
        %v3148 = vand.u32 %v493, 4294901760
        %3149 = vmatprep.subr.mxu0 %v3148
        %v3150 = vand.u32 %v492, 4294901760
        %3151 = vmatpush1.xpose.msra.mxu0 %v3150
        %v3152 = vand.u32 %v477, 4294901760
        %3153 = vmatprep.subr.mxu0 %v3152
        %v3154 = vand.u32 %v476, 4294901760
        %3155 = vmatpush1.xpose.msra.mxu0 %v3154
        %v3156 = vand.u32 %v461, 4294901760
        %3157 = vmatprep.subr.mxu0 %v3156
        %v3158 = vand.u32 %v460, 4294901760
        %3159 = vmatpush1.xpose.msra.mxu0 %v3158
        %v3160 = vand.u32 %v445, 4294901760
        %3161 = vmatprep.subr.mxu0 %v3160
        %v3162 = vand.u32 %v444, 4294901760
        %3163 = vmatpush1.xpose.msra.mxu0 %v3162
        %v3164 = vand.u32 %v429, 4294901760
        %3165 = vmatprep.subr.mxu0 %v3164
        %v3166 = vand.u32 %v428, 4294901760
        %3167 = vmatpush1.xpose.msra.mxu0 %v3166
        %v3168 = vand.u32 %v413, 4294901760
        %3169 = vmatprep.subr.mxu0 %v3168
        %v3170 = vand.u32 %v412, 4294901760
        %3171 = vmatpush1.xpose.msra.mxu0 %v3170
        %v3172 = vand.u32 %v397, 4294901760
        %3173 = vmatprep.subr.mxu0 %v3172
        %v3174 = vand.u32 %v396, 4294901760
        %3175 = vmatpush1.xpose.msra.mxu0 %v3174
        %v3176 = vand.u32 %v381, 4294901760
        %3177 = vmatprep.subr.mxu0 %v3176
        %v3178 = vand.u32 %v380, 4294901760
        %3179 = vmatpush1.xpose.msra.mxu0 %v3178
        %v3180 = vand.u32 %v365, 4294901760
        %3181 = vmatprep.subr.mxu0 %v3180
        %v3182 = vand.u32 %v364, 4294901760
        %3183 = vmatpush1.xpose.msra.mxu0 %v3182
        %v3184 = vand.u32 %v349, 4294901760
        %3185 = vmatprep.subr.mxu0 %v3184
        %v3186 = vand.u32 %v348, 4294901760
        %3187 = vmatpush1.xpose.msra.mxu0 %v3186
        %v3188 = vand.u32 %v333, 4294901760
        %3189 = vmatprep.subr.mxu0 %v3188
        %v3190 = vand.u32 %v332, 4294901760
        %3191 = vmatpush1.xpose.msra.mxu0 %v3190
        %v3192 = vand.u32 %v317, 4294901760
        %3193 = vmatprep.subr.mxu0 %v3192
        %v3194 = vand.u32 %v316, 4294901760
        %3195 = vmatpush1.xpose.msra.mxu0 %v3194
        %v3196 = vand.u32 %v301, 4294901760
        %3197 = vmatprep.subr.mxu0 %v3196
        %v3198 = vand.u32 %v300, 4294901760
        %3199 = vmatpush1.xpose.msra.mxu0 %v3198
        %3200 = vmatprep.subr.mxu0 0.0
        %3201 = vmatpush2.xpose.msra.mxu0 0.0
        %3202 = vmatprep.subr.mxu0 0.0
        %3203 = vmatpush2.xpose.msra.mxu0 0.0
        %3204 = vmatprep.subr.mxu0 0.0
        %3205 = vmatpush2.xpose.msra.mxu0 0.0
        %3206 = vmatprep.subr.mxu0 0.0
        %3207 = vmatpush2.xpose.msra.mxu0 0.0
        %3208 = vmatprep.subr.mxu0 0.0
        %3209 = vmatpush2.xpose.msra.mxu0 0.0
        %3210 = vmatprep.subr.mxu0 0.0
        %3211 = vmatpush2.xpose.msra.mxu0 0.0
        %3212 = vmatprep.subr.mxu0 0.0
        %3213 = vmatpush2.xpose.msra.mxu0 0.0
        %3214 = vmatprep.subr.mxu0 0.0
        %3215 = vmatpush2.xpose.msra.mxu0 0.0
        %3216 = vmatprep.subr.mxu0 0.0
        %3217 = vmatpush2.xpose.msra.mxu0 0.0
        %3218 = vmatprep.subr.mxu0 0.0
        %3219 = vmatpush2.xpose.msra.mxu0 0.0
        %3220 = vmatprep.subr.mxu0 0.0
        %3221 = vmatpush2.xpose.msra.mxu0 0.0
        %3222 = vmatprep.subr.mxu0 0.0
        %3223 = vmatpush2.xpose.msra.mxu0 0.0
        %3224 = vmatprep.subr.mxu0 0.0
        %3225 = vmatpush2.xpose.msra.mxu0 0.0
        %3226 = vmatprep.subr.mxu0 0.0
        %3227 = vmatpush2.xpose.msra.mxu0 0.0
        %3228 = vmatprep.subr.mxu0 0.0
        %3229 = vmatpush2.xpose.msra.mxu0 0.0
        %3230 = vmatprep.subr.mxu0 0.0
        %3231 = vmatpush2.xpose.msra.mxu0 0.0
        %v3232 = vand.u32 %v285, 4294901760
        %v3233 = vsub.f32 %v285, %v3232
        %v3234 = vand.u32 %v3233, 4294901760
        %v3235 = vsub.f32 %v3233, %v3234
        %v3236 = vand.u32 %v3235, 4294901760
        %3237 = vmatprep.mubr.f32.mxu0 %v3236
        %v3238 = vand.u32 %v284, 4294901760
        %v3239 = vsub.f32 %v284, %v3238
        %v3240 = vand.u32 %v3239, 4294901760
        %v3241 = vsub.f32 %v3239, %v3240
        %v3242 = vand.u32 %v3241, 4294901760
        %3243 = vmatmul.mubr.f32.gmra.mxu0 %v3242
        %v3244 = vpop.f32.mrf.mxu0
        %v3245 = vadd.f32 %v3133, %v3244
        %v3246 = vpop.f32.mrf.mxu0
        %3247 = vdwg.mxu0
        %v3248 = vand.u32 %v541, 4294901760
        %v3249 = vsub.f32 %v541, %v3248
        %v3250 = vand.u32 %v3249, 4294901760
        %v3251 = vsub.f32 %v3249, %v3250
        %v3252 = vand.u32 %v3251, 4294901760
        %3253 = vmatprep.subr.mxu0 %v3252
        %v3254 = vand.u32 %v540, 4294901760
        %v3255 = vsub.f32 %v540, %v3254
        %v3256 = vand.u32 %v3255, 4294901760
        %v3257 = vsub.f32 %v3255, %v3256
        %v3258 = vand.u32 %v3257, 4294901760
        %3259 = vmatpush1.xpose.msra.mxu0 %v3258
        %v3260 = vand.u32 %v525, 4294901760
        %v3261 = vsub.f32 %v525, %v3260
        %v3262 = vand.u32 %v3261, 4294901760
        %v3263 = vsub.f32 %v3261, %v3262
        %v3264 = vand.u32 %v3263, 4294901760
        %3265 = vmatprep.subr.mxu0 %v3264
        %v3266 = vand.u32 %v524, 4294901760
        %v3267 = vsub.f32 %v524, %v3266
        %v3268 = vand.u32 %v3267, 4294901760
        %v3269 = vsub.f32 %v3267, %v3268
        %v3270 = vand.u32 %v3269, 4294901760
        %3271 = vmatpush1.xpose.msra.mxu0 %v3270
        %v3272 = vand.u32 %v509, 4294901760
        %v3273 = vsub.f32 %v509, %v3272
        %v3274 = vand.u32 %v3273, 4294901760
        %v3275 = vsub.f32 %v3273, %v3274
        %v3276 = vand.u32 %v3275, 4294901760
        %3277 = vmatprep.subr.mxu0 %v3276
        %v3278 = vand.u32 %v508, 4294901760
        %v3279 = vsub.f32 %v508, %v3278
        %v3280 = vand.u32 %v3279, 4294901760
        %v3281 = vsub.f32 %v3279, %v3280
        %v3282 = vand.u32 %v3281, 4294901760
        %3283 = vmatpush1.xpose.msra.mxu0 %v3282
        %v3284 = vand.u32 %v493, 4294901760
        %v3285 = vsub.f32 %v493, %v3284
        %v3286 = vand.u32 %v3285, 4294901760
        %v3287 = vsub.f32 %v3285, %v3286
        %v3288 = vand.u32 %v3287, 4294901760
        %3289 = vmatprep.subr.mxu0 %v3288
        %v3290 = vand.u32 %v492, 4294901760
        %v3291 = vsub.f32 %v492, %v3290
        %v3292 = vand.u32 %v3291, 4294901760
        %v3293 = vsub.f32 %v3291, %v3292
        %v3294 = vand.u32 %v3293, 4294901760
        %3295 = vmatpush1.xpose.msra.mxu0 %v3294
        %v3296 = vand.u32 %v477, 4294901760
        %v3297 = vsub.f32 %v477, %v3296
        %v3298 = vand.u32 %v3297, 4294901760
        %v3299 = vsub.f32 %v3297, %v3298
        %v3300 = vand.u32 %v3299, 4294901760
        %3301 = vmatprep.subr.mxu0 %v3300
        %v3302 = vand.u32 %v476, 4294901760
        %v3303 = vsub.f32 %v476, %v3302
        %v3304 = vand.u32 %v3303, 4294901760
        %v3305 = vsub.f32 %v3303, %v3304
        %v3306 = vand.u32 %v3305, 4294901760
        %3307 = vmatpush1.xpose.msra.mxu0 %v3306
        %v3308 = vand.u32 %v461, 4294901760
        %v3309 = vsub.f32 %v461, %v3308
        %v3310 = vand.u32 %v3309, 4294901760
        %v3311 = vsub.f32 %v3309, %v3310
        %v3312 = vand.u32 %v3311, 4294901760
        %3313 = vmatprep.subr.mxu0 %v3312
        %v3314 = vand.u32 %v460, 4294901760
        %v3315 = vsub.f32 %v460, %v3314
        %v3316 = vand.u32 %v3315, 4294901760
        %v3317 = vsub.f32 %v3315, %v3316
        %v3318 = vand.u32 %v3317, 4294901760
        %3319 = vmatpush1.xpose.msra.mxu0 %v3318
        %v3320 = vand.u32 %v445, 4294901760
        %v3321 = vsub.f32 %v445, %v3320
        %v3322 = vand.u32 %v3321, 4294901760
        %v3323 = vsub.f32 %v3321, %v3322
        %v3324 = vand.u32 %v3323, 4294901760
        %3325 = vmatprep.subr.mxu0 %v3324
        %v3326 = vand.u32 %v444, 4294901760
        %v3327 = vsub.f32 %v444, %v3326
        %v3328 = vand.u32 %v3327, 4294901760
        %v3329 = vsub.f32 %v3327, %v3328
        %v3330 = vand.u32 %v3329, 4294901760
        %3331 = vmatpush1.xpose.msra.mxu0 %v3330
        %v3332 = vand.u32 %v429, 4294901760
        %v3333 = vsub.f32 %v429, %v3332
        %v3334 = vand.u32 %v3333, 4294901760
        %v3335 = vsub.f32 %v3333, %v3334
        %v3336 = vand.u32 %v3335, 4294901760
        %3337 = vmatprep.subr.mxu0 %v3336
        %v3338 = vand.u32 %v428, 4294901760
        %v3339 = vsub.f32 %v428, %v3338
        %v3340 = vand.u32 %v3339, 4294901760
        %v3341 = vsub.f32 %v3339, %v3340
        %v3342 = vand.u32 %v3341, 4294901760
        %3343 = vmatpush1.xpose.msra.mxu0 %v3342
        %v3344 = vand.u32 %v413, 4294901760
        %v3345 = vsub.f32 %v413, %v3344
        %v3346 = vand.u32 %v3345, 4294901760
        %v3347 = vsub.f32 %v3345, %v3346
        %v3348 = vand.u32 %v3347, 4294901760
        %3349 = vmatprep.subr.mxu0 %v3348
        %v3350 = vand.u32 %v412, 4294901760
        %v3351 = vsub.f32 %v412, %v3350
        %v3352 = vand.u32 %v3351, 4294901760
        %v3353 = vsub.f32 %v3351, %v3352
        %v3354 = vand.u32 %v3353, 4294901760
        %3355 = vmatpush1.xpose.msra.mxu0 %v3354
        %v3356 = vand.u32 %v397, 4294901760
        %v3357 = vsub.f32 %v397, %v3356
        %v3358 = vand.u32 %v3357, 4294901760
        %v3359 = vsub.f32 %v3357, %v3358
        %v3360 = vand.u32 %v3359, 4294901760
        %3361 = vmatprep.subr.mxu0 %v3360
        %v3362 = vand.u32 %v396, 4294901760
        %v3363 = vsub.f32 %v396, %v3362
        %v3364 = vand.u32 %v3363, 4294901760
        %v3365 = vsub.f32 %v3363, %v3364
        %v3366 = vand.u32 %v3365, 4294901760
        %3367 = vmatpush1.xpose.msra.mxu0 %v3366
        %v3368 = vand.u32 %v381, 4294901760
        %v3369 = vsub.f32 %v381, %v3368
        %v3370 = vand.u32 %v3369, 4294901760
        %v3371 = vsub.f32 %v3369, %v3370
        %v3372 = vand.u32 %v3371, 4294901760
        %3373 = vmatprep.subr.mxu0 %v3372
        %v3374 = vand.u32 %v380, 4294901760
        %v3375 = vsub.f32 %v380, %v3374
        %v3376 = vand.u32 %v3375, 4294901760
        %v3377 = vsub.f32 %v3375, %v3376
        %v3378 = vand.u32 %v3377, 4294901760
        %3379 = vmatpush1.xpose.msra.mxu0 %v3378
        %v3380 = vand.u32 %v365, 4294901760
        %v3381 = vsub.f32 %v365, %v3380
        %v3382 = vand.u32 %v3381, 4294901760
        %v3383 = vsub.f32 %v3381, %v3382
        %v3384 = vand.u32 %v3383, 4294901760
        %3385 = vmatprep.subr.mxu0 %v3384
        %v3386 = vand.u32 %v364, 4294901760
        %v3387 = vsub.f32 %v364, %v3386
        %v3388 = vand.u32 %v3387, 4294901760
        %v3389 = vsub.f32 %v3387, %v3388
        %v3390 = vand.u32 %v3389, 4294901760
        %3391 = vmatpush1.xpose.msra.mxu0 %v3390
        %v3392 = vand.u32 %v349, 4294901760
        %v3393 = vsub.f32 %v349, %v3392
        %v3394 = vand.u32 %v3393, 4294901760
        %v3395 = vsub.f32 %v3393, %v3394
        %v3396 = vand.u32 %v3395, 4294901760
        %3397 = vmatprep.subr.mxu0 %v3396
        %v3398 = vand.u32 %v348, 4294901760
        %v3399 = vsub.f32 %v348, %v3398
        %v3400 = vand.u32 %v3399, 4294901760
        %v3401 = vsub.f32 %v3399, %v3400
        %v3402 = vand.u32 %v3401, 4294901760
        %3403 = vmatpush1.xpose.msra.mxu0 %v3402
        %v3404 = vand.u32 %v333, 4294901760
        %v3405 = vsub.f32 %v333, %v3404
        %v3406 = vand.u32 %v3405, 4294901760
        %v3407 = vsub.f32 %v3405, %v3406
        %v3408 = vand.u32 %v3407, 4294901760
        %3409 = vmatprep.subr.mxu0 %v3408
        %v3410 = vand.u32 %v332, 4294901760
        %v3411 = vsub.f32 %v332, %v3410
        %v3412 = vand.u32 %v3411, 4294901760
        %v3413 = vsub.f32 %v3411, %v3412
        %v3414 = vand.u32 %v3413, 4294901760
        %3415 = vmatpush1.xpose.msra.mxu0 %v3414
        %v3416 = vand.u32 %v317, 4294901760
        %v3417 = vsub.f32 %v317, %v3416
        %v3418 = vand.u32 %v3417, 4294901760
        %v3419 = vsub.f32 %v3417, %v3418
        %v3420 = vand.u32 %v3419, 4294901760
        %3421 = vmatprep.subr.mxu0 %v3420
        %v3422 = vand.u32 %v316, 4294901760
        %v3423 = vsub.f32 %v316, %v3422
        %v3424 = vand.u32 %v3423, 4294901760
        %v3425 = vsub.f32 %v3423, %v3424
        %v3426 = vand.u32 %v3425, 4294901760
        %3427 = vmatpush1.xpose.msra.mxu0 %v3426
        %v3428 = vand.u32 %v301, 4294901760
        %v3429 = vsub.f32 %v301, %v3428
        %v3430 = vand.u32 %v3429, 4294901760
        %v3431 = vsub.f32 %v3429, %v3430
        %v3432 = vand.u32 %v3431, 4294901760
        %3433 = vmatprep.subr.mxu0 %v3432
        %v3434 = vand.u32 %v300, 4294901760
        %v3435 = vsub.f32 %v300, %v3434
        %v3436 = vand.u32 %v3435, 4294901760
        %v3437 = vsub.f32 %v3435, %v3436
        %v3438 = vand.u32 %v3437, 4294901760
        %3439 = vmatpush1.xpose.msra.mxu0 %v3438
        %3440 = vmatprep.subr.mxu0 0.0
        %3441 = vmatpush2.xpose.msra.mxu0 0.0
        %3442 = vmatprep.subr.mxu0 0.0
        %3443 = vmatpush2.xpose.msra.mxu0 0.0
        %3444 = vmatprep.subr.mxu0 0.0
        %3445 = vmatpush2.xpose.msra.mxu0 0.0
        %3446 = vmatprep.subr.mxu0 0.0
        %3447 = vmatpush2.xpose.msra.mxu0 0.0
        %3448 = vmatprep.subr.mxu0 0.0
        %3449 = vmatpush2.xpose.msra.mxu0 0.0
        %3450 = vmatprep.subr.mxu0 0.0
        %3451 = vmatpush2.xpose.msra.mxu0 0.0
        %3452 = vmatprep.subr.mxu0 0.0
        %3453 = vmatpush2.xpose.msra.mxu0 0.0
        %3454 = vmatprep.subr.mxu0 0.0
        %3455 = vmatpush2.xpose.msra.mxu0 0.0
        %3456 = vmatprep.subr.mxu0 0.0
        %3457 = vmatpush2.xpose.msra.mxu0 0.0
        %3458 = vmatprep.subr.mxu0 0.0
        %3459 = vmatpush2.xpose.msra.mxu0 0.0
        %3460 = vmatprep.subr.mxu0 0.0
        %3461 = vmatpush2.xpose.msra.mxu0 0.0
        %3462 = vmatprep.subr.mxu0 0.0
        %3463 = vmatpush2.xpose.msra.mxu0 0.0
        %3464 = vmatprep.subr.mxu0 0.0
        %3465 = vmatpush2.xpose.msra.mxu0 0.0
        %3466 = vmatprep.subr.mxu0 0.0
        %3467 = vmatpush2.xpose.msra.mxu0 0.0
        %3468 = vmatprep.subr.mxu0 0.0
        %3469 = vmatpush2.xpose.msra.mxu0 0.0
        %3470 = vmatprep.subr.mxu0 0.0
        %3471 = vmatpush2.xpose.msra.mxu0 0.0
        %v3472 = vand.u32 %v285, 4294901760
        %3473 = vmatprep.mubr.f32.mxu0 %v3472
        %v3474 = vand.u32 %v284, 4294901760
        %3475 = vmatmul.mubr.f32.gmra.mxu0 %v3474
        %v3476 = vpop.f32.mrf.mxu0
        %v3477 = vadd.f32 %v3245, %v3476
        %v3478 = vpop.f32.mrf.mxu0
        %3479 = vdwg.mxu0
        %v3480 = vand.u32 %v541, 4294901760
        %v3481 = vsub.f32 %v541, %v3480
        %3482 = vmatprep.subr.mxu0 %v3481
        %v3483 = vand.u32 %v540, 4294901760
        %v3484 = vsub.f32 %v540, %v3483
        %3485 = vmatpush1.xpose.msra.mxu0 %v3484
        %v3486 = vand.u32 %v525, 4294901760
        %v3487 = vsub.f32 %v525, %v3486
        %3488 = vmatprep.subr.mxu0 %v3487
        %v3489 = vand.u32 %v524, 4294901760
        %v3490 = vsub.f32 %v524, %v3489
        %3491 = vmatpush1.xpose.msra.mxu0 %v3490
        %v3492 = vand.u32 %v509, 4294901760
        %v3493 = vsub.f32 %v509, %v3492
        %3494 = vmatprep.subr.mxu0 %v3493
        %v3495 = vand.u32 %v508, 4294901760
        %v3496 = vsub.f32 %v508, %v3495
        %3497 = vmatpush1.xpose.msra.mxu0 %v3496
        %v3498 = vand.u32 %v493, 4294901760
        %v3499 = vsub.f32 %v493, %v3498
        %3500 = vmatprep.subr.mxu0 %v3499
        %v3501 = vand.u32 %v492, 4294901760
        %v3502 = vsub.f32 %v492, %v3501
        %3503 = vmatpush1.xpose.msra.mxu0 %v3502
        %v3504 = vand.u32 %v477, 4294901760
        %v3505 = vsub.f32 %v477, %v3504
        %3506 = vmatprep.subr.mxu0 %v3505
        %v3507 = vand.u32 %v476, 4294901760
        %v3508 = vsub.f32 %v476, %v3507
        %3509 = vmatpush1.xpose.msra.mxu0 %v3508
        %v3510 = vand.u32 %v461, 4294901760
        %v3511 = vsub.f32 %v461, %v3510
        %3512 = vmatprep.subr.mxu0 %v3511
        %v3513 = vand.u32 %v460, 4294901760
        %v3514 = vsub.f32 %v460, %v3513
        %3515 = vmatpush1.xpose.msra.mxu0 %v3514
        %v3516 = vand.u32 %v445, 4294901760
        %v3517 = vsub.f32 %v445, %v3516
        %3518 = vmatprep.subr.mxu0 %v3517
        %v3519 = vand.u32 %v444, 4294901760
        %v3520 = vsub.f32 %v444, %v3519
        %3521 = vmatpush1.xpose.msra.mxu0 %v3520
        %v3522 = vand.u32 %v429, 4294901760
        %v3523 = vsub.f32 %v429, %v3522
        %3524 = vmatprep.subr.mxu0 %v3523
        %v3525 = vand.u32 %v428, 4294901760
        %v3526 = vsub.f32 %v428, %v3525
        %3527 = vmatpush1.xpose.msra.mxu0 %v3526
        %v3528 = vand.u32 %v413, 4294901760
        %v3529 = vsub.f32 %v413, %v3528
        %3530 = vmatprep.subr.mxu0 %v3529
        %v3531 = vand.u32 %v412, 4294901760
        %v3532 = vsub.f32 %v412, %v3531
        %3533 = vmatpush1.xpose.msra.mxu0 %v3532
        %v3534 = vand.u32 %v397, 4294901760
        %v3535 = vsub.f32 %v397, %v3534
        %3536 = vmatprep.subr.mxu0 %v3535
        %v3537 = vand.u32 %v396, 4294901760
        %v3538 = vsub.f32 %v396, %v3537
        %3539 = vmatpush1.xpose.msra.mxu0 %v3538
        %v3540 = vand.u32 %v381, 4294901760
        %v3541 = vsub.f32 %v381, %v3540
        %3542 = vmatprep.subr.mxu0 %v3541
        %v3543 = vand.u32 %v380, 4294901760
        %v3544 = vsub.f32 %v380, %v3543
        %3545 = vmatpush1.xpose.msra.mxu0 %v3544
        %v3546 = vand.u32 %v365, 4294901760
        %v3547 = vsub.f32 %v365, %v3546
        %3548 = vmatprep.subr.mxu0 %v3547
        %v3549 = vand.u32 %v364, 4294901760
        %v3550 = vsub.f32 %v364, %v3549
        %3551 = vmatpush1.xpose.msra.mxu0 %v3550
        %v3552 = vand.u32 %v349, 4294901760
        %v3553 = vsub.f32 %v349, %v3552
        %3554 = vmatprep.subr.mxu0 %v3553
        %v3555 = vand.u32 %v348, 4294901760
        %v3556 = vsub.f32 %v348, %v3555
        %3557 = vmatpush1.xpose.msra.mxu0 %v3556
        %v3558 = vand.u32 %v333, 4294901760
        %v3559 = vsub.f32 %v333, %v3558
        %3560 = vmatprep.subr.mxu0 %v3559
        %v3561 = vand.u32 %v332, 4294901760
        %v3562 = vsub.f32 %v332, %v3561
        %3563 = vmatpush1.xpose.msra.mxu0 %v3562
        %v3564 = vand.u32 %v317, 4294901760
        %v3565 = vsub.f32 %v317, %v3564
        %3566 = vmatprep.subr.mxu0 %v3565
        %v3567 = vand.u32 %v316, 4294901760
        %v3568 = vsub.f32 %v316, %v3567
        %3569 = vmatpush1.xpose.msra.mxu0 %v3568
        %v3570 = vand.u32 %v301, 4294901760
        %v3571 = vsub.f32 %v301, %v3570
        %3572 = vmatprep.subr.mxu0 %v3571
        %v3573 = vand.u32 %v300, 4294901760
        %v3574 = vsub.f32 %v300, %v3573
        %3575 = vmatpush1.xpose.msra.mxu0 %v3574
        %3576 = vmatprep.subr.mxu0 0.0
        %3577 = vmatpush2.xpose.msra.mxu0 0.0
        %3578 = vmatprep.subr.mxu0 0.0
        %3579 = vmatpush2.xpose.msra.mxu0 0.0
        %3580 = vmatprep.subr.mxu0 0.0
        %3581 = vmatpush2.xpose.msra.mxu0 0.0
        %3582 = vmatprep.subr.mxu0 0.0
        %3583 = vmatpush2.xpose.msra.mxu0 0.0
        %3584 = vmatprep.subr.mxu0 0.0
        %3585 = vmatpush2.xpose.msra.mxu0 0.0
        %3586 = vmatprep.subr.mxu0 0.0
        %3587 = vmatpush2.xpose.msra.mxu0 0.0
        %3588 = vmatprep.subr.mxu0 0.0
        %3589 = vmatpush2.xpose.msra.mxu0 0.0
        %3590 = vmatprep.subr.mxu0 0.0
        %3591 = vmatpush2.xpose.msra.mxu0 0.0
        %3592 = vmatprep.subr.mxu0 0.0
        %3593 = vmatpush2.xpose.msra.mxu0 0.0
        %3594 = vmatprep.subr.mxu0 0.0
        %3595 = vmatpush2.xpose.msra.mxu0 0.0
        %3596 = vmatprep.subr.mxu0 0.0
        %3597 = vmatpush2.xpose.msra.mxu0 0.0
        %3598 = vmatprep.subr.mxu0 0.0
        %3599 = vmatpush2.xpose.msra.mxu0 0.0
        %3600 = vmatprep.subr.mxu0 0.0
        %3601 = vmatpush2.xpose.msra.mxu0 0.0
        %3602 = vmatprep.subr.mxu0 0.0
        %3603 = vmatpush2.xpose.msra.mxu0 0.0
        %3604 = vmatprep.subr.mxu0 0.0
        %3605 = vmatpush2.xpose.msra.mxu0 0.0
        %3606 = vmatprep.subr.mxu0 0.0
        %3607 = vmatpush2.xpose.msra.mxu0 0.0
        %v3608 = vand.u32 %v285, 4294901760
        %v3609 = vsub.f32 %v285, %v3608
        %3610 = vmatprep.mubr.f32.mxu0 %v3609
        %v3611 = vand.u32 %v284, 4294901760
        %v3612 = vsub.f32 %v284, %v3611
        %3613 = vmatmul.mubr.f32.gmra.mxu0 %v3612
        %v3614 = vpop.f32.mrf.mxu0
        %v3615 = vadd.f32 %v3477, %v3614
        %v3616 = vpop.f32.mrf.mxu0
        %3617 = vdwg.mxu0
        %v3618 = vand.u32 %v541, 4294901760
        %3619 = vmatprep.subr.mxu0 %v3618
        %v3620 = vand.u32 %v540, 4294901760
        %3621 = vmatpush1.xpose.msra.mxu0 %v3620
        %v3622 = vand.u32 %v525, 4294901760
        %3623 = vmatprep.subr.mxu0 %v3622
        %v3624 = vand.u32 %v524, 4294901760
        %3625 = vmatpush1.xpose.msra.mxu0 %v3624
        %v3626 = vand.u32 %v509, 4294901760
        %3627 = vmatprep.subr.mxu0 %v3626
        %v3628 = vand.u32 %v508, 4294901760
        %3629 = vmatpush1.xpose.msra.mxu0 %v3628
        %v3630 = vand.u32 %v493, 4294901760
        %3631 = vmatprep.subr.mxu0 %v3630
        %v3632 = vand.u32 %v492, 4294901760
        %3633 = vmatpush1.xpose.msra.mxu0 %v3632
        %v3634 = vand.u32 %v477, 4294901760
        %3635 = vmatprep.subr.mxu0 %v3634
        %v3636 = vand.u32 %v476, 4294901760
        %3637 = vmatpush1.xpose.msra.mxu0 %v3636
        %v3638 = vand.u32 %v461, 4294901760
        %3639 = vmatprep.subr.mxu0 %v3638
        %v3640 = vand.u32 %v460, 4294901760
        %3641 = vmatpush1.xpose.msra.mxu0 %v3640
        %v3642 = vand.u32 %v445, 4294901760
        %3643 = vmatprep.subr.mxu0 %v3642
        %v3644 = vand.u32 %v444, 4294901760
        %3645 = vmatpush1.xpose.msra.mxu0 %v3644
        %v3646 = vand.u32 %v429, 4294901760
        %3647 = vmatprep.subr.mxu0 %v3646
        %v3648 = vand.u32 %v428, 4294901760
        %3649 = vmatpush1.xpose.msra.mxu0 %v3648
        %v3650 = vand.u32 %v413, 4294901760
        %3651 = vmatprep.subr.mxu0 %v3650
        %v3652 = vand.u32 %v412, 4294901760
        %3653 = vmatpush1.xpose.msra.mxu0 %v3652
        %v3654 = vand.u32 %v397, 4294901760
        %3655 = vmatprep.subr.mxu0 %v3654
        %v3656 = vand.u32 %v396, 4294901760
        %3657 = vmatpush1.xpose.msra.mxu0 %v3656
        %v3658 = vand.u32 %v381, 4294901760
        %3659 = vmatprep.subr.mxu0 %v3658
        %v3660 = vand.u32 %v380, 4294901760
        %3661 = vmatpush1.xpose.msra.mxu0 %v3660
        %v3662 = vand.u32 %v365, 4294901760
        %3663 = vmatprep.subr.mxu0 %v3662
        %v3664 = vand.u32 %v364, 4294901760
        %3665 = vmatpush1.xpose.msra.mxu0 %v3664
        %v3666 = vand.u32 %v349, 4294901760
        %3667 = vmatprep.subr.mxu0 %v3666
        %v3668 = vand.u32 %v348, 4294901760
        %3669 = vmatpush1.xpose.msra.mxu0 %v3668
        %v3670 = vand.u32 %v333, 4294901760
        %3671 = vmatprep.subr.mxu0 %v3670
        %v3672 = vand.u32 %v332, 4294901760
        %3673 = vmatpush1.xpose.msra.mxu0 %v3672
        %v3674 = vand.u32 %v317, 4294901760
        %3675 = vmatprep.subr.mxu0 %v3674
        %v3676 = vand.u32 %v316, 4294901760
        %3677 = vmatpush1.xpose.msra.mxu0 %v3676
        %v3678 = vand.u32 %v301, 4294901760
        %3679 = vmatprep.subr.mxu0 %v3678
        %v3680 = vand.u32 %v300, 4294901760
        %3681 = vmatpush1.xpose.msra.mxu0 %v3680
        %3682 = vmatprep.subr.mxu0 0.0
        %3683 = vmatpush2.xpose.msra.mxu0 0.0
        %3684 = vmatprep.subr.mxu0 0.0
        %3685 = vmatpush2.xpose.msra.mxu0 0.0
        %3686 = vmatprep.subr.mxu0 0.0
        %3687 = vmatpush2.xpose.msra.mxu0 0.0
        %3688 = vmatprep.subr.mxu0 0.0
        %3689 = vmatpush2.xpose.msra.mxu0 0.0
        %3690 = vmatprep.subr.mxu0 0.0
        %3691 = vmatpush2.xpose.msra.mxu0 0.0
        %3692 = vmatprep.subr.mxu0 0.0
        %3693 = vmatpush2.xpose.msra.mxu0 0.0
        %3694 = vmatprep.subr.mxu0 0.0
        %3695 = vmatpush2.xpose.msra.mxu0 0.0
        %3696 = vmatprep.subr.mxu0 0.0
        %3697 = vmatpush2.xpose.msra.mxu0 0.0
        %3698 = vmatprep.subr.mxu0 0.0
        %3699 = vmatpush2.xpose.msra.mxu0 0.0
        %3700 = vmatprep.subr.mxu0 0.0
        %3701 = vmatpush2.xpose.msra.mxu0 0.0
        %3702 = vmatprep.subr.mxu0 0.0
        %3703 = vmatpush2.xpose.msra.mxu0 0.0
        %3704 = vmatprep.subr.mxu0 0.0
        %3705 = vmatpush2.xpose.msra.mxu0 0.0
        %3706 = vmatprep.subr.mxu0 0.0
        %3707 = vmatpush2.xpose.msra.mxu0 0.0
        %3708 = vmatprep.subr.mxu0 0.0
        %3709 = vmatpush2.xpose.msra.mxu0 0.0
        %3710 = vmatprep.subr.mxu0 0.0
        %3711 = vmatpush2.xpose.msra.mxu0 0.0
        %3712 = vmatprep.subr.mxu0 0.0
        %3713 = vmatpush2.xpose.msra.mxu0 0.0
        %v3714 = vand.u32 %v285, 4294901760
        %v3715 = vsub.f32 %v285, %v3714
        %v3716 = vand.u32 %v3715, 4294901760
        %3717 = vmatprep.mubr.f32.mxu0 %v3716
        %v3718 = vand.u32 %v284, 4294901760
        %v3719 = vsub.f32 %v284, %v3718
        %v3720 = vand.u32 %v3719, 4294901760
        %3721 = vmatmul.mubr.f32.gmra.mxu0 %v3720
        %v3722 = vpop.f32.mrf.mxu0
        %v3723 = vadd.f32 %v3615, %v3722
        %v3724 = vpop.f32.mrf.mxu0
        %3725 = vdwg.mxu0
        %v3726 = vand.u32 %v541, 4294901760
        %v3727 = vsub.f32 %v541, %v3726
        %v3728 = vand.u32 %v3727, 4294901760
        %3729 = vmatprep.subr.mxu0 %v3728
        %v3730 = vand.u32 %v540, 4294901760
        %v3731 = vsub.f32 %v540, %v3730
        %v3732 = vand.u32 %v3731, 4294901760
        %3733 = vmatpush1.xpose.msra.mxu0 %v3732
        %v3734 = vand.u32 %v525, 4294901760
        %v3735 = vsub.f32 %v525, %v3734
        %v3736 = vand.u32 %v3735, 4294901760
        %3737 = vmatprep.subr.mxu0 %v3736
        %v3738 = vand.u32 %v524, 4294901760
        %v3739 = vsub.f32 %v524, %v3738
        %v3740 = vand.u32 %v3739, 4294901760
        %3741 = vmatpush1.xpose.msra.mxu0 %v3740
        %v3742 = vand.u32 %v509, 4294901760
        %v3743 = vsub.f32 %v509, %v3742
        %v3744 = vand.u32 %v3743, 4294901760
        %3745 = vmatprep.subr.mxu0 %v3744
        %v3746 = vand.u32 %v508, 4294901760
        %v3747 = vsub.f32 %v508, %v3746
        %v3748 = vand.u32 %v3747, 4294901760
        %3749 = vmatpush1.xpose.msra.mxu0 %v3748
        %v3750 = vand.u32 %v493, 4294901760
        %v3751 = vsub.f32 %v493, %v3750
        %v3752 = vand.u32 %v3751, 4294901760
        %3753 = vmatprep.subr.mxu0 %v3752
        %v3754 = vand.u32 %v492, 4294901760
        %v3755 = vsub.f32 %v492, %v3754
        %v3756 = vand.u32 %v3755, 4294901760
        %3757 = vmatpush1.xpose.msra.mxu0 %v3756
        %v3758 = vand.u32 %v477, 4294901760
        %v3759 = vsub.f32 %v477, %v3758
        %v3760 = vand.u32 %v3759, 4294901760
        %3761 = vmatprep.subr.mxu0 %v3760
        %v3762 = vand.u32 %v476, 4294901760
        %v3763 = vsub.f32 %v476, %v3762
        %v3764 = vand.u32 %v3763, 4294901760
        %3765 = vmatpush1.xpose.msra.mxu0 %v3764
        %v3766 = vand.u32 %v461, 4294901760
        %v3767 = vsub.f32 %v461, %v3766
        %v3768 = vand.u32 %v3767, 4294901760
        %3769 = vmatprep.subr.mxu0 %v3768
        %v3770 = vand.u32 %v460, 4294901760
        %v3771 = vsub.f32 %v460, %v3770
        %v3772 = vand.u32 %v3771, 4294901760
        %3773 = vmatpush1.xpose.msra.mxu0 %v3772
        %v3774 = vand.u32 %v445, 4294901760
        %v3775 = vsub.f32 %v445, %v3774
        %v3776 = vand.u32 %v3775, 4294901760
        %3777 = vmatprep.subr.mxu0 %v3776
        %v3778 = vand.u32 %v444, 4294901760
        %v3779 = vsub.f32 %v444, %v3778
        %v3780 = vand.u32 %v3779, 4294901760
        %3781 = vmatpush1.xpose.msra.mxu0 %v3780
        %v3782 = vand.u32 %v429, 4294901760
        %v3783 = vsub.f32 %v429, %v3782
        %v3784 = vand.u32 %v3783, 4294901760
        %3785 = vmatprep.subr.mxu0 %v3784
        %v3786 = vand.u32 %v428, 4294901760
        %v3787 = vsub.f32 %v428, %v3786
        %v3788 = vand.u32 %v3787, 4294901760
        %3789 = vmatpush1.xpose.msra.mxu0 %v3788
        %v3790 = vand.u32 %v413, 4294901760
        %v3791 = vsub.f32 %v413, %v3790
        %v3792 = vand.u32 %v3791, 4294901760
        %3793 = vmatprep.subr.mxu0 %v3792
        %v3794 = vand.u32 %v412, 4294901760
        %v3795 = vsub.f32 %v412, %v3794
        %v3796 = vand.u32 %v3795, 4294901760
        %3797 = vmatpush1.xpose.msra.mxu0 %v3796
        %v3798 = vand.u32 %v397, 4294901760
        %v3799 = vsub.f32 %v397, %v3798
        %v3800 = vand.u32 %v3799, 4294901760
        %3801 = vmatprep.subr.mxu0 %v3800
        %v3802 = vand.u32 %v396, 4294901760
        %v3803 = vsub.f32 %v396, %v3802
        %v3804 = vand.u32 %v3803, 4294901760
        %3805 = vmatpush1.xpose.msra.mxu0 %v3804
        %v3806 = vand.u32 %v381, 4294901760
        %v3807 = vsub.f32 %v381, %v3806
        %v3808 = vand.u32 %v3807, 4294901760
        %3809 = vmatprep.subr.mxu0 %v3808
        %v3810 = vand.u32 %v380, 4294901760
        %v3811 = vsub.f32 %v380, %v3810
        %v3812 = vand.u32 %v3811, 4294901760
        %3813 = vmatpush1.xpose.msra.mxu0 %v3812
        %v3814 = vand.u32 %v365, 4294901760
        %v3815 = vsub.f32 %v365, %v3814
        %v3816 = vand.u32 %v3815, 4294901760
        %3817 = vmatprep.subr.mxu0 %v3816
        %v3818 = vand.u32 %v364, 4294901760
        %v3819 = vsub.f32 %v364, %v3818
        %v3820 = vand.u32 %v3819, 4294901760
        %3821 = vmatpush1.xpose.msra.mxu0 %v3820
        %v3822 = vand.u32 %v349, 4294901760
        %v3823 = vsub.f32 %v349, %v3822
        %v3824 = vand.u32 %v3823, 4294901760
        %3825 = vmatprep.subr.mxu0 %v3824
        %v3826 = vand.u32 %v348, 4294901760
        %v3827 = vsub.f32 %v348, %v3826
        %v3828 = vand.u32 %v3827, 4294901760
        %3829 = vmatpush1.xpose.msra.mxu0 %v3828
        %v3830 = vand.u32 %v333, 4294901760
        %v3831 = vsub.f32 %v333, %v3830
        %v3832 = vand.u32 %v3831, 4294901760
        %3833 = vmatprep.subr.mxu0 %v3832
        %v3834 = vand.u32 %v332, 4294901760
        %v3835 = vsub.f32 %v332, %v3834
        %v3836 = vand.u32 %v3835, 4294901760
        %3837 = vmatpush1.xpose.msra.mxu0 %v3836
        %v3838 = vand.u32 %v317, 4294901760
        %v3839 = vsub.f32 %v317, %v3838
        %v3840 = vand.u32 %v3839, 4294901760
        %3841 = vmatprep.subr.mxu0 %v3840
        %v3842 = vand.u32 %v316, 4294901760
        %v3843 = vsub.f32 %v316, %v3842
        %v3844 = vand.u32 %v3843, 4294901760
        %3845 = vmatpush1.xpose.msra.mxu0 %v3844
        %v3846 = vand.u32 %v301, 4294901760
        %v3847 = vsub.f32 %v301, %v3846
        %v3848 = vand.u32 %v3847, 4294901760
        %3849 = vmatprep.subr.mxu0 %v3848
        %v3850 = vand.u32 %v300, 4294901760
        %v3851 = vsub.f32 %v300, %v3850
        %v3852 = vand.u32 %v3851, 4294901760
        %3853 = vmatpush1.xpose.msra.mxu0 %v3852
        %3854 = vmatprep.subr.mxu0 0.0
        %3855 = vmatpush2.xpose.msra.mxu0 0.0
        %3856 = vmatprep.subr.mxu0 0.0
        %3857 = vmatpush2.xpose.msra.mxu0 0.0
        %3858 = vmatprep.subr.mxu0 0.0
        %3859 = vmatpush2.xpose.msra.mxu0 0.0
        %3860 = vmatprep.subr.mxu0 0.0
        %3861 = vmatpush2.xpose.msra.mxu0 0.0
        %3862 = vmatprep.subr.mxu0 0.0
        %3863 = vmatpush2.xpose.msra.mxu0 0.0
        %3864 = vmatprep.subr.mxu0 0.0
        %3865 = vmatpush2.xpose.msra.mxu0 0.0
        %3866 = vmatprep.subr.mxu0 0.0
        %3867 = vmatpush2.xpose.msra.mxu0 0.0
        %3868 = vmatprep.subr.mxu0 0.0
        %3869 = vmatpush2.xpose.msra.mxu0 0.0
        %3870 = vmatprep.subr.mxu0 0.0
        %3871 = vmatpush2.xpose.msra.mxu0 0.0
        %3872 = vmatprep.subr.mxu0 0.0
        %3873 = vmatpush2.xpose.msra.mxu0 0.0
        %3874 = vmatprep.subr.mxu0 0.0
        %3875 = vmatpush2.xpose.msra.mxu0 0.0
        %3876 = vmatprep.subr.mxu0 0.0
        %3877 = vmatpush2.xpose.msra.mxu0 0.0
        %3878 = vmatprep.subr.mxu0 0.0
        %3879 = vmatpush2.xpose.msra.mxu0 0.0
        %3880 = vmatprep.subr.mxu0 0.0
        %3881 = vmatpush2.xpose.msra.mxu0 0.0
        %3882 = vmatprep.subr.mxu0 0.0
        %3883 = vmatpush2.xpose.msra.mxu0 0.0
        %3884 = vmatprep.subr.mxu0 0.0
        %3885 = vmatpush2.xpose.msra.mxu0 0.0
        %v3886 = vand.u32 %v285, 4294901760
        %3887 = vmatprep.mubr.f32.mxu0 %v3886
        %v3888 = vand.u32 %v284, 4294901760
        %3889 = vmatmul.mubr.f32.gmra.mxu0 %v3888
        %v3890 = vpop.f32.mrf.mxu0
        %v3891 = vadd.f32 %v3723, %v3890
        %v3892 = vpop.f32.mrf.mxu0
        %3893 = vdwg.mxu0
        %v3894 = vand.u32 %v541, 4294901760
        %3895 = vmatprep.subr.mxu0 %v3894
        %v3896 = vand.u32 %v540, 4294901760
        %3897 = vmatpush1.xpose.msra.mxu0 %v3896
        %v3898 = vand.u32 %v525, 4294901760
        %3899 = vmatprep.subr.mxu0 %v3898
        %v3900 = vand.u32 %v524, 4294901760
        %3901 = vmatpush1.xpose.msra.mxu0 %v3900
        %v3902 = vand.u32 %v509, 4294901760
        %3903 = vmatprep.subr.mxu0 %v3902
        %v3904 = vand.u32 %v508, 4294901760
        %3905 = vmatpush1.xpose.msra.mxu0 %v3904
        %v3906 = vand.u32 %v493, 4294901760
        %3907 = vmatprep.subr.mxu0 %v3906
        %v3908 = vand.u32 %v492, 4294901760
        %3909 = vmatpush1.xpose.msra.mxu0 %v3908
        %v3910 = vand.u32 %v477, 4294901760
        %3911 = vmatprep.subr.mxu0 %v3910
        %v3912 = vand.u32 %v476, 4294901760
        %3913 = vmatpush1.xpose.msra.mxu0 %v3912
        %v3914 = vand.u32 %v461, 4294901760
        %3915 = vmatprep.subr.mxu0 %v3914
        %v3916 = vand.u32 %v460, 4294901760
        %3917 = vmatpush1.xpose.msra.mxu0 %v3916
        %v3918 = vand.u32 %v445, 4294901760
        %3919 = vmatprep.subr.mxu0 %v3918
        %v3920 = vand.u32 %v444, 4294901760
        %3921 = vmatpush1.xpose.msra.mxu0 %v3920
        %v3922 = vand.u32 %v429, 4294901760
        %3923 = vmatprep.subr.mxu0 %v3922
        %v3924 = vand.u32 %v428, 4294901760
        %3925 = vmatpush1.xpose.msra.mxu0 %v3924
        %v3926 = vand.u32 %v413, 4294901760
        %3927 = vmatprep.subr.mxu0 %v3926
        %v3928 = vand.u32 %v412, 4294901760
        %3929 = vmatpush1.xpose.msra.mxu0 %v3928
        %v3930 = vand.u32 %v397, 4294901760
        %3931 = vmatprep.subr.mxu0 %v3930
        %v3932 = vand.u32 %v396, 4294901760
        %3933 = vmatpush1.xpose.msra.mxu0 %v3932
        %v3934 = vand.u32 %v381, 4294901760
        %3935 = vmatprep.subr.mxu0 %v3934
        %v3936 = vand.u32 %v380, 4294901760
        %3937 = vmatpush1.xpose.msra.mxu0 %v3936
        %v3938 = vand.u32 %v365, 4294901760
        %3939 = vmatprep.subr.mxu0 %v3938
        %v3940 = vand.u32 %v364, 4294901760
        %3941 = vmatpush1.xpose.msra.mxu0 %v3940
        %v3942 = vand.u32 %v349, 4294901760
        %3943 = vmatprep.subr.mxu0 %v3942
        %v3944 = vand.u32 %v348, 4294901760
        %3945 = vmatpush1.xpose.msra.mxu0 %v3944
        %v3946 = vand.u32 %v333, 4294901760
        %3947 = vmatprep.subr.mxu0 %v3946
        %v3948 = vand.u32 %v332, 4294901760
        %3949 = vmatpush1.xpose.msra.mxu0 %v3948
        %v3950 = vand.u32 %v317, 4294901760
        %3951 = vmatprep.subr.mxu0 %v3950
        %v3952 = vand.u32 %v316, 4294901760
        %3953 = vmatpush1.xpose.msra.mxu0 %v3952
        %v3954 = vand.u32 %v301, 4294901760
        %3955 = vmatprep.subr.mxu0 %v3954
        %v3956 = vand.u32 %v300, 4294901760
        %3957 = vmatpush1.xpose.msra.mxu0 %v3956
        %3958 = vmatprep.subr.mxu0 0.0
        %3959 = vmatpush2.xpose.msra.mxu0 0.0
        %3960 = vmatprep.subr.mxu0 0.0
        %3961 = vmatpush2.xpose.msra.mxu0 0.0
        %3962 = vmatprep.subr.mxu0 0.0
        %3963 = vmatpush2.xpose.msra.mxu0 0.0
        %3964 = vmatprep.subr.mxu0 0.0
        %3965 = vmatpush2.xpose.msra.mxu0 0.0
        %3966 = vmatprep.subr.mxu0 0.0
        %3967 = vmatpush2.xpose.msra.mxu0 0.0
        %3968 = vmatprep.subr.mxu0 0.0
        %3969 = vmatpush2.xpose.msra.mxu0 0.0
        %3970 = vmatprep.subr.mxu0 0.0
        %3971 = vmatpush2.xpose.msra.mxu0 0.0
        %3972 = vmatprep.subr.mxu0 0.0
        %3973 = vmatpush2.xpose.msra.mxu0 0.0
        %3974 = vmatprep.subr.mxu0 0.0
        %3975 = vmatpush2.xpose.msra.mxu0 0.0
        %3976 = vmatprep.subr.mxu0 0.0
        %3977 = vmatpush2.xpose.msra.mxu0 0.0
        %3978 = vmatprep.subr.mxu0 0.0
        %3979 = vmatpush2.xpose.msra.mxu0 0.0
        %3980 = vmatprep.subr.mxu0 0.0
        %3981 = vmatpush2.xpose.msra.mxu0 0.0
        %3982 = vmatprep.subr.mxu0 0.0
        %3983 = vmatpush2.xpose.msra.mxu0 0.0
        %3984 = vmatprep.subr.mxu0 0.0
        %3985 = vmatpush2.xpose.msra.mxu0 0.0
        %3986 = vmatprep.subr.mxu0 0.0
        %3987 = vmatpush2.xpose.msra.mxu0 0.0
        %3988 = vmatprep.subr.mxu0 0.0
        %3989 = vmatpush2.xpose.msra.mxu0 0.0
        %v3990 = vand.u32 %v285, 4294901760
        %3991 = vmatprep.mubr.f32.mxu0 %v3990
        %v3992 = vand.u32 %v284, 4294901760
        %3993 = vmatmul.mubr.f32.gmra.mxu0 %v3992
        %v3994 = vpop.f32.mrf.mxu0
        %v3995 = vadd.f32 %v3891, %v3994
        %v3996 = vpop.f32.mrf.mxu0
        %3997 = vdwg.mxu0
        %v3998 = vand.u32 %v543, 4294901760
        %3999 = vmatprep.subr.mxu0 %v3998
        %v4000 = vand.u32 %v542, 4294901760
        %4001 = vmatpush1.xpose.msra.mxu0 %v4000
        %v4002 = vand.u32 %v527, 4294901760
        %4003 = vmatprep.subr.mxu0 %v4002
        %v4004 = vand.u32 %v526, 4294901760
        %4005 = vmatpush1.xpose.msra.mxu0 %v4004
        %v4006 = vand.u32 %v511, 4294901760
        %4007 = vmatprep.subr.mxu0 %v4006
        %v4008 = vand.u32 %v510, 4294901760
        %4009 = vmatpush1.xpose.msra.mxu0 %v4008
        %v4010 = vand.u32 %v495, 4294901760
        %4011 = vmatprep.subr.mxu0 %v4010
        %v4012 = vand.u32 %v494, 4294901760
        %4013 = vmatpush1.xpose.msra.mxu0 %v4012
        %v4014 = vand.u32 %v479, 4294901760
        %4015 = vmatprep.subr.mxu0 %v4014
        %v4016 = vand.u32 %v478, 4294901760
        %4017 = vmatpush1.xpose.msra.mxu0 %v4016
        %v4018 = vand.u32 %v463, 4294901760
        %4019 = vmatprep.subr.mxu0 %v4018
        %v4020 = vand.u32 %v462, 4294901760
        %4021 = vmatpush1.xpose.msra.mxu0 %v4020
        %v4022 = vand.u32 %v447, 4294901760
        %4023 = vmatprep.subr.mxu0 %v4022
        %v4024 = vand.u32 %v446, 4294901760
        %4025 = vmatpush1.xpose.msra.mxu0 %v4024
        %v4026 = vand.u32 %v431, 4294901760
        %4027 = vmatprep.subr.mxu0 %v4026
        %v4028 = vand.u32 %v430, 4294901760
        %4029 = vmatpush1.xpose.msra.mxu0 %v4028
        %v4030 = vand.u32 %v415, 4294901760
        %4031 = vmatprep.subr.mxu0 %v4030
        %v4032 = vand.u32 %v414, 4294901760
        %4033 = vmatpush1.xpose.msra.mxu0 %v4032
        %v4034 = vand.u32 %v399, 4294901760
        %4035 = vmatprep.subr.mxu0 %v4034
        %v4036 = vand.u32 %v398, 4294901760
        %4037 = vmatpush1.xpose.msra.mxu0 %v4036
        %v4038 = vand.u32 %v383, 4294901760
        %4039 = vmatprep.subr.mxu0 %v4038
        %v4040 = vand.u32 %v382, 4294901760
        %4041 = vmatpush1.xpose.msra.mxu0 %v4040
        %v4042 = vand.u32 %v367, 4294901760
        %4043 = vmatprep.subr.mxu0 %v4042
        %v4044 = vand.u32 %v366, 4294901760
        %4045 = vmatpush1.xpose.msra.mxu0 %v4044
        %v4046 = vand.u32 %v351, 4294901760
        %4047 = vmatprep.subr.mxu0 %v4046
        %v4048 = vand.u32 %v350, 4294901760
        %4049 = vmatpush1.xpose.msra.mxu0 %v4048
        %v4050 = vand.u32 %v335, 4294901760
        %4051 = vmatprep.subr.mxu0 %v4050
        %v4052 = vand.u32 %v334, 4294901760
        %4053 = vmatpush1.xpose.msra.mxu0 %v4052
        %v4054 = vand.u32 %v319, 4294901760
        %4055 = vmatprep.subr.mxu0 %v4054
        %v4056 = vand.u32 %v318, 4294901760
        %4057 = vmatpush1.xpose.msra.mxu0 %v4056
        %v4058 = vand.u32 %v303, 4294901760
        %4059 = vmatprep.subr.mxu0 %v4058
        %v4060 = vand.u32 %v302, 4294901760
        %4061 = vmatpush1.xpose.msra.mxu0 %v4060
        %4062 = vmatprep.subr.mxu0 0.0
        %4063 = vmatpush2.xpose.msra.mxu0 0.0
        %4064 = vmatprep.subr.mxu0 0.0
        %4065 = vmatpush2.xpose.msra.mxu0 0.0
        %4066 = vmatprep.subr.mxu0 0.0
        %4067 = vmatpush2.xpose.msra.mxu0 0.0
        %4068 = vmatprep.subr.mxu0 0.0
        %4069 = vmatpush2.xpose.msra.mxu0 0.0
        %4070 = vmatprep.subr.mxu0 0.0
        %4071 = vmatpush2.xpose.msra.mxu0 0.0
        %4072 = vmatprep.subr.mxu0 0.0
        %4073 = vmatpush2.xpose.msra.mxu0 0.0
        %4074 = vmatprep.subr.mxu0 0.0
        %4075 = vmatpush2.xpose.msra.mxu0 0.0
        %4076 = vmatprep.subr.mxu0 0.0
        %4077 = vmatpush2.xpose.msra.mxu0 0.0
        %4078 = vmatprep.subr.mxu0 0.0
        %4079 = vmatpush2.xpose.msra.mxu0 0.0
        %4080 = vmatprep.subr.mxu0 0.0
        %4081 = vmatpush2.xpose.msra.mxu0 0.0
        %4082 = vmatprep.subr.mxu0 0.0
        %4083 = vmatpush2.xpose.msra.mxu0 0.0
        %4084 = vmatprep.subr.mxu0 0.0
        %4085 = vmatpush2.xpose.msra.mxu0 0.0
        %4086 = vmatprep.subr.mxu0 0.0
        %4087 = vmatpush2.xpose.msra.mxu0 0.0
        %4088 = vmatprep.subr.mxu0 0.0
        %4089 = vmatpush2.xpose.msra.mxu0 0.0
        %4090 = vmatprep.subr.mxu0 0.0
        %4091 = vmatpush2.xpose.msra.mxu0 0.0
        %4092 = vmatprep.subr.mxu0 0.0
        %4093 = vmatpush2.xpose.msra.mxu0 0.0
        %v4094 = vand.u32 %v287, 4294901760
        %v4095 = vsub.f32 %v287, %v4094
        %v4096 = vand.u32 %v4095, 4294901760
        %v4097 = vsub.f32 %v4095, %v4096
        %v4098 = vand.u32 %v4097, 4294901760
        %4099 = vmatprep.mubr.f32.mxu0 %v4098
        %v4100 = vand.u32 %v286, 4294901760
        %v4101 = vsub.f32 %v286, %v4100
        %v4102 = vand.u32 %v4101, 4294901760
        %v4103 = vsub.f32 %v4101, %v4102
        %v4104 = vand.u32 %v4103, 4294901760
        %4105 = vmatmul.mubr.f32.gmra.mxu0 %v4104
        %v4106 = vpop.f32.mrf.mxu0
        %v4107 = vadd.f32 %v3995, %v4106
        %v4108 = vpop.f32.mrf.mxu0
        %4109 = vdwg.mxu0
        %v4110 = vand.u32 %v543, 4294901760
        %v4111 = vsub.f32 %v543, %v4110
        %v4112 = vand.u32 %v4111, 4294901760
        %v4113 = vsub.f32 %v4111, %v4112
        %v4114 = vand.u32 %v4113, 4294901760
        %4115 = vmatprep.subr.mxu0 %v4114
        %v4116 = vand.u32 %v542, 4294901760
        %v4117 = vsub.f32 %v542, %v4116
        %v4118 = vand.u32 %v4117, 4294901760
        %v4119 = vsub.f32 %v4117, %v4118
        %v4120 = vand.u32 %v4119, 4294901760
        %4121 = vmatpush1.xpose.msra.mxu0 %v4120
        %v4122 = vand.u32 %v527, 4294901760
        %v4123 = vsub.f32 %v527, %v4122
        %v4124 = vand.u32 %v4123, 4294901760
        %v4125 = vsub.f32 %v4123, %v4124
        %v4126 = vand.u32 %v4125, 4294901760
        %4127 = vmatprep.subr.mxu0 %v4126
        %v4128 = vand.u32 %v526, 4294901760
        %v4129 = vsub.f32 %v526, %v4128
        %v4130 = vand.u32 %v4129, 4294901760
        %v4131 = vsub.f32 %v4129, %v4130
        %v4132 = vand.u32 %v4131, 4294901760
        %4133 = vmatpush1.xpose.msra.mxu0 %v4132
        %v4134 = vand.u32 %v511, 4294901760
        %v4135 = vsub.f32 %v511, %v4134
        %v4136 = vand.u32 %v4135, 4294901760
        %v4137 = vsub.f32 %v4135, %v4136
        %v4138 = vand.u32 %v4137, 4294901760
        %4139 = vmatprep.subr.mxu0 %v4138
        %v4140 = vand.u32 %v510, 4294901760
        %v4141 = vsub.f32 %v510, %v4140
        %v4142 = vand.u32 %v4141, 4294901760
        %v4143 = vsub.f32 %v4141, %v4142
        %v4144 = vand.u32 %v4143, 4294901760
        %4145 = vmatpush1.xpose.msra.mxu0 %v4144
        %v4146 = vand.u32 %v495, 4294901760
        %v4147 = vsub.f32 %v495, %v4146
        %v4148 = vand.u32 %v4147, 4294901760
        %v4149 = vsub.f32 %v4147, %v4148
        %v4150 = vand.u32 %v4149, 4294901760
        %4151 = vmatprep.subr.mxu0 %v4150
        %v4152 = vand.u32 %v494, 4294901760
        %v4153 = vsub.f32 %v494, %v4152
        %v4154 = vand.u32 %v4153, 4294901760
        %v4155 = vsub.f32 %v4153, %v4154
        %v4156 = vand.u32 %v4155, 4294901760
        %4157 = vmatpush1.xpose.msra.mxu0 %v4156
        %v4158 = vand.u32 %v479, 4294901760
        %v4159 = vsub.f32 %v479, %v4158
        %v4160 = vand.u32 %v4159, 4294901760
        %v4161 = vsub.f32 %v4159, %v4160
        %v4162 = vand.u32 %v4161, 4294901760
        %4163 = vmatprep.subr.mxu0 %v4162
        %v4164 = vand.u32 %v478, 4294901760
        %v4165 = vsub.f32 %v478, %v4164
        %v4166 = vand.u32 %v4165, 4294901760
        %v4167 = vsub.f32 %v4165, %v4166
        %v4168 = vand.u32 %v4167, 4294901760
        %4169 = vmatpush1.xpose.msra.mxu0 %v4168
        %v4170 = vand.u32 %v463, 4294901760
        %v4171 = vsub.f32 %v463, %v4170
        %v4172 = vand.u32 %v4171, 4294901760
        %v4173 = vsub.f32 %v4171, %v4172
        %v4174 = vand.u32 %v4173, 4294901760
        %4175 = vmatprep.subr.mxu0 %v4174
        %v4176 = vand.u32 %v462, 4294901760
        %v4177 = vsub.f32 %v462, %v4176
        %v4178 = vand.u32 %v4177, 4294901760
        %v4179 = vsub.f32 %v4177, %v4178
        %v4180 = vand.u32 %v4179, 4294901760
        %4181 = vmatpush1.xpose.msra.mxu0 %v4180
        %v4182 = vand.u32 %v447, 4294901760
        %v4183 = vsub.f32 %v447, %v4182
        %v4184 = vand.u32 %v4183, 4294901760
        %v4185 = vsub.f32 %v4183, %v4184
        %v4186 = vand.u32 %v4185, 4294901760
        %4187 = vmatprep.subr.mxu0 %v4186
        %v4188 = vand.u32 %v446, 4294901760
        %v4189 = vsub.f32 %v446, %v4188
        %v4190 = vand.u32 %v4189, 4294901760
        %v4191 = vsub.f32 %v4189, %v4190
        %v4192 = vand.u32 %v4191, 4294901760
        %4193 = vmatpush1.xpose.msra.mxu0 %v4192
        %v4194 = vand.u32 %v431, 4294901760
        %v4195 = vsub.f32 %v431, %v4194
        %v4196 = vand.u32 %v4195, 4294901760
        %v4197 = vsub.f32 %v4195, %v4196
        %v4198 = vand.u32 %v4197, 4294901760
        %4199 = vmatprep.subr.mxu0 %v4198
        %v4200 = vand.u32 %v430, 4294901760
        %v4201 = vsub.f32 %v430, %v4200
        %v4202 = vand.u32 %v4201, 4294901760
        %v4203 = vsub.f32 %v4201, %v4202
        %v4204 = vand.u32 %v4203, 4294901760
        %4205 = vmatpush1.xpose.msra.mxu0 %v4204
        %v4206 = vand.u32 %v415, 4294901760
        %v4207 = vsub.f32 %v415, %v4206
        %v4208 = vand.u32 %v4207, 4294901760
        %v4209 = vsub.f32 %v4207, %v4208
        %v4210 = vand.u32 %v4209, 4294901760
        %4211 = vmatprep.subr.mxu0 %v4210
        %v4212 = vand.u32 %v414, 4294901760
        %v4213 = vsub.f32 %v414, %v4212
        %v4214 = vand.u32 %v4213, 4294901760
        %v4215 = vsub.f32 %v4213, %v4214
        %v4216 = vand.u32 %v4215, 4294901760
        %4217 = vmatpush1.xpose.msra.mxu0 %v4216
        %v4218 = vand.u32 %v399, 4294901760
        %v4219 = vsub.f32 %v399, %v4218
        %v4220 = vand.u32 %v4219, 4294901760
        %v4221 = vsub.f32 %v4219, %v4220
        %v4222 = vand.u32 %v4221, 4294901760
        %4223 = vmatprep.subr.mxu0 %v4222
        %v4224 = vand.u32 %v398, 4294901760
        %v4225 = vsub.f32 %v398, %v4224
        %v4226 = vand.u32 %v4225, 4294901760
        %v4227 = vsub.f32 %v4225, %v4226
        %v4228 = vand.u32 %v4227, 4294901760
        %4229 = vmatpush1.xpose.msra.mxu0 %v4228
        %v4230 = vand.u32 %v383, 4294901760
        %v4231 = vsub.f32 %v383, %v4230
        %v4232 = vand.u32 %v4231, 4294901760
        %v4233 = vsub.f32 %v4231, %v4232
        %v4234 = vand.u32 %v4233, 4294901760
        %4235 = vmatprep.subr.mxu0 %v4234
        %v4236 = vand.u32 %v382, 4294901760
        %v4237 = vsub.f32 %v382, %v4236
        %v4238 = vand.u32 %v4237, 4294901760
        %v4239 = vsub.f32 %v4237, %v4238
        %v4240 = vand.u32 %v4239, 4294901760
        %4241 = vmatpush1.xpose.msra.mxu0 %v4240
        %v4242 = vand.u32 %v367, 4294901760
        %v4243 = vsub.f32 %v367, %v4242
        %v4244 = vand.u32 %v4243, 4294901760
        %v4245 = vsub.f32 %v4243, %v4244
        %v4246 = vand.u32 %v4245, 4294901760
        %4247 = vmatprep.subr.mxu0 %v4246
        %v4248 = vand.u32 %v366, 4294901760
        %v4249 = vsub.f32 %v366, %v4248
        %v4250 = vand.u32 %v4249, 4294901760
        %v4251 = vsub.f32 %v4249, %v4250
        %v4252 = vand.u32 %v4251, 4294901760
        %4253 = vmatpush1.xpose.msra.mxu0 %v4252
        %v4254 = vand.u32 %v351, 4294901760
        %v4255 = vsub.f32 %v351, %v4254
        %v4256 = vand.u32 %v4255, 4294901760
        %v4257 = vsub.f32 %v4255, %v4256
        %v4258 = vand.u32 %v4257, 4294901760
        %4259 = vmatprep.subr.mxu0 %v4258
        %v4260 = vand.u32 %v350, 4294901760
        %v4261 = vsub.f32 %v350, %v4260
        %v4262 = vand.u32 %v4261, 4294901760
        %v4263 = vsub.f32 %v4261, %v4262
        %v4264 = vand.u32 %v4263, 4294901760
        %4265 = vmatpush1.xpose.msra.mxu0 %v4264
        %v4266 = vand.u32 %v335, 4294901760
        %v4267 = vsub.f32 %v335, %v4266
        %v4268 = vand.u32 %v4267, 4294901760
        %v4269 = vsub.f32 %v4267, %v4268
        %v4270 = vand.u32 %v4269, 4294901760
        %4271 = vmatprep.subr.mxu0 %v4270
        %v4272 = vand.u32 %v334, 4294901760
        %v4273 = vsub.f32 %v334, %v4272
        %v4274 = vand.u32 %v4273, 4294901760
        %v4275 = vsub.f32 %v4273, %v4274
        %v4276 = vand.u32 %v4275, 4294901760
        %4277 = vmatpush1.xpose.msra.mxu0 %v4276
        %v4278 = vand.u32 %v319, 4294901760
        %v4279 = vsub.f32 %v319, %v4278
        %v4280 = vand.u32 %v4279, 4294901760
        %v4281 = vsub.f32 %v4279, %v4280
        %v4282 = vand.u32 %v4281, 4294901760
        %4283 = vmatprep.subr.mxu0 %v4282
        %v4284 = vand.u32 %v318, 4294901760
        %v4285 = vsub.f32 %v318, %v4284
        %v4286 = vand.u32 %v4285, 4294901760
        %v4287 = vsub.f32 %v4285, %v4286
        %v4288 = vand.u32 %v4287, 4294901760
        %4289 = vmatpush1.xpose.msra.mxu0 %v4288
        %v4290 = vand.u32 %v303, 4294901760
        %v4291 = vsub.f32 %v303, %v4290
        %v4292 = vand.u32 %v4291, 4294901760
        %v4293 = vsub.f32 %v4291, %v4292
        %v4294 = vand.u32 %v4293, 4294901760
        %4295 = vmatprep.subr.mxu0 %v4294
        %v4296 = vand.u32 %v302, 4294901760
        %v4297 = vsub.f32 %v302, %v4296
        %v4298 = vand.u32 %v4297, 4294901760
        %v4299 = vsub.f32 %v4297, %v4298
        %v4300 = vand.u32 %v4299, 4294901760
        %4301 = vmatpush1.xpose.msra.mxu0 %v4300
        %4302 = vmatprep.subr.mxu0 0.0
        %4303 = vmatpush2.xpose.msra.mxu0 0.0
        %4304 = vmatprep.subr.mxu0 0.0
        %4305 = vmatpush2.xpose.msra.mxu0 0.0
        %4306 = vmatprep.subr.mxu0 0.0
        %4307 = vmatpush2.xpose.msra.mxu0 0.0
        %4308 = vmatprep.subr.mxu0 0.0
        %4309 = vmatpush2.xpose.msra.mxu0 0.0
        %4310 = vmatprep.subr.mxu0 0.0
        %4311 = vmatpush2.xpose.msra.mxu0 0.0
        %4312 = vmatprep.subr.mxu0 0.0
        %4313 = vmatpush2.xpose.msra.mxu0 0.0
        %4314 = vmatprep.subr.mxu0 0.0
        %4315 = vmatpush2.xpose.msra.mxu0 0.0
        %4316 = vmatprep.subr.mxu0 0.0
        %4317 = vmatpush2.xpose.msra.mxu0 0.0
        %4318 = vmatprep.subr.mxu0 0.0
        %4319 = vmatpush2.xpose.msra.mxu0 0.0
        %4320 = vmatprep.subr.mxu0 0.0
        %4321 = vmatpush2.xpose.msra.mxu0 0.0
        %4322 = vmatprep.subr.mxu0 0.0
        %4323 = vmatpush2.xpose.msra.mxu0 0.0
        %4324 = vmatprep.subr.mxu0 0.0
        %4325 = vmatpush2.xpose.msra.mxu0 0.0
        %4326 = vmatprep.subr.mxu0 0.0
        %4327 = vmatpush2.xpose.msra.mxu0 0.0
        %4328 = vmatprep.subr.mxu0 0.0
        %4329 = vmatpush2.xpose.msra.mxu0 0.0
        %4330 = vmatprep.subr.mxu0 0.0
        %4331 = vmatpush2.xpose.msra.mxu0 0.0
        %4332 = vmatprep.subr.mxu0 0.0
        %4333 = vmatpush2.xpose.msra.mxu0 0.0
        %v4334 = vand.u32 %v287, 4294901760
        %4335 = vmatprep.mubr.f32.mxu0 %v4334
        %v4336 = vand.u32 %v286, 4294901760
        %4337 = vmatmul.mubr.f32.gmra.mxu0 %v4336
        %v4338 = vpop.f32.mrf.mxu0
        %v4339 = vadd.f32 %v4107, %v4338
        %v4340 = vpop.f32.mrf.mxu0
        %4341 = vdwg.mxu0
        %v4342 = vand.u32 %v543, 4294901760
        %v4343 = vsub.f32 %v543, %v4342
        %4344 = vmatprep.subr.mxu0 %v4343
        %v4345 = vand.u32 %v542, 4294901760
        %v4346 = vsub.f32 %v542, %v4345
        %4347 = vmatpush1.xpose.msra.mxu0 %v4346
        %v4348 = vand.u32 %v527, 4294901760
        %v4349 = vsub.f32 %v527, %v4348
        %4350 = vmatprep.subr.mxu0 %v4349
        %v4351 = vand.u32 %v526, 4294901760
        %v4352 = vsub.f32 %v526, %v4351
        %4353 = vmatpush1.xpose.msra.mxu0 %v4352
        %v4354 = vand.u32 %v511, 4294901760
        %v4355 = vsub.f32 %v511, %v4354
        %4356 = vmatprep.subr.mxu0 %v4355
        %v4357 = vand.u32 %v510, 4294901760
        %v4358 = vsub.f32 %v510, %v4357
        %4359 = vmatpush1.xpose.msra.mxu0 %v4358
        %v4360 = vand.u32 %v495, 4294901760
        %v4361 = vsub.f32 %v495, %v4360
        %4362 = vmatprep.subr.mxu0 %v4361
        %v4363 = vand.u32 %v494, 4294901760
        %v4364 = vsub.f32 %v494, %v4363
        %4365 = vmatpush1.xpose.msra.mxu0 %v4364
        %v4366 = vand.u32 %v479, 4294901760
        %v4367 = vsub.f32 %v479, %v4366
        %4368 = vmatprep.subr.mxu0 %v4367
        %v4369 = vand.u32 %v478, 4294901760
        %v4370 = vsub.f32 %v478, %v4369
        %4371 = vmatpush1.xpose.msra.mxu0 %v4370
        %v4372 = vand.u32 %v463, 4294901760
        %v4373 = vsub.f32 %v463, %v4372
        %4374 = vmatprep.subr.mxu0 %v4373
        %v4375 = vand.u32 %v462, 4294901760
        %v4376 = vsub.f32 %v462, %v4375
        %4377 = vmatpush1.xpose.msra.mxu0 %v4376
        %v4378 = vand.u32 %v447, 4294901760
        %v4379 = vsub.f32 %v447, %v4378
        %4380 = vmatprep.subr.mxu0 %v4379
        %v4381 = vand.u32 %v446, 4294901760
        %v4382 = vsub.f32 %v446, %v4381
        %4383 = vmatpush1.xpose.msra.mxu0 %v4382
        %v4384 = vand.u32 %v431, 4294901760
        %v4385 = vsub.f32 %v431, %v4384
        %4386 = vmatprep.subr.mxu0 %v4385
        %v4387 = vand.u32 %v430, 4294901760
        %v4388 = vsub.f32 %v430, %v4387
        %4389 = vmatpush1.xpose.msra.mxu0 %v4388
        %v4390 = vand.u32 %v415, 4294901760
        %v4391 = vsub.f32 %v415, %v4390
        %4392 = vmatprep.subr.mxu0 %v4391
        %v4393 = vand.u32 %v414, 4294901760
        %v4394 = vsub.f32 %v414, %v4393
        %4395 = vmatpush1.xpose.msra.mxu0 %v4394
        %v4396 = vand.u32 %v399, 4294901760
        %v4397 = vsub.f32 %v399, %v4396
        %4398 = vmatprep.subr.mxu0 %v4397
        %v4399 = vand.u32 %v398, 4294901760
        %v4400 = vsub.f32 %v398, %v4399
        %4401 = vmatpush1.xpose.msra.mxu0 %v4400
        %v4402 = vand.u32 %v383, 4294901760
        %v4403 = vsub.f32 %v383, %v4402
        %4404 = vmatprep.subr.mxu0 %v4403
        %v4405 = vand.u32 %v382, 4294901760
        %v4406 = vsub.f32 %v382, %v4405
        %4407 = vmatpush1.xpose.msra.mxu0 %v4406
        %v4408 = vand.u32 %v367, 4294901760
        %v4409 = vsub.f32 %v367, %v4408
        %4410 = vmatprep.subr.mxu0 %v4409
        %v4411 = vand.u32 %v366, 4294901760
        %v4412 = vsub.f32 %v366, %v4411
        %4413 = vmatpush1.xpose.msra.mxu0 %v4412
        %v4414 = vand.u32 %v351, 4294901760
        %v4415 = vsub.f32 %v351, %v4414
        %4416 = vmatprep.subr.mxu0 %v4415
        %v4417 = vand.u32 %v350, 4294901760
        %v4418 = vsub.f32 %v350, %v4417
        %4419 = vmatpush1.xpose.msra.mxu0 %v4418
        %v4420 = vand.u32 %v335, 4294901760
        %v4421 = vsub.f32 %v335, %v4420
        %4422 = vmatprep.subr.mxu0 %v4421
        %v4423 = vand.u32 %v334, 4294901760
        %v4424 = vsub.f32 %v334, %v4423
        %4425 = vmatpush1.xpose.msra.mxu0 %v4424
        %v4426 = vand.u32 %v319, 4294901760
        %v4427 = vsub.f32 %v319, %v4426
        %4428 = vmatprep.subr.mxu0 %v4427
        %v4429 = vand.u32 %v318, 4294901760
        %v4430 = vsub.f32 %v318, %v4429
        %4431 = vmatpush1.xpose.msra.mxu0 %v4430
        %v4432 = vand.u32 %v303, 4294901760
        %v4433 = vsub.f32 %v303, %v4432
        %4434 = vmatprep.subr.mxu0 %v4433
        %v4435 = vand.u32 %v302, 4294901760
        %v4436 = vsub.f32 %v302, %v4435
        %4437 = vmatpush1.xpose.msra.mxu0 %v4436
        %4438 = vmatprep.subr.mxu0 0.0
        %4439 = vmatpush2.xpose.msra.mxu0 0.0
        %4440 = vmatprep.subr.mxu0 0.0
        %4441 = vmatpush2.xpose.msra.mxu0 0.0
        %4442 = vmatprep.subr.mxu0 0.0
        %4443 = vmatpush2.xpose.msra.mxu0 0.0
        %4444 = vmatprep.subr.mxu0 0.0
        %4445 = vmatpush2.xpose.msra.mxu0 0.0
        %4446 = vmatprep.subr.mxu0 0.0
        %4447 = vmatpush2.xpose.msra.mxu0 0.0
        %4448 = vmatprep.subr.mxu0 0.0
        %4449 = vmatpush2.xpose.msra.mxu0 0.0
        %4450 = vmatprep.subr.mxu0 0.0
        %4451 = vmatpush2.xpose.msra.mxu0 0.0
        %4452 = vmatprep.subr.mxu0 0.0
        %4453 = vmatpush2.xpose.msra.mxu0 0.0
        %4454 = vmatprep.subr.mxu0 0.0
        %4455 = vmatpush2.xpose.msra.mxu0 0.0
        %4456 = vmatprep.subr.mxu0 0.0
        %4457 = vmatpush2.xpose.msra.mxu0 0.0
        %4458 = vmatprep.subr.mxu0 0.0
        %4459 = vmatpush2.xpose.msra.mxu0 0.0
        %4460 = vmatprep.subr.mxu0 0.0
        %4461 = vmatpush2.xpose.msra.mxu0 0.0
        %4462 = vmatprep.subr.mxu0 0.0
        %4463 = vmatpush2.xpose.msra.mxu0 0.0
        %4464 = vmatprep.subr.mxu0 0.0
        %4465 = vmatpush2.xpose.msra.mxu0 0.0
        %4466 = vmatprep.subr.mxu0 0.0
        %4467 = vmatpush2.xpose.msra.mxu0 0.0
        %4468 = vmatprep.subr.mxu0 0.0
        %4469 = vmatpush2.xpose.msra.mxu0 0.0
        %v4470 = vand.u32 %v287, 4294901760
        %v4471 = vsub.f32 %v287, %v4470
        %4472 = vmatprep.mubr.f32.mxu0 %v4471
        %v4473 = vand.u32 %v286, 4294901760
        %v4474 = vsub.f32 %v286, %v4473
        %4475 = vmatmul.mubr.f32.gmra.mxu0 %v4474
        %v4476 = vpop.f32.mrf.mxu0
        %v4477 = vadd.f32 %v4339, %v4476
        %v4478 = vpop.f32.mrf.mxu0
        %4479 = vdwg.mxu0
        %v4480 = vand.u32 %v543, 4294901760
        %4481 = vmatprep.subr.mxu0 %v4480
        %v4482 = vand.u32 %v542, 4294901760
        %4483 = vmatpush1.xpose.msra.mxu0 %v4482
        %v4484 = vand.u32 %v527, 4294901760
        %4485 = vmatprep.subr.mxu0 %v4484
        %v4486 = vand.u32 %v526, 4294901760
        %4487 = vmatpush1.xpose.msra.mxu0 %v4486
        %v4488 = vand.u32 %v511, 4294901760
        %4489 = vmatprep.subr.mxu0 %v4488
        %v4490 = vand.u32 %v510, 4294901760
        %4491 = vmatpush1.xpose.msra.mxu0 %v4490
        %v4492 = vand.u32 %v495, 4294901760
        %4493 = vmatprep.subr.mxu0 %v4492
        %v4494 = vand.u32 %v494, 4294901760
        %4495 = vmatpush1.xpose.msra.mxu0 %v4494
        %v4496 = vand.u32 %v479, 4294901760
        %4497 = vmatprep.subr.mxu0 %v4496
        %v4498 = vand.u32 %v478, 4294901760
        %4499 = vmatpush1.xpose.msra.mxu0 %v4498
        %v4500 = vand.u32 %v463, 4294901760
        %4501 = vmatprep.subr.mxu0 %v4500
        %v4502 = vand.u32 %v462, 4294901760
        %4503 = vmatpush1.xpose.msra.mxu0 %v4502
        %v4504 = vand.u32 %v447, 4294901760
        %4505 = vmatprep.subr.mxu0 %v4504
        %v4506 = vand.u32 %v446, 4294901760
        %4507 = vmatpush1.xpose.msra.mxu0 %v4506
        %v4508 = vand.u32 %v431, 4294901760
        %4509 = vmatprep.subr.mxu0 %v4508
        %v4510 = vand.u32 %v430, 4294901760
        %4511 = vmatpush1.xpose.msra.mxu0 %v4510
        %v4512 = vand.u32 %v415, 4294901760
        %4513 = vmatprep.subr.mxu0 %v4512
        %v4514 = vand.u32 %v414, 4294901760
        %4515 = vmatpush1.xpose.msra.mxu0 %v4514
        %v4516 = vand.u32 %v399, 4294901760
        %4517 = vmatprep.subr.mxu0 %v4516
        %v4518 = vand.u32 %v398, 4294901760
        %4519 = vmatpush1.xpose.msra.mxu0 %v4518
        %v4520 = vand.u32 %v383, 4294901760
        %4521 = vmatprep.subr.mxu0 %v4520
        %v4522 = vand.u32 %v382, 4294901760
        %4523 = vmatpush1.xpose.msra.mxu0 %v4522
        %v4524 = vand.u32 %v367, 4294901760
        %4525 = vmatprep.subr.mxu0 %v4524
        %v4526 = vand.u32 %v366, 4294901760
        %4527 = vmatpush1.xpose.msra.mxu0 %v4526
        %v4528 = vand.u32 %v351, 4294901760
        %4529 = vmatprep.subr.mxu0 %v4528
        %v4530 = vand.u32 %v350, 4294901760
        %4531 = vmatpush1.xpose.msra.mxu0 %v4530
        %v4532 = vand.u32 %v335, 4294901760
        %4533 = vmatprep.subr.mxu0 %v4532
        %v4534 = vand.u32 %v334, 4294901760
        %4535 = vmatpush1.xpose.msra.mxu0 %v4534
        %v4536 = vand.u32 %v319, 4294901760
        %4537 = vmatprep.subr.mxu0 %v4536
        %v4538 = vand.u32 %v318, 4294901760
        %4539 = vmatpush1.xpose.msra.mxu0 %v4538
        %v4540 = vand.u32 %v303, 4294901760
        %4541 = vmatprep.subr.mxu0 %v4540
        %v4542 = vand.u32 %v302, 4294901760
        %4543 = vmatpush1.xpose.msra.mxu0 %v4542
        %4544 = vmatprep.subr.mxu0 0.0
        %4545 = vmatpush2.xpose.msra.mxu0 0.0
        %4546 = vmatprep.subr.mxu0 0.0
        %4547 = vmatpush2.xpose.msra.mxu0 0.0
        %4548 = vmatprep.subr.mxu0 0.0
        %4549 = vmatpush2.xpose.msra.mxu0 0.0
        %4550 = vmatprep.subr.mxu0 0.0
        %4551 = vmatpush2.xpose.msra.mxu0 0.0
        %4552 = vmatprep.subr.mxu0 0.0
        %4553 = vmatpush2.xpose.msra.mxu0 0.0
        %4554 = vmatprep.subr.mxu0 0.0
        %4555 = vmatpush2.xpose.msra.mxu0 0.0
        %4556 = vmatprep.subr.mxu0 0.0
        %4557 = vmatpush2.xpose.msra.mxu0 0.0
        %4558 = vmatprep.subr.mxu0 0.0
        %4559 = vmatpush2.xpose.msra.mxu0 0.0
        %4560 = vmatprep.subr.mxu0 0.0
        %4561 = vmatpush2.xpose.msra.mxu0 0.0
        %4562 = vmatprep.subr.mxu0 0.0
        %4563 = vmatpush2.xpose.msra.mxu0 0.0
        %4564 = vmatprep.subr.mxu0 0.0
        %4565 = vmatpush2.xpose.msra.mxu0 0.0
        %4566 = vmatprep.subr.mxu0 0.0
        %4567 = vmatpush2.xpose.msra.mxu0 0.0
        %4568 = vmatprep.subr.mxu0 0.0
        %4569 = vmatpush2.xpose.msra.mxu0 0.0
        %4570 = vmatprep.subr.mxu0 0.0
        %4571 = vmatpush2.xpose.msra.mxu0 0.0
        %4572 = vmatprep.subr.mxu0 0.0
        %4573 = vmatpush2.xpose.msra.mxu0 0.0
        %4574 = vmatprep.subr.mxu0 0.0
        %4575 = vmatpush2.xpose.msra.mxu0 0.0
        %v4576 = vand.u32 %v287, 4294901760
        %v4577 = vsub.f32 %v287, %v4576
        %v4578 = vand.u32 %v4577, 4294901760
        %4579 = vmatprep.mubr.f32.mxu0 %v4578
        %v4580 = vand.u32 %v286, 4294901760
        %v4581 = vsub.f32 %v286, %v4580
        %v4582 = vand.u32 %v4581, 4294901760
        %4583 = vmatmul.mubr.f32.gmra.mxu0 %v4582
        %v4584 = vpop.f32.mrf.mxu0
        %v4585 = vadd.f32 %v4477, %v4584
        %v4586 = vpop.f32.mrf.mxu0
        %4587 = vdwg.mxu0
        %v4588 = vand.u32 %v543, 4294901760
        %v4589 = vsub.f32 %v543, %v4588
        %v4590 = vand.u32 %v4589, 4294901760
        %4591 = vmatprep.subr.mxu0 %v4590
        %v4592 = vand.u32 %v542, 4294901760
        %v4593 = vsub.f32 %v542, %v4592
        %v4594 = vand.u32 %v4593, 4294901760
        %4595 = vmatpush1.xpose.msra.mxu0 %v4594
        %v4596 = vand.u32 %v527, 4294901760
        %v4597 = vsub.f32 %v527, %v4596
        %v4598 = vand.u32 %v4597, 4294901760
        %4599 = vmatprep.subr.mxu0 %v4598
        %v4600 = vand.u32 %v526, 4294901760
        %v4601 = vsub.f32 %v526, %v4600
        %v4602 = vand.u32 %v4601, 4294901760
        %4603 = vmatpush1.xpose.msra.mxu0 %v4602
        %v4604 = vand.u32 %v511, 4294901760
        %v4605 = vsub.f32 %v511, %v4604
        %v4606 = vand.u32 %v4605, 4294901760
        %4607 = vmatprep.subr.mxu0 %v4606
        %v4608 = vand.u32 %v510, 4294901760
        %v4609 = vsub.f32 %v510, %v4608
        %v4610 = vand.u32 %v4609, 4294901760
        %4611 = vmatpush1.xpose.msra.mxu0 %v4610
        %v4612 = vand.u32 %v495, 4294901760
        %v4613 = vsub.f32 %v495, %v4612
        %v4614 = vand.u32 %v4613, 4294901760
        %4615 = vmatprep.subr.mxu0 %v4614
        %v4616 = vand.u32 %v494, 4294901760
        %v4617 = vsub.f32 %v494, %v4616
        %v4618 = vand.u32 %v4617, 4294901760
        %4619 = vmatpush1.xpose.msra.mxu0 %v4618
        %v4620 = vand.u32 %v479, 4294901760
        %v4621 = vsub.f32 %v479, %v4620
        %v4622 = vand.u32 %v4621, 4294901760
        %4623 = vmatprep.subr.mxu0 %v4622
        %v4624 = vand.u32 %v478, 4294901760
        %v4625 = vsub.f32 %v478, %v4624
        %v4626 = vand.u32 %v4625, 4294901760
        %4627 = vmatpush1.xpose.msra.mxu0 %v4626
        %v4628 = vand.u32 %v463, 4294901760
        %v4629 = vsub.f32 %v463, %v4628
        %v4630 = vand.u32 %v4629, 4294901760
        %4631 = vmatprep.subr.mxu0 %v4630
        %v4632 = vand.u32 %v462, 4294901760
        %v4633 = vsub.f32 %v462, %v4632
        %v4634 = vand.u32 %v4633, 4294901760
        %4635 = vmatpush1.xpose.msra.mxu0 %v4634
        %v4636 = vand.u32 %v447, 4294901760
        %v4637 = vsub.f32 %v447, %v4636
        %v4638 = vand.u32 %v4637, 4294901760
        %4639 = vmatprep.subr.mxu0 %v4638
        %v4640 = vand.u32 %v446, 4294901760
        %v4641 = vsub.f32 %v446, %v4640
        %v4642 = vand.u32 %v4641, 4294901760
        %4643 = vmatpush1.xpose.msra.mxu0 %v4642
        %v4644 = vand.u32 %v431, 4294901760
        %v4645 = vsub.f32 %v431, %v4644
        %v4646 = vand.u32 %v4645, 4294901760
        %4647 = vmatprep.subr.mxu0 %v4646
        %v4648 = vand.u32 %v430, 4294901760
        %v4649 = vsub.f32 %v430, %v4648
        %v4650 = vand.u32 %v4649, 4294901760
        %4651 = vmatpush1.xpose.msra.mxu0 %v4650
        %v4652 = vand.u32 %v415, 4294901760
        %v4653 = vsub.f32 %v415, %v4652
        %v4654 = vand.u32 %v4653, 4294901760
        %4655 = vmatprep.subr.mxu0 %v4654
        %v4656 = vand.u32 %v414, 4294901760
        %v4657 = vsub.f32 %v414, %v4656
        %v4658 = vand.u32 %v4657, 4294901760
        %4659 = vmatpush1.xpose.msra.mxu0 %v4658
        %v4660 = vand.u32 %v399, 4294901760
        %v4661 = vsub.f32 %v399, %v4660
        %v4662 = vand.u32 %v4661, 4294901760
        %4663 = vmatprep.subr.mxu0 %v4662
        %v4664 = vand.u32 %v398, 4294901760
        %v4665 = vsub.f32 %v398, %v4664
        %v4666 = vand.u32 %v4665, 4294901760
        %4667 = vmatpush1.xpose.msra.mxu0 %v4666
        %v4668 = vand.u32 %v383, 4294901760
        %v4669 = vsub.f32 %v383, %v4668
        %v4670 = vand.u32 %v4669, 4294901760
        %4671 = vmatprep.subr.mxu0 %v4670
        %v4672 = vand.u32 %v382, 4294901760
        %v4673 = vsub.f32 %v382, %v4672
        %v4674 = vand.u32 %v4673, 4294901760
        %4675 = vmatpush1.xpose.msra.mxu0 %v4674
        %v4676 = vand.u32 %v367, 4294901760
        %v4677 = vsub.f32 %v367, %v4676
        %v4678 = vand.u32 %v4677, 4294901760
        %4679 = vmatprep.subr.mxu0 %v4678
        %v4680 = vand.u32 %v366, 4294901760
        %v4681 = vsub.f32 %v366, %v4680
        %v4682 = vand.u32 %v4681, 4294901760
        %4683 = vmatpush1.xpose.msra.mxu0 %v4682
        %v4684 = vand.u32 %v351, 4294901760
        %v4685 = vsub.f32 %v351, %v4684
        %v4686 = vand.u32 %v4685, 4294901760
        %4687 = vmatprep.subr.mxu0 %v4686
        %v4688 = vand.u32 %v350, 4294901760
        %v4689 = vsub.f32 %v350, %v4688
        %v4690 = vand.u32 %v4689, 4294901760
        %4691 = vmatpush1.xpose.msra.mxu0 %v4690
        %v4692 = vand.u32 %v335, 4294901760
        %v4693 = vsub.f32 %v335, %v4692
        %v4694 = vand.u32 %v4693, 4294901760
        %4695 = vmatprep.subr.mxu0 %v4694
        %v4696 = vand.u32 %v334, 4294901760
        %v4697 = vsub.f32 %v334, %v4696
        %v4698 = vand.u32 %v4697, 4294901760
        %4699 = vmatpush1.xpose.msra.mxu0 %v4698
        %v4700 = vand.u32 %v319, 4294901760
        %v4701 = vsub.f32 %v319, %v4700
        %v4702 = vand.u32 %v4701, 4294901760
        %4703 = vmatprep.subr.mxu0 %v4702
        %v4704 = vand.u32 %v318, 4294901760
        %v4705 = vsub.f32 %v318, %v4704
        %v4706 = vand.u32 %v4705, 4294901760
        %4707 = vmatpush1.xpose.msra.mxu0 %v4706
        %v4708 = vand.u32 %v303, 4294901760
        %v4709 = vsub.f32 %v303, %v4708
        %v4710 = vand.u32 %v4709, 4294901760
        %4711 = vmatprep.subr.mxu0 %v4710
        %v4712 = vand.u32 %v302, 4294901760
        %v4713 = vsub.f32 %v302, %v4712
        %v4714 = vand.u32 %v4713, 4294901760
        %4715 = vmatpush1.xpose.msra.mxu0 %v4714
        %4716 = vmatprep.subr.mxu0 0.0
        %4717 = vmatpush2.xpose.msra.mxu0 0.0
        %4718 = vmatprep.subr.mxu0 0.0
        %4719 = vmatpush2.xpose.msra.mxu0 0.0
        %4720 = vmatprep.subr.mxu0 0.0
        %4721 = vmatpush2.xpose.msra.mxu0 0.0
        %4722 = vmatprep.subr.mxu0 0.0
        %4723 = vmatpush2.xpose.msra.mxu0 0.0
        %4724 = vmatprep.subr.mxu0 0.0
        %4725 = vmatpush2.xpose.msra.mxu0 0.0
        %4726 = vmatprep.subr.mxu0 0.0
        %4727 = vmatpush2.xpose.msra.mxu0 0.0
        %4728 = vmatprep.subr.mxu0 0.0
        %4729 = vmatpush2.xpose.msra.mxu0 0.0
        %4730 = vmatprep.subr.mxu0 0.0
        %4731 = vmatpush2.xpose.msra.mxu0 0.0
        %4732 = vmatprep.subr.mxu0 0.0
        %4733 = vmatpush2.xpose.msra.mxu0 0.0
        %4734 = vmatprep.subr.mxu0 0.0
        %4735 = vmatpush2.xpose.msra.mxu0 0.0
        %4736 = vmatprep.subr.mxu0 0.0
        %4737 = vmatpush2.xpose.msra.mxu0 0.0
        %4738 = vmatprep.subr.mxu0 0.0
        %4739 = vmatpush2.xpose.msra.mxu0 0.0
        %4740 = vmatprep.subr.mxu0 0.0
        %4741 = vmatpush2.xpose.msra.mxu0 0.0
        %4742 = vmatprep.subr.mxu0 0.0
        %4743 = vmatpush2.xpose.msra.mxu0 0.0
        %4744 = vmatprep.subr.mxu0 0.0
        %4745 = vmatpush2.xpose.msra.mxu0 0.0
        %4746 = vmatprep.subr.mxu0 0.0
        %4747 = vmatpush2.xpose.msra.mxu0 0.0
        %v4748 = vand.u32 %v287, 4294901760
        %4749 = vmatprep.mubr.f32.mxu0 %v4748
        %v4750 = vand.u32 %v286, 4294901760
        %4751 = vmatmul.mubr.f32.gmra.mxu0 %v4750
        %v4752 = vpop.f32.mrf.mxu0
        %v4753 = vadd.f32 %v4585, %v4752
        %v4754 = vpop.f32.mrf.mxu0
        %4755 = vdwg.mxu0
        %v4756 = vand.u32 %v543, 4294901760
        %4757 = vmatprep.subr.mxu0 %v4756
        %v4758 = vand.u32 %v542, 4294901760
        %4759 = vmatpush1.xpose.msra.mxu0 %v4758
        %v4760 = vand.u32 %v527, 4294901760
        %4761 = vmatprep.subr.mxu0 %v4760
        %v4762 = vand.u32 %v526, 4294901760
        %4763 = vmatpush1.xpose.msra.mxu0 %v4762
        %v4764 = vand.u32 %v511, 4294901760
        %4765 = vmatprep.subr.mxu0 %v4764
        %v4766 = vand.u32 %v510, 4294901760
        %4767 = vmatpush1.xpose.msra.mxu0 %v4766
        %v4768 = vand.u32 %v495, 4294901760
        %4769 = vmatprep.subr.mxu0 %v4768
        %v4770 = vand.u32 %v494, 4294901760
        %4771 = vmatpush1.xpose.msra.mxu0 %v4770
        %v4772 = vand.u32 %v479, 4294901760
        %4773 = vmatprep.subr.mxu0 %v4772
        %v4774 = vand.u32 %v478, 4294901760
        %4775 = vmatpush1.xpose.msra.mxu0 %v4774
        %v4776 = vand.u32 %v463, 4294901760
        %4777 = vmatprep.subr.mxu0 %v4776
        %v4778 = vand.u32 %v462, 4294901760
        %4779 = vmatpush1.xpose.msra.mxu0 %v4778
        %v4780 = vand.u32 %v447, 4294901760
        %4781 = vmatprep.subr.mxu0 %v4780
        %v4782 = vand.u32 %v446, 4294901760
        %4783 = vmatpush1.xpose.msra.mxu0 %v4782
        %v4784 = vand.u32 %v431, 4294901760
        %4785 = vmatprep.subr.mxu0 %v4784
        %v4786 = vand.u32 %v430, 4294901760
        %4787 = vmatpush1.xpose.msra.mxu0 %v4786
        %v4788 = vand.u32 %v415, 4294901760
        %4789 = vmatprep.subr.mxu0 %v4788
        %v4790 = vand.u32 %v414, 4294901760
        %4791 = vmatpush1.xpose.msra.mxu0 %v4790
        %v4792 = vand.u32 %v399, 4294901760
        %4793 = vmatprep.subr.mxu0 %v4792
        %v4794 = vand.u32 %v398, 4294901760
        %4795 = vmatpush1.xpose.msra.mxu0 %v4794
        %v4796 = vand.u32 %v383, 4294901760
        %4797 = vmatprep.subr.mxu0 %v4796
        %v4798 = vand.u32 %v382, 4294901760
        %4799 = vmatpush1.xpose.msra.mxu0 %v4798
        %v4800 = vand.u32 %v367, 4294901760
        %4801 = vmatprep.subr.mxu0 %v4800
        %v4802 = vand.u32 %v366, 4294901760
        %4803 = vmatpush1.xpose.msra.mxu0 %v4802
        %v4804 = vand.u32 %v351, 4294901760
        %4805 = vmatprep.subr.mxu0 %v4804
        %v4806 = vand.u32 %v350, 4294901760
        %4807 = vmatpush1.xpose.msra.mxu0 %v4806
        %v4808 = vand.u32 %v335, 4294901760
        %4809 = vmatprep.subr.mxu0 %v4808
        %v4810 = vand.u32 %v334, 4294901760
        %4811 = vmatpush1.xpose.msra.mxu0 %v4810
        %v4812 = vand.u32 %v319, 4294901760
        %4813 = vmatprep.subr.mxu0 %v4812
        %v4814 = vand.u32 %v318, 4294901760
        %4815 = vmatpush1.xpose.msra.mxu0 %v4814
        %v4816 = vand.u32 %v303, 4294901760
        %4817 = vmatprep.subr.mxu0 %v4816
        %v4818 = vand.u32 %v302, 4294901760
        %4819 = vmatpush1.xpose.msra.mxu0 %v4818
        %4820 = vmatprep.subr.mxu0 0.0
        %4821 = vmatpush2.xpose.msra.mxu0 0.0
        %4822 = vmatprep.subr.mxu0 0.0
        %4823 = vmatpush2.xpose.msra.mxu0 0.0
        %4824 = vmatprep.subr.mxu0 0.0
        %4825 = vmatpush2.xpose.msra.mxu0 0.0
        %4826 = vmatprep.subr.mxu0 0.0
        %4827 = vmatpush2.xpose.msra.mxu0 0.0
        %4828 = vmatprep.subr.mxu0 0.0
        %4829 = vmatpush2.xpose.msra.mxu0 0.0
        %4830 = vmatprep.subr.mxu0 0.0
        %4831 = vmatpush2.xpose.msra.mxu0 0.0
        %4832 = vmatprep.subr.mxu0 0.0
        %4833 = vmatpush2.xpose.msra.mxu0 0.0
        %4834 = vmatprep.subr.mxu0 0.0
        %4835 = vmatpush2.xpose.msra.mxu0 0.0
        %4836 = vmatprep.subr.mxu0 0.0
        %4837 = vmatpush2.xpose.msra.mxu0 0.0
        %4838 = vmatprep.subr.mxu0 0.0
        %4839 = vmatpush2.xpose.msra.mxu0 0.0
        %4840 = vmatprep.subr.mxu0 0.0
        %4841 = vmatpush2.xpose.msra.mxu0 0.0
        %4842 = vmatprep.subr.mxu0 0.0
        %4843 = vmatpush2.xpose.msra.mxu0 0.0
        %4844 = vmatprep.subr.mxu0 0.0
        %4845 = vmatpush2.xpose.msra.mxu0 0.0
        %4846 = vmatprep.subr.mxu0 0.0
        %4847 = vmatpush2.xpose.msra.mxu0 0.0
        %4848 = vmatprep.subr.mxu0 0.0
        %4849 = vmatpush2.xpose.msra.mxu0 0.0
        %4850 = vmatprep.subr.mxu0 0.0
        %4851 = vmatpush2.xpose.msra.mxu0 0.0
        %v4852 = vand.u32 %v287, 4294901760
        %4853 = vmatprep.mubr.f32.mxu0 %v4852
        %v4854 = vand.u32 %v286, 4294901760
        %4855 = vmatmul.mubr.f32.gmra.mxu0 %v4854
        %v4856 = vpop.f32.mrf.mxu0
        %v4857 = vadd.f32 %v4753, %v4856
        %v4858 = vpop.f32.mrf.mxu0
        %4859 = vdwg.mxu0
        %v4860 = vand.u32 %v545, 4294901760
        %4861 = vmatprep.subr.mxu0 %v4860
        %v4862 = vand.u32 %v544, 4294901760
        %4863 = vmatpush1.xpose.msra.mxu0 %v4862
        %v4864 = vand.u32 %v529, 4294901760
        %4865 = vmatprep.subr.mxu0 %v4864
        %v4866 = vand.u32 %v528, 4294901760
        %4867 = vmatpush1.xpose.msra.mxu0 %v4866
        %v4868 = vand.u32 %v513, 4294901760
        %4869 = vmatprep.subr.mxu0 %v4868
        %v4870 = vand.u32 %v512, 4294901760
        %4871 = vmatpush1.xpose.msra.mxu0 %v4870
        %v4872 = vand.u32 %v497, 4294901760
        %4873 = vmatprep.subr.mxu0 %v4872
        %v4874 = vand.u32 %v496, 4294901760
        %4875 = vmatpush1.xpose.msra.mxu0 %v4874
        %v4876 = vand.u32 %v481, 4294901760
        %4877 = vmatprep.subr.mxu0 %v4876
        %v4878 = vand.u32 %v480, 4294901760
        %4879 = vmatpush1.xpose.msra.mxu0 %v4878
        %v4880 = vand.u32 %v465, 4294901760
        %4881 = vmatprep.subr.mxu0 %v4880
        %v4882 = vand.u32 %v464, 4294901760
        %4883 = vmatpush1.xpose.msra.mxu0 %v4882
        %v4884 = vand.u32 %v449, 4294901760
        %4885 = vmatprep.subr.mxu0 %v4884
        %v4886 = vand.u32 %v448, 4294901760
        %4887 = vmatpush1.xpose.msra.mxu0 %v4886
        %v4888 = vand.u32 %v433, 4294901760
        %4889 = vmatprep.subr.mxu0 %v4888
        %v4890 = vand.u32 %v432, 4294901760
        %4891 = vmatpush1.xpose.msra.mxu0 %v4890
        %v4892 = vand.u32 %v417, 4294901760
        %4893 = vmatprep.subr.mxu0 %v4892
        %v4894 = vand.u32 %v416, 4294901760
        %4895 = vmatpush1.xpose.msra.mxu0 %v4894
        %v4896 = vand.u32 %v401, 4294901760
        %4897 = vmatprep.subr.mxu0 %v4896
        %v4898 = vand.u32 %v400, 4294901760
        %4899 = vmatpush1.xpose.msra.mxu0 %v4898
        %v4900 = vand.u32 %v385, 4294901760
        %4901 = vmatprep.subr.mxu0 %v4900
        %v4902 = vand.u32 %v384, 4294901760
        %4903 = vmatpush1.xpose.msra.mxu0 %v4902
        %v4904 = vand.u32 %v369, 4294901760
        %4905 = vmatprep.subr.mxu0 %v4904
        %v4906 = vand.u32 %v368, 4294901760
        %4907 = vmatpush1.xpose.msra.mxu0 %v4906
        %v4908 = vand.u32 %v353, 4294901760
        %4909 = vmatprep.subr.mxu0 %v4908
        %v4910 = vand.u32 %v352, 4294901760
        %4911 = vmatpush1.xpose.msra.mxu0 %v4910
        %v4912 = vand.u32 %v337, 4294901760
        %4913 = vmatprep.subr.mxu0 %v4912
        %v4914 = vand.u32 %v336, 4294901760
        %4915 = vmatpush1.xpose.msra.mxu0 %v4914
        %v4916 = vand.u32 %v321, 4294901760
        %4917 = vmatprep.subr.mxu0 %v4916
        %v4918 = vand.u32 %v320, 4294901760
        %4919 = vmatpush1.xpose.msra.mxu0 %v4918
        %v4920 = vand.u32 %v305, 4294901760
        %4921 = vmatprep.subr.mxu0 %v4920
        %v4922 = vand.u32 %v304, 4294901760
        %4923 = vmatpush1.xpose.msra.mxu0 %v4922
        %4924 = vmatprep.subr.mxu0 0.0
        %4925 = vmatpush2.xpose.msra.mxu0 0.0
        %4926 = vmatprep.subr.mxu0 0.0
        %4927 = vmatpush2.xpose.msra.mxu0 0.0
        %4928 = vmatprep.subr.mxu0 0.0
        %4929 = vmatpush2.xpose.msra.mxu0 0.0
        %4930 = vmatprep.subr.mxu0 0.0
        %4931 = vmatpush2.xpose.msra.mxu0 0.0
        %4932 = vmatprep.subr.mxu0 0.0
        %4933 = vmatpush2.xpose.msra.mxu0 0.0
        %4934 = vmatprep.subr.mxu0 0.0
        %4935 = vmatpush2.xpose.msra.mxu0 0.0
        %4936 = vmatprep.subr.mxu0 0.0
        %4937 = vmatpush2.xpose.msra.mxu0 0.0
        %4938 = vmatprep.subr.mxu0 0.0
        %4939 = vmatpush2.xpose.msra.mxu0 0.0
        %4940 = vmatprep.subr.mxu0 0.0
        %4941 = vmatpush2.xpose.msra.mxu0 0.0
        %4942 = vmatprep.subr.mxu0 0.0
        %4943 = vmatpush2.xpose.msra.mxu0 0.0
        %4944 = vmatprep.subr.mxu0 0.0
        %4945 = vmatpush2.xpose.msra.mxu0 0.0
        %4946 = vmatprep.subr.mxu0 0.0
        %4947 = vmatpush2.xpose.msra.mxu0 0.0
        %4948 = vmatprep.subr.mxu0 0.0
        %4949 = vmatpush2.xpose.msra.mxu0 0.0
        %4950 = vmatprep.subr.mxu0 0.0
        %4951 = vmatpush2.xpose.msra.mxu0 0.0
        %4952 = vmatprep.subr.mxu0 0.0
        %4953 = vmatpush2.xpose.msra.mxu0 0.0
        %4954 = vmatprep.subr.mxu0 0.0
        %4955 = vmatpush2.xpose.msra.mxu0 0.0
        %v4956 = vand.u32 %v289, 4294901760
        %v4957 = vsub.f32 %v289, %v4956
        %v4958 = vand.u32 %v4957, 4294901760
        %v4959 = vsub.f32 %v4957, %v4958
        %v4960 = vand.u32 %v4959, 4294901760
        %4961 = vmatprep.mubr.f32.mxu0 %v4960
        %v4962 = vand.u32 %v288, 4294901760
        %v4963 = vsub.f32 %v288, %v4962
        %v4964 = vand.u32 %v4963, 4294901760
        %v4965 = vsub.f32 %v4963, %v4964
        %v4966 = vand.u32 %v4965, 4294901760
        %4967 = vmatmul.mubr.f32.gmra.mxu0 %v4966
        %v4968 = vpop.f32.mrf.mxu0
        %v4969 = vadd.f32 %v4857, %v4968
        %v4970 = vpop.f32.mrf.mxu0
        %4971 = vdwg.mxu0
        %v4972 = vand.u32 %v545, 4294901760
        %v4973 = vsub.f32 %v545, %v4972
        %v4974 = vand.u32 %v4973, 4294901760
        %v4975 = vsub.f32 %v4973, %v4974
        %v4976 = vand.u32 %v4975, 4294901760
        %4977 = vmatprep.subr.mxu0 %v4976
        %v4978 = vand.u32 %v544, 4294901760
        %v4979 = vsub.f32 %v544, %v4978
        %v4980 = vand.u32 %v4979, 4294901760
        %v4981 = vsub.f32 %v4979, %v4980
        %v4982 = vand.u32 %v4981, 4294901760
        %4983 = vmatpush1.xpose.msra.mxu0 %v4982
        %v4984 = vand.u32 %v529, 4294901760
        %v4985 = vsub.f32 %v529, %v4984
        %v4986 = vand.u32 %v4985, 4294901760
        %v4987 = vsub.f32 %v4985, %v4986
        %v4988 = vand.u32 %v4987, 4294901760
        %4989 = vmatprep.subr.mxu0 %v4988
        %v4990 = vand.u32 %v528, 4294901760
        %v4991 = vsub.f32 %v528, %v4990
        %v4992 = vand.u32 %v4991, 4294901760
        %v4993 = vsub.f32 %v4991, %v4992
        %v4994 = vand.u32 %v4993, 4294901760
        %4995 = vmatpush1.xpose.msra.mxu0 %v4994
        %v4996 = vand.u32 %v513, 4294901760
        %v4997 = vsub.f32 %v513, %v4996
        %v4998 = vand.u32 %v4997, 4294901760
        %v4999 = vsub.f32 %v4997, %v4998
        %v5000 = vand.u32 %v4999, 4294901760
        %5001 = vmatprep.subr.mxu0 %v5000
        %v5002 = vand.u32 %v512, 4294901760
        %v5003 = vsub.f32 %v512, %v5002
        %v5004 = vand.u32 %v5003, 4294901760
        %v5005 = vsub.f32 %v5003, %v5004
        %v5006 = vand.u32 %v5005, 4294901760
        %5007 = vmatpush1.xpose.msra.mxu0 %v5006
        %v5008 = vand.u32 %v497, 4294901760
        %v5009 = vsub.f32 %v497, %v5008
        %v5010 = vand.u32 %v5009, 4294901760
        %v5011 = vsub.f32 %v5009, %v5010
        %v5012 = vand.u32 %v5011, 4294901760
        %5013 = vmatprep.subr.mxu0 %v5012
        %v5014 = vand.u32 %v496, 4294901760
        %v5015 = vsub.f32 %v496, %v5014
        %v5016 = vand.u32 %v5015, 4294901760
        %v5017 = vsub.f32 %v5015, %v5016
        %v5018 = vand.u32 %v5017, 4294901760
        %5019 = vmatpush1.xpose.msra.mxu0 %v5018
        %v5020 = vand.u32 %v481, 4294901760
        %v5021 = vsub.f32 %v481, %v5020
        %v5022 = vand.u32 %v5021, 4294901760
        %v5023 = vsub.f32 %v5021, %v5022
        %v5024 = vand.u32 %v5023, 4294901760
        %5025 = vmatprep.subr.mxu0 %v5024
        %v5026 = vand.u32 %v480, 4294901760
        %v5027 = vsub.f32 %v480, %v5026
        %v5028 = vand.u32 %v5027, 4294901760
        %v5029 = vsub.f32 %v5027, %v5028
        %v5030 = vand.u32 %v5029, 4294901760
        %5031 = vmatpush1.xpose.msra.mxu0 %v5030
        %v5032 = vand.u32 %v465, 4294901760
        %v5033 = vsub.f32 %v465, %v5032
        %v5034 = vand.u32 %v5033, 4294901760
        %v5035 = vsub.f32 %v5033, %v5034
        %v5036 = vand.u32 %v5035, 4294901760
        %5037 = vmatprep.subr.mxu0 %v5036
        %v5038 = vand.u32 %v464, 4294901760
        %v5039 = vsub.f32 %v464, %v5038
        %v5040 = vand.u32 %v5039, 4294901760
        %v5041 = vsub.f32 %v5039, %v5040
        %v5042 = vand.u32 %v5041, 4294901760
        %5043 = vmatpush1.xpose.msra.mxu0 %v5042
        %v5044 = vand.u32 %v449, 4294901760
        %v5045 = vsub.f32 %v449, %v5044
        %v5046 = vand.u32 %v5045, 4294901760
        %v5047 = vsub.f32 %v5045, %v5046
        %v5048 = vand.u32 %v5047, 4294901760
        %5049 = vmatprep.subr.mxu0 %v5048
        %v5050 = vand.u32 %v448, 4294901760
        %v5051 = vsub.f32 %v448, %v5050
        %v5052 = vand.u32 %v5051, 4294901760
        %v5053 = vsub.f32 %v5051, %v5052
        %v5054 = vand.u32 %v5053, 4294901760
        %5055 = vmatpush1.xpose.msra.mxu0 %v5054
        %v5056 = vand.u32 %v433, 4294901760
        %v5057 = vsub.f32 %v433, %v5056
        %v5058 = vand.u32 %v5057, 4294901760
        %v5059 = vsub.f32 %v5057, %v5058
        %v5060 = vand.u32 %v5059, 4294901760
        %5061 = vmatprep.subr.mxu0 %v5060
        %v5062 = vand.u32 %v432, 4294901760
        %v5063 = vsub.f32 %v432, %v5062
        %v5064 = vand.u32 %v5063, 4294901760
        %v5065 = vsub.f32 %v5063, %v5064
        %v5066 = vand.u32 %v5065, 4294901760
        %5067 = vmatpush1.xpose.msra.mxu0 %v5066
        %v5068 = vand.u32 %v417, 4294901760
        %v5069 = vsub.f32 %v417, %v5068
        %v5070 = vand.u32 %v5069, 4294901760
        %v5071 = vsub.f32 %v5069, %v5070
        %v5072 = vand.u32 %v5071, 4294901760
        %5073 = vmatprep.subr.mxu0 %v5072
        %v5074 = vand.u32 %v416, 4294901760
        %v5075 = vsub.f32 %v416, %v5074
        %v5076 = vand.u32 %v5075, 4294901760
        %v5077 = vsub.f32 %v5075, %v5076
        %v5078 = vand.u32 %v5077, 4294901760
        %5079 = vmatpush1.xpose.msra.mxu0 %v5078
        %v5080 = vand.u32 %v401, 4294901760
        %v5081 = vsub.f32 %v401, %v5080
        %v5082 = vand.u32 %v5081, 4294901760
        %v5083 = vsub.f32 %v5081, %v5082
        %v5084 = vand.u32 %v5083, 4294901760
        %5085 = vmatprep.subr.mxu0 %v5084
        %v5086 = vand.u32 %v400, 4294901760
        %v5087 = vsub.f32 %v400, %v5086
        %v5088 = vand.u32 %v5087, 4294901760
        %v5089 = vsub.f32 %v5087, %v5088
        %v5090 = vand.u32 %v5089, 4294901760
        %5091 = vmatpush1.xpose.msra.mxu0 %v5090
        %v5092 = vand.u32 %v385, 4294901760
        %v5093 = vsub.f32 %v385, %v5092
        %v5094 = vand.u32 %v5093, 4294901760
        %v5095 = vsub.f32 %v5093, %v5094
        %v5096 = vand.u32 %v5095, 4294901760
        %5097 = vmatprep.subr.mxu0 %v5096
        %v5098 = vand.u32 %v384, 4294901760
        %v5099 = vsub.f32 %v384, %v5098
        %v5100 = vand.u32 %v5099, 4294901760
        %v5101 = vsub.f32 %v5099, %v5100
        %v5102 = vand.u32 %v5101, 4294901760
        %5103 = vmatpush1.xpose.msra.mxu0 %v5102
        %v5104 = vand.u32 %v369, 4294901760
        %v5105 = vsub.f32 %v369, %v5104
        %v5106 = vand.u32 %v5105, 4294901760
        %v5107 = vsub.f32 %v5105, %v5106
        %v5108 = vand.u32 %v5107, 4294901760
        %5109 = vmatprep.subr.mxu0 %v5108
        %v5110 = vand.u32 %v368, 4294901760
        %v5111 = vsub.f32 %v368, %v5110
        %v5112 = vand.u32 %v5111, 4294901760
        %v5113 = vsub.f32 %v5111, %v5112
        %v5114 = vand.u32 %v5113, 4294901760
        %5115 = vmatpush1.xpose.msra.mxu0 %v5114
        %v5116 = vand.u32 %v353, 4294901760
        %v5117 = vsub.f32 %v353, %v5116
        %v5118 = vand.u32 %v5117, 4294901760
        %v5119 = vsub.f32 %v5117, %v5118
        %v5120 = vand.u32 %v5119, 4294901760
        %5121 = vmatprep.subr.mxu0 %v5120
        %v5122 = vand.u32 %v352, 4294901760
        %v5123 = vsub.f32 %v352, %v5122
        %v5124 = vand.u32 %v5123, 4294901760
        %v5125 = vsub.f32 %v5123, %v5124
        %v5126 = vand.u32 %v5125, 4294901760
        %5127 = vmatpush1.xpose.msra.mxu0 %v5126
        %v5128 = vand.u32 %v337, 4294901760
        %v5129 = vsub.f32 %v337, %v5128
        %v5130 = vand.u32 %v5129, 4294901760
        %v5131 = vsub.f32 %v5129, %v5130
        %v5132 = vand.u32 %v5131, 4294901760
        %5133 = vmatprep.subr.mxu0 %v5132
        %v5134 = vand.u32 %v336, 4294901760
        %v5135 = vsub.f32 %v336, %v5134
        %v5136 = vand.u32 %v5135, 4294901760
        %v5137 = vsub.f32 %v5135, %v5136
        %v5138 = vand.u32 %v5137, 4294901760
        %5139 = vmatpush1.xpose.msra.mxu0 %v5138
        %v5140 = vand.u32 %v321, 4294901760
        %v5141 = vsub.f32 %v321, %v5140
        %v5142 = vand.u32 %v5141, 4294901760
        %v5143 = vsub.f32 %v5141, %v5142
        %v5144 = vand.u32 %v5143, 4294901760
        %5145 = vmatprep.subr.mxu0 %v5144
        %v5146 = vand.u32 %v320, 4294901760
        %v5147 = vsub.f32 %v320, %v5146
        %v5148 = vand.u32 %v5147, 4294901760
        %v5149 = vsub.f32 %v5147, %v5148
        %v5150 = vand.u32 %v5149, 4294901760
        %5151 = vmatpush1.xpose.msra.mxu0 %v5150
        %v5152 = vand.u32 %v305, 4294901760
        %v5153 = vsub.f32 %v305, %v5152
        %v5154 = vand.u32 %v5153, 4294901760
        %v5155 = vsub.f32 %v5153, %v5154
        %v5156 = vand.u32 %v5155, 4294901760
        %5157 = vmatprep.subr.mxu0 %v5156
        %v5158 = vand.u32 %v304, 4294901760
        %v5159 = vsub.f32 %v304, %v5158
        %v5160 = vand.u32 %v5159, 4294901760
        %v5161 = vsub.f32 %v5159, %v5160
        %v5162 = vand.u32 %v5161, 4294901760
        %5163 = vmatpush1.xpose.msra.mxu0 %v5162
        %5164 = vmatprep.subr.mxu0 0.0
        %5165 = vmatpush2.xpose.msra.mxu0 0.0
        %5166 = vmatprep.subr.mxu0 0.0
        %5167 = vmatpush2.xpose.msra.mxu0 0.0
        %5168 = vmatprep.subr.mxu0 0.0
        %5169 = vmatpush2.xpose.msra.mxu0 0.0
        %5170 = vmatprep.subr.mxu0 0.0
        %5171 = vmatpush2.xpose.msra.mxu0 0.0
        %5172 = vmatprep.subr.mxu0 0.0
        %5173 = vmatpush2.xpose.msra.mxu0 0.0
        %5174 = vmatprep.subr.mxu0 0.0
        %5175 = vmatpush2.xpose.msra.mxu0 0.0
        %5176 = vmatprep.subr.mxu0 0.0
        %5177 = vmatpush2.xpose.msra.mxu0 0.0
        %5178 = vmatprep.subr.mxu0 0.0
        %5179 = vmatpush2.xpose.msra.mxu0 0.0
        %5180 = vmatprep.subr.mxu0 0.0
        %5181 = vmatpush2.xpose.msra.mxu0 0.0
        %5182 = vmatprep.subr.mxu0 0.0
        %5183 = vmatpush2.xpose.msra.mxu0 0.0
        %5184 = vmatprep.subr.mxu0 0.0
        %5185 = vmatpush2.xpose.msra.mxu0 0.0
        %5186 = vmatprep.subr.mxu0 0.0
        %5187 = vmatpush2.xpose.msra.mxu0 0.0
        %5188 = vmatprep.subr.mxu0 0.0
        %5189 = vmatpush2.xpose.msra.mxu0 0.0
        %5190 = vmatprep.subr.mxu0 0.0
        %5191 = vmatpush2.xpose.msra.mxu0 0.0
        %5192 = vmatprep.subr.mxu0 0.0
        %5193 = vmatpush2.xpose.msra.mxu0 0.0
        %5194 = vmatprep.subr.mxu0 0.0
        %5195 = vmatpush2.xpose.msra.mxu0 0.0
        %v5196 = vand.u32 %v289, 4294901760
        %5197 = vmatprep.mubr.f32.mxu0 %v5196
        %v5198 = vand.u32 %v288, 4294901760
        %5199 = vmatmul.mubr.f32.gmra.mxu0 %v5198
        %v5200 = vpop.f32.mrf.mxu0
        %v5201 = vadd.f32 %v4969, %v5200
        %v5202 = vpop.f32.mrf.mxu0
        %5203 = vdwg.mxu0
        %v5204 = vand.u32 %v545, 4294901760
        %v5205 = vsub.f32 %v545, %v5204
        %5206 = vmatprep.subr.mxu0 %v5205
        %v5207 = vand.u32 %v544, 4294901760
        %v5208 = vsub.f32 %v544, %v5207
        %5209 = vmatpush1.xpose.msra.mxu0 %v5208
        %v5210 = vand.u32 %v529, 4294901760
        %v5211 = vsub.f32 %v529, %v5210
        %5212 = vmatprep.subr.mxu0 %v5211
        %v5213 = vand.u32 %v528, 4294901760
        %v5214 = vsub.f32 %v528, %v5213
        %5215 = vmatpush1.xpose.msra.mxu0 %v5214
        %v5216 = vand.u32 %v513, 4294901760
        %v5217 = vsub.f32 %v513, %v5216
        %5218 = vmatprep.subr.mxu0 %v5217
        %v5219 = vand.u32 %v512, 4294901760
        %v5220 = vsub.f32 %v512, %v5219
        %5221 = vmatpush1.xpose.msra.mxu0 %v5220
        %v5222 = vand.u32 %v497, 4294901760
        %v5223 = vsub.f32 %v497, %v5222
        %5224 = vmatprep.subr.mxu0 %v5223
        %v5225 = vand.u32 %v496, 4294901760
        %v5226 = vsub.f32 %v496, %v5225
        %5227 = vmatpush1.xpose.msra.mxu0 %v5226
        %v5228 = vand.u32 %v481, 4294901760
        %v5229 = vsub.f32 %v481, %v5228
        %5230 = vmatprep.subr.mxu0 %v5229
        %v5231 = vand.u32 %v480, 4294901760
        %v5232 = vsub.f32 %v480, %v5231
        %5233 = vmatpush1.xpose.msra.mxu0 %v5232
        %v5234 = vand.u32 %v465, 4294901760
        %v5235 = vsub.f32 %v465, %v5234
        %5236 = vmatprep.subr.mxu0 %v5235
        %v5237 = vand.u32 %v464, 4294901760
        %v5238 = vsub.f32 %v464, %v5237
        %5239 = vmatpush1.xpose.msra.mxu0 %v5238
        %v5240 = vand.u32 %v449, 4294901760
        %v5241 = vsub.f32 %v449, %v5240
        %5242 = vmatprep.subr.mxu0 %v5241
        %v5243 = vand.u32 %v448, 4294901760
        %v5244 = vsub.f32 %v448, %v5243
        %5245 = vmatpush1.xpose.msra.mxu0 %v5244
        %v5246 = vand.u32 %v433, 4294901760
        %v5247 = vsub.f32 %v433, %v5246
        %5248 = vmatprep.subr.mxu0 %v5247
        %v5249 = vand.u32 %v432, 4294901760
        %v5250 = vsub.f32 %v432, %v5249
        %5251 = vmatpush1.xpose.msra.mxu0 %v5250
        %v5252 = vand.u32 %v417, 4294901760
        %v5253 = vsub.f32 %v417, %v5252
        %5254 = vmatprep.subr.mxu0 %v5253
        %v5255 = vand.u32 %v416, 4294901760
        %v5256 = vsub.f32 %v416, %v5255
        %5257 = vmatpush1.xpose.msra.mxu0 %v5256
        %v5258 = vand.u32 %v401, 4294901760
        %v5259 = vsub.f32 %v401, %v5258
        %5260 = vmatprep.subr.mxu0 %v5259
        %v5261 = vand.u32 %v400, 4294901760
        %v5262 = vsub.f32 %v400, %v5261
        %5263 = vmatpush1.xpose.msra.mxu0 %v5262
        %v5264 = vand.u32 %v385, 4294901760
        %v5265 = vsub.f32 %v385, %v5264
        %5266 = vmatprep.subr.mxu0 %v5265
        %v5267 = vand.u32 %v384, 4294901760
        %v5268 = vsub.f32 %v384, %v5267
        %5269 = vmatpush1.xpose.msra.mxu0 %v5268
        %v5270 = vand.u32 %v369, 4294901760
        %v5271 = vsub.f32 %v369, %v5270
        %5272 = vmatprep.subr.mxu0 %v5271
        %v5273 = vand.u32 %v368, 4294901760
        %v5274 = vsub.f32 %v368, %v5273
        %5275 = vmatpush1.xpose.msra.mxu0 %v5274
        %v5276 = vand.u32 %v353, 4294901760
        %v5277 = vsub.f32 %v353, %v5276
        %5278 = vmatprep.subr.mxu0 %v5277
        %v5279 = vand.u32 %v352, 4294901760
        %v5280 = vsub.f32 %v352, %v5279
        %5281 = vmatpush1.xpose.msra.mxu0 %v5280
        %v5282 = vand.u32 %v337, 4294901760
        %v5283 = vsub.f32 %v337, %v5282
        %5284 = vmatprep.subr.mxu0 %v5283
        %v5285 = vand.u32 %v336, 4294901760
        %v5286 = vsub.f32 %v336, %v5285
        %5287 = vmatpush1.xpose.msra.mxu0 %v5286
        %v5288 = vand.u32 %v321, 4294901760
        %v5289 = vsub.f32 %v321, %v5288
        %5290 = vmatprep.subr.mxu0 %v5289
        %v5291 = vand.u32 %v320, 4294901760
        %v5292 = vsub.f32 %v320, %v5291
        %5293 = vmatpush1.xpose.msra.mxu0 %v5292
        %v5294 = vand.u32 %v305, 4294901760
        %v5295 = vsub.f32 %v305, %v5294
        %5296 = vmatprep.subr.mxu0 %v5295
        %v5297 = vand.u32 %v304, 4294901760
        %v5298 = vsub.f32 %v304, %v5297
        %5299 = vmatpush1.xpose.msra.mxu0 %v5298
        %5300 = vmatprep.subr.mxu0 0.0
        %5301 = vmatpush2.xpose.msra.mxu0 0.0
        %5302 = vmatprep.subr.mxu0 0.0
        %5303 = vmatpush2.xpose.msra.mxu0 0.0
        %5304 = vmatprep.subr.mxu0 0.0
        %5305 = vmatpush2.xpose.msra.mxu0 0.0
        %5306 = vmatprep.subr.mxu0 0.0
        %5307 = vmatpush2.xpose.msra.mxu0 0.0
        %5308 = vmatprep.subr.mxu0 0.0
        %5309 = vmatpush2.xpose.msra.mxu0 0.0
        %5310 = vmatprep.subr.mxu0 0.0
        %5311 = vmatpush2.xpose.msra.mxu0 0.0
        %5312 = vmatprep.subr.mxu0 0.0
        %5313 = vmatpush2.xpose.msra.mxu0 0.0
        %5314 = vmatprep.subr.mxu0 0.0
        %5315 = vmatpush2.xpose.msra.mxu0 0.0
        %5316 = vmatprep.subr.mxu0 0.0
        %5317 = vmatpush2.xpose.msra.mxu0 0.0
        %5318 = vmatprep.subr.mxu0 0.0
        %5319 = vmatpush2.xpose.msra.mxu0 0.0
        %5320 = vmatprep.subr.mxu0 0.0
        %5321 = vmatpush2.xpose.msra.mxu0 0.0
        %5322 = vmatprep.subr.mxu0 0.0
        %5323 = vmatpush2.xpose.msra.mxu0 0.0
        %5324 = vmatprep.subr.mxu0 0.0
        %5325 = vmatpush2.xpose.msra.mxu0 0.0
        %5326 = vmatprep.subr.mxu0 0.0
        %5327 = vmatpush2.xpose.msra.mxu0 0.0
        %5328 = vmatprep.subr.mxu0 0.0
        %5329 = vmatpush2.xpose.msra.mxu0 0.0
        %5330 = vmatprep.subr.mxu0 0.0
        %5331 = vmatpush2.xpose.msra.mxu0 0.0
        %v5332 = vand.u32 %v289, 4294901760
        %v5333 = vsub.f32 %v289, %v5332
        %5334 = vmatprep.mubr.f32.mxu0 %v5333
        %v5335 = vand.u32 %v288, 4294901760
        %v5336 = vsub.f32 %v288, %v5335
        %5337 = vmatmul.mubr.f32.gmra.mxu0 %v5336
        %v5338 = vpop.f32.mrf.mxu0
        %v5339 = vadd.f32 %v5201, %v5338
        %v5340 = vpop.f32.mrf.mxu0
        %5341 = vdwg.mxu0
        %v5342 = vand.u32 %v545, 4294901760
        %5343 = vmatprep.subr.mxu0 %v5342
        %v5344 = vand.u32 %v544, 4294901760
        %5345 = vmatpush1.xpose.msra.mxu0 %v5344
        %v5346 = vand.u32 %v529, 4294901760
        %5347 = vmatprep.subr.mxu0 %v5346
        %v5348 = vand.u32 %v528, 4294901760
        %5349 = vmatpush1.xpose.msra.mxu0 %v5348
        %v5350 = vand.u32 %v513, 4294901760
        %5351 = vmatprep.subr.mxu0 %v5350
        %v5352 = vand.u32 %v512, 4294901760
        %5353 = vmatpush1.xpose.msra.mxu0 %v5352
        %v5354 = vand.u32 %v497, 4294901760
        %5355 = vmatprep.subr.mxu0 %v5354
        %v5356 = vand.u32 %v496, 4294901760
        %5357 = vmatpush1.xpose.msra.mxu0 %v5356
        %v5358 = vand.u32 %v481, 4294901760
        %5359 = vmatprep.subr.mxu0 %v5358
        %v5360 = vand.u32 %v480, 4294901760
        %5361 = vmatpush1.xpose.msra.mxu0 %v5360
        %v5362 = vand.u32 %v465, 4294901760
        %5363 = vmatprep.subr.mxu0 %v5362
        %v5364 = vand.u32 %v464, 4294901760
        %5365 = vmatpush1.xpose.msra.mxu0 %v5364
        %v5366 = vand.u32 %v449, 4294901760
        %5367 = vmatprep.subr.mxu0 %v5366
        %v5368 = vand.u32 %v448, 4294901760
        %5369 = vmatpush1.xpose.msra.mxu0 %v5368
        %v5370 = vand.u32 %v433, 4294901760
        %5371 = vmatprep.subr.mxu0 %v5370
        %v5372 = vand.u32 %v432, 4294901760
        %5373 = vmatpush1.xpose.msra.mxu0 %v5372
        %v5374 = vand.u32 %v417, 4294901760
        %5375 = vmatprep.subr.mxu0 %v5374
        %v5376 = vand.u32 %v416, 4294901760
        %5377 = vmatpush1.xpose.msra.mxu0 %v5376
        %v5378 = vand.u32 %v401, 4294901760
        %5379 = vmatprep.subr.mxu0 %v5378
        %v5380 = vand.u32 %v400, 4294901760
        %5381 = vmatpush1.xpose.msra.mxu0 %v5380
        %v5382 = vand.u32 %v385, 4294901760
        %5383 = vmatprep.subr.mxu0 %v5382
        %v5384 = vand.u32 %v384, 4294901760
        %5385 = vmatpush1.xpose.msra.mxu0 %v5384
        %v5386 = vand.u32 %v369, 4294901760
        %5387 = vmatprep.subr.mxu0 %v5386
        %v5388 = vand.u32 %v368, 4294901760
        %5389 = vmatpush1.xpose.msra.mxu0 %v5388
        %v5390 = vand.u32 %v353, 4294901760
        %5391 = vmatprep.subr.mxu0 %v5390
        %v5392 = vand.u32 %v352, 4294901760
        %5393 = vmatpush1.xpose.msra.mxu0 %v5392
        %v5394 = vand.u32 %v337, 4294901760
        %5395 = vmatprep.subr.mxu0 %v5394
        %v5396 = vand.u32 %v336, 4294901760
        %5397 = vmatpush1.xpose.msra.mxu0 %v5396
        %v5398 = vand.u32 %v321, 4294901760
        %5399 = vmatprep.subr.mxu0 %v5398
        %v5400 = vand.u32 %v320, 4294901760
        %5401 = vmatpush1.xpose.msra.mxu0 %v5400
        %v5402 = vand.u32 %v305, 4294901760
        %5403 = vmatprep.subr.mxu0 %v5402
        %v5404 = vand.u32 %v304, 4294901760
        %5405 = vmatpush1.xpose.msra.mxu0 %v5404
        %5406 = vmatprep.subr.mxu0 0.0
        %5407 = vmatpush2.xpose.msra.mxu0 0.0
        %5408 = vmatprep.subr.mxu0 0.0
        %5409 = vmatpush2.xpose.msra.mxu0 0.0
        %5410 = vmatprep.subr.mxu0 0.0
        %5411 = vmatpush2.xpose.msra.mxu0 0.0
        %5412 = vmatprep.subr.mxu0 0.0
        %5413 = vmatpush2.xpose.msra.mxu0 0.0
        %5414 = vmatprep.subr.mxu0 0.0
        %5415 = vmatpush2.xpose.msra.mxu0 0.0
        %5416 = vmatprep.subr.mxu0 0.0
        %5417 = vmatpush2.xpose.msra.mxu0 0.0
        %5418 = vmatprep.subr.mxu0 0.0
        %5419 = vmatpush2.xpose.msra.mxu0 0.0
        %5420 = vmatprep.subr.mxu0 0.0
        %5421 = vmatpush2.xpose.msra.mxu0 0.0
        %5422 = vmatprep.subr.mxu0 0.0
        %5423 = vmatpush2.xpose.msra.mxu0 0.0
        %5424 = vmatprep.subr.mxu0 0.0
        %5425 = vmatpush2.xpose.msra.mxu0 0.0
        %5426 = vmatprep.subr.mxu0 0.0
        %5427 = vmatpush2.xpose.msra.mxu0 0.0
        %5428 = vmatprep.subr.mxu0 0.0
        %5429 = vmatpush2.xpose.msra.mxu0 0.0
        %5430 = vmatprep.subr.mxu0 0.0
        %5431 = vmatpush2.xpose.msra.mxu0 0.0
        %5432 = vmatprep.subr.mxu0 0.0
        %5433 = vmatpush2.xpose.msra.mxu0 0.0
        %5434 = vmatprep.subr.mxu0 0.0
        %5435 = vmatpush2.xpose.msra.mxu0 0.0
        %5436 = vmatprep.subr.mxu0 0.0
        %5437 = vmatpush2.xpose.msra.mxu0 0.0
        %v5438 = vand.u32 %v289, 4294901760
        %v5439 = vsub.f32 %v289, %v5438
        %v5440 = vand.u32 %v5439, 4294901760
        %5441 = vmatprep.mubr.f32.mxu0 %v5440
        %v5442 = vand.u32 %v288, 4294901760
        %v5443 = vsub.f32 %v288, %v5442
        %v5444 = vand.u32 %v5443, 4294901760
        %5445 = vmatmul.mubr.f32.gmra.mxu0 %v5444
        %v5446 = vpop.f32.mrf.mxu0
        %v5447 = vadd.f32 %v5339, %v5446
        %v5448 = vpop.f32.mrf.mxu0
        %5449 = vdwg.mxu0
        %v5450 = vand.u32 %v545, 4294901760
        %v5451 = vsub.f32 %v545, %v5450
        %v5452 = vand.u32 %v5451, 4294901760
        %5453 = vmatprep.subr.mxu0 %v5452
        %v5454 = vand.u32 %v544, 4294901760
        %v5455 = vsub.f32 %v544, %v5454
        %v5456 = vand.u32 %v5455, 4294901760
        %5457 = vmatpush1.xpose.msra.mxu0 %v5456
        %v5458 = vand.u32 %v529, 4294901760
        %v5459 = vsub.f32 %v529, %v5458
        %v5460 = vand.u32 %v5459, 4294901760
        %5461 = vmatprep.subr.mxu0 %v5460
        %v5462 = vand.u32 %v528, 4294901760
        %v5463 = vsub.f32 %v528, %v5462
        %v5464 = vand.u32 %v5463, 4294901760
        %5465 = vmatpush1.xpose.msra.mxu0 %v5464
        %v5466 = vand.u32 %v513, 4294901760
        %v5467 = vsub.f32 %v513, %v5466
        %v5468 = vand.u32 %v5467, 4294901760
        %5469 = vmatprep.subr.mxu0 %v5468
        %v5470 = vand.u32 %v512, 4294901760
        %v5471 = vsub.f32 %v512, %v5470
        %v5472 = vand.u32 %v5471, 4294901760
        %5473 = vmatpush1.xpose.msra.mxu0 %v5472
        %v5474 = vand.u32 %v497, 4294901760
        %v5475 = vsub.f32 %v497, %v5474
        %v5476 = vand.u32 %v5475, 4294901760
        %5477 = vmatprep.subr.mxu0 %v5476
        %v5478 = vand.u32 %v496, 4294901760
        %v5479 = vsub.f32 %v496, %v5478
        %v5480 = vand.u32 %v5479, 4294901760
        %5481 = vmatpush1.xpose.msra.mxu0 %v5480
        %v5482 = vand.u32 %v481, 4294901760
        %v5483 = vsub.f32 %v481, %v5482
        %v5484 = vand.u32 %v5483, 4294901760
        %5485 = vmatprep.subr.mxu0 %v5484
        %v5486 = vand.u32 %v480, 4294901760
        %v5487 = vsub.f32 %v480, %v5486
        %v5488 = vand.u32 %v5487, 4294901760
        %5489 = vmatpush1.xpose.msra.mxu0 %v5488
        %v5490 = vand.u32 %v465, 4294901760
        %v5491 = vsub.f32 %v465, %v5490
        %v5492 = vand.u32 %v5491, 4294901760
        %5493 = vmatprep.subr.mxu0 %v5492
        %v5494 = vand.u32 %v464, 4294901760
        %v5495 = vsub.f32 %v464, %v5494
        %v5496 = vand.u32 %v5495, 4294901760
        %5497 = vmatpush1.xpose.msra.mxu0 %v5496
        %v5498 = vand.u32 %v449, 4294901760
        %v5499 = vsub.f32 %v449, %v5498
        %v5500 = vand.u32 %v5499, 4294901760
        %5501 = vmatprep.subr.mxu0 %v5500
        %v5502 = vand.u32 %v448, 4294901760
        %v5503 = vsub.f32 %v448, %v5502
        %v5504 = vand.u32 %v5503, 4294901760
        %5505 = vmatpush1.xpose.msra.mxu0 %v5504
        %v5506 = vand.u32 %v433, 4294901760
        %v5507 = vsub.f32 %v433, %v5506
        %v5508 = vand.u32 %v5507, 4294901760
        %5509 = vmatprep.subr.mxu0 %v5508
        %v5510 = vand.u32 %v432, 4294901760
        %v5511 = vsub.f32 %v432, %v5510
        %v5512 = vand.u32 %v5511, 4294901760
        %5513 = vmatpush1.xpose.msra.mxu0 %v5512
        %v5514 = vand.u32 %v417, 4294901760
        %v5515 = vsub.f32 %v417, %v5514
        %v5516 = vand.u32 %v5515, 4294901760
        %5517 = vmatprep.subr.mxu0 %v5516
        %v5518 = vand.u32 %v416, 4294901760
        %v5519 = vsub.f32 %v416, %v5518
        %v5520 = vand.u32 %v5519, 4294901760
        %5521 = vmatpush1.xpose.msra.mxu0 %v5520
        %v5522 = vand.u32 %v401, 4294901760
        %v5523 = vsub.f32 %v401, %v5522
        %v5524 = vand.u32 %v5523, 4294901760
        %5525 = vmatprep.subr.mxu0 %v5524
        %v5526 = vand.u32 %v400, 4294901760
        %v5527 = vsub.f32 %v400, %v5526
        %v5528 = vand.u32 %v5527, 4294901760
        %5529 = vmatpush1.xpose.msra.mxu0 %v5528
        %v5530 = vand.u32 %v385, 4294901760
        %v5531 = vsub.f32 %v385, %v5530
        %v5532 = vand.u32 %v5531, 4294901760
        %5533 = vmatprep.subr.mxu0 %v5532
        %v5534 = vand.u32 %v384, 4294901760
        %v5535 = vsub.f32 %v384, %v5534
        %v5536 = vand.u32 %v5535, 4294901760
        %5537 = vmatpush1.xpose.msra.mxu0 %v5536
        %v5538 = vand.u32 %v369, 4294901760
        %v5539 = vsub.f32 %v369, %v5538
        %v5540 = vand.u32 %v5539, 4294901760
        %5541 = vmatprep.subr.mxu0 %v5540
        %v5542 = vand.u32 %v368, 4294901760
        %v5543 = vsub.f32 %v368, %v5542
        %v5544 = vand.u32 %v5543, 4294901760
        %5545 = vmatpush1.xpose.msra.mxu0 %v5544
        %v5546 = vand.u32 %v353, 4294901760
        %v5547 = vsub.f32 %v353, %v5546
        %v5548 = vand.u32 %v5547, 4294901760
        %5549 = vmatprep.subr.mxu0 %v5548
        %v5550 = vand.u32 %v352, 4294901760
        %v5551 = vsub.f32 %v352, %v5550
        %v5552 = vand.u32 %v5551, 4294901760
        %5553 = vmatpush1.xpose.msra.mxu0 %v5552
        %v5554 = vand.u32 %v337, 4294901760
        %v5555 = vsub.f32 %v337, %v5554
        %v5556 = vand.u32 %v5555, 4294901760
        %5557 = vmatprep.subr.mxu0 %v5556
        %v5558 = vand.u32 %v336, 4294901760
        %v5559 = vsub.f32 %v336, %v5558
        %v5560 = vand.u32 %v5559, 4294901760
        %5561 = vmatpush1.xpose.msra.mxu0 %v5560
        %v5562 = vand.u32 %v321, 4294901760
        %v5563 = vsub.f32 %v321, %v5562
        %v5564 = vand.u32 %v5563, 4294901760
        %5565 = vmatprep.subr.mxu0 %v5564
        %v5566 = vand.u32 %v320, 4294901760
        %v5567 = vsub.f32 %v320, %v5566
        %v5568 = vand.u32 %v5567, 4294901760
        %5569 = vmatpush1.xpose.msra.mxu0 %v5568
        %v5570 = vand.u32 %v305, 4294901760
        %v5571 = vsub.f32 %v305, %v5570
        %v5572 = vand.u32 %v5571, 4294901760
        %5573 = vmatprep.subr.mxu0 %v5572
        %v5574 = vand.u32 %v304, 4294901760
        %v5575 = vsub.f32 %v304, %v5574
        %v5576 = vand.u32 %v5575, 4294901760
        %5577 = vmatpush1.xpose.msra.mxu0 %v5576
        %5578 = vmatprep.subr.mxu0 0.0
        %5579 = vmatpush2.xpose.msra.mxu0 0.0
        %5580 = vmatprep.subr.mxu0 0.0
        %5581 = vmatpush2.xpose.msra.mxu0 0.0
        %5582 = vmatprep.subr.mxu0 0.0
        %5583 = vmatpush2.xpose.msra.mxu0 0.0
        %5584 = vmatprep.subr.mxu0 0.0
        %5585 = vmatpush2.xpose.msra.mxu0 0.0
        %5586 = vmatprep.subr.mxu0 0.0
        %5587 = vmatpush2.xpose.msra.mxu0 0.0
        %5588 = vmatprep.subr.mxu0 0.0
        %5589 = vmatpush2.xpose.msra.mxu0 0.0
        %5590 = vmatprep.subr.mxu0 0.0
        %5591 = vmatpush2.xpose.msra.mxu0 0.0
        %5592 = vmatprep.subr.mxu0 0.0
        %5593 = vmatpush2.xpose.msra.mxu0 0.0
        %5594 = vmatprep.subr.mxu0 0.0
        %5595 = vmatpush2.xpose.msra.mxu0 0.0
        %5596 = vmatprep.subr.mxu0 0.0
        %5597 = vmatpush2.xpose.msra.mxu0 0.0
        %5598 = vmatprep.subr.mxu0 0.0
        %5599 = vmatpush2.xpose.msra.mxu0 0.0
        %5600 = vmatprep.subr.mxu0 0.0
        %5601 = vmatpush2.xpose.msra.mxu0 0.0
        %5602 = vmatprep.subr.mxu0 0.0
        %5603 = vmatpush2.xpose.msra.mxu0 0.0
        %5604 = vmatprep.subr.mxu0 0.0
        %5605 = vmatpush2.xpose.msra.mxu0 0.0
        %5606 = vmatprep.subr.mxu0 0.0
        %5607 = vmatpush2.xpose.msra.mxu0 0.0
        %5608 = vmatprep.subr.mxu0 0.0
        %5609 = vmatpush2.xpose.msra.mxu0 0.0
        %v5610 = vand.u32 %v289, 4294901760
        %5611 = vmatprep.mubr.f32.mxu0 %v5610
        %v5612 = vand.u32 %v288, 4294901760
        %5613 = vmatmul.mubr.f32.gmra.mxu0 %v5612
        %v5614 = vpop.f32.mrf.mxu0
        %v5615 = vadd.f32 %v5447, %v5614
        %v5616 = vpop.f32.mrf.mxu0
        %5617 = vdwg.mxu0
        %v5618 = vand.u32 %v545, 4294901760
        %5619 = vmatprep.subr.mxu0 %v5618
        %v5620 = vand.u32 %v544, 4294901760
        %5621 = vmatpush1.xpose.msra.mxu0 %v5620
        %v5622 = vand.u32 %v529, 4294901760
        %5623 = vmatprep.subr.mxu0 %v5622
        %v5624 = vand.u32 %v528, 4294901760
        %5625 = vmatpush1.xpose.msra.mxu0 %v5624
        %v5626 = vand.u32 %v513, 4294901760
        %5627 = vmatprep.subr.mxu0 %v5626
        %v5628 = vand.u32 %v512, 4294901760
        %5629 = vmatpush1.xpose.msra.mxu0 %v5628
        %v5630 = vand.u32 %v497, 4294901760
        %5631 = vmatprep.subr.mxu0 %v5630
        %v5632 = vand.u32 %v496, 4294901760
        %5633 = vmatpush1.xpose.msra.mxu0 %v5632
        %v5634 = vand.u32 %v481, 4294901760
        %5635 = vmatprep.subr.mxu0 %v5634
        %v5636 = vand.u32 %v480, 4294901760
        %5637 = vmatpush1.xpose.msra.mxu0 %v5636
        %v5638 = vand.u32 %v465, 4294901760
        %5639 = vmatprep.subr.mxu0 %v5638
        %v5640 = vand.u32 %v464, 4294901760
        %5641 = vmatpush1.xpose.msra.mxu0 %v5640
        %v5642 = vand.u32 %v449, 4294901760
        %5643 = vmatprep.subr.mxu0 %v5642
        %v5644 = vand.u32 %v448, 4294901760
        %5645 = vmatpush1.xpose.msra.mxu0 %v5644
        %v5646 = vand.u32 %v433, 4294901760
        %5647 = vmatprep.subr.mxu0 %v5646
        %v5648 = vand.u32 %v432, 4294901760
        %5649 = vmatpush1.xpose.msra.mxu0 %v5648
        %v5650 = vand.u32 %v417, 4294901760
        %5651 = vmatprep.subr.mxu0 %v5650
        %v5652 = vand.u32 %v416, 4294901760
        %5653 = vmatpush1.xpose.msra.mxu0 %v5652
        %v5654 = vand.u32 %v401, 4294901760
        %5655 = vmatprep.subr.mxu0 %v5654
        %v5656 = vand.u32 %v400, 4294901760
        %5657 = vmatpush1.xpose.msra.mxu0 %v5656
        %v5658 = vand.u32 %v385, 4294901760
        %5659 = vmatprep.subr.mxu0 %v5658
        %v5660 = vand.u32 %v384, 4294901760
        %5661 = vmatpush1.xpose.msra.mxu0 %v5660
        %v5662 = vand.u32 %v369, 4294901760
        %5663 = vmatprep.subr.mxu0 %v5662
        %v5664 = vand.u32 %v368, 4294901760
        %5665 = vmatpush1.xpose.msra.mxu0 %v5664
        %v5666 = vand.u32 %v353, 4294901760
        %5667 = vmatprep.subr.mxu0 %v5666
        %v5668 = vand.u32 %v352, 4294901760
        %5669 = vmatpush1.xpose.msra.mxu0 %v5668
        %v5670 = vand.u32 %v337, 4294901760
        %5671 = vmatprep.subr.mxu0 %v5670
        %v5672 = vand.u32 %v336, 4294901760
        %5673 = vmatpush1.xpose.msra.mxu0 %v5672
        %v5674 = vand.u32 %v321, 4294901760
        %5675 = vmatprep.subr.mxu0 %v5674
        %v5676 = vand.u32 %v320, 4294901760
        %5677 = vmatpush1.xpose.msra.mxu0 %v5676
        %v5678 = vand.u32 %v305, 4294901760
        %5679 = vmatprep.subr.mxu0 %v5678
        %v5680 = vand.u32 %v304, 4294901760
        %5681 = vmatpush1.xpose.msra.mxu0 %v5680
        %5682 = vmatprep.subr.mxu0 0.0
        %5683 = vmatpush2.xpose.msra.mxu0 0.0
        %5684 = vmatprep.subr.mxu0 0.0
        %5685 = vmatpush2.xpose.msra.mxu0 0.0
        %5686 = vmatprep.subr.mxu0 0.0
        %5687 = vmatpush2.xpose.msra.mxu0 0.0
        %5688 = vmatprep.subr.mxu0 0.0
        %5689 = vmatpush2.xpose.msra.mxu0 0.0
        %5690 = vmatprep.subr.mxu0 0.0
        %5691 = vmatpush2.xpose.msra.mxu0 0.0
        %5692 = vmatprep.subr.mxu0 0.0
        %5693 = vmatpush2.xpose.msra.mxu0 0.0
        %5694 = vmatprep.subr.mxu0 0.0
        %5695 = vmatpush2.xpose.msra.mxu0 0.0
        %5696 = vmatprep.subr.mxu0 0.0
        %5697 = vmatpush2.xpose.msra.mxu0 0.0
        %5698 = vmatprep.subr.mxu0 0.0
        %5699 = vmatpush2.xpose.msra.mxu0 0.0
        %5700 = vmatprep.subr.mxu0 0.0
        %5701 = vmatpush2.xpose.msra.mxu0 0.0
        %5702 = vmatprep.subr.mxu0 0.0
        %5703 = vmatpush2.xpose.msra.mxu0 0.0
        %5704 = vmatprep.subr.mxu0 0.0
        %5705 = vmatpush2.xpose.msra.mxu0 0.0
        %5706 = vmatprep.subr.mxu0 0.0
        %5707 = vmatpush2.xpose.msra.mxu0 0.0
        %5708 = vmatprep.subr.mxu0 0.0
        %5709 = vmatpush2.xpose.msra.mxu0 0.0
        %5710 = vmatprep.subr.mxu0 0.0
        %5711 = vmatpush2.xpose.msra.mxu0 0.0
        %5712 = vmatprep.subr.mxu0 0.0
        %5713 = vmatpush2.xpose.msra.mxu0 0.0
        %v5714 = vand.u32 %v289, 4294901760
        %5715 = vmatprep.mubr.f32.mxu0 %v5714
        %v5716 = vand.u32 %v288, 4294901760
        %5717 = vmatmul.mubr.f32.gmra.mxu0 %v5716
        %v5718 = vpop.f32.mrf.mxu0
        %v5719 = vadd.f32 %v5615, %v5718
        %v5720 = vpop.f32.mrf.mxu0
        %5721 = vdwg.mxu0
        %v5722 = vand.u32 %v547, 4294901760
        %5723 = vmatprep.subr.mxu0 %v5722
        %v5724 = vand.u32 %v546, 4294901760
        %5725 = vmatpush1.xpose.msra.mxu0 %v5724
        %v5726 = vand.u32 %v531, 4294901760
        %5727 = vmatprep.subr.mxu0 %v5726
        %v5728 = vand.u32 %v530, 4294901760
        %5729 = vmatpush1.xpose.msra.mxu0 %v5728
        %v5730 = vand.u32 %v515, 4294901760
        %5731 = vmatprep.subr.mxu0 %v5730
        %v5732 = vand.u32 %v514, 4294901760
        %5733 = vmatpush1.xpose.msra.mxu0 %v5732
        %v5734 = vand.u32 %v499, 4294901760
        %5735 = vmatprep.subr.mxu0 %v5734
        %v5736 = vand.u32 %v498, 4294901760
        %5737 = vmatpush1.xpose.msra.mxu0 %v5736
        %v5738 = vand.u32 %v483, 4294901760
        %5739 = vmatprep.subr.mxu0 %v5738
        %v5740 = vand.u32 %v482, 4294901760
        %5741 = vmatpush1.xpose.msra.mxu0 %v5740
        %v5742 = vand.u32 %v467, 4294901760
        %5743 = vmatprep.subr.mxu0 %v5742
        %v5744 = vand.u32 %v466, 4294901760
        %5745 = vmatpush1.xpose.msra.mxu0 %v5744
        %v5746 = vand.u32 %v451, 4294901760
        %5747 = vmatprep.subr.mxu0 %v5746
        %v5748 = vand.u32 %v450, 4294901760
        %5749 = vmatpush1.xpose.msra.mxu0 %v5748
        %v5750 = vand.u32 %v435, 4294901760
        %5751 = vmatprep.subr.mxu0 %v5750
        %v5752 = vand.u32 %v434, 4294901760
        %5753 = vmatpush1.xpose.msra.mxu0 %v5752
        %v5754 = vand.u32 %v419, 4294901760
        %5755 = vmatprep.subr.mxu0 %v5754
        %v5756 = vand.u32 %v418, 4294901760
        %5757 = vmatpush1.xpose.msra.mxu0 %v5756
        %v5758 = vand.u32 %v403, 4294901760
        %5759 = vmatprep.subr.mxu0 %v5758
        %v5760 = vand.u32 %v402, 4294901760
        %5761 = vmatpush1.xpose.msra.mxu0 %v5760
        %v5762 = vand.u32 %v387, 4294901760
        %5763 = vmatprep.subr.mxu0 %v5762
        %v5764 = vand.u32 %v386, 4294901760
        %5765 = vmatpush1.xpose.msra.mxu0 %v5764
        %v5766 = vand.u32 %v371, 4294901760
        %5767 = vmatprep.subr.mxu0 %v5766
        %v5768 = vand.u32 %v370, 4294901760
        %5769 = vmatpush1.xpose.msra.mxu0 %v5768
        %v5770 = vand.u32 %v355, 4294901760
        %5771 = vmatprep.subr.mxu0 %v5770
        %v5772 = vand.u32 %v354, 4294901760
        %5773 = vmatpush1.xpose.msra.mxu0 %v5772
        %v5774 = vand.u32 %v339, 4294901760
        %5775 = vmatprep.subr.mxu0 %v5774
        %v5776 = vand.u32 %v338, 4294901760
        %5777 = vmatpush1.xpose.msra.mxu0 %v5776
        %v5778 = vand.u32 %v323, 4294901760
        %5779 = vmatprep.subr.mxu0 %v5778
        %v5780 = vand.u32 %v322, 4294901760
        %5781 = vmatpush1.xpose.msra.mxu0 %v5780
        %v5782 = vand.u32 %v307, 4294901760
        %5783 = vmatprep.subr.mxu0 %v5782
        %v5784 = vand.u32 %v306, 4294901760
        %5785 = vmatpush1.xpose.msra.mxu0 %v5784
        %5786 = vmatprep.subr.mxu0 0.0
        %5787 = vmatpush2.xpose.msra.mxu0 0.0
        %5788 = vmatprep.subr.mxu0 0.0
        %5789 = vmatpush2.xpose.msra.mxu0 0.0
        %5790 = vmatprep.subr.mxu0 0.0
        %5791 = vmatpush2.xpose.msra.mxu0 0.0
        %5792 = vmatprep.subr.mxu0 0.0
        %5793 = vmatpush2.xpose.msra.mxu0 0.0
        %5794 = vmatprep.subr.mxu0 0.0
        %5795 = vmatpush2.xpose.msra.mxu0 0.0
        %5796 = vmatprep.subr.mxu0 0.0
        %5797 = vmatpush2.xpose.msra.mxu0 0.0
        %5798 = vmatprep.subr.mxu0 0.0
        %5799 = vmatpush2.xpose.msra.mxu0 0.0
        %5800 = vmatprep.subr.mxu0 0.0
        %5801 = vmatpush2.xpose.msra.mxu0 0.0
        %5802 = vmatprep.subr.mxu0 0.0
        %5803 = vmatpush2.xpose.msra.mxu0 0.0
        %5804 = vmatprep.subr.mxu0 0.0
        %5805 = vmatpush2.xpose.msra.mxu0 0.0
        %5806 = vmatprep.subr.mxu0 0.0
        %5807 = vmatpush2.xpose.msra.mxu0 0.0
        %5808 = vmatprep.subr.mxu0 0.0
        %5809 = vmatpush2.xpose.msra.mxu0 0.0
        %5810 = vmatprep.subr.mxu0 0.0
        %5811 = vmatpush2.xpose.msra.mxu0 0.0
        %5812 = vmatprep.subr.mxu0 0.0
        %5813 = vmatpush2.xpose.msra.mxu0 0.0
        %5814 = vmatprep.subr.mxu0 0.0
        %5815 = vmatpush2.xpose.msra.mxu0 0.0
        %5816 = vmatprep.subr.mxu0 0.0
        %5817 = vmatpush2.xpose.msra.mxu0 0.0
        %v5818 = vand.u32 %v291, 4294901760
        %v5819 = vsub.f32 %v291, %v5818
        %v5820 = vand.u32 %v5819, 4294901760
        %v5821 = vsub.f32 %v5819, %v5820
        %v5822 = vand.u32 %v5821, 4294901760
        %5823 = vmatprep.mubr.f32.mxu0 %v5822
        %v5824 = vand.u32 %v290, 4294901760
        %v5825 = vsub.f32 %v290, %v5824
        %v5826 = vand.u32 %v5825, 4294901760
        %v5827 = vsub.f32 %v5825, %v5826
        %v5828 = vand.u32 %v5827, 4294901760
        %5829 = vmatmul.mubr.f32.gmra.mxu0 %v5828
        %v5830 = vpop.f32.mrf.mxu0
        %v5831 = vadd.f32 %v5719, %v5830
        %v5832 = vpop.f32.mrf.mxu0
        %5833 = vdwg.mxu0
        %v5834 = vand.u32 %v547, 4294901760
        %v5835 = vsub.f32 %v547, %v5834
        %v5836 = vand.u32 %v5835, 4294901760
        %v5837 = vsub.f32 %v5835, %v5836
        %v5838 = vand.u32 %v5837, 4294901760
        %5839 = vmatprep.subr.mxu0 %v5838
        %v5840 = vand.u32 %v546, 4294901760
        %v5841 = vsub.f32 %v546, %v5840
        %v5842 = vand.u32 %v5841, 4294901760
        %v5843 = vsub.f32 %v5841, %v5842
        %v5844 = vand.u32 %v5843, 4294901760
        %5845 = vmatpush1.xpose.msra.mxu0 %v5844
        %v5846 = vand.u32 %v531, 4294901760
        %v5847 = vsub.f32 %v531, %v5846
        %v5848 = vand.u32 %v5847, 4294901760
        %v5849 = vsub.f32 %v5847, %v5848
        %v5850 = vand.u32 %v5849, 4294901760
        %5851 = vmatprep.subr.mxu0 %v5850
        %v5852 = vand.u32 %v530, 4294901760
        %v5853 = vsub.f32 %v530, %v5852
        %v5854 = vand.u32 %v5853, 4294901760
        %v5855 = vsub.f32 %v5853, %v5854
        %v5856 = vand.u32 %v5855, 4294901760
        %5857 = vmatpush1.xpose.msra.mxu0 %v5856
        %v5858 = vand.u32 %v515, 4294901760
        %v5859 = vsub.f32 %v515, %v5858
        %v5860 = vand.u32 %v5859, 4294901760
        %v5861 = vsub.f32 %v5859, %v5860
        %v5862 = vand.u32 %v5861, 4294901760
        %5863 = vmatprep.subr.mxu0 %v5862
        %v5864 = vand.u32 %v514, 4294901760
        %v5865 = vsub.f32 %v514, %v5864
        %v5866 = vand.u32 %v5865, 4294901760
        %v5867 = vsub.f32 %v5865, %v5866
        %v5868 = vand.u32 %v5867, 4294901760
        %5869 = vmatpush1.xpose.msra.mxu0 %v5868
        %v5870 = vand.u32 %v499, 4294901760
        %v5871 = vsub.f32 %v499, %v5870
        %v5872 = vand.u32 %v5871, 4294901760
        %v5873 = vsub.f32 %v5871, %v5872
        %v5874 = vand.u32 %v5873, 4294901760
        %5875 = vmatprep.subr.mxu0 %v5874
        %v5876 = vand.u32 %v498, 4294901760
        %v5877 = vsub.f32 %v498, %v5876
        %v5878 = vand.u32 %v5877, 4294901760
        %v5879 = vsub.f32 %v5877, %v5878
        %v5880 = vand.u32 %v5879, 4294901760
        %5881 = vmatpush1.xpose.msra.mxu0 %v5880
        %v5882 = vand.u32 %v483, 4294901760
        %v5883 = vsub.f32 %v483, %v5882
        %v5884 = vand.u32 %v5883, 4294901760
        %v5885 = vsub.f32 %v5883, %v5884
        %v5886 = vand.u32 %v5885, 4294901760
        %5887 = vmatprep.subr.mxu0 %v5886
        %v5888 = vand.u32 %v482, 4294901760
        %v5889 = vsub.f32 %v482, %v5888
        %v5890 = vand.u32 %v5889, 4294901760
        %v5891 = vsub.f32 %v5889, %v5890
        %v5892 = vand.u32 %v5891, 4294901760
        %5893 = vmatpush1.xpose.msra.mxu0 %v5892
        %v5894 = vand.u32 %v467, 4294901760
        %v5895 = vsub.f32 %v467, %v5894
        %v5896 = vand.u32 %v5895, 4294901760
        %v5897 = vsub.f32 %v5895, %v5896
        %v5898 = vand.u32 %v5897, 4294901760
        %5899 = vmatprep.subr.mxu0 %v5898
        %v5900 = vand.u32 %v466, 4294901760
        %v5901 = vsub.f32 %v466, %v5900
        %v5902 = vand.u32 %v5901, 4294901760
        %v5903 = vsub.f32 %v5901, %v5902
        %v5904 = vand.u32 %v5903, 4294901760
        %5905 = vmatpush1.xpose.msra.mxu0 %v5904
        %v5906 = vand.u32 %v451, 4294901760
        %v5907 = vsub.f32 %v451, %v5906
        %v5908 = vand.u32 %v5907, 4294901760
        %v5909 = vsub.f32 %v5907, %v5908
        %v5910 = vand.u32 %v5909, 4294901760
        %5911 = vmatprep.subr.mxu0 %v5910
        %v5912 = vand.u32 %v450, 4294901760
        %v5913 = vsub.f32 %v450, %v5912
        %v5914 = vand.u32 %v5913, 4294901760
        %v5915 = vsub.f32 %v5913, %v5914
        %v5916 = vand.u32 %v5915, 4294901760
        %5917 = vmatpush1.xpose.msra.mxu0 %v5916
        %v5918 = vand.u32 %v435, 4294901760
        %v5919 = vsub.f32 %v435, %v5918
        %v5920 = vand.u32 %v5919, 4294901760
        %v5921 = vsub.f32 %v5919, %v5920
        %v5922 = vand.u32 %v5921, 4294901760
        %5923 = vmatprep.subr.mxu0 %v5922
        %v5924 = vand.u32 %v434, 4294901760
        %v5925 = vsub.f32 %v434, %v5924
        %v5926 = vand.u32 %v5925, 4294901760
        %v5927 = vsub.f32 %v5925, %v5926
        %v5928 = vand.u32 %v5927, 4294901760
        %5929 = vmatpush1.xpose.msra.mxu0 %v5928
        %v5930 = vand.u32 %v419, 4294901760
        %v5931 = vsub.f32 %v419, %v5930
        %v5932 = vand.u32 %v5931, 4294901760
        %v5933 = vsub.f32 %v5931, %v5932
        %v5934 = vand.u32 %v5933, 4294901760
        %5935 = vmatprep.subr.mxu0 %v5934
        %v5936 = vand.u32 %v418, 4294901760
        %v5937 = vsub.f32 %v418, %v5936
        %v5938 = vand.u32 %v5937, 4294901760
        %v5939 = vsub.f32 %v5937, %v5938
        %v5940 = vand.u32 %v5939, 4294901760
        %5941 = vmatpush1.xpose.msra.mxu0 %v5940
        %v5942 = vand.u32 %v403, 4294901760
        %v5943 = vsub.f32 %v403, %v5942
        %v5944 = vand.u32 %v5943, 4294901760
        %v5945 = vsub.f32 %v5943, %v5944
        %v5946 = vand.u32 %v5945, 4294901760
        %5947 = vmatprep.subr.mxu0 %v5946
        %v5948 = vand.u32 %v402, 4294901760
        %v5949 = vsub.f32 %v402, %v5948
        %v5950 = vand.u32 %v5949, 4294901760
        %v5951 = vsub.f32 %v5949, %v5950
        %v5952 = vand.u32 %v5951, 4294901760
        %5953 = vmatpush1.xpose.msra.mxu0 %v5952
        %v5954 = vand.u32 %v387, 4294901760
        %v5955 = vsub.f32 %v387, %v5954
        %v5956 = vand.u32 %v5955, 4294901760
        %v5957 = vsub.f32 %v5955, %v5956
        %v5958 = vand.u32 %v5957, 4294901760
        %5959 = vmatprep.subr.mxu0 %v5958
        %v5960 = vand.u32 %v386, 4294901760
        %v5961 = vsub.f32 %v386, %v5960
        %v5962 = vand.u32 %v5961, 4294901760
        %v5963 = vsub.f32 %v5961, %v5962
        %v5964 = vand.u32 %v5963, 4294901760
        %5965 = vmatpush1.xpose.msra.mxu0 %v5964
        %v5966 = vand.u32 %v371, 4294901760
        %v5967 = vsub.f32 %v371, %v5966
        %v5968 = vand.u32 %v5967, 4294901760
        %v5969 = vsub.f32 %v5967, %v5968
        %v5970 = vand.u32 %v5969, 4294901760
        %5971 = vmatprep.subr.mxu0 %v5970
        %v5972 = vand.u32 %v370, 4294901760
        %v5973 = vsub.f32 %v370, %v5972
        %v5974 = vand.u32 %v5973, 4294901760
        %v5975 = vsub.f32 %v5973, %v5974
        %v5976 = vand.u32 %v5975, 4294901760
        %5977 = vmatpush1.xpose.msra.mxu0 %v5976
        %v5978 = vand.u32 %v355, 4294901760
        %v5979 = vsub.f32 %v355, %v5978
        %v5980 = vand.u32 %v5979, 4294901760
        %v5981 = vsub.f32 %v5979, %v5980
        %v5982 = vand.u32 %v5981, 4294901760
        %5983 = vmatprep.subr.mxu0 %v5982
        %v5984 = vand.u32 %v354, 4294901760
        %v5985 = vsub.f32 %v354, %v5984
        %v5986 = vand.u32 %v5985, 4294901760
        %v5987 = vsub.f32 %v5985, %v5986
        %v5988 = vand.u32 %v5987, 4294901760
        %5989 = vmatpush1.xpose.msra.mxu0 %v5988
        %v5990 = vand.u32 %v339, 4294901760
        %v5991 = vsub.f32 %v339, %v5990
        %v5992 = vand.u32 %v5991, 4294901760
        %v5993 = vsub.f32 %v5991, %v5992
        %v5994 = vand.u32 %v5993, 4294901760
        %5995 = vmatprep.subr.mxu0 %v5994
        %v5996 = vand.u32 %v338, 4294901760
        %v5997 = vsub.f32 %v338, %v5996
        %v5998 = vand.u32 %v5997, 4294901760
        %v5999 = vsub.f32 %v5997, %v5998
        %v6000 = vand.u32 %v5999, 4294901760
        %6001 = vmatpush1.xpose.msra.mxu0 %v6000
        %v6002 = vand.u32 %v323, 4294901760
        %v6003 = vsub.f32 %v323, %v6002
        %v6004 = vand.u32 %v6003, 4294901760
        %v6005 = vsub.f32 %v6003, %v6004
        %v6006 = vand.u32 %v6005, 4294901760
        %6007 = vmatprep.subr.mxu0 %v6006
        %v6008 = vand.u32 %v322, 4294901760
        %v6009 = vsub.f32 %v322, %v6008
        %v6010 = vand.u32 %v6009, 4294901760
        %v6011 = vsub.f32 %v6009, %v6010
        %v6012 = vand.u32 %v6011, 4294901760
        %6013 = vmatpush1.xpose.msra.mxu0 %v6012
        %v6014 = vand.u32 %v307, 4294901760
        %v6015 = vsub.f32 %v307, %v6014
        %v6016 = vand.u32 %v6015, 4294901760
        %v6017 = vsub.f32 %v6015, %v6016
        %v6018 = vand.u32 %v6017, 4294901760
        %6019 = vmatprep.subr.mxu0 %v6018
        %v6020 = vand.u32 %v306, 4294901760
        %v6021 = vsub.f32 %v306, %v6020
        %v6022 = vand.u32 %v6021, 4294901760
        %v6023 = vsub.f32 %v6021, %v6022
        %v6024 = vand.u32 %v6023, 4294901760
        %6025 = vmatpush1.xpose.msra.mxu0 %v6024
        %6026 = vmatprep.subr.mxu0 0.0
        %6027 = vmatpush2.xpose.msra.mxu0 0.0
        %6028 = vmatprep.subr.mxu0 0.0
        %6029 = vmatpush2.xpose.msra.mxu0 0.0
        %6030 = vmatprep.subr.mxu0 0.0
        %6031 = vmatpush2.xpose.msra.mxu0 0.0
        %6032 = vmatprep.subr.mxu0 0.0
        %6033 = vmatpush2.xpose.msra.mxu0 0.0
        %6034 = vmatprep.subr.mxu0 0.0
        %6035 = vmatpush2.xpose.msra.mxu0 0.0
        %6036 = vmatprep.subr.mxu0 0.0
        %6037 = vmatpush2.xpose.msra.mxu0 0.0
        %6038 = vmatprep.subr.mxu0 0.0
        %6039 = vmatpush2.xpose.msra.mxu0 0.0
        %6040 = vmatprep.subr.mxu0 0.0
        %6041 = vmatpush2.xpose.msra.mxu0 0.0
        %6042 = vmatprep.subr.mxu0 0.0
        %6043 = vmatpush2.xpose.msra.mxu0 0.0
        %6044 = vmatprep.subr.mxu0 0.0
        %6045 = vmatpush2.xpose.msra.mxu0 0.0
        %6046 = vmatprep.subr.mxu0 0.0
        %6047 = vmatpush2.xpose.msra.mxu0 0.0
        %6048 = vmatprep.subr.mxu0 0.0
        %6049 = vmatpush2.xpose.msra.mxu0 0.0
        %6050 = vmatprep.subr.mxu0 0.0
        %6051 = vmatpush2.xpose.msra.mxu0 0.0
        %6052 = vmatprep.subr.mxu0 0.0
        %6053 = vmatpush2.xpose.msra.mxu0 0.0
        %6054 = vmatprep.subr.mxu0 0.0
        %6055 = vmatpush2.xpose.msra.mxu0 0.0
        %6056 = vmatprep.subr.mxu0 0.0
        %6057 = vmatpush2.xpose.msra.mxu0 0.0
        %v6058 = vand.u32 %v291, 4294901760
        %6059 = vmatprep.mubr.f32.mxu0 %v6058
        %v6060 = vand.u32 %v290, 4294901760
        %6061 = vmatmul.mubr.f32.gmra.mxu0 %v6060
        %v6062 = vpop.f32.mrf.mxu0
        %v6063 = vadd.f32 %v5831, %v6062
        %v6064 = vpop.f32.mrf.mxu0
        %6065 = vdwg.mxu0
        %v6066 = vand.u32 %v547, 4294901760
        %v6067 = vsub.f32 %v547, %v6066
        %6068 = vmatprep.subr.mxu0 %v6067
        %v6069 = vand.u32 %v546, 4294901760
        %v6070 = vsub.f32 %v546, %v6069
        %6071 = vmatpush1.xpose.msra.mxu0 %v6070
        %v6072 = vand.u32 %v531, 4294901760
        %v6073 = vsub.f32 %v531, %v6072
        %6074 = vmatprep.subr.mxu0 %v6073
        %v6075 = vand.u32 %v530, 4294901760
        %v6076 = vsub.f32 %v530, %v6075
        %6077 = vmatpush1.xpose.msra.mxu0 %v6076
        %v6078 = vand.u32 %v515, 4294901760
        %v6079 = vsub.f32 %v515, %v6078
        %6080 = vmatprep.subr.mxu0 %v6079
        %v6081 = vand.u32 %v514, 4294901760
        %v6082 = vsub.f32 %v514, %v6081
        %6083 = vmatpush1.xpose.msra.mxu0 %v6082
        %v6084 = vand.u32 %v499, 4294901760
        %v6085 = vsub.f32 %v499, %v6084
        %6086 = vmatprep.subr.mxu0 %v6085
        %v6087 = vand.u32 %v498, 4294901760
        %v6088 = vsub.f32 %v498, %v6087
        %6089 = vmatpush1.xpose.msra.mxu0 %v6088
        %v6090 = vand.u32 %v483, 4294901760
        %v6091 = vsub.f32 %v483, %v6090
        %6092 = vmatprep.subr.mxu0 %v6091
        %v6093 = vand.u32 %v482, 4294901760
        %v6094 = vsub.f32 %v482, %v6093
        %6095 = vmatpush1.xpose.msra.mxu0 %v6094
        %v6096 = vand.u32 %v467, 4294901760
        %v6097 = vsub.f32 %v467, %v6096
        %6098 = vmatprep.subr.mxu0 %v6097
        %v6099 = vand.u32 %v466, 4294901760
        %v6100 = vsub.f32 %v466, %v6099
        %6101 = vmatpush1.xpose.msra.mxu0 %v6100
        %v6102 = vand.u32 %v451, 4294901760
        %v6103 = vsub.f32 %v451, %v6102
        %6104 = vmatprep.subr.mxu0 %v6103
        %v6105 = vand.u32 %v450, 4294901760
        %v6106 = vsub.f32 %v450, %v6105
        %6107 = vmatpush1.xpose.msra.mxu0 %v6106
        %v6108 = vand.u32 %v435, 4294901760
        %v6109 = vsub.f32 %v435, %v6108
        %6110 = vmatprep.subr.mxu0 %v6109
        %v6111 = vand.u32 %v434, 4294901760
        %v6112 = vsub.f32 %v434, %v6111
        %6113 = vmatpush1.xpose.msra.mxu0 %v6112
        %v6114 = vand.u32 %v419, 4294901760
        %v6115 = vsub.f32 %v419, %v6114
        %6116 = vmatprep.subr.mxu0 %v6115
        %v6117 = vand.u32 %v418, 4294901760
        %v6118 = vsub.f32 %v418, %v6117
        %6119 = vmatpush1.xpose.msra.mxu0 %v6118
        %v6120 = vand.u32 %v403, 4294901760
        %v6121 = vsub.f32 %v403, %v6120
        %6122 = vmatprep.subr.mxu0 %v6121
        %v6123 = vand.u32 %v402, 4294901760
        %v6124 = vsub.f32 %v402, %v6123
        %6125 = vmatpush1.xpose.msra.mxu0 %v6124
        %v6126 = vand.u32 %v387, 4294901760
        %v6127 = vsub.f32 %v387, %v6126
        %6128 = vmatprep.subr.mxu0 %v6127
        %v6129 = vand.u32 %v386, 4294901760
        %v6130 = vsub.f32 %v386, %v6129
        %6131 = vmatpush1.xpose.msra.mxu0 %v6130
        %v6132 = vand.u32 %v371, 4294901760
        %v6133 = vsub.f32 %v371, %v6132
        %6134 = vmatprep.subr.mxu0 %v6133
        %v6135 = vand.u32 %v370, 4294901760
        %v6136 = vsub.f32 %v370, %v6135
        %6137 = vmatpush1.xpose.msra.mxu0 %v6136
        %v6138 = vand.u32 %v355, 4294901760
        %v6139 = vsub.f32 %v355, %v6138
        %6140 = vmatprep.subr.mxu0 %v6139
        %v6141 = vand.u32 %v354, 4294901760
        %v6142 = vsub.f32 %v354, %v6141
        %6143 = vmatpush1.xpose.msra.mxu0 %v6142
        %v6144 = vand.u32 %v339, 4294901760
        %v6145 = vsub.f32 %v339, %v6144
        %6146 = vmatprep.subr.mxu0 %v6145
        %v6147 = vand.u32 %v338, 4294901760
        %v6148 = vsub.f32 %v338, %v6147
        %6149 = vmatpush1.xpose.msra.mxu0 %v6148
        %v6150 = vand.u32 %v323, 4294901760
        %v6151 = vsub.f32 %v323, %v6150
        %6152 = vmatprep.subr.mxu0 %v6151
        %v6153 = vand.u32 %v322, 4294901760
        %v6154 = vsub.f32 %v322, %v6153
        %6155 = vmatpush1.xpose.msra.mxu0 %v6154
        %v6156 = vand.u32 %v307, 4294901760
        %v6157 = vsub.f32 %v307, %v6156
        %6158 = vmatprep.subr.mxu0 %v6157
        %v6159 = vand.u32 %v306, 4294901760
        %v6160 = vsub.f32 %v306, %v6159
        %6161 = vmatpush1.xpose.msra.mxu0 %v6160
        %6162 = vmatprep.subr.mxu0 0.0
        %6163 = vmatpush2.xpose.msra.mxu0 0.0
        %6164 = vmatprep.subr.mxu0 0.0
        %6165 = vmatpush2.xpose.msra.mxu0 0.0
        %6166 = vmatprep.subr.mxu0 0.0
        %6167 = vmatpush2.xpose.msra.mxu0 0.0
        %6168 = vmatprep.subr.mxu0 0.0
        %6169 = vmatpush2.xpose.msra.mxu0 0.0
        %6170 = vmatprep.subr.mxu0 0.0
        %6171 = vmatpush2.xpose.msra.mxu0 0.0
        %6172 = vmatprep.subr.mxu0 0.0
        %6173 = vmatpush2.xpose.msra.mxu0 0.0
        %6174 = vmatprep.subr.mxu0 0.0
        %6175 = vmatpush2.xpose.msra.mxu0 0.0
        %6176 = vmatprep.subr.mxu0 0.0
        %6177 = vmatpush2.xpose.msra.mxu0 0.0
        %6178 = vmatprep.subr.mxu0 0.0
        %6179 = vmatpush2.xpose.msra.mxu0 0.0
        %6180 = vmatprep.subr.mxu0 0.0
        %6181 = vmatpush2.xpose.msra.mxu0 0.0
        %6182 = vmatprep.subr.mxu0 0.0
        %6183 = vmatpush2.xpose.msra.mxu0 0.0
        %6184 = vmatprep.subr.mxu0 0.0
        %6185 = vmatpush2.xpose.msra.mxu0 0.0
        %6186 = vmatprep.subr.mxu0 0.0
        %6187 = vmatpush2.xpose.msra.mxu0 0.0
        %6188 = vmatprep.subr.mxu0 0.0
        %6189 = vmatpush2.xpose.msra.mxu0 0.0
        %6190 = vmatprep.subr.mxu0 0.0
        %6191 = vmatpush2.xpose.msra.mxu0 0.0
        %6192 = vmatprep.subr.mxu0 0.0
        %6193 = vmatpush2.xpose.msra.mxu0 0.0
        %v6194 = vand.u32 %v291, 4294901760
        %v6195 = vsub.f32 %v291, %v6194
        %6196 = vmatprep.mubr.f32.mxu0 %v6195
        %v6197 = vand.u32 %v290, 4294901760
        %v6198 = vsub.f32 %v290, %v6197
        %6199 = vmatmul.mubr.f32.gmra.mxu0 %v6198
        %v6200 = vpop.f32.mrf.mxu0
        %v6201 = vadd.f32 %v6063, %v6200
        %v6202 = vpop.f32.mrf.mxu0
        %6203 = vdwg.mxu0
        %v6204 = vand.u32 %v547, 4294901760
        %6205 = vmatprep.subr.mxu0 %v6204
        %v6206 = vand.u32 %v546, 4294901760
        %6207 = vmatpush1.xpose.msra.mxu0 %v6206
        %v6208 = vand.u32 %v531, 4294901760
        %6209 = vmatprep.subr.mxu0 %v6208
        %v6210 = vand.u32 %v530, 4294901760
        %6211 = vmatpush1.xpose.msra.mxu0 %v6210
        %v6212 = vand.u32 %v515, 4294901760
        %6213 = vmatprep.subr.mxu0 %v6212
        %v6214 = vand.u32 %v514, 4294901760
        %6215 = vmatpush1.xpose.msra.mxu0 %v6214
        %v6216 = vand.u32 %v499, 4294901760
        %6217 = vmatprep.subr.mxu0 %v6216
        %v6218 = vand.u32 %v498, 4294901760
        %6219 = vmatpush1.xpose.msra.mxu0 %v6218
        %v6220 = vand.u32 %v483, 4294901760
        %6221 = vmatprep.subr.mxu0 %v6220
        %v6222 = vand.u32 %v482, 4294901760
        %6223 = vmatpush1.xpose.msra.mxu0 %v6222
        %v6224 = vand.u32 %v467, 4294901760
        %6225 = vmatprep.subr.mxu0 %v6224
        %v6226 = vand.u32 %v466, 4294901760
        %6227 = vmatpush1.xpose.msra.mxu0 %v6226
        %v6228 = vand.u32 %v451, 4294901760
        %6229 = vmatprep.subr.mxu0 %v6228
        %v6230 = vand.u32 %v450, 4294901760
        %6231 = vmatpush1.xpose.msra.mxu0 %v6230
        %v6232 = vand.u32 %v435, 4294901760
        %6233 = vmatprep.subr.mxu0 %v6232
        %v6234 = vand.u32 %v434, 4294901760
        %6235 = vmatpush1.xpose.msra.mxu0 %v6234
        %v6236 = vand.u32 %v419, 4294901760
        %6237 = vmatprep.subr.mxu0 %v6236
        %v6238 = vand.u32 %v418, 4294901760
        %6239 = vmatpush1.xpose.msra.mxu0 %v6238
        %v6240 = vand.u32 %v403, 4294901760
        %6241 = vmatprep.subr.mxu0 %v6240
        %v6242 = vand.u32 %v402, 4294901760
        %6243 = vmatpush1.xpose.msra.mxu0 %v6242
        %v6244 = vand.u32 %v387, 4294901760
        %6245 = vmatprep.subr.mxu0 %v6244
        %v6246 = vand.u32 %v386, 4294901760
        %6247 = vmatpush1.xpose.msra.mxu0 %v6246
        %v6248 = vand.u32 %v371, 4294901760
        %6249 = vmatprep.subr.mxu0 %v6248
        %v6250 = vand.u32 %v370, 4294901760
        %6251 = vmatpush1.xpose.msra.mxu0 %v6250
        %v6252 = vand.u32 %v355, 4294901760
        %6253 = vmatprep.subr.mxu0 %v6252
        %v6254 = vand.u32 %v354, 4294901760
        %6255 = vmatpush1.xpose.msra.mxu0 %v6254
        %v6256 = vand.u32 %v339, 4294901760
        %6257 = vmatprep.subr.mxu0 %v6256
        %v6258 = vand.u32 %v338, 4294901760
        %6259 = vmatpush1.xpose.msra.mxu0 %v6258
        %v6260 = vand.u32 %v323, 4294901760
        %6261 = vmatprep.subr.mxu0 %v6260
        %v6262 = vand.u32 %v322, 4294901760
        %6263 = vmatpush1.xpose.msra.mxu0 %v6262
        %v6264 = vand.u32 %v307, 4294901760
        %6265 = vmatprep.subr.mxu0 %v6264
        %v6266 = vand.u32 %v306, 4294901760
        %6267 = vmatpush1.xpose.msra.mxu0 %v6266
        %6268 = vmatprep.subr.mxu0 0.0
        %6269 = vmatpush2.xpose.msra.mxu0 0.0
        %6270 = vmatprep.subr.mxu0 0.0
        %6271 = vmatpush2.xpose.msra.mxu0 0.0
        %6272 = vmatprep.subr.mxu0 0.0
        %6273 = vmatpush2.xpose.msra.mxu0 0.0
        %6274 = vmatprep.subr.mxu0 0.0
        %6275 = vmatpush2.xpose.msra.mxu0 0.0
        %6276 = vmatprep.subr.mxu0 0.0
        %6277 = vmatpush2.xpose.msra.mxu0 0.0
        %6278 = vmatprep.subr.mxu0 0.0
        %6279 = vmatpush2.xpose.msra.mxu0 0.0
        %6280 = vmatprep.subr.mxu0 0.0
        %6281 = vmatpush2.xpose.msra.mxu0 0.0
        %6282 = vmatprep.subr.mxu0 0.0
        %6283 = vmatpush2.xpose.msra.mxu0 0.0
        %6284 = vmatprep.subr.mxu0 0.0
        %6285 = vmatpush2.xpose.msra.mxu0 0.0
        %6286 = vmatprep.subr.mxu0 0.0
        %6287 = vmatpush2.xpose.msra.mxu0 0.0
        %6288 = vmatprep.subr.mxu0 0.0
        %6289 = vmatpush2.xpose.msra.mxu0 0.0
        %6290 = vmatprep.subr.mxu0 0.0
        %6291 = vmatpush2.xpose.msra.mxu0 0.0
        %6292 = vmatprep.subr.mxu0 0.0
        %6293 = vmatpush2.xpose.msra.mxu0 0.0
        %6294 = vmatprep.subr.mxu0 0.0
        %6295 = vmatpush2.xpose.msra.mxu0 0.0
        %6296 = vmatprep.subr.mxu0 0.0
        %6297 = vmatpush2.xpose.msra.mxu0 0.0
        %6298 = vmatprep.subr.mxu0 0.0
        %6299 = vmatpush2.xpose.msra.mxu0 0.0
        %v6300 = vand.u32 %v291, 4294901760
        %v6301 = vsub.f32 %v291, %v6300
        %v6302 = vand.u32 %v6301, 4294901760
        %6303 = vmatprep.mubr.f32.mxu0 %v6302
        %v6304 = vand.u32 %v290, 4294901760
        %v6305 = vsub.f32 %v290, %v6304
        %v6306 = vand.u32 %v6305, 4294901760
        %6307 = vmatmul.mubr.f32.gmra.mxu0 %v6306
        %v6308 = vpop.f32.mrf.mxu0
        %v6309 = vadd.f32 %v6201, %v6308
        %v6310 = vpop.f32.mrf.mxu0
        %6311 = vdwg.mxu0
        %v6312 = vand.u32 %v547, 4294901760
        %v6313 = vsub.f32 %v547, %v6312
        %v6314 = vand.u32 %v6313, 4294901760
        %6315 = vmatprep.subr.mxu0 %v6314
        %v6316 = vand.u32 %v546, 4294901760
        %v6317 = vsub.f32 %v546, %v6316
        %v6318 = vand.u32 %v6317, 4294901760
        %6319 = vmatpush1.xpose.msra.mxu0 %v6318
        %v6320 = vand.u32 %v531, 4294901760
        %v6321 = vsub.f32 %v531, %v6320
        %v6322 = vand.u32 %v6321, 4294901760
        %6323 = vmatprep.subr.mxu0 %v6322
        %v6324 = vand.u32 %v530, 4294901760
        %v6325 = vsub.f32 %v530, %v6324
        %v6326 = vand.u32 %v6325, 4294901760
        %6327 = vmatpush1.xpose.msra.mxu0 %v6326
        %v6328 = vand.u32 %v515, 4294901760
        %v6329 = vsub.f32 %v515, %v6328
        %v6330 = vand.u32 %v6329, 4294901760
        %6331 = vmatprep.subr.mxu0 %v6330
        %v6332 = vand.u32 %v514, 4294901760
        %v6333 = vsub.f32 %v514, %v6332
        %v6334 = vand.u32 %v6333, 4294901760
        %6335 = vmatpush1.xpose.msra.mxu0 %v6334
        %v6336 = vand.u32 %v499, 4294901760
        %v6337 = vsub.f32 %v499, %v6336
        %v6338 = vand.u32 %v6337, 4294901760
        %6339 = vmatprep.subr.mxu0 %v6338
        %v6340 = vand.u32 %v498, 4294901760
        %v6341 = vsub.f32 %v498, %v6340
        %v6342 = vand.u32 %v6341, 4294901760
        %6343 = vmatpush1.xpose.msra.mxu0 %v6342
        %v6344 = vand.u32 %v483, 4294901760
        %v6345 = vsub.f32 %v483, %v6344
        %v6346 = vand.u32 %v6345, 4294901760
        %6347 = vmatprep.subr.mxu0 %v6346
        %v6348 = vand.u32 %v482, 4294901760
        %v6349 = vsub.f32 %v482, %v6348
        %v6350 = vand.u32 %v6349, 4294901760
        %6351 = vmatpush1.xpose.msra.mxu0 %v6350
        %v6352 = vand.u32 %v467, 4294901760
        %v6353 = vsub.f32 %v467, %v6352
        %v6354 = vand.u32 %v6353, 4294901760
        %6355 = vmatprep.subr.mxu0 %v6354
        %v6356 = vand.u32 %v466, 4294901760
        %v6357 = vsub.f32 %v466, %v6356
        %v6358 = vand.u32 %v6357, 4294901760
        %6359 = vmatpush1.xpose.msra.mxu0 %v6358
        %v6360 = vand.u32 %v451, 4294901760
        %v6361 = vsub.f32 %v451, %v6360
        %v6362 = vand.u32 %v6361, 4294901760
        %6363 = vmatprep.subr.mxu0 %v6362
        %v6364 = vand.u32 %v450, 4294901760
        %v6365 = vsub.f32 %v450, %v6364
        %v6366 = vand.u32 %v6365, 4294901760
        %6367 = vmatpush1.xpose.msra.mxu0 %v6366
        %v6368 = vand.u32 %v435, 4294901760
        %v6369 = vsub.f32 %v435, %v6368
        %v6370 = vand.u32 %v6369, 4294901760
        %6371 = vmatprep.subr.mxu0 %v6370
        %v6372 = vand.u32 %v434, 4294901760
        %v6373 = vsub.f32 %v434, %v6372
        %v6374 = vand.u32 %v6373, 4294901760
        %6375 = vmatpush1.xpose.msra.mxu0 %v6374
        %v6376 = vand.u32 %v419, 4294901760
        %v6377 = vsub.f32 %v419, %v6376
        %v6378 = vand.u32 %v6377, 4294901760
        %6379 = vmatprep.subr.mxu0 %v6378
        %v6380 = vand.u32 %v418, 4294901760
        %v6381 = vsub.f32 %v418, %v6380
        %v6382 = vand.u32 %v6381, 4294901760
        %6383 = vmatpush1.xpose.msra.mxu0 %v6382
        %v6384 = vand.u32 %v403, 4294901760
        %v6385 = vsub.f32 %v403, %v6384
        %v6386 = vand.u32 %v6385, 4294901760
        %6387 = vmatprep.subr.mxu0 %v6386
        %v6388 = vand.u32 %v402, 4294901760
        %v6389 = vsub.f32 %v402, %v6388
        %v6390 = vand.u32 %v6389, 4294901760
        %6391 = vmatpush1.xpose.msra.mxu0 %v6390
        %v6392 = vand.u32 %v387, 4294901760
        %v6393 = vsub.f32 %v387, %v6392
        %v6394 = vand.u32 %v6393, 4294901760
        %6395 = vmatprep.subr.mxu0 %v6394
        %v6396 = vand.u32 %v386, 4294901760
        %v6397 = vsub.f32 %v386, %v6396
        %v6398 = vand.u32 %v6397, 4294901760
        %6399 = vmatpush1.xpose.msra.mxu0 %v6398
        %v6400 = vand.u32 %v371, 4294901760
        %v6401 = vsub.f32 %v371, %v6400
        %v6402 = vand.u32 %v6401, 4294901760
        %6403 = vmatprep.subr.mxu0 %v6402
        %v6404 = vand.u32 %v370, 4294901760
        %v6405 = vsub.f32 %v370, %v6404
        %v6406 = vand.u32 %v6405, 4294901760
        %6407 = vmatpush1.xpose.msra.mxu0 %v6406
        %v6408 = vand.u32 %v355, 4294901760
        %v6409 = vsub.f32 %v355, %v6408
        %v6410 = vand.u32 %v6409, 4294901760
        %6411 = vmatprep.subr.mxu0 %v6410
        %v6412 = vand.u32 %v354, 4294901760
        %v6413 = vsub.f32 %v354, %v6412
        %v6414 = vand.u32 %v6413, 4294901760
        %6415 = vmatpush1.xpose.msra.mxu0 %v6414
        %v6416 = vand.u32 %v339, 4294901760
        %v6417 = vsub.f32 %v339, %v6416
        %v6418 = vand.u32 %v6417, 4294901760
        %6419 = vmatprep.subr.mxu0 %v6418
        %v6420 = vand.u32 %v338, 4294901760
        %v6421 = vsub.f32 %v338, %v6420
        %v6422 = vand.u32 %v6421, 4294901760
        %6423 = vmatpush1.xpose.msra.mxu0 %v6422
        %v6424 = vand.u32 %v323, 4294901760
        %v6425 = vsub.f32 %v323, %v6424
        %v6426 = vand.u32 %v6425, 4294901760
        %6427 = vmatprep.subr.mxu0 %v6426
        %v6428 = vand.u32 %v322, 4294901760
        %v6429 = vsub.f32 %v322, %v6428
        %v6430 = vand.u32 %v6429, 4294901760
        %6431 = vmatpush1.xpose.msra.mxu0 %v6430
        %v6432 = vand.u32 %v307, 4294901760
        %v6433 = vsub.f32 %v307, %v6432
        %v6434 = vand.u32 %v6433, 4294901760
        %6435 = vmatprep.subr.mxu0 %v6434
        %v6436 = vand.u32 %v306, 4294901760
        %v6437 = vsub.f32 %v306, %v6436
        %v6438 = vand.u32 %v6437, 4294901760
        %6439 = vmatpush1.xpose.msra.mxu0 %v6438
        %6440 = vmatprep.subr.mxu0 0.0
        %6441 = vmatpush2.xpose.msra.mxu0 0.0
        %6442 = vmatprep.subr.mxu0 0.0
        %6443 = vmatpush2.xpose.msra.mxu0 0.0
        %6444 = vmatprep.subr.mxu0 0.0
        %6445 = vmatpush2.xpose.msra.mxu0 0.0
        %6446 = vmatprep.subr.mxu0 0.0
        %6447 = vmatpush2.xpose.msra.mxu0 0.0
        %6448 = vmatprep.subr.mxu0 0.0
        %6449 = vmatpush2.xpose.msra.mxu0 0.0
        %6450 = vmatprep.subr.mxu0 0.0
        %6451 = vmatpush2.xpose.msra.mxu0 0.0
        %6452 = vmatprep.subr.mxu0 0.0
        %6453 = vmatpush2.xpose.msra.mxu0 0.0
        %6454 = vmatprep.subr.mxu0 0.0
        %6455 = vmatpush2.xpose.msra.mxu0 0.0
        %6456 = vmatprep.subr.mxu0 0.0
        %6457 = vmatpush2.xpose.msra.mxu0 0.0
        %6458 = vmatprep.subr.mxu0 0.0
        %6459 = vmatpush2.xpose.msra.mxu0 0.0
        %6460 = vmatprep.subr.mxu0 0.0
        %6461 = vmatpush2.xpose.msra.mxu0 0.0
        %6462 = vmatprep.subr.mxu0 0.0
        %6463 = vmatpush2.xpose.msra.mxu0 0.0
        %6464 = vmatprep.subr.mxu0 0.0
        %6465 = vmatpush2.xpose.msra.mxu0 0.0
        %6466 = vmatprep.subr.mxu0 0.0
        %6467 = vmatpush2.xpose.msra.mxu0 0.0
        %6468 = vmatprep.subr.mxu0 0.0
        %6469 = vmatpush2.xpose.msra.mxu0 0.0
        %6470 = vmatprep.subr.mxu0 0.0
        %6471 = vmatpush2.xpose.msra.mxu0 0.0
        %v6472 = vand.u32 %v291, 4294901760
        %6473 = vmatprep.mubr.f32.mxu0 %v6472
        %v6474 = vand.u32 %v290, 4294901760
        %6475 = vmatmul.mubr.f32.gmra.mxu0 %v6474
        %v6476 = vpop.f32.mrf.mxu0
        %v6477 = vadd.f32 %v6309, %v6476
        %v6478 = vpop.f32.mrf.mxu0
        %6479 = vdwg.mxu0
        %v6480 = vand.u32 %v547, 4294901760
        %6481 = vmatprep.subr.mxu0 %v6480
        %v6482 = vand.u32 %v546, 4294901760
        %6483 = vmatpush1.xpose.msra.mxu0 %v6482
        %v6484 = vand.u32 %v531, 4294901760
        %6485 = vmatprep.subr.mxu0 %v6484
        %v6486 = vand.u32 %v530, 4294901760
        %6487 = vmatpush1.xpose.msra.mxu0 %v6486
        %v6488 = vand.u32 %v515, 4294901760
        %6489 = vmatprep.subr.mxu0 %v6488
        %v6490 = vand.u32 %v514, 4294901760
        %6491 = vmatpush1.xpose.msra.mxu0 %v6490
        %v6492 = vand.u32 %v499, 4294901760
        %6493 = vmatprep.subr.mxu0 %v6492
        %v6494 = vand.u32 %v498, 4294901760
        %6495 = vmatpush1.xpose.msra.mxu0 %v6494
        %v6496 = vand.u32 %v483, 4294901760
        %6497 = vmatprep.subr.mxu0 %v6496
        %v6498 = vand.u32 %v482, 4294901760
        %6499 = vmatpush1.xpose.msra.mxu0 %v6498
        %v6500 = vand.u32 %v467, 4294901760
        %6501 = vmatprep.subr.mxu0 %v6500
        %v6502 = vand.u32 %v466, 4294901760
        %6503 = vmatpush1.xpose.msra.mxu0 %v6502
        %v6504 = vand.u32 %v451, 4294901760
        %6505 = vmatprep.subr.mxu0 %v6504
        %v6506 = vand.u32 %v450, 4294901760
        %6507 = vmatpush1.xpose.msra.mxu0 %v6506
        %v6508 = vand.u32 %v435, 4294901760
        %6509 = vmatprep.subr.mxu0 %v6508
        %v6510 = vand.u32 %v434, 4294901760
        %6511 = vmatpush1.xpose.msra.mxu0 %v6510
        %v6512 = vand.u32 %v419, 4294901760
        %6513 = vmatprep.subr.mxu0 %v6512
        %v6514 = vand.u32 %v418, 4294901760
        %6515 = vmatpush1.xpose.msra.mxu0 %v6514
        %v6516 = vand.u32 %v403, 4294901760
        %6517 = vmatprep.subr.mxu0 %v6516
        %v6518 = vand.u32 %v402, 4294901760
        %6519 = vmatpush1.xpose.msra.mxu0 %v6518
        %v6520 = vand.u32 %v387, 4294901760
        %6521 = vmatprep.subr.mxu0 %v6520
        %v6522 = vand.u32 %v386, 4294901760
        %6523 = vmatpush1.xpose.msra.mxu0 %v6522
        %v6524 = vand.u32 %v371, 4294901760
        %6525 = vmatprep.subr.mxu0 %v6524
        %v6526 = vand.u32 %v370, 4294901760
        %6527 = vmatpush1.xpose.msra.mxu0 %v6526
        %v6528 = vand.u32 %v355, 4294901760
        %6529 = vmatprep.subr.mxu0 %v6528
        %v6530 = vand.u32 %v354, 4294901760
        %6531 = vmatpush1.xpose.msra.mxu0 %v6530
        %v6532 = vand.u32 %v339, 4294901760
        %6533 = vmatprep.subr.mxu0 %v6532
        %v6534 = vand.u32 %v338, 4294901760
        %6535 = vmatpush1.xpose.msra.mxu0 %v6534
        %v6536 = vand.u32 %v323, 4294901760
        %6537 = vmatprep.subr.mxu0 %v6536
        %v6538 = vand.u32 %v322, 4294901760
        %6539 = vmatpush1.xpose.msra.mxu0 %v6538
        %v6540 = vand.u32 %v307, 4294901760
        %6541 = vmatprep.subr.mxu0 %v6540
        %v6542 = vand.u32 %v306, 4294901760
        %6543 = vmatpush1.xpose.msra.mxu0 %v6542
        %6544 = vmatprep.subr.mxu0 0.0
        %6545 = vmatpush2.xpose.msra.mxu0 0.0
        %6546 = vmatprep.subr.mxu0 0.0
        %6547 = vmatpush2.xpose.msra.mxu0 0.0
        %6548 = vmatprep.subr.mxu0 0.0
        %6549 = vmatpush2.xpose.msra.mxu0 0.0
        %6550 = vmatprep.subr.mxu0 0.0
        %6551 = vmatpush2.xpose.msra.mxu0 0.0
        %6552 = vmatprep.subr.mxu0 0.0
        %6553 = vmatpush2.xpose.msra.mxu0 0.0
        %6554 = vmatprep.subr.mxu0 0.0
        %6555 = vmatpush2.xpose.msra.mxu0 0.0
        %6556 = vmatprep.subr.mxu0 0.0
        %6557 = vmatpush2.xpose.msra.mxu0 0.0
        %6558 = vmatprep.subr.mxu0 0.0
        %6559 = vmatpush2.xpose.msra.mxu0 0.0
        %6560 = vmatprep.subr.mxu0 0.0
        %6561 = vmatpush2.xpose.msra.mxu0 0.0
        %6562 = vmatprep.subr.mxu0 0.0
        %6563 = vmatpush2.xpose.msra.mxu0 0.0
        %6564 = vmatprep.subr.mxu0 0.0
        %6565 = vmatpush2.xpose.msra.mxu0 0.0
        %6566 = vmatprep.subr.mxu0 0.0
        %6567 = vmatpush2.xpose.msra.mxu0 0.0
        %6568 = vmatprep.subr.mxu0 0.0
        %6569 = vmatpush2.xpose.msra.mxu0 0.0
        %6570 = vmatprep.subr.mxu0 0.0
        %6571 = vmatpush2.xpose.msra.mxu0 0.0
        %6572 = vmatprep.subr.mxu0 0.0
        %6573 = vmatpush2.xpose.msra.mxu0 0.0
        %6574 = vmatprep.subr.mxu0 0.0
        %6575 = vmatpush2.xpose.msra.mxu0 0.0
        %v6576 = vand.u32 %v291, 4294901760
        %6577 = vmatprep.mubr.f32.mxu0 %v6576
        %v6578 = vand.u32 %v290, 4294901760
        %6579 = vmatmul.mubr.f32.gmra.mxu0 %v6578
        %v6580 = vpop.f32.mrf.mxu0
        %v6581 = vadd.f32 %v6477, %v6580
        %v6582 = vpop.f32.mrf.mxu0
        %6583 = vdwg.mxu0
        %v6584 = vand.u32 %v549, 4294901760
        %6585 = vmatprep.subr.mxu0 %v6584
        %v6586 = vand.u32 %v548, 4294901760
        %6587 = vmatpush1.xpose.msra.mxu0 %v6586
        %v6588 = vand.u32 %v533, 4294901760
        %6589 = vmatprep.subr.mxu0 %v6588
        %v6590 = vand.u32 %v532, 4294901760
        %6591 = vmatpush1.xpose.msra.mxu0 %v6590
        %v6592 = vand.u32 %v517, 4294901760
        %6593 = vmatprep.subr.mxu0 %v6592
        %v6594 = vand.u32 %v516, 4294901760
        %6595 = vmatpush1.xpose.msra.mxu0 %v6594
        %v6596 = vand.u32 %v501, 4294901760
        %6597 = vmatprep.subr.mxu0 %v6596
        %v6598 = vand.u32 %v500, 4294901760
        %6599 = vmatpush1.xpose.msra.mxu0 %v6598
        %v6600 = vand.u32 %v485, 4294901760
        %6601 = vmatprep.subr.mxu0 %v6600
        %v6602 = vand.u32 %v484, 4294901760
        %6603 = vmatpush1.xpose.msra.mxu0 %v6602
        %v6604 = vand.u32 %v469, 4294901760
        %6605 = vmatprep.subr.mxu0 %v6604
        %v6606 = vand.u32 %v468, 4294901760
        %6607 = vmatpush1.xpose.msra.mxu0 %v6606
        %v6608 = vand.u32 %v453, 4294901760
        %6609 = vmatprep.subr.mxu0 %v6608
        %v6610 = vand.u32 %v452, 4294901760
        %6611 = vmatpush1.xpose.msra.mxu0 %v6610
        %v6612 = vand.u32 %v437, 4294901760
        %6613 = vmatprep.subr.mxu0 %v6612
        %v6614 = vand.u32 %v436, 4294901760
        %6615 = vmatpush1.xpose.msra.mxu0 %v6614
        %v6616 = vand.u32 %v421, 4294901760
        %6617 = vmatprep.subr.mxu0 %v6616
        %v6618 = vand.u32 %v420, 4294901760
        %6619 = vmatpush1.xpose.msra.mxu0 %v6618
        %v6620 = vand.u32 %v405, 4294901760
        %6621 = vmatprep.subr.mxu0 %v6620
        %v6622 = vand.u32 %v404, 4294901760
        %6623 = vmatpush1.xpose.msra.mxu0 %v6622
        %v6624 = vand.u32 %v389, 4294901760
        %6625 = vmatprep.subr.mxu0 %v6624
        %v6626 = vand.u32 %v388, 4294901760
        %6627 = vmatpush1.xpose.msra.mxu0 %v6626
        %v6628 = vand.u32 %v373, 4294901760
        %6629 = vmatprep.subr.mxu0 %v6628
        %v6630 = vand.u32 %v372, 4294901760
        %6631 = vmatpush1.xpose.msra.mxu0 %v6630
        %v6632 = vand.u32 %v357, 4294901760
        %6633 = vmatprep.subr.mxu0 %v6632
        %v6634 = vand.u32 %v356, 4294901760
        %6635 = vmatpush1.xpose.msra.mxu0 %v6634
        %v6636 = vand.u32 %v341, 4294901760
        %6637 = vmatprep.subr.mxu0 %v6636
        %v6638 = vand.u32 %v340, 4294901760
        %6639 = vmatpush1.xpose.msra.mxu0 %v6638
        %v6640 = vand.u32 %v325, 4294901760
        %6641 = vmatprep.subr.mxu0 %v6640
        %v6642 = vand.u32 %v324, 4294901760
        %6643 = vmatpush1.xpose.msra.mxu0 %v6642
        %v6644 = vand.u32 %v309, 4294901760
        %6645 = vmatprep.subr.mxu0 %v6644
        %v6646 = vand.u32 %v308, 4294901760
        %6647 = vmatpush1.xpose.msra.mxu0 %v6646
        %6648 = vmatprep.subr.mxu0 0.0
        %6649 = vmatpush2.xpose.msra.mxu0 0.0
        %6650 = vmatprep.subr.mxu0 0.0
        %6651 = vmatpush2.xpose.msra.mxu0 0.0
        %6652 = vmatprep.subr.mxu0 0.0
        %6653 = vmatpush2.xpose.msra.mxu0 0.0
        %6654 = vmatprep.subr.mxu0 0.0
        %6655 = vmatpush2.xpose.msra.mxu0 0.0
        %6656 = vmatprep.subr.mxu0 0.0
        %6657 = vmatpush2.xpose.msra.mxu0 0.0
        %6658 = vmatprep.subr.mxu0 0.0
        %6659 = vmatpush2.xpose.msra.mxu0 0.0
        %6660 = vmatprep.subr.mxu0 0.0
        %6661 = vmatpush2.xpose.msra.mxu0 0.0
        %6662 = vmatprep.subr.mxu0 0.0
        %6663 = vmatpush2.xpose.msra.mxu0 0.0
        %6664 = vmatprep.subr.mxu0 0.0
        %6665 = vmatpush2.xpose.msra.mxu0 0.0
        %6666 = vmatprep.subr.mxu0 0.0
        %6667 = vmatpush2.xpose.msra.mxu0 0.0
        %6668 = vmatprep.subr.mxu0 0.0
        %6669 = vmatpush2.xpose.msra.mxu0 0.0
        %6670 = vmatprep.subr.mxu0 0.0
        %6671 = vmatpush2.xpose.msra.mxu0 0.0
        %6672 = vmatprep.subr.mxu0 0.0
        %6673 = vmatpush2.xpose.msra.mxu0 0.0
        %6674 = vmatprep.subr.mxu0 0.0
        %6675 = vmatpush2.xpose.msra.mxu0 0.0
        %6676 = vmatprep.subr.mxu0 0.0
        %6677 = vmatpush2.xpose.msra.mxu0 0.0
        %6678 = vmatprep.subr.mxu0 0.0
        %6679 = vmatpush2.xpose.msra.mxu0 0.0
        %v6680 = vand.u32 %v293, 4294901760
        %v6681 = vsub.f32 %v293, %v6680
        %v6682 = vand.u32 %v6681, 4294901760
        %v6683 = vsub.f32 %v6681, %v6682
        %v6684 = vand.u32 %v6683, 4294901760
        %6685 = vmatprep.mubr.f32.mxu0 %v6684
        %v6686 = vand.u32 %v292, 4294901760
        %v6687 = vsub.f32 %v292, %v6686
        %v6688 = vand.u32 %v6687, 4294901760
        %v6689 = vsub.f32 %v6687, %v6688
        %v6690 = vand.u32 %v6689, 4294901760
        %6691 = vmatmul.mubr.f32.gmra.mxu0 %v6690
        %v6692 = vpop.f32.mrf.mxu0
        %v6693 = vadd.f32 %v6581, %v6692
        %v6694 = vpop.f32.mrf.mxu0
        %6695 = vdwg.mxu0
        %v6696 = vand.u32 %v549, 4294901760
        %v6697 = vsub.f32 %v549, %v6696
        %v6698 = vand.u32 %v6697, 4294901760
        %v6699 = vsub.f32 %v6697, %v6698
        %v6700 = vand.u32 %v6699, 4294901760
        %6701 = vmatprep.subr.mxu0 %v6700
        %v6702 = vand.u32 %v548, 4294901760
        %v6703 = vsub.f32 %v548, %v6702
        %v6704 = vand.u32 %v6703, 4294901760
        %v6705 = vsub.f32 %v6703, %v6704
        %v6706 = vand.u32 %v6705, 4294901760
        %6707 = vmatpush1.xpose.msra.mxu0 %v6706
        %v6708 = vand.u32 %v533, 4294901760
        %v6709 = vsub.f32 %v533, %v6708
        %v6710 = vand.u32 %v6709, 4294901760
        %v6711 = vsub.f32 %v6709, %v6710
        %v6712 = vand.u32 %v6711, 4294901760
        %6713 = vmatprep.subr.mxu0 %v6712
        %v6714 = vand.u32 %v532, 4294901760
        %v6715 = vsub.f32 %v532, %v6714
        %v6716 = vand.u32 %v6715, 4294901760
        %v6717 = vsub.f32 %v6715, %v6716
        %v6718 = vand.u32 %v6717, 4294901760
        %6719 = vmatpush1.xpose.msra.mxu0 %v6718
        %v6720 = vand.u32 %v517, 4294901760
        %v6721 = vsub.f32 %v517, %v6720
        %v6722 = vand.u32 %v6721, 4294901760
        %v6723 = vsub.f32 %v6721, %v6722
        %v6724 = vand.u32 %v6723, 4294901760
        %6725 = vmatprep.subr.mxu0 %v6724
        %v6726 = vand.u32 %v516, 4294901760
        %v6727 = vsub.f32 %v516, %v6726
        %v6728 = vand.u32 %v6727, 4294901760
        %v6729 = vsub.f32 %v6727, %v6728
        %v6730 = vand.u32 %v6729, 4294901760
        %6731 = vmatpush1.xpose.msra.mxu0 %v6730
        %v6732 = vand.u32 %v501, 4294901760
        %v6733 = vsub.f32 %v501, %v6732
        %v6734 = vand.u32 %v6733, 4294901760
        %v6735 = vsub.f32 %v6733, %v6734
        %v6736 = vand.u32 %v6735, 4294901760
        %6737 = vmatprep.subr.mxu0 %v6736
        %v6738 = vand.u32 %v500, 4294901760
        %v6739 = vsub.f32 %v500, %v6738
        %v6740 = vand.u32 %v6739, 4294901760
        %v6741 = vsub.f32 %v6739, %v6740
        %v6742 = vand.u32 %v6741, 4294901760
        %6743 = vmatpush1.xpose.msra.mxu0 %v6742
        %v6744 = vand.u32 %v485, 4294901760
        %v6745 = vsub.f32 %v485, %v6744
        %v6746 = vand.u32 %v6745, 4294901760
        %v6747 = vsub.f32 %v6745, %v6746
        %v6748 = vand.u32 %v6747, 4294901760
        %6749 = vmatprep.subr.mxu0 %v6748
        %v6750 = vand.u32 %v484, 4294901760
        %v6751 = vsub.f32 %v484, %v6750
        %v6752 = vand.u32 %v6751, 4294901760
        %v6753 = vsub.f32 %v6751, %v6752
        %v6754 = vand.u32 %v6753, 4294901760
        %6755 = vmatpush1.xpose.msra.mxu0 %v6754
        %v6756 = vand.u32 %v469, 4294901760
        %v6757 = vsub.f32 %v469, %v6756
        %v6758 = vand.u32 %v6757, 4294901760
        %v6759 = vsub.f32 %v6757, %v6758
        %v6760 = vand.u32 %v6759, 4294901760
        %6761 = vmatprep.subr.mxu0 %v6760
        %v6762 = vand.u32 %v468, 4294901760
        %v6763 = vsub.f32 %v468, %v6762
        %v6764 = vand.u32 %v6763, 4294901760
        %v6765 = vsub.f32 %v6763, %v6764
        %v6766 = vand.u32 %v6765, 4294901760
        %6767 = vmatpush1.xpose.msra.mxu0 %v6766
        %v6768 = vand.u32 %v453, 4294901760
        %v6769 = vsub.f32 %v453, %v6768
        %v6770 = vand.u32 %v6769, 4294901760
        %v6771 = vsub.f32 %v6769, %v6770
        %v6772 = vand.u32 %v6771, 4294901760
        %6773 = vmatprep.subr.mxu0 %v6772
        %v6774 = vand.u32 %v452, 4294901760
        %v6775 = vsub.f32 %v452, %v6774
        %v6776 = vand.u32 %v6775, 4294901760
        %v6777 = vsub.f32 %v6775, %v6776
        %v6778 = vand.u32 %v6777, 4294901760
        %6779 = vmatpush1.xpose.msra.mxu0 %v6778
        %v6780 = vand.u32 %v437, 4294901760
        %v6781 = vsub.f32 %v437, %v6780
        %v6782 = vand.u32 %v6781, 4294901760
        %v6783 = vsub.f32 %v6781, %v6782
        %v6784 = vand.u32 %v6783, 4294901760
        %6785 = vmatprep.subr.mxu0 %v6784
        %v6786 = vand.u32 %v436, 4294901760
        %v6787 = vsub.f32 %v436, %v6786
        %v6788 = vand.u32 %v6787, 4294901760
        %v6789 = vsub.f32 %v6787, %v6788
        %v6790 = vand.u32 %v6789, 4294901760
        %6791 = vmatpush1.xpose.msra.mxu0 %v6790
        %v6792 = vand.u32 %v421, 4294901760
        %v6793 = vsub.f32 %v421, %v6792
        %v6794 = vand.u32 %v6793, 4294901760
        %v6795 = vsub.f32 %v6793, %v6794
        %v6796 = vand.u32 %v6795, 4294901760
        %6797 = vmatprep.subr.mxu0 %v6796
        %v6798 = vand.u32 %v420, 4294901760
        %v6799 = vsub.f32 %v420, %v6798
        %v6800 = vand.u32 %v6799, 4294901760
        %v6801 = vsub.f32 %v6799, %v6800
        %v6802 = vand.u32 %v6801, 4294901760
        %6803 = vmatpush1.xpose.msra.mxu0 %v6802
        %v6804 = vand.u32 %v405, 4294901760
        %v6805 = vsub.f32 %v405, %v6804
        %v6806 = vand.u32 %v6805, 4294901760
        %v6807 = vsub.f32 %v6805, %v6806
        %v6808 = vand.u32 %v6807, 4294901760
        %6809 = vmatprep.subr.mxu0 %v6808
        %v6810 = vand.u32 %v404, 4294901760
        %v6811 = vsub.f32 %v404, %v6810
        %v6812 = vand.u32 %v6811, 4294901760
        %v6813 = vsub.f32 %v6811, %v6812
        %v6814 = vand.u32 %v6813, 4294901760
        %6815 = vmatpush1.xpose.msra.mxu0 %v6814
        %v6816 = vand.u32 %v389, 4294901760
        %v6817 = vsub.f32 %v389, %v6816
        %v6818 = vand.u32 %v6817, 4294901760
        %v6819 = vsub.f32 %v6817, %v6818
        %v6820 = vand.u32 %v6819, 4294901760
        %6821 = vmatprep.subr.mxu0 %v6820
        %v6822 = vand.u32 %v388, 4294901760
        %v6823 = vsub.f32 %v388, %v6822
        %v6824 = vand.u32 %v6823, 4294901760
        %v6825 = vsub.f32 %v6823, %v6824
        %v6826 = vand.u32 %v6825, 4294901760
        %6827 = vmatpush1.xpose.msra.mxu0 %v6826
        %v6828 = vand.u32 %v373, 4294901760
        %v6829 = vsub.f32 %v373, %v6828
        %v6830 = vand.u32 %v6829, 4294901760
        %v6831 = vsub.f32 %v6829, %v6830
        %v6832 = vand.u32 %v6831, 4294901760
        %6833 = vmatprep.subr.mxu0 %v6832
        %v6834 = vand.u32 %v372, 4294901760
        %v6835 = vsub.f32 %v372, %v6834
        %v6836 = vand.u32 %v6835, 4294901760
        %v6837 = vsub.f32 %v6835, %v6836
        %v6838 = vand.u32 %v6837, 4294901760
        %6839 = vmatpush1.xpose.msra.mxu0 %v6838
        %v6840 = vand.u32 %v357, 4294901760
        %v6841 = vsub.f32 %v357, %v6840
        %v6842 = vand.u32 %v6841, 4294901760
        %v6843 = vsub.f32 %v6841, %v6842
        %v6844 = vand.u32 %v6843, 4294901760
        %6845 = vmatprep.subr.mxu0 %v6844
        %v6846 = vand.u32 %v356, 4294901760
        %v6847 = vsub.f32 %v356, %v6846
        %v6848 = vand.u32 %v6847, 4294901760
        %v6849 = vsub.f32 %v6847, %v6848
        %v6850 = vand.u32 %v6849, 4294901760
        %6851 = vmatpush1.xpose.msra.mxu0 %v6850
        %v6852 = vand.u32 %v341, 4294901760
        %v6853 = vsub.f32 %v341, %v6852
        %v6854 = vand.u32 %v6853, 4294901760
        %v6855 = vsub.f32 %v6853, %v6854
        %v6856 = vand.u32 %v6855, 4294901760
        %6857 = vmatprep.subr.mxu0 %v6856
        %v6858 = vand.u32 %v340, 4294901760
        %v6859 = vsub.f32 %v340, %v6858
        %v6860 = vand.u32 %v6859, 4294901760
        %v6861 = vsub.f32 %v6859, %v6860
        %v6862 = vand.u32 %v6861, 4294901760
        %6863 = vmatpush1.xpose.msra.mxu0 %v6862
        %v6864 = vand.u32 %v325, 4294901760
        %v6865 = vsub.f32 %v325, %v6864
        %v6866 = vand.u32 %v6865, 4294901760
        %v6867 = vsub.f32 %v6865, %v6866
        %v6868 = vand.u32 %v6867, 4294901760
        %6869 = vmatprep.subr.mxu0 %v6868
        %v6870 = vand.u32 %v324, 4294901760
        %v6871 = vsub.f32 %v324, %v6870
        %v6872 = vand.u32 %v6871, 4294901760
        %v6873 = vsub.f32 %v6871, %v6872
        %v6874 = vand.u32 %v6873, 4294901760
        %6875 = vmatpush1.xpose.msra.mxu0 %v6874
        %v6876 = vand.u32 %v309, 4294901760
        %v6877 = vsub.f32 %v309, %v6876
        %v6878 = vand.u32 %v6877, 4294901760
        %v6879 = vsub.f32 %v6877, %v6878
        %v6880 = vand.u32 %v6879, 4294901760
        %6881 = vmatprep.subr.mxu0 %v6880
        %v6882 = vand.u32 %v308, 4294901760
        %v6883 = vsub.f32 %v308, %v6882
        %v6884 = vand.u32 %v6883, 4294901760
        %v6885 = vsub.f32 %v6883, %v6884
        %v6886 = vand.u32 %v6885, 4294901760
        %6887 = vmatpush1.xpose.msra.mxu0 %v6886
        %6888 = vmatprep.subr.mxu0 0.0
        %6889 = vmatpush2.xpose.msra.mxu0 0.0
        %6890 = vmatprep.subr.mxu0 0.0
        %6891 = vmatpush2.xpose.msra.mxu0 0.0
        %6892 = vmatprep.subr.mxu0 0.0
        %6893 = vmatpush2.xpose.msra.mxu0 0.0
        %6894 = vmatprep.subr.mxu0 0.0
        %6895 = vmatpush2.xpose.msra.mxu0 0.0
        %6896 = vmatprep.subr.mxu0 0.0
        %6897 = vmatpush2.xpose.msra.mxu0 0.0
        %6898 = vmatprep.subr.mxu0 0.0
        %6899 = vmatpush2.xpose.msra.mxu0 0.0
        %6900 = vmatprep.subr.mxu0 0.0
        %6901 = vmatpush2.xpose.msra.mxu0 0.0
        %6902 = vmatprep.subr.mxu0 0.0
        %6903 = vmatpush2.xpose.msra.mxu0 0.0
        %6904 = vmatprep.subr.mxu0 0.0
        %6905 = vmatpush2.xpose.msra.mxu0 0.0
        %6906 = vmatprep.subr.mxu0 0.0
        %6907 = vmatpush2.xpose.msra.mxu0 0.0
        %6908 = vmatprep.subr.mxu0 0.0
        %6909 = vmatpush2.xpose.msra.mxu0 0.0
        %6910 = vmatprep.subr.mxu0 0.0
        %6911 = vmatpush2.xpose.msra.mxu0 0.0
        %6912 = vmatprep.subr.mxu0 0.0
        %6913 = vmatpush2.xpose.msra.mxu0 0.0
        %6914 = vmatprep.subr.mxu0 0.0
        %6915 = vmatpush2.xpose.msra.mxu0 0.0
        %6916 = vmatprep.subr.mxu0 0.0
        %6917 = vmatpush2.xpose.msra.mxu0 0.0
        %6918 = vmatprep.subr.mxu0 0.0
        %6919 = vmatpush2.xpose.msra.mxu0 0.0
        %v6920 = vand.u32 %v293, 4294901760
        %6921 = vmatprep.mubr.f32.mxu0 %v6920
        %v6922 = vand.u32 %v292, 4294901760
        %6923 = vmatmul.mubr.f32.gmra.mxu0 %v6922
        %v6924 = vpop.f32.mrf.mxu0
        %v6925 = vadd.f32 %v6693, %v6924
        %v6926 = vpop.f32.mrf.mxu0
        %6927 = vdwg.mxu0
        %v6928 = vand.u32 %v549, 4294901760
        %v6929 = vsub.f32 %v549, %v6928
        %6930 = vmatprep.subr.mxu0 %v6929
        %v6931 = vand.u32 %v548, 4294901760
        %v6932 = vsub.f32 %v548, %v6931
        %6933 = vmatpush1.xpose.msra.mxu0 %v6932
        %v6934 = vand.u32 %v533, 4294901760
        %v6935 = vsub.f32 %v533, %v6934
        %6936 = vmatprep.subr.mxu0 %v6935
        %v6937 = vand.u32 %v532, 4294901760
        %v6938 = vsub.f32 %v532, %v6937
        %6939 = vmatpush1.xpose.msra.mxu0 %v6938
        %v6940 = vand.u32 %v517, 4294901760
        %v6941 = vsub.f32 %v517, %v6940
        %6942 = vmatprep.subr.mxu0 %v6941
        %v6943 = vand.u32 %v516, 4294901760
        %v6944 = vsub.f32 %v516, %v6943
        %6945 = vmatpush1.xpose.msra.mxu0 %v6944
        %v6946 = vand.u32 %v501, 4294901760
        %v6947 = vsub.f32 %v501, %v6946
        %6948 = vmatprep.subr.mxu0 %v6947
        %v6949 = vand.u32 %v500, 4294901760
        %v6950 = vsub.f32 %v500, %v6949
        %6951 = vmatpush1.xpose.msra.mxu0 %v6950
        %v6952 = vand.u32 %v485, 4294901760
        %v6953 = vsub.f32 %v485, %v6952
        %6954 = vmatprep.subr.mxu0 %v6953
        %v6955 = vand.u32 %v484, 4294901760
        %v6956 = vsub.f32 %v484, %v6955
        %6957 = vmatpush1.xpose.msra.mxu0 %v6956
        %v6958 = vand.u32 %v469, 4294901760
        %v6959 = vsub.f32 %v469, %v6958
        %6960 = vmatprep.subr.mxu0 %v6959
        %v6961 = vand.u32 %v468, 4294901760
        %v6962 = vsub.f32 %v468, %v6961
        %6963 = vmatpush1.xpose.msra.mxu0 %v6962
        %v6964 = vand.u32 %v453, 4294901760
        %v6965 = vsub.f32 %v453, %v6964
        %6966 = vmatprep.subr.mxu0 %v6965
        %v6967 = vand.u32 %v452, 4294901760
        %v6968 = vsub.f32 %v452, %v6967
        %6969 = vmatpush1.xpose.msra.mxu0 %v6968
        %v6970 = vand.u32 %v437, 4294901760
        %v6971 = vsub.f32 %v437, %v6970
        %6972 = vmatprep.subr.mxu0 %v6971
        %v6973 = vand.u32 %v436, 4294901760
        %v6974 = vsub.f32 %v436, %v6973
        %6975 = vmatpush1.xpose.msra.mxu0 %v6974
        %v6976 = vand.u32 %v421, 4294901760
        %v6977 = vsub.f32 %v421, %v6976
        %6978 = vmatprep.subr.mxu0 %v6977
        %v6979 = vand.u32 %v420, 4294901760
        %v6980 = vsub.f32 %v420, %v6979
        %6981 = vmatpush1.xpose.msra.mxu0 %v6980
        %v6982 = vand.u32 %v405, 4294901760
        %v6983 = vsub.f32 %v405, %v6982
        %6984 = vmatprep.subr.mxu0 %v6983
        %v6985 = vand.u32 %v404, 4294901760
        %v6986 = vsub.f32 %v404, %v6985
        %6987 = vmatpush1.xpose.msra.mxu0 %v6986
        %v6988 = vand.u32 %v389, 4294901760
        %v6989 = vsub.f32 %v389, %v6988
        %6990 = vmatprep.subr.mxu0 %v6989
        %v6991 = vand.u32 %v388, 4294901760
        %v6992 = vsub.f32 %v388, %v6991
        %6993 = vmatpush1.xpose.msra.mxu0 %v6992
        %v6994 = vand.u32 %v373, 4294901760
        %v6995 = vsub.f32 %v373, %v6994
        %6996 = vmatprep.subr.mxu0 %v6995
        %v6997 = vand.u32 %v372, 4294901760
        %v6998 = vsub.f32 %v372, %v6997
        %6999 = vmatpush1.xpose.msra.mxu0 %v6998
        %v7000 = vand.u32 %v357, 4294901760
        %v7001 = vsub.f32 %v357, %v7000
        %7002 = vmatprep.subr.mxu0 %v7001
        %v7003 = vand.u32 %v356, 4294901760
        %v7004 = vsub.f32 %v356, %v7003
        %7005 = vmatpush1.xpose.msra.mxu0 %v7004
        %v7006 = vand.u32 %v341, 4294901760
        %v7007 = vsub.f32 %v341, %v7006
        %7008 = vmatprep.subr.mxu0 %v7007
        %v7009 = vand.u32 %v340, 4294901760
        %v7010 = vsub.f32 %v340, %v7009
        %7011 = vmatpush1.xpose.msra.mxu0 %v7010
        %v7012 = vand.u32 %v325, 4294901760
        %v7013 = vsub.f32 %v325, %v7012
        %7014 = vmatprep.subr.mxu0 %v7013
        %v7015 = vand.u32 %v324, 4294901760
        %v7016 = vsub.f32 %v324, %v7015
        %7017 = vmatpush1.xpose.msra.mxu0 %v7016
        %v7018 = vand.u32 %v309, 4294901760
        %v7019 = vsub.f32 %v309, %v7018
        %7020 = vmatprep.subr.mxu0 %v7019
        %v7021 = vand.u32 %v308, 4294901760
        %v7022 = vsub.f32 %v308, %v7021
        %7023 = vmatpush1.xpose.msra.mxu0 %v7022
        %7024 = vmatprep.subr.mxu0 0.0
        %7025 = vmatpush2.xpose.msra.mxu0 0.0
        %7026 = vmatprep.subr.mxu0 0.0
        %7027 = vmatpush2.xpose.msra.mxu0 0.0
        %7028 = vmatprep.subr.mxu0 0.0
        %7029 = vmatpush2.xpose.msra.mxu0 0.0
        %7030 = vmatprep.subr.mxu0 0.0
        %7031 = vmatpush2.xpose.msra.mxu0 0.0
        %7032 = vmatprep.subr.mxu0 0.0
        %7033 = vmatpush2.xpose.msra.mxu0 0.0
        %7034 = vmatprep.subr.mxu0 0.0
        %7035 = vmatpush2.xpose.msra.mxu0 0.0
        %7036 = vmatprep.subr.mxu0 0.0
        %7037 = vmatpush2.xpose.msra.mxu0 0.0
        %7038 = vmatprep.subr.mxu0 0.0
        %7039 = vmatpush2.xpose.msra.mxu0 0.0
        %7040 = vmatprep.subr.mxu0 0.0
        %7041 = vmatpush2.xpose.msra.mxu0 0.0
        %7042 = vmatprep.subr.mxu0 0.0
        %7043 = vmatpush2.xpose.msra.mxu0 0.0
        %7044 = vmatprep.subr.mxu0 0.0
        %7045 = vmatpush2.xpose.msra.mxu0 0.0
        %7046 = vmatprep.subr.mxu0 0.0
        %7047 = vmatpush2.xpose.msra.mxu0 0.0
        %7048 = vmatprep.subr.mxu0 0.0
        %7049 = vmatpush2.xpose.msra.mxu0 0.0
        %7050 = vmatprep.subr.mxu0 0.0
        %7051 = vmatpush2.xpose.msra.mxu0 0.0
        %7052 = vmatprep.subr.mxu0 0.0
        %7053 = vmatpush2.xpose.msra.mxu0 0.0
        %7054 = vmatprep.subr.mxu0 0.0
        %7055 = vmatpush2.xpose.msra.mxu0 0.0
        %v7056 = vand.u32 %v293, 4294901760
        %v7057 = vsub.f32 %v293, %v7056
        %7058 = vmatprep.mubr.f32.mxu0 %v7057
        %v7059 = vand.u32 %v292, 4294901760
        %v7060 = vsub.f32 %v292, %v7059
        %7061 = vmatmul.mubr.f32.gmra.mxu0 %v7060
        %v7062 = vpop.f32.mrf.mxu0
        %v7063 = vadd.f32 %v6925, %v7062
        %v7064 = vpop.f32.mrf.mxu0
        %7065 = vdwg.mxu0
        %v7066 = vand.u32 %v549, 4294901760
        %7067 = vmatprep.subr.mxu0 %v7066
        %v7068 = vand.u32 %v548, 4294901760
        %7069 = vmatpush1.xpose.msra.mxu0 %v7068
        %v7070 = vand.u32 %v533, 4294901760
        %7071 = vmatprep.subr.mxu0 %v7070
        %v7072 = vand.u32 %v532, 4294901760
        %7073 = vmatpush1.xpose.msra.mxu0 %v7072
        %v7074 = vand.u32 %v517, 4294901760
        %7075 = vmatprep.subr.mxu0 %v7074
        %v7076 = vand.u32 %v516, 4294901760
        %7077 = vmatpush1.xpose.msra.mxu0 %v7076
        %v7078 = vand.u32 %v501, 4294901760
        %7079 = vmatprep.subr.mxu0 %v7078
        %v7080 = vand.u32 %v500, 4294901760
        %7081 = vmatpush1.xpose.msra.mxu0 %v7080
        %v7082 = vand.u32 %v485, 4294901760
        %7083 = vmatprep.subr.mxu0 %v7082
        %v7084 = vand.u32 %v484, 4294901760
        %7085 = vmatpush1.xpose.msra.mxu0 %v7084
        %v7086 = vand.u32 %v469, 4294901760
        %7087 = vmatprep.subr.mxu0 %v7086
        %v7088 = vand.u32 %v468, 4294901760
        %7089 = vmatpush1.xpose.msra.mxu0 %v7088
        %v7090 = vand.u32 %v453, 4294901760
        %7091 = vmatprep.subr.mxu0 %v7090
        %v7092 = vand.u32 %v452, 4294901760
        %7093 = vmatpush1.xpose.msra.mxu0 %v7092
        %v7094 = vand.u32 %v437, 4294901760
        %7095 = vmatprep.subr.mxu0 %v7094
        %v7096 = vand.u32 %v436, 4294901760
        %7097 = vmatpush1.xpose.msra.mxu0 %v7096
        %v7098 = vand.u32 %v421, 4294901760
        %7099 = vmatprep.subr.mxu0 %v7098
        %v7100 = vand.u32 %v420, 4294901760
        %7101 = vmatpush1.xpose.msra.mxu0 %v7100
        %v7102 = vand.u32 %v405, 4294901760
        %7103 = vmatprep.subr.mxu0 %v7102
        %v7104 = vand.u32 %v404, 4294901760
        %7105 = vmatpush1.xpose.msra.mxu0 %v7104
        %v7106 = vand.u32 %v389, 4294901760
        %7107 = vmatprep.subr.mxu0 %v7106
        %v7108 = vand.u32 %v388, 4294901760
        %7109 = vmatpush1.xpose.msra.mxu0 %v7108
        %v7110 = vand.u32 %v373, 4294901760
        %7111 = vmatprep.subr.mxu0 %v7110
        %v7112 = vand.u32 %v372, 4294901760
        %7113 = vmatpush1.xpose.msra.mxu0 %v7112
        %v7114 = vand.u32 %v357, 4294901760
        %7115 = vmatprep.subr.mxu0 %v7114
        %v7116 = vand.u32 %v356, 4294901760
        %7117 = vmatpush1.xpose.msra.mxu0 %v7116
        %v7118 = vand.u32 %v341, 4294901760
        %7119 = vmatprep.subr.mxu0 %v7118
        %v7120 = vand.u32 %v340, 4294901760
        %7121 = vmatpush1.xpose.msra.mxu0 %v7120
        %v7122 = vand.u32 %v325, 4294901760
        %7123 = vmatprep.subr.mxu0 %v7122
        %v7124 = vand.u32 %v324, 4294901760
        %7125 = vmatpush1.xpose.msra.mxu0 %v7124
        %v7126 = vand.u32 %v309, 4294901760
        %7127 = vmatprep.subr.mxu0 %v7126
        %v7128 = vand.u32 %v308, 4294901760
        %7129 = vmatpush1.xpose.msra.mxu0 %v7128
        %7130 = vmatprep.subr.mxu0 0.0
        %7131 = vmatpush2.xpose.msra.mxu0 0.0
        %7132 = vmatprep.subr.mxu0 0.0
        %7133 = vmatpush2.xpose.msra.mxu0 0.0
        %7134 = vmatprep.subr.mxu0 0.0
        %7135 = vmatpush2.xpose.msra.mxu0 0.0
        %7136 = vmatprep.subr.mxu0 0.0
        %7137 = vmatpush2.xpose.msra.mxu0 0.0
        %7138 = vmatprep.subr.mxu0 0.0
        %7139 = vmatpush2.xpose.msra.mxu0 0.0
        %7140 = vmatprep.subr.mxu0 0.0
        %7141 = vmatpush2.xpose.msra.mxu0 0.0
        %7142 = vmatprep.subr.mxu0 0.0
        %7143 = vmatpush2.xpose.msra.mxu0 0.0
        %7144 = vmatprep.subr.mxu0 0.0
        %7145 = vmatpush2.xpose.msra.mxu0 0.0
        %7146 = vmatprep.subr.mxu0 0.0
        %7147 = vmatpush2.xpose.msra.mxu0 0.0
        %7148 = vmatprep.subr.mxu0 0.0
        %7149 = vmatpush2.xpose.msra.mxu0 0.0
        %7150 = vmatprep.subr.mxu0 0.0
        %7151 = vmatpush2.xpose.msra.mxu0 0.0
        %7152 = vmatprep.subr.mxu0 0.0
        %7153 = vmatpush2.xpose.msra.mxu0 0.0
        %7154 = vmatprep.subr.mxu0 0.0
        %7155 = vmatpush2.xpose.msra.mxu0 0.0
        %7156 = vmatprep.subr.mxu0 0.0
        %7157 = vmatpush2.xpose.msra.mxu0 0.0
        %7158 = vmatprep.subr.mxu0 0.0
        %7159 = vmatpush2.xpose.msra.mxu0 0.0
        %7160 = vmatprep.subr.mxu0 0.0
        %7161 = vmatpush2.xpose.msra.mxu0 0.0
        %v7162 = vand.u32 %v293, 4294901760
        %v7163 = vsub.f32 %v293, %v7162
        %v7164 = vand.u32 %v7163, 4294901760
        %7165 = vmatprep.mubr.f32.mxu0 %v7164
        %v7166 = vand.u32 %v292, 4294901760
        %v7167 = vsub.f32 %v292, %v7166
        %v7168 = vand.u32 %v7167, 4294901760
        %7169 = vmatmul.mubr.f32.gmra.mxu0 %v7168
        %v7170 = vpop.f32.mrf.mxu0
        %v7171 = vadd.f32 %v7063, %v7170
        %v7172 = vpop.f32.mrf.mxu0
        %7173 = vdwg.mxu0
        %v7174 = vand.u32 %v549, 4294901760
        %v7175 = vsub.f32 %v549, %v7174
        %v7176 = vand.u32 %v7175, 4294901760
        %7177 = vmatprep.subr.mxu0 %v7176
        %v7178 = vand.u32 %v548, 4294901760
        %v7179 = vsub.f32 %v548, %v7178
        %v7180 = vand.u32 %v7179, 4294901760
        %7181 = vmatpush1.xpose.msra.mxu0 %v7180
        %v7182 = vand.u32 %v533, 4294901760
        %v7183 = vsub.f32 %v533, %v7182
        %v7184 = vand.u32 %v7183, 4294901760
        %7185 = vmatprep.subr.mxu0 %v7184
        %v7186 = vand.u32 %v532, 4294901760
        %v7187 = vsub.f32 %v532, %v7186
        %v7188 = vand.u32 %v7187, 4294901760
        %7189 = vmatpush1.xpose.msra.mxu0 %v7188
        %v7190 = vand.u32 %v517, 4294901760
        %v7191 = vsub.f32 %v517, %v7190
        %v7192 = vand.u32 %v7191, 4294901760
        %7193 = vmatprep.subr.mxu0 %v7192
        %v7194 = vand.u32 %v516, 4294901760
        %v7195 = vsub.f32 %v516, %v7194
        %v7196 = vand.u32 %v7195, 4294901760
        %7197 = vmatpush1.xpose.msra.mxu0 %v7196
        %v7198 = vand.u32 %v501, 4294901760
        %v7199 = vsub.f32 %v501, %v7198
        %v7200 = vand.u32 %v7199, 4294901760
        %7201 = vmatprep.subr.mxu0 %v7200
        %v7202 = vand.u32 %v500, 4294901760
        %v7203 = vsub.f32 %v500, %v7202
        %v7204 = vand.u32 %v7203, 4294901760
        %7205 = vmatpush1.xpose.msra.mxu0 %v7204
        %v7206 = vand.u32 %v485, 4294901760
        %v7207 = vsub.f32 %v485, %v7206
        %v7208 = vand.u32 %v7207, 4294901760
        %7209 = vmatprep.subr.mxu0 %v7208
        %v7210 = vand.u32 %v484, 4294901760
        %v7211 = vsub.f32 %v484, %v7210
        %v7212 = vand.u32 %v7211, 4294901760
        %7213 = vmatpush1.xpose.msra.mxu0 %v7212
        %v7214 = vand.u32 %v469, 4294901760
        %v7215 = vsub.f32 %v469, %v7214
        %v7216 = vand.u32 %v7215, 4294901760
        %7217 = vmatprep.subr.mxu0 %v7216
        %v7218 = vand.u32 %v468, 4294901760
        %v7219 = vsub.f32 %v468, %v7218
        %v7220 = vand.u32 %v7219, 4294901760
        %7221 = vmatpush1.xpose.msra.mxu0 %v7220
        %v7222 = vand.u32 %v453, 4294901760
        %v7223 = vsub.f32 %v453, %v7222
        %v7224 = vand.u32 %v7223, 4294901760
        %7225 = vmatprep.subr.mxu0 %v7224
        %v7226 = vand.u32 %v452, 4294901760
        %v7227 = vsub.f32 %v452, %v7226
        %v7228 = vand.u32 %v7227, 4294901760
        %7229 = vmatpush1.xpose.msra.mxu0 %v7228
        %v7230 = vand.u32 %v437, 4294901760
        %v7231 = vsub.f32 %v437, %v7230
        %v7232 = vand.u32 %v7231, 4294901760
        %7233 = vmatprep.subr.mxu0 %v7232
        %v7234 = vand.u32 %v436, 4294901760
        %v7235 = vsub.f32 %v436, %v7234
        %v7236 = vand.u32 %v7235, 4294901760
        %7237 = vmatpush1.xpose.msra.mxu0 %v7236
        %v7238 = vand.u32 %v421, 4294901760
        %v7239 = vsub.f32 %v421, %v7238
        %v7240 = vand.u32 %v7239, 4294901760
        %7241 = vmatprep.subr.mxu0 %v7240
        %v7242 = vand.u32 %v420, 4294901760
        %v7243 = vsub.f32 %v420, %v7242
        %v7244 = vand.u32 %v7243, 4294901760
        %7245 = vmatpush1.xpose.msra.mxu0 %v7244
        %v7246 = vand.u32 %v405, 4294901760
        %v7247 = vsub.f32 %v405, %v7246
        %v7248 = vand.u32 %v7247, 4294901760
        %7249 = vmatprep.subr.mxu0 %v7248
        %v7250 = vand.u32 %v404, 4294901760
        %v7251 = vsub.f32 %v404, %v7250
        %v7252 = vand.u32 %v7251, 4294901760
        %7253 = vmatpush1.xpose.msra.mxu0 %v7252
        %v7254 = vand.u32 %v389, 4294901760
        %v7255 = vsub.f32 %v389, %v7254
        %v7256 = vand.u32 %v7255, 4294901760
        %7257 = vmatprep.subr.mxu0 %v7256
        %v7258 = vand.u32 %v388, 4294901760
        %v7259 = vsub.f32 %v388, %v7258
        %v7260 = vand.u32 %v7259, 4294901760
        %7261 = vmatpush1.xpose.msra.mxu0 %v7260
        %v7262 = vand.u32 %v373, 4294901760
        %v7263 = vsub.f32 %v373, %v7262
        %v7264 = vand.u32 %v7263, 4294901760
        %7265 = vmatprep.subr.mxu0 %v7264
        %v7266 = vand.u32 %v372, 4294901760
        %v7267 = vsub.f32 %v372, %v7266
        %v7268 = vand.u32 %v7267, 4294901760
        %7269 = vmatpush1.xpose.msra.mxu0 %v7268
        %v7270 = vand.u32 %v357, 4294901760
        %v7271 = vsub.f32 %v357, %v7270
        %v7272 = vand.u32 %v7271, 4294901760
        %7273 = vmatprep.subr.mxu0 %v7272
        %v7274 = vand.u32 %v356, 4294901760
        %v7275 = vsub.f32 %v356, %v7274
        %v7276 = vand.u32 %v7275, 4294901760
        %7277 = vmatpush1.xpose.msra.mxu0 %v7276
        %v7278 = vand.u32 %v341, 4294901760
        %v7279 = vsub.f32 %v341, %v7278
        %v7280 = vand.u32 %v7279, 4294901760
        %7281 = vmatprep.subr.mxu0 %v7280
        %v7282 = vand.u32 %v340, 4294901760
        %v7283 = vsub.f32 %v340, %v7282
        %v7284 = vand.u32 %v7283, 4294901760
        %7285 = vmatpush1.xpose.msra.mxu0 %v7284
        %v7286 = vand.u32 %v325, 4294901760
        %v7287 = vsub.f32 %v325, %v7286
        %v7288 = vand.u32 %v7287, 4294901760
        %7289 = vmatprep.subr.mxu0 %v7288
        %v7290 = vand.u32 %v324, 4294901760
        %v7291 = vsub.f32 %v324, %v7290
        %v7292 = vand.u32 %v7291, 4294901760
        %7293 = vmatpush1.xpose.msra.mxu0 %v7292
        %v7294 = vand.u32 %v309, 4294901760
        %v7295 = vsub.f32 %v309, %v7294
        %v7296 = vand.u32 %v7295, 4294901760
        %7297 = vmatprep.subr.mxu0 %v7296
        %v7298 = vand.u32 %v308, 4294901760
        %v7299 = vsub.f32 %v308, %v7298
        %v7300 = vand.u32 %v7299, 4294901760
        %7301 = vmatpush1.xpose.msra.mxu0 %v7300
        %7302 = vmatprep.subr.mxu0 0.0
        %7303 = vmatpush2.xpose.msra.mxu0 0.0
        %7304 = vmatprep.subr.mxu0 0.0
        %7305 = vmatpush2.xpose.msra.mxu0 0.0
        %7306 = vmatprep.subr.mxu0 0.0
        %7307 = vmatpush2.xpose.msra.mxu0 0.0
        %7308 = vmatprep.subr.mxu0 0.0
        %7309 = vmatpush2.xpose.msra.mxu0 0.0
        %7310 = vmatprep.subr.mxu0 0.0
        %7311 = vmatpush2.xpose.msra.mxu0 0.0
        %7312 = vmatprep.subr.mxu0 0.0
        %7313 = vmatpush2.xpose.msra.mxu0 0.0
        %7314 = vmatprep.subr.mxu0 0.0
        %7315 = vmatpush2.xpose.msra.mxu0 0.0
        %7316 = vmatprep.subr.mxu0 0.0
        %7317 = vmatpush2.xpose.msra.mxu0 0.0
        %7318 = vmatprep.subr.mxu0 0.0
        %7319 = vmatpush2.xpose.msra.mxu0 0.0
        %7320 = vmatprep.subr.mxu0 0.0
        %7321 = vmatpush2.xpose.msra.mxu0 0.0
        %7322 = vmatprep.subr.mxu0 0.0
        %7323 = vmatpush2.xpose.msra.mxu0 0.0
        %7324 = vmatprep.subr.mxu0 0.0
        %7325 = vmatpush2.xpose.msra.mxu0 0.0
        %7326 = vmatprep.subr.mxu0 0.0
        %7327 = vmatpush2.xpose.msra.mxu0 0.0
        %7328 = vmatprep.subr.mxu0 0.0
        %7329 = vmatpush2.xpose.msra.mxu0 0.0
        %7330 = vmatprep.subr.mxu0 0.0
        %7331 = vmatpush2.xpose.msra.mxu0 0.0
        %7332 = vmatprep.subr.mxu0 0.0
        %7333 = vmatpush2.xpose.msra.mxu0 0.0
        %v7334 = vand.u32 %v293, 4294901760
        %7335 = vmatprep.mubr.f32.mxu0 %v7334
        %v7336 = vand.u32 %v292, 4294901760
        %7337 = vmatmul.mubr.f32.gmra.mxu0 %v7336
        %v7338 = vpop.f32.mrf.mxu0
        %v7339 = vadd.f32 %v7171, %v7338
        %v7340 = vpop.f32.mrf.mxu0
        %7341 = vdwg.mxu0
        %v7342 = vand.u32 %v549, 4294901760
        %7343 = vmatprep.subr.mxu0 %v7342
        %v7344 = vand.u32 %v548, 4294901760
        %7345 = vmatpush1.xpose.msra.mxu0 %v7344
        %v7346 = vand.u32 %v533, 4294901760
        %7347 = vmatprep.subr.mxu0 %v7346
        %v7348 = vand.u32 %v532, 4294901760
        %7349 = vmatpush1.xpose.msra.mxu0 %v7348
        %v7350 = vand.u32 %v517, 4294901760
        %7351 = vmatprep.subr.mxu0 %v7350
        %v7352 = vand.u32 %v516, 4294901760
        %7353 = vmatpush1.xpose.msra.mxu0 %v7352
        %v7354 = vand.u32 %v501, 4294901760
        %7355 = vmatprep.subr.mxu0 %v7354
        %v7356 = vand.u32 %v500, 4294901760
        %7357 = vmatpush1.xpose.msra.mxu0 %v7356
        %v7358 = vand.u32 %v485, 4294901760
        %7359 = vmatprep.subr.mxu0 %v7358
        %v7360 = vand.u32 %v484, 4294901760
        %7361 = vmatpush1.xpose.msra.mxu0 %v7360
        %v7362 = vand.u32 %v469, 4294901760
        %7363 = vmatprep.subr.mxu0 %v7362
        %v7364 = vand.u32 %v468, 4294901760
        %7365 = vmatpush1.xpose.msra.mxu0 %v7364
        %v7366 = vand.u32 %v453, 4294901760
        %7367 = vmatprep.subr.mxu0 %v7366
        %v7368 = vand.u32 %v452, 4294901760
        %7369 = vmatpush1.xpose.msra.mxu0 %v7368
        %v7370 = vand.u32 %v437, 4294901760
        %7371 = vmatprep.subr.mxu0 %v7370
        %v7372 = vand.u32 %v436, 4294901760
        %7373 = vmatpush1.xpose.msra.mxu0 %v7372
        %v7374 = vand.u32 %v421, 4294901760
        %7375 = vmatprep.subr.mxu0 %v7374
        %v7376 = vand.u32 %v420, 4294901760
        %7377 = vmatpush1.xpose.msra.mxu0 %v7376
        %v7378 = vand.u32 %v405, 4294901760
        %7379 = vmatprep.subr.mxu0 %v7378
        %v7380 = vand.u32 %v404, 4294901760
        %7381 = vmatpush1.xpose.msra.mxu0 %v7380
        %v7382 = vand.u32 %v389, 4294901760
        %7383 = vmatprep.subr.mxu0 %v7382
        %v7384 = vand.u32 %v388, 4294901760
        %7385 = vmatpush1.xpose.msra.mxu0 %v7384
        %v7386 = vand.u32 %v373, 4294901760
        %7387 = vmatprep.subr.mxu0 %v7386
        %v7388 = vand.u32 %v372, 4294901760
        %7389 = vmatpush1.xpose.msra.mxu0 %v7388
        %v7390 = vand.u32 %v357, 4294901760
        %7391 = vmatprep.subr.mxu0 %v7390
        %v7392 = vand.u32 %v356, 4294901760
        %7393 = vmatpush1.xpose.msra.mxu0 %v7392
        %v7394 = vand.u32 %v341, 4294901760
        %7395 = vmatprep.subr.mxu0 %v7394
        %v7396 = vand.u32 %v340, 4294901760
        %7397 = vmatpush1.xpose.msra.mxu0 %v7396
        %v7398 = vand.u32 %v325, 4294901760
        %7399 = vmatprep.subr.mxu0 %v7398
        %v7400 = vand.u32 %v324, 4294901760
        %7401 = vmatpush1.xpose.msra.mxu0 %v7400
        %v7402 = vand.u32 %v309, 4294901760
        %7403 = vmatprep.subr.mxu0 %v7402
        %v7404 = vand.u32 %v308, 4294901760
        %7405 = vmatpush1.xpose.msra.mxu0 %v7404
        %7406 = vmatprep.subr.mxu0 0.0
        %7407 = vmatpush2.xpose.msra.mxu0 0.0
        %7408 = vmatprep.subr.mxu0 0.0
        %7409 = vmatpush2.xpose.msra.mxu0 0.0
        %7410 = vmatprep.subr.mxu0 0.0
        %7411 = vmatpush2.xpose.msra.mxu0 0.0
        %7412 = vmatprep.subr.mxu0 0.0
        %7413 = vmatpush2.xpose.msra.mxu0 0.0
        %7414 = vmatprep.subr.mxu0 0.0
        %7415 = vmatpush2.xpose.msra.mxu0 0.0
        %7416 = vmatprep.subr.mxu0 0.0
        %7417 = vmatpush2.xpose.msra.mxu0 0.0
        %7418 = vmatprep.subr.mxu0 0.0
        %7419 = vmatpush2.xpose.msra.mxu0 0.0
        %7420 = vmatprep.subr.mxu0 0.0
        %7421 = vmatpush2.xpose.msra.mxu0 0.0
        %7422 = vmatprep.subr.mxu0 0.0
        %7423 = vmatpush2.xpose.msra.mxu0 0.0
        %7424 = vmatprep.subr.mxu0 0.0
        %7425 = vmatpush2.xpose.msra.mxu0 0.0
        %7426 = vmatprep.subr.mxu0 0.0
        %7427 = vmatpush2.xpose.msra.mxu0 0.0
        %7428 = vmatprep.subr.mxu0 0.0
        %7429 = vmatpush2.xpose.msra.mxu0 0.0
        %7430 = vmatprep.subr.mxu0 0.0
        %7431 = vmatpush2.xpose.msra.mxu0 0.0
        %7432 = vmatprep.subr.mxu0 0.0
        %7433 = vmatpush2.xpose.msra.mxu0 0.0
        %7434 = vmatprep.subr.mxu0 0.0
        %7435 = vmatpush2.xpose.msra.mxu0 0.0
        %7436 = vmatprep.subr.mxu0 0.0
        %7437 = vmatpush2.xpose.msra.mxu0 0.0
        %v7438 = vand.u32 %v293, 4294901760
        %7439 = vmatprep.mubr.f32.mxu0 %v7438
        %v7440 = vand.u32 %v292, 4294901760
        %7441 = vmatmul.mubr.f32.gmra.mxu0 %v7440
        %v7442 = vpop.f32.mrf.mxu0
        %v7443 = vadd.f32 %v7339, %v7442
        %v7444 = vpop.f32.mrf.mxu0
        %7445 = vdwg.mxu0
        %7446 = vst [vmem:[%s258] sm:$0xff] %v7443
        %v7447 = vmul.f32 %v294, %v294
        %v7448 = vmul.f32 %v295, %v295
        %v7449 = vmul.f32 %v296, %v296
        %v7450 = vmul.f32 %v297, %v297
        %v7451 = vmul.f32 %v298, %v298
        %v7452 = vmul.f32 %v299, %v299
        %v7453 = vmul.f32 %v300, %v300
        %v7454 = vmul.f32 %v301, %v301
        %v7455 = vmul.f32 %v302, %v302
        %v7456 = vmul.f32 %v303, %v303
        %v7457 = vmul.f32 %v304, %v304
        %v7458 = vmul.f32 %v305, %v305
        %v7459 = vmul.f32 %v306, %v306
        %v7460 = vmul.f32 %v307, %v307
        %v7461 = vmul.f32 %v308, %v308
        %v7462 = vmul.f32 %v309, %v309
        %v7463 = vmul.f32 %v310, %v310
        %v7464 = vmul.f32 %v311, %v311
        %v7465 = vmul.f32 %v312, %v312
        %v7466 = vmul.f32 %v313, %v313
        %v7467 = vmul.f32 %v314, %v314
        %v7468 = vmul.f32 %v315, %v315
        %v7469 = vmul.f32 %v316, %v316
        %v7470 = vmul.f32 %v317, %v317
        %v7471 = vmul.f32 %v318, %v318
        %v7472 = vmul.f32 %v319, %v319
        %v7473 = vmul.f32 %v320, %v320
        %v7474 = vmul.f32 %v321, %v321
        %v7475 = vmul.f32 %v322, %v322
        %v7476 = vmul.f32 %v323, %v323
        %v7477 = vmul.f32 %v324, %v324
        %v7478 = vmul.f32 %v325, %v325
        %v7479 = vmul.f32 %v326, %v326
        %v7480 = vmul.f32 %v327, %v327
        %v7481 = vmul.f32 %v328, %v328
        %v7482 = vmul.f32 %v329, %v329
        %v7483 = vmul.f32 %v330, %v330
        %v7484 = vmul.f32 %v331, %v331
        %v7485 = vmul.f32 %v332, %v332
        %v7486 = vmul.f32 %v333, %v333
        %v7487 = vmul.f32 %v334, %v334
        %v7488 = vmul.f32 %v335, %v335
        %v7489 = vmul.f32 %v336, %v336
        %v7490 = vmul.f32 %v337, %v337
        %v7491 = vmul.f32 %v338, %v338
        %v7492 = vmul.f32 %v339, %v339
        %v7493 = vmul.f32 %v340, %v340
        %v7494 = vmul.f32 %v341, %v341
        %v7495 = vmul.f32 %v342, %v342
        %v7496 = vmul.f32 %v343, %v343
        %v7497 = vmul.f32 %v344, %v344
        %v7498 = vmul.f32 %v345, %v345
        %v7499 = vmul.f32 %v346, %v346
        %v7500 = vmul.f32 %v347, %v347
        %v7501 = vmul.f32 %v348, %v348
        %v7502 = vmul.f32 %v349, %v349
        %v7503 = vmul.f32 %v350, %v350
        %v7504 = vmul.f32 %v351, %v351
        %v7505 = vmul.f32 %v352, %v352
        %v7506 = vmul.f32 %v353, %v353
        %v7507 = vmul.f32 %v354, %v354
        %v7508 = vmul.f32 %v355, %v355
        %v7509 = vmul.f32 %v356, %v356
        %v7510 = vmul.f32 %v357, %v357
        %v7511 = vmul.f32 %v358, %v358
        %v7512 = vmul.f32 %v359, %v359
        %v7513 = vmul.f32 %v360, %v360
        %v7514 = vmul.f32 %v361, %v361
        %v7515 = vmul.f32 %v362, %v362
        %v7516 = vmul.f32 %v363, %v363
        %v7517 = vmul.f32 %v364, %v364
        %v7518 = vmul.f32 %v365, %v365
        %v7519 = vmul.f32 %v366, %v366
        %v7520 = vmul.f32 %v367, %v367
        %v7521 = vmul.f32 %v368, %v368
        %v7522 = vmul.f32 %v369, %v369
        %v7523 = vmul.f32 %v370, %v370
        %v7524 = vmul.f32 %v371, %v371
        %v7525 = vmul.f32 %v372, %v372
        %v7526 = vmul.f32 %v373, %v373
        %v7527 = vmul.f32 %v374, %v374
        %v7528 = vmul.f32 %v375, %v375
        %v7529 = vmul.f32 %v376, %v376
        %v7530 = vmul.f32 %v377, %v377
        %v7531 = vmul.f32 %v378, %v378
        %v7532 = vmul.f32 %v379, %v379
        %v7533 = vmul.f32 %v380, %v380
        %v7534 = vmul.f32 %v381, %v381
        %v7535 = vmul.f32 %v382, %v382
        %v7536 = vmul.f32 %v383, %v383
        %v7537 = vmul.f32 %v384, %v384
        %v7538 = vmul.f32 %v385, %v385
        %v7539 = vmul.f32 %v386, %v386
        %v7540 = vmul.f32 %v387, %v387
        %v7541 = vmul.f32 %v388, %v388
        %v7542 = vmul.f32 %v389, %v389
        %v7543 = vmul.f32 %v390, %v390
        %v7544 = vmul.f32 %v391, %v391
        %v7545 = vmul.f32 %v392, %v392
        %v7546 = vmul.f32 %v393, %v393
        %v7547 = vmul.f32 %v394, %v394
        %v7548 = vmul.f32 %v395, %v395
        %v7549 = vmul.f32 %v396, %v396
        %v7550 = vmul.f32 %v397, %v397
        %v7551 = vmul.f32 %v398, %v398
        %v7552 = vmul.f32 %v399, %v399
        %v7553 = vmul.f32 %v400, %v400
        %v7554 = vmul.f32 %v401, %v401
        %v7555 = vmul.f32 %v402, %v402
        %v7556 = vmul.f32 %v403, %v403
        %v7557 = vmul.f32 %v404, %v404
        %v7558 = vmul.f32 %v405, %v405
        %v7559 = vmul.f32 %v406, %v406
        %v7560 = vmul.f32 %v407, %v407
        %v7561 = vmul.f32 %v408, %v408
        %v7562 = vmul.f32 %v409, %v409
        %v7563 = vmul.f32 %v410, %v410
        %v7564 = vmul.f32 %v411, %v411
        %v7565 = vmul.f32 %v412, %v412
        %v7566 = vmul.f32 %v413, %v413
        %v7567 = vmul.f32 %v414, %v414
        %v7568 = vmul.f32 %v415, %v415
        %v7569 = vmul.f32 %v416, %v416
        %v7570 = vmul.f32 %v417, %v417
        %v7571 = vmul.f32 %v418, %v418
        %v7572 = vmul.f32 %v419, %v419
        %v7573 = vmul.f32 %v420, %v420
        %v7574 = vmul.f32 %v421, %v421
        %v7575 = vmul.f32 %v422, %v422
        %v7576 = vmul.f32 %v423, %v423
        %v7577 = vmul.f32 %v424, %v424
        %v7578 = vmul.f32 %v425, %v425
        %v7579 = vmul.f32 %v426, %v426
        %v7580 = vmul.f32 %v427, %v427
        %v7581 = vmul.f32 %v428, %v428
        %v7582 = vmul.f32 %v429, %v429
        %v7583 = vmul.f32 %v430, %v430
        %v7584 = vmul.f32 %v431, %v431
        %v7585 = vmul.f32 %v432, %v432
        %v7586 = vmul.f32 %v433, %v433
        %v7587 = vmul.f32 %v434, %v434
        %v7588 = vmul.f32 %v435, %v435
        %v7589 = vmul.f32 %v436, %v436
        %v7590 = vmul.f32 %v437, %v437
        %v7591 = vmul.f32 %v438, %v438
        %v7592 = vmul.f32 %v439, %v439
        %v7593 = vmul.f32 %v440, %v440
        %v7594 = vmul.f32 %v441, %v441
        %v7595 = vmul.f32 %v442, %v442
        %v7596 = vmul.f32 %v443, %v443
        %v7597 = vmul.f32 %v444, %v444
        %v7598 = vmul.f32 %v445, %v445
        %v7599 = vmul.f32 %v446, %v446
        %v7600 = vmul.f32 %v447, %v447
        %v7601 = vmul.f32 %v448, %v448
        %v7602 = vmul.f32 %v449, %v449
        %v7603 = vmul.f32 %v450, %v450
        %v7604 = vmul.f32 %v451, %v451
        %v7605 = vmul.f32 %v452, %v452
        %v7606 = vmul.f32 %v453, %v453
        %v7607 = vmul.f32 %v454, %v454
        %v7608 = vmul.f32 %v455, %v455
        %v7609 = vmul.f32 %v456, %v456
        %v7610 = vmul.f32 %v457, %v457
        %v7611 = vmul.f32 %v458, %v458
        %v7612 = vmul.f32 %v459, %v459
        %v7613 = vmul.f32 %v460, %v460
        %v7614 = vmul.f32 %v461, %v461
        %v7615 = vmul.f32 %v462, %v462
        %v7616 = vmul.f32 %v463, %v463
        %v7617 = vmul.f32 %v464, %v464
        %v7618 = vmul.f32 %v465, %v465
        %v7619 = vmul.f32 %v466, %v466
        %v7620 = vmul.f32 %v467, %v467
        %v7621 = vmul.f32 %v468, %v468
        %v7622 = vmul.f32 %v469, %v469
        %v7623 = vmul.f32 %v470, %v470
        %v7624 = vmul.f32 %v471, %v471
        %v7625 = vmul.f32 %v472, %v472
        %v7626 = vmul.f32 %v473, %v473
        %v7627 = vmul.f32 %v474, %v474
        %v7628 = vmul.f32 %v475, %v475
        %v7629 = vmul.f32 %v476, %v476
        %v7630 = vmul.f32 %v477, %v477
        %v7631 = vmul.f32 %v478, %v478
        %v7632 = vmul.f32 %v479, %v479
        %v7633 = vmul.f32 %v480, %v480
        %v7634 = vmul.f32 %v481, %v481
        %v7635 = vmul.f32 %v482, %v482
        %v7636 = vmul.f32 %v483, %v483
        %v7637 = vmul.f32 %v484, %v484
        %v7638 = vmul.f32 %v485, %v485
        %v7639 = vmul.f32 %v486, %v486
        %v7640 = vmul.f32 %v487, %v487
        %v7641 = vmul.f32 %v488, %v488
        %v7642 = vmul.f32 %v489, %v489
        %v7643 = vmul.f32 %v490, %v490
        %v7644 = vmul.f32 %v491, %v491
        %v7645 = vmul.f32 %v492, %v492
        %v7646 = vmul.f32 %v493, %v493
        %v7647 = vmul.f32 %v494, %v494
        %v7648 = vmul.f32 %v495, %v495
        %v7649 = vmul.f32 %v496, %v496
        %v7650 = vmul.f32 %v497, %v497
        %v7651 = vmul.f32 %v498, %v498
        %v7652 = vmul.f32 %v499, %v499
        %v7653 = vmul.f32 %v500, %v500
        %v7654 = vmul.f32 %v501, %v501
        %v7655 = vmul.f32 %v502, %v502
        %v7656 = vmul.f32 %v503, %v503
        %v7657 = vmul.f32 %v504, %v504
        %v7658 = vmul.f32 %v505, %v505
        %v7659 = vmul.f32 %v506, %v506
        %v7660 = vmul.f32 %v507, %v507
        %v7661 = vmul.f32 %v508, %v508
        %v7662 = vmul.f32 %v509, %v509
        %v7663 = vmul.f32 %v510, %v510
        %v7664 = vmul.f32 %v511, %v511
        %v7665 = vmul.f32 %v512, %v512
        %v7666 = vmul.f32 %v513, %v513
        %v7667 = vmul.f32 %v514, %v514
        %v7668 = vmul.f32 %v515, %v515
        %v7669 = vmul.f32 %v516, %v516
        %v7670 = vmul.f32 %v517, %v517
        %v7671 = vmul.f32 %v518, %v518
        %v7672 = vmul.f32 %v519, %v519
        %v7673 = vmul.f32 %v520, %v520
        %v7674 = vmul.f32 %v521, %v521
        %v7675 = vmul.f32 %v522, %v522
        %v7676 = vmul.f32 %v523, %v523
        %v7677 = vmul.f32 %v524, %v524
        %v7678 = vmul.f32 %v525, %v525
        %v7679 = vmul.f32 %v526, %v526
        %v7680 = vmul.f32 %v527, %v527
        %v7681 = vmul.f32 %v528, %v528
        %v7682 = vmul.f32 %v529, %v529
        %v7683 = vmul.f32 %v530, %v530
        %v7684 = vmul.f32 %v531, %v531
        %v7685 = vmul.f32 %v532, %v532
        %v7686 = vmul.f32 %v533, %v533
        %v7687 = vmul.f32 %v534, %v534
        %v7688 = vmul.f32 %v535, %v535
        %v7689 = vmul.f32 %v536, %v536
        %v7690 = vmul.f32 %v537, %v537
        %v7691 = vmul.f32 %v538, %v538
        %v7692 = vmul.f32 %v539, %v539
        %v7693 = vmul.f32 %v540, %v540
        %v7694 = vmul.f32 %v541, %v541
        %v7695 = vmul.f32 %v542, %v542
        %v7696 = vmul.f32 %v543, %v543
        %v7697 = vmul.f32 %v544, %v544
        %v7698 = vmul.f32 %v545, %v545
        %v7699 = vmul.f32 %v546, %v546
        %v7700 = vmul.f32 %v547, %v547
        %v7701 = vmul.f32 %v548, %v548
        %v7702 = vmul.f32 %v549, %v549
        %v7703 = vadd.f32 %v7447, %v7448
        %v7704 = vadd.f32 %v7703, %v7449
        %v7705 = vadd.f32 %v7704, %v7450
        %v7706 = vadd.f32 %v7705, %v7451
        %v7707 = vadd.f32 %v7706, %v7452
        %v7708 = vadd.f32 %v7707, %v7453
        %v7709 = vadd.f32 %v7708, %v7454
        %v7710 = vadd.f32 %v7709, %v7455
        %v7711 = vadd.f32 %v7710, %v7456
        %v7712 = vadd.f32 %v7711, %v7457
        %v7713 = vadd.f32 %v7712, %v7458
        %v7714 = vadd.f32 %v7713, %v7459
        %v7715 = vadd.f32 %v7714, %v7460
        %v7716 = vadd.f32 %v7715, %v7461
        %v7717 = vadd.f32 %v7716, %v7462
        %7718 = vadd.xlane.f32.xlu0 %v7717
        %v7719 = vpop.xlane.xlu0 %7718
        %v7720 = vadd.f32 %v7463, %v7464
        %v7721 = vadd.f32 %v7720, %v7465
        %v7722 = vadd.f32 %v7721, %v7466
        %v7723 = vadd.f32 %v7722, %v7467
        %v7724 = vadd.f32 %v7723, %v7468
        %v7725 = vadd.f32 %v7724, %v7469
        %v7726 = vadd.f32 %v7725, %v7470
        %v7727 = vadd.f32 %v7726, %v7471
        %v7728 = vadd.f32 %v7727, %v7472
        %v7729 = vadd.f32 %v7728, %v7473
        %v7730 = vadd.f32 %v7729, %v7474
        %v7731 = vadd.f32 %v7730, %v7475
        %v7732 = vadd.f32 %v7731, %v7476
        %v7733 = vadd.f32 %v7732, %v7477
        %v7734 = vadd.f32 %v7733, %v7478
        %7735 = vadd.xlane.f32.xlu0 %v7734
        %v7736 = vpop.xlane.xlu0 %7735
        %v7737 = vadd.f32 %v7479, %v7480
        %v7738 = vadd.f32 %v7737, %v7481
        %v7739 = vadd.f32 %v7738, %v7482
        %v7740 = vadd.f32 %v7739, %v7483
        %v7741 = vadd.f32 %v7740, %v7484
        %v7742 = vadd.f32 %v7741, %v7485
        %v7743 = vadd.f32 %v7742, %v7486
        %v7744 = vadd.f32 %v7743, %v7487
        %v7745 = vadd.f32 %v7744, %v7488
        %v7746 = vadd.f32 %v7745, %v7489
        %v7747 = vadd.f32 %v7746, %v7490
        %v7748 = vadd.f32 %v7747, %v7491
        %v7749 = vadd.f32 %v7748, %v7492
        %v7750 = vadd.f32 %v7749, %v7493
        %v7751 = vadd.f32 %v7750, %v7494
        %7752 = vadd.xlane.f32.xlu0 %v7751
        %v7753 = vpop.xlane.xlu0 %7752
        %v7754 = vadd.f32 %v7495, %v7496
        %v7755 = vadd.f32 %v7754, %v7497
        %v7756 = vadd.f32 %v7755, %v7498
        %v7757 = vadd.f32 %v7756, %v7499
        %v7758 = vadd.f32 %v7757, %v7500
        %v7759 = vadd.f32 %v7758, %v7501
        %v7760 = vadd.f32 %v7759, %v7502
        %v7761 = vadd.f32 %v7760, %v7503
        %v7762 = vadd.f32 %v7761, %v7504
        %v7763 = vadd.f32 %v7762, %v7505
        %v7764 = vadd.f32 %v7763, %v7506
        %v7765 = vadd.f32 %v7764, %v7507
        %v7766 = vadd.f32 %v7765, %v7508
        %v7767 = vadd.f32 %v7766, %v7509
        %v7768 = vadd.f32 %v7767, %v7510
        %7769 = vadd.xlane.f32.xlu0 %v7768
        %v7770 = vpop.xlane.xlu0 %7769
        %v7771 = vadd.f32 %v7511, %v7512
        %v7772 = vadd.f32 %v7771, %v7513
        %v7773 = vadd.f32 %v7772, %v7514
        %v7774 = vadd.f32 %v7773, %v7515
        %v7775 = vadd.f32 %v7774, %v7516
        %v7776 = vadd.f32 %v7775, %v7517
        %v7777 = vadd.f32 %v7776, %v7518
        %v7778 = vadd.f32 %v7777, %v7519
        %v7779 = vadd.f32 %v7778, %v7520
        %v7780 = vadd.f32 %v7779, %v7521
        %v7781 = vadd.f32 %v7780, %v7522
        %v7782 = vadd.f32 %v7781, %v7523
        %v7783 = vadd.f32 %v7782, %v7524
        %v7784 = vadd.f32 %v7783, %v7525
        %v7785 = vadd.f32 %v7784, %v7526
        %7786 = vadd.xlane.f32.xlu0 %v7785
        %v7787 = vpop.xlane.xlu0 %7786
        %v7788 = vadd.f32 %v7527, %v7528
        %v7789 = vadd.f32 %v7788, %v7529
        %v7790 = vadd.f32 %v7789, %v7530
        %v7791 = vadd.f32 %v7790, %v7531
        %v7792 = vadd.f32 %v7791, %v7532
        %v7793 = vadd.f32 %v7792, %v7533
        %v7794 = vadd.f32 %v7793, %v7534
        %v7795 = vadd.f32 %v7794, %v7535
        %v7796 = vadd.f32 %v7795, %v7536
        %v7797 = vadd.f32 %v7796, %v7537
        %v7798 = vadd.f32 %v7797, %v7538
        %v7799 = vadd.f32 %v7798, %v7539
        %v7800 = vadd.f32 %v7799, %v7540
        %v7801 = vadd.f32 %v7800, %v7541
        %v7802 = vadd.f32 %v7801, %v7542
        %7803 = vadd.xlane.f32.xlu0 %v7802
        %v7804 = vpop.xlane.xlu0 %7803
        %v7805 = vadd.f32 %v7543, %v7544
        %v7806 = vadd.f32 %v7805, %v7545
        %v7807 = vadd.f32 %v7806, %v7546
        %v7808 = vadd.f32 %v7807, %v7547
        %v7809 = vadd.f32 %v7808, %v7548
        %v7810 = vadd.f32 %v7809, %v7549
        %v7811 = vadd.f32 %v7810, %v7550
        %v7812 = vadd.f32 %v7811, %v7551
        %v7813 = vadd.f32 %v7812, %v7552
        %v7814 = vadd.f32 %v7813, %v7553
        %v7815 = vadd.f32 %v7814, %v7554
        %v7816 = vadd.f32 %v7815, %v7555
        %v7817 = vadd.f32 %v7816, %v7556
        %v7818 = vadd.f32 %v7817, %v7557
        %v7819 = vadd.f32 %v7818, %v7558
        %7820 = vadd.xlane.f32.xlu0 %v7819
        %v7821 = vpop.xlane.xlu0 %7820
        %v7822 = vadd.f32 %v7559, %v7560
        %v7823 = vadd.f32 %v7822, %v7561
        %v7824 = vadd.f32 %v7823, %v7562
        %v7825 = vadd.f32 %v7824, %v7563
        %v7826 = vadd.f32 %v7825, %v7564
        %v7827 = vadd.f32 %v7826, %v7565
        %v7828 = vadd.f32 %v7827, %v7566
        %v7829 = vadd.f32 %v7828, %v7567
        %v7830 = vadd.f32 %v7829, %v7568
        %v7831 = vadd.f32 %v7830, %v7569
        %v7832 = vadd.f32 %v7831, %v7570
        %v7833 = vadd.f32 %v7832, %v7571
        %v7834 = vadd.f32 %v7833, %v7572
        %v7835 = vadd.f32 %v7834, %v7573
        %v7836 = vadd.f32 %v7835, %v7574
        %7837 = vadd.xlane.f32.xlu0 %v7836
        %v7838 = vpop.xlane.xlu0 %7837
        %v7839 = vadd.f32 %v7575, %v7576
        %v7840 = vadd.f32 %v7839, %v7577
        %v7841 = vadd.f32 %v7840, %v7578
        %v7842 = vadd.f32 %v7841, %v7579
        %v7843 = vadd.f32 %v7842, %v7580
        %v7844 = vadd.f32 %v7843, %v7581
        %v7845 = vadd.f32 %v7844, %v7582
        %v7846 = vadd.f32 %v7845, %v7583
        %v7847 = vadd.f32 %v7846, %v7584
        %v7848 = vadd.f32 %v7847, %v7585
        %v7849 = vadd.f32 %v7848, %v7586
        %v7850 = vadd.f32 %v7849, %v7587
        %v7851 = vadd.f32 %v7850, %v7588
        %v7852 = vadd.f32 %v7851, %v7589
        %v7853 = vadd.f32 %v7852, %v7590
        %7854 = vadd.xlane.f32.xlu0 %v7853
        %v7855 = vpop.xlane.xlu0 %7854
        %v7856 = vadd.f32 %v7591, %v7592
        %v7857 = vadd.f32 %v7856, %v7593
        %v7858 = vadd.f32 %v7857, %v7594
        %v7859 = vadd.f32 %v7858, %v7595
        %v7860 = vadd.f32 %v7859, %v7596
        %v7861 = vadd.f32 %v7860, %v7597
        %v7862 = vadd.f32 %v7861, %v7598
        %v7863 = vadd.f32 %v7862, %v7599
        %v7864 = vadd.f32 %v7863, %v7600
        %v7865 = vadd.f32 %v7864, %v7601
        %v7866 = vadd.f32 %v7865, %v7602
        %v7867 = vadd.f32 %v7866, %v7603
        %v7868 = vadd.f32 %v7867, %v7604
        %v7869 = vadd.f32 %v7868, %v7605
        %v7870 = vadd.f32 %v7869, %v7606
        %7871 = vadd.xlane.f32.xlu0 %v7870
        %v7872 = vpop.xlane.xlu0 %7871
        %v7873 = vadd.f32 %v7607, %v7608
        %v7874 = vadd.f32 %v7873, %v7609
        %v7875 = vadd.f32 %v7874, %v7610
        %v7876 = vadd.f32 %v7875, %v7611
        %v7877 = vadd.f32 %v7876, %v7612
        %v7878 = vadd.f32 %v7877, %v7613
        %v7879 = vadd.f32 %v7878, %v7614
        %v7880 = vadd.f32 %v7879, %v7615
        %v7881 = vadd.f32 %v7880, %v7616
        %v7882 = vadd.f32 %v7881, %v7617
        %v7883 = vadd.f32 %v7882, %v7618
        %v7884 = vadd.f32 %v7883, %v7619
        %v7885 = vadd.f32 %v7884, %v7620
        %v7886 = vadd.f32 %v7885, %v7621
        %v7887 = vadd.f32 %v7886, %v7622
        %7888 = vadd.xlane.f32.xlu0 %v7887
        %v7889 = vpop.xlane.xlu0 %7888
        %v7890 = vadd.f32 %v7623, %v7624
        %v7891 = vadd.f32 %v7890, %v7625
        %v7892 = vadd.f32 %v7891, %v7626
        %v7893 = vadd.f32 %v7892, %v7627
        %v7894 = vadd.f32 %v7893, %v7628
        %v7895 = vadd.f32 %v7894, %v7629
        %v7896 = vadd.f32 %v7895, %v7630
        %v7897 = vadd.f32 %v7896, %v7631
        %v7898 = vadd.f32 %v7897, %v7632
        %v7899 = vadd.f32 %v7898, %v7633
        %v7900 = vadd.f32 %v7899, %v7634
        %v7901 = vadd.f32 %v7900, %v7635
        %v7902 = vadd.f32 %v7901, %v7636
        %v7903 = vadd.f32 %v7902, %v7637
        %v7904 = vadd.f32 %v7903, %v7638
        %7905 = vadd.xlane.f32.xlu0 %v7904
        %v7906 = vpop.xlane.xlu0 %7905
        %v7907 = vadd.f32 %v7639, %v7640
        %v7908 = vadd.f32 %v7907, %v7641
        %v7909 = vadd.f32 %v7908, %v7642
        %v7910 = vadd.f32 %v7909, %v7643
        %v7911 = vadd.f32 %v7910, %v7644
        %v7912 = vadd.f32 %v7911, %v7645
        %v7913 = vadd.f32 %v7912, %v7646
        %v7914 = vadd.f32 %v7913, %v7647
        %v7915 = vadd.f32 %v7914, %v7648
        %v7916 = vadd.f32 %v7915, %v7649
        %v7917 = vadd.f32 %v7916, %v7650
        %v7918 = vadd.f32 %v7917, %v7651
        %v7919 = vadd.f32 %v7918, %v7652
        %v7920 = vadd.f32 %v7919, %v7653
        %v7921 = vadd.f32 %v7920, %v7654
        %7922 = vadd.xlane.f32.xlu0 %v7921
        %v7923 = vpop.xlane.xlu0 %7922
        %v7924 = vadd.f32 %v7655, %v7656
        %v7925 = vadd.f32 %v7924, %v7657
        %v7926 = vadd.f32 %v7925, %v7658
        %v7927 = vadd.f32 %v7926, %v7659
        %v7928 = vadd.f32 %v7927, %v7660
        %v7929 = vadd.f32 %v7928, %v7661
        %v7930 = vadd.f32 %v7929, %v7662
        %v7931 = vadd.f32 %v7930, %v7663
        %v7932 = vadd.f32 %v7931, %v7664
        %v7933 = vadd.f32 %v7932, %v7665
        %v7934 = vadd.f32 %v7933, %v7666
        %v7935 = vadd.f32 %v7934, %v7667
        %v7936 = vadd.f32 %v7935, %v7668
        %v7937 = vadd.f32 %v7936, %v7669
        %v7938 = vadd.f32 %v7937, %v7670
        %7939 = vadd.xlane.f32.xlu0 %v7938
        %v7940 = vpop.xlane.xlu0 %7939
        %v7941 = vadd.f32 %v7671, %v7672
        %v7942 = vadd.f32 %v7941, %v7673
        %v7943 = vadd.f32 %v7942, %v7674
        %v7944 = vadd.f32 %v7943, %v7675
        %v7945 = vadd.f32 %v7944, %v7676
        %v7946 = vadd.f32 %v7945, %v7677
        %v7947 = vadd.f32 %v7946, %v7678
        %v7948 = vadd.f32 %v7947, %v7679
        %v7949 = vadd.f32 %v7948, %v7680
        %v7950 = vadd.f32 %v7949, %v7681
        %v7951 = vadd.f32 %v7950, %v7682
        %v7952 = vadd.f32 %v7951, %v7683
        %v7953 = vadd.f32 %v7952, %v7684
        %v7954 = vadd.f32 %v7953, %v7685
        %v7955 = vadd.f32 %v7954, %v7686
        %7956 = vadd.xlane.f32.xlu0 %v7955
        %v7957 = vpop.xlane.xlu0 %7956
        %v7958 = vadd.f32 %v7687, %v7688
        %v7959 = vadd.f32 %v7958, %v7689
        %v7960 = vadd.f32 %v7959, %v7690
        %v7961 = vadd.f32 %v7960, %v7691
        %v7962 = vadd.f32 %v7961, %v7692
        %v7963 = vadd.f32 %v7962, %v7693
        %v7964 = vadd.f32 %v7963, %v7694
        %v7965 = vadd.f32 %v7964, %v7695
        %v7966 = vadd.f32 %v7965, %v7696
        %v7967 = vadd.f32 %v7966, %v7697
        %v7968 = vadd.f32 %v7967, %v7698
        %v7969 = vadd.f32 %v7968, %v7699
        %v7970 = vadd.f32 %v7969, %v7700
        %v7971 = vadd.f32 %v7970, %v7701
        %v7972 = vadd.f32 %v7971, %v7702
        %7973 = vadd.xlane.f32.xlu0 %v7972
        %v7974 = vpop.xlane.xlu0 %7973
        %v7975 = vrsqrt.pop %v7719
        %v7976 = vrsqrt.pop %v7736
        %v7977 = vrsqrt.pop %v7753
        %v7978 = vrsqrt.pop %v7770
        %v7979 = vrsqrt.pop %v7787
        %v7980 = vrsqrt.pop %v7804
        %v7981 = vrsqrt.pop %v7821
        %v7982 = vrsqrt.pop %v7838
        %v7983 = vrsqrt.pop %v7855
        %v7984 = vrsqrt.pop %v7872
        %v7985 = vrsqrt.pop %v7889
        %v7986 = vrsqrt.pop %v7906
        %v7987 = vrsqrt.pop %v7923
        %v7988 = vrsqrt.pop %v7940
        %v7989 = vrsqrt.pop %v7957
        %v7990 = vrsqrt.pop %v7974
        %v7991 = vmul.f32 %v294, %v7975
        %v7992 = vmul.f32 %v295, %v7975
        %v7993 = vmul.f32 %v296, %v7975
        %v7994 = vmul.f32 %v297, %v7975
        %v7995 = vmul.f32 %v298, %v7975
        %v7996 = vmul.f32 %v299, %v7975
        %v7997 = vmul.f32 %v300, %v7975
        %v7998 = vmul.f32 %v301, %v7975
        %v7999 = vmul.f32 %v302, %v7975
        %v8000 = vmul.f32 %v303, %v7975
        %v8001 = vmul.f32 %v304, %v7975
        %v8002 = vmul.f32 %v305, %v7975
        %v8003 = vmul.f32 %v306, %v7975
        %v8004 = vmul.f32 %v307, %v7975
        %v8005 = vmul.f32 %v308, %v7975
        %v8006 = vmul.f32 %v309, %v7975
        %v8007 = vmul.f32 %v310, %v7976
        %v8008 = vmul.f32 %v311, %v7976
        %v8009 = vmul.f32 %v312, %v7976
        %v8010 = vmul.f32 %v313, %v7976
        %v8011 = vmul.f32 %v314, %v7976
        %v8012 = vmul.f32 %v315, %v7976
        %v8013 = vmul.f32 %v316, %v7976
        %v8014 = vmul.f32 %v317, %v7976
        %v8015 = vmul.f32 %v318, %v7976
        %v8016 = vmul.f32 %v319, %v7976
        %v8017 = vmul.f32 %v320, %v7976
        %v8018 = vmul.f32 %v321, %v7976
        %v8019 = vmul.f32 %v322, %v7976
        %v8020 = vmul.f32 %v323, %v7976
        %v8021 = vmul.f32 %v324, %v7976
        %v8022 = vmul.f32 %v325, %v7976
        %v8023 = vmul.f32 %v326, %v7977
        %v8024 = vmul.f32 %v327, %v7977
        %v8025 = vmul.f32 %v328, %v7977
        %v8026 = vmul.f32 %v329, %v7977
        %v8027 = vmul.f32 %v330, %v7977
        %v8028 = vmul.f32 %v331, %v7977
        %v8029 = vmul.f32 %v332, %v7977
        %v8030 = vmul.f32 %v333, %v7977
        %v8031 = vmul.f32 %v334, %v7977
        %v8032 = vmul.f32 %v335, %v7977
        %v8033 = vmul.f32 %v336, %v7977
        %v8034 = vmul.f32 %v337, %v7977
        %v8035 = vmul.f32 %v338, %v7977
        %v8036 = vmul.f32 %v339, %v7977
        %v8037 = vmul.f32 %v340, %v7977
        %v8038 = vmul.f32 %v341, %v7977
        %v8039 = vmul.f32 %v342, %v7978
        %v8040 = vmul.f32 %v343, %v7978
        %v8041 = vmul.f32 %v344, %v7978
        %v8042 = vmul.f32 %v345, %v7978
        %v8043 = vmul.f32 %v346, %v7978
        %v8044 = vmul.f32 %v347, %v7978
        %v8045 = vmul.f32 %v348, %v7978
        %v8046 = vmul.f32 %v349, %v7978
        %v8047 = vmul.f32 %v350, %v7978
        %v8048 = vmul.f32 %v351, %v7978
        %v8049 = vmul.f32 %v352, %v7978
        %v8050 = vmul.f32 %v353, %v7978
        %v8051 = vmul.f32 %v354, %v7978
        %v8052 = vmul.f32 %v355, %v7978
        %v8053 = vmul.f32 %v356, %v7978
        %v8054 = vmul.f32 %v357, %v7978
        %v8055 = vmul.f32 %v358, %v7979
        %v8056 = vmul.f32 %v359, %v7979
        %v8057 = vmul.f32 %v360, %v7979
        %v8058 = vmul.f32 %v361, %v7979
        %v8059 = vmul.f32 %v362, %v7979
        %v8060 = vmul.f32 %v363, %v7979
        %v8061 = vmul.f32 %v364, %v7979
        %v8062 = vmul.f32 %v365, %v7979
        %v8063 = vmul.f32 %v366, %v7979
        %v8064 = vmul.f32 %v367, %v7979
        %v8065 = vmul.f32 %v368, %v7979
        %v8066 = vmul.f32 %v369, %v7979
        %v8067 = vmul.f32 %v370, %v7979
        %v8068 = vmul.f32 %v371, %v7979
        %v8069 = vmul.f32 %v372, %v7979
        %v8070 = vmul.f32 %v373, %v7979
        %v8071 = vmul.f32 %v374, %v7980
        %v8072 = vmul.f32 %v375, %v7980
        %v8073 = vmul.f32 %v376, %v7980
        %v8074 = vmul.f32 %v377, %v7980
        %v8075 = vmul.f32 %v378, %v7980
        %v8076 = vmul.f32 %v379, %v7980
        %v8077 = vmul.f32 %v380, %v7980
        %v8078 = vmul.f32 %v381, %v7980
        %v8079 = vmul.f32 %v382, %v7980
        %v8080 = vmul.f32 %v383, %v7980
        %v8081 = vmul.f32 %v384, %v7980
        %v8082 = vmul.f32 %v385, %v7980
        %v8083 = vmul.f32 %v386, %v7980
        %v8084 = vmul.f32 %v387, %v7980
        %v8085 = vmul.f32 %v388, %v7980
        %v8086 = vmul.f32 %v389, %v7980
        %v8087 = vmul.f32 %v390, %v7981
        %v8088 = vmul.f32 %v391, %v7981
        %v8089 = vmul.f32 %v392, %v7981
        %v8090 = vmul.f32 %v393, %v7981
        %v8091 = vmul.f32 %v394, %v7981
        %v8092 = vmul.f32 %v395, %v7981
        %v8093 = vmul.f32 %v396, %v7981
        %v8094 = vmul.f32 %v397, %v7981
        %v8095 = vmul.f32 %v398, %v7981
        %v8096 = vmul.f32 %v399, %v7981
        %v8097 = vmul.f32 %v400, %v7981
        %v8098 = vmul.f32 %v401, %v7981
        %v8099 = vmul.f32 %v402, %v7981
        %v8100 = vmul.f32 %v403, %v7981
        %v8101 = vmul.f32 %v404, %v7981
        %v8102 = vmul.f32 %v405, %v7981
        %v8103 = vmul.f32 %v406, %v7982
        %v8104 = vmul.f32 %v407, %v7982
        %v8105 = vmul.f32 %v408, %v7982
        %v8106 = vmul.f32 %v409, %v7982
        %v8107 = vmul.f32 %v410, %v7982
        %v8108 = vmul.f32 %v411, %v7982
        %v8109 = vmul.f32 %v412, %v7982
        %v8110 = vmul.f32 %v413, %v7982
        %v8111 = vmul.f32 %v414, %v7982
        %v8112 = vmul.f32 %v415, %v7982
        %v8113 = vmul.f32 %v416, %v7982
        %v8114 = vmul.f32 %v417, %v7982
        %v8115 = vmul.f32 %v418, %v7982
        %v8116 = vmul.f32 %v419, %v7982
        %v8117 = vmul.f32 %v420, %v7982
        %v8118 = vmul.f32 %v421, %v7982
        %v8119 = vmul.f32 %v422, %v7983
        %v8120 = vmul.f32 %v423, %v7983
        %v8121 = vmul.f32 %v424, %v7983
        %v8122 = vmul.f32 %v425, %v7983
        %v8123 = vmul.f32 %v426, %v7983
        %v8124 = vmul.f32 %v427, %v7983
        %v8125 = vmul.f32 %v428, %v7983
        %v8126 = vmul.f32 %v429, %v7983
        %v8127 = vmul.f32 %v430, %v7983
        %v8128 = vmul.f32 %v431, %v7983
        %v8129 = vmul.f32 %v432, %v7983
        %v8130 = vmul.f32 %v433, %v7983
        %v8131 = vmul.f32 %v434, %v7983
        %v8132 = vmul.f32 %v435, %v7983
        %v8133 = vmul.f32 %v436, %v7983
        %v8134 = vmul.f32 %v437, %v7983
        %v8135 = vmul.f32 %v438, %v7984
        %v8136 = vmul.f32 %v439, %v7984
        %v8137 = vmul.f32 %v440, %v7984
        %v8138 = vmul.f32 %v441, %v7984
        %v8139 = vmul.f32 %v442, %v7984
        %v8140 = vmul.f32 %v443, %v7984
        %v8141 = vmul.f32 %v444, %v7984
        %v8142 = vmul.f32 %v445, %v7984
        %v8143 = vmul.f32 %v446, %v7984
        %v8144 = vmul.f32 %v447, %v7984
        %v8145 = vmul.f32 %v448, %v7984
        %v8146 = vmul.f32 %v449, %v7984
        %v8147 = vmul.f32 %v450, %v7984
        %v8148 = vmul.f32 %v451, %v7984
        %v8149 = vmul.f32 %v452, %v7984
        %v8150 = vmul.f32 %v453, %v7984
        %v8151 = vmul.f32 %v454, %v7985
        %v8152 = vmul.f32 %v455, %v7985
        %v8153 = vmul.f32 %v456, %v7985
        %v8154 = vmul.f32 %v457, %v7985
        %v8155 = vmul.f32 %v458, %v7985
        %v8156 = vmul.f32 %v459, %v7985
        %v8157 = vmul.f32 %v460, %v7985
        %v8158 = vmul.f32 %v461, %v7985
        %v8159 = vmul.f32 %v462, %v7985
        %v8160 = vmul.f32 %v463, %v7985
        %v8161 = vmul.f32 %v464, %v7985
        %v8162 = vmul.f32 %v465, %v7985
        %v8163 = vmul.f32 %v466, %v7985
        %v8164 = vmul.f32 %v467, %v7985
        %v8165 = vmul.f32 %v468, %v7985
        %v8166 = vmul.f32 %v469, %v7985
        %v8167 = vmul.f32 %v470, %v7986
        %v8168 = vmul.f32 %v471, %v7986
        %v8169 = vmul.f32 %v472, %v7986
        %v8170 = vmul.f32 %v473, %v7986
        %v8171 = vmul.f32 %v474, %v7986
        %v8172 = vmul.f32 %v475, %v7986
        %v8173 = vmul.f32 %v476, %v7986
        %v8174 = vmul.f32 %v477, %v7986
        %v8175 = vmul.f32 %v478, %v7986
        %v8176 = vmul.f32 %v479, %v7986
        %v8177 = vmul.f32 %v480, %v7986
        %v8178 = vmul.f32 %v481, %v7986
        %v8179 = vmul.f32 %v482, %v7986
        %v8180 = vmul.f32 %v483, %v7986
        %v8181 = vmul.f32 %v484, %v7986
        %v8182 = vmul.f32 %v485, %v7986
        %v8183 = vmul.f32 %v486, %v7987
        %v8184 = vmul.f32 %v487, %v7987
        %v8185 = vmul.f32 %v488, %v7987
        %v8186 = vmul.f32 %v489, %v7987
        %v8187 = vmul.f32 %v490, %v7987
        %v8188 = vmul.f32 %v491, %v7987
        %v8189 = vmul.f32 %v492, %v7987
        %v8190 = vmul.f32 %v493, %v7987
        %v8191 = vmul.f32 %v494, %v7987
        %v8192 = vmul.f32 %v495, %v7987
        %v8193 = vmul.f32 %v496, %v7987
        %v8194 = vmul.f32 %v497, %v7987
        %v8195 = vmul.f32 %v498, %v7987
        %v8196 = vmul.f32 %v499, %v7987
        %v8197 = vmul.f32 %v500, %v7987
        %v8198 = vmul.f32 %v501, %v7987
        %v8199 = vmul.f32 %v502, %v7988
        %v8200 = vmul.f32 %v503, %v7988
        %v8201 = vmul.f32 %v504, %v7988
        %v8202 = vmul.f32 %v505, %v7988
        %v8203 = vmul.f32 %v506, %v7988
        %v8204 = vmul.f32 %v507, %v7988
        %v8205 = vmul.f32 %v508, %v7988
        %v8206 = vmul.f32 %v509, %v7988
        %v8207 = vmul.f32 %v510, %v7988
        %v8208 = vmul.f32 %v511, %v7988
        %v8209 = vmul.f32 %v512, %v7988
        %v8210 = vmul.f32 %v513, %v7988
        %v8211 = vmul.f32 %v514, %v7988
        %v8212 = vmul.f32 %v515, %v7988
        %v8213 = vmul.f32 %v516, %v7988
        %v8214 = vmul.f32 %v517, %v7988
        %v8215 = vmul.f32 %v518, %v7989
        %v8216 = vmul.f32 %v519, %v7989
        %v8217 = vmul.f32 %v520, %v7989
        %v8218 = vmul.f32 %v521, %v7989
        %v8219 = vmul.f32 %v522, %v7989
        %v8220 = vmul.f32 %v523, %v7989
        %v8221 = vmul.f32 %v524, %v7989
        %v8222 = vmul.f32 %v525, %v7989
        %v8223 = vmul.f32 %v526, %v7989
        %v8224 = vmul.f32 %v527, %v7989
        %v8225 = vmul.f32 %v528, %v7989
        %v8226 = vmul.f32 %v529, %v7989
        %v8227 = vmul.f32 %v530, %v7989
        %v8228 = vmul.f32 %v531, %v7989
        %v8229 = vmul.f32 %v532, %v7989
        %v8230 = vmul.f32 %v533, %v7989
        %v8231 = vmul.f32 %v534, %v7990
        %v8232 = vmul.f32 %v535, %v7990
        %v8233 = vmul.f32 %v536, %v7990
        %v8234 = vmul.f32 %v537, %v7990
        %v8235 = vmul.f32 %v538, %v7990
        %v8236 = vmul.f32 %v539, %v7990
        %v8237 = vmul.f32 %v540, %v7990
        %v8238 = vmul.f32 %v541, %v7990
        %v8239 = vmul.f32 %v542, %v7990
        %v8240 = vmul.f32 %v543, %v7990
        %v8241 = vmul.f32 %v544, %v7990
        %v8242 = vmul.f32 %v545, %v7990
        %v8243 = vmul.f32 %v546, %v7990
        %v8244 = vmul.f32 %v547, %v7990
        %v8245 = vmul.f32 %v548, %v7990
        %v8246 = vmul.f32 %v549, %v7990
        %8247 = vst [vmem:[%s265] sm:$0xff] %v7991
        %8248 = vst [vmem:[%s265 + $0x8] sm:$0xff] %v7992
        %8249 = vst [vmem:[%s265 + $0x10] sm:$0xff] %v7993
        %8250 = vst [vmem:[%s265 + $0x18] sm:$0xff] %v7994
        %8251 = vst [vmem:[%s265 + $0x20] sm:$0xff] %v7995
        %8252 = vst [vmem:[%s265 + $0x28] sm:$0xff] %v7996
        %8253 = vst [vmem:[%s265 + $0x30] sm:$0xff] %v7997
        %8254 = vst [vmem:[%s265 + $0x38] sm:$0xff] %v7998
        %8255 = vst [vmem:[%s265 + $0x40] sm:$0xff] %v7999
        %8256 = vst [vmem:[%s265 + $0x48] sm:$0xff] %v8000
        %8257 = vst [vmem:[%s265 + $0x50] sm:$0xff] %v8001
        %8258 = vst [vmem:[%s265 + $0x58] sm:$0xff] %v8002
        %8259 = vst [vmem:[%s265 + $0x60] sm:$0xff] %v8003
        %8260 = vst [vmem:[%s265 + $0x68] sm:$0xff] %v8004
        %8261 = vst [vmem:[%s265 + $0x70] sm:$0xff] %v8005
        %8262 = vst [vmem:[%s265 + $0x78] sm:$0xff] %v8006
        %8263 = vst [vmem:[%s265 + $0x80] sm:$0xff] %v8007
        %8264 = vst [vmem:[%s265 + $0x88] sm:$0xff] %v8008
        %8265 = vst [vmem:[%s265 + $0x90] sm:$0xff] %v8009
        %8266 = vst [vmem:[%s265 + $0x98] sm:$0xff] %v8010
        %8267 = vst [vmem:[%s265 + $0xa0] sm:$0xff] %v8011
        %8268 = vst [vmem:[%s265 + $0xa8] sm:$0xff] %v8012
        %8269 = vst [vmem:[%s265 + $0xb0] sm:$0xff] %v8013
        %8270 = vst [vmem:[%s265 + $0xb8] sm:$0xff] %v8014
        %8271 = vst [vmem:[%s265 + $0xc0] sm:$0xff] %v8015
        %8272 = vst [vmem:[%s265 + $0xc8] sm:$0xff] %v8016
        %8273 = vst [vmem:[%s265 + $0xd0] sm:$0xff] %v8017
        %8274 = vst [vmem:[%s265 + $0xd8] sm:$0xff] %v8018
        %8275 = vst [vmem:[%s265 + $0xe0] sm:$0xff] %v8019
        %8276 = vst [vmem:[%s265 + $0xe8] sm:$0xff] %v8020
        %8277 = vst [vmem:[%s265 + $0xf0] sm:$0xff] %v8021
        %8278 = vst [vmem:[%s265 + $0xf8] sm:$0xff] %v8022
        %8279 = vst [vmem:[%s265 + $0x100] sm:$0xff] %v8023
        %8280 = vst [vmem:[%s265 + $0x108] sm:$0xff] %v8024
        %8281 = vst [vmem:[%s265 + $0x110] sm:$0xff] %v8025
        %8282 = vst [vmem:[%s265 + $0x118] sm:$0xff] %v8026
        %8283 = vst [vmem:[%s265 + $0x120] sm:$0xff] %v8027
        %8284 = vst [vmem:[%s265 + $0x128] sm:$0xff] %v8028
        %8285 = vst [vmem:[%s265 + $0x130] sm:$0xff] %v8029
        %8286 = vst [vmem:[%s265 + $0x138] sm:$0xff] %v8030
        %8287 = vst [vmem:[%s265 + $0x140] sm:$0xff] %v8031
        %8288 = vst [vmem:[%s265 + $0x148] sm:$0xff] %v8032
        %8289 = vst [vmem:[%s265 + $0x150] sm:$0xff] %v8033
        %8290 = vst [vmem:[%s265 + $0x158] sm:$0xff] %v8034
        %8291 = vst [vmem:[%s265 + $0x160] sm:$0xff] %v8035
        %8292 = vst [vmem:[%s265 + $0x168] sm:$0xff] %v8036
        %8293 = vst [vmem:[%s265 + $0x170] sm:$0xff] %v8037
        %8294 = vst [vmem:[%s265 + $0x178] sm:$0xff] %v8038
        %8295 = vst [vmem:[%s265 + $0x180] sm:$0xff] %v8039
        %8296 = vst [vmem:[%s265 + $0x188] sm:$0xff] %v8040
        %8297 = vst [vmem:[%s265 + $0x190] sm:$0xff] %v8041
        %8298 = vst [vmem:[%s265 + $0x198] sm:$0xff] %v8042
        %8299 = vst [vmem:[%s265 + $0x1a0] sm:$0xff] %v8043
        %8300 = vst [vmem:[%s265 + $0x1a8] sm:$0xff] %v8044
        %8301 = vst [vmem:[%s265 + $0x1b0] sm:$0xff] %v8045
        %8302 = vst [vmem:[%s265 + $0x1b8] sm:$0xff] %v8046
        %8303 = vst [vmem:[%s265 + $0x1c0] sm:$0xff] %v8047
        %8304 = vst [vmem:[%s265 + $0x1c8] sm:$0xff] %v8048
        %8305 = vst [vmem:[%s265 + $0x1d0] sm:$0xff] %v8049
        %8306 = vst [vmem:[%s265 + $0x1d8] sm:$0xff] %v8050
        %8307 = vst [vmem:[%s265 + $0x1e0] sm:$0xff] %v8051
        %8308 = vst [vmem:[%s265 + $0x1e8] sm:$0xff] %v8052
        %8309 = vst [vmem:[%s265 + $0x1f0] sm:$0xff] %v8053
        %8310 = vst [vmem:[%s265 + $0x1f8] sm:$0xff] %v8054
        %8311 = vst [vmem:[%s265 + $0x200] sm:$0xff] %v8055
        %8312 = vst [vmem:[%s265 + $0x208] sm:$0xff] %v8056
        %8313 = vst [vmem:[%s265 + $0x210] sm:$0xff] %v8057
        %8314 = vst [vmem:[%s265 + $0x218] sm:$0xff] %v8058
        %8315 = vst [vmem:[%s265 + $0x220] sm:$0xff] %v8059
        %8316 = vst [vmem:[%s265 + $0x228] sm:$0xff] %v8060
        %8317 = vst [vmem:[%s265 + $0x230] sm:$0xff] %v8061
        %8318 = vst [vmem:[%s265 + $0x238] sm:$0xff] %v8062
        %8319 = vst [vmem:[%s265 + $0x240] sm:$0xff] %v8063
        %8320 = vst [vmem:[%s265 + $0x248] sm:$0xff] %v8064
        %8321 = vst [vmem:[%s265 + $0x250] sm:$0xff] %v8065
        %8322 = vst [vmem:[%s265 + $0x258] sm:$0xff] %v8066
        %8323 = vst [vmem:[%s265 + $0x260] sm:$0xff] %v8067
        %8324 = vst [vmem:[%s265 + $0x268] sm:$0xff] %v8068
        %8325 = vst [vmem:[%s265 + $0x270] sm:$0xff] %v8069
        %8326 = vst [vmem:[%s265 + $0x278] sm:$0xff] %v8070
        %8327 = vst [vmem:[%s265 + $0x280] sm:$0xff] %v8071
        %8328 = vst [vmem:[%s265 + $0x288] sm:$0xff] %v8072
        %8329 = vst [vmem:[%s265 + $0x290] sm:$0xff] %v8073
        %8330 = vst [vmem:[%s265 + $0x298] sm:$0xff] %v8074
        %8331 = vst [vmem:[%s265 + $0x2a0] sm:$0xff] %v8075
        %8332 = vst [vmem:[%s265 + $0x2a8] sm:$0xff] %v8076
        %8333 = vst [vmem:[%s265 + $0x2b0] sm:$0xff] %v8077
        %8334 = vst [vmem:[%s265 + $0x2b8] sm:$0xff] %v8078
        %8335 = vst [vmem:[%s265 + $0x2c0] sm:$0xff] %v8079
        %8336 = vst [vmem:[%s265 + $0x2c8] sm:$0xff] %v8080
        %8337 = vst [vmem:[%s265 + $0x2d0] sm:$0xff] %v8081
        %8338 = vst [vmem:[%s265 + $0x2d8] sm:$0xff] %v8082
        %8339 = vst [vmem:[%s265 + $0x2e0] sm:$0xff] %v8083
        %8340 = vst [vmem:[%s265 + $0x2e8] sm:$0xff] %v8084
        %8341 = vst [vmem:[%s265 + $0x2f0] sm:$0xff] %v8085
        %8342 = vst [vmem:[%s265 + $0x2f8] sm:$0xff] %v8086
        %8343 = vst [vmem:[%s265 + $0x300] sm:$0xff] %v8087
        %8344 = vst [vmem:[%s265 + $0x308] sm:$0xff] %v8088
        %8345 = vst [vmem:[%s265 + $0x310] sm:$0xff] %v8089
        %8346 = vst [vmem:[%s265 + $0x318] sm:$0xff] %v8090
        %8347 = vst [vmem:[%s265 + $0x320] sm:$0xff] %v8091
        %8348 = vst [vmem:[%s265 + $0x328] sm:$0xff] %v8092
        %8349 = vst [vmem:[%s265 + $0x330] sm:$0xff] %v8093
        %8350 = vst [vmem:[%s265 + $0x338] sm:$0xff] %v8094
        %8351 = vst [vmem:[%s265 + $0x340] sm:$0xff] %v8095
        %8352 = vst [vmem:[%s265 + $0x348] sm:$0xff] %v8096
        %8353 = vst [vmem:[%s265 + $0x350] sm:$0xff] %v8097
        %8354 = vst [vmem:[%s265 + $0x358] sm:$0xff] %v8098
        %8355 = vst [vmem:[%s265 + $0x360] sm:$0xff] %v8099
        %8356 = vst [vmem:[%s265 + $0x368] sm:$0xff] %v8100
        %8357 = vst [vmem:[%s265 + $0x370] sm:$0xff] %v8101
        %8358 = vst [vmem:[%s265 + $0x378] sm:$0xff] %v8102
        %8359 = vst [vmem:[%s265 + $0x380] sm:$0xff] %v8103
        %8360 = vst [vmem:[%s265 + $0x388] sm:$0xff] %v8104
        %8361 = vst [vmem:[%s265 + $0x390] sm:$0xff] %v8105
        %8362 = vst [vmem:[%s265 + $0x398] sm:$0xff] %v8106
        %8363 = vst [vmem:[%s265 + $0x3a0] sm:$0xff] %v8107
        %8364 = vst [vmem:[%s265 + $0x3a8] sm:$0xff] %v8108
        %8365 = vst [vmem:[%s265 + $0x3b0] sm:$0xff] %v8109
        %8366 = vst [vmem:[%s265 + $0x3b8] sm:$0xff] %v8110
        %8367 = vst [vmem:[%s265 + $0x3c0] sm:$0xff] %v8111
        %8368 = vst [vmem:[%s265 + $0x3c8] sm:$0xff] %v8112
        %8369 = vst [vmem:[%s265 + $0x3d0] sm:$0xff] %v8113
        %8370 = vst [vmem:[%s265 + $0x3d8] sm:$0xff] %v8114
        %8371 = vst [vmem:[%s265 + $0x3e0] sm:$0xff] %v8115
        %8372 = vst [vmem:[%s265 + $0x3e8] sm:$0xff] %v8116
        %8373 = vst [vmem:[%s265 + $0x3f0] sm:$0xff] %v8117
        %8374 = vst [vmem:[%s265 + $0x3f8] sm:$0xff] %v8118
        %8375 = vst [vmem:[%s265 + $0x400] sm:$0xff] %v8119
        %8376 = vst [vmem:[%s265 + $0x408] sm:$0xff] %v8120
        %8377 = vst [vmem:[%s265 + $0x410] sm:$0xff] %v8121
        %8378 = vst [vmem:[%s265 + $0x418] sm:$0xff] %v8122
        %8379 = vst [vmem:[%s265 + $0x420] sm:$0xff] %v8123
        %8380 = vst [vmem:[%s265 + $0x428] sm:$0xff] %v8124
        %8381 = vst [vmem:[%s265 + $0x430] sm:$0xff] %v8125
        %8382 = vst [vmem:[%s265 + $0x438] sm:$0xff] %v8126
        %8383 = vst [vmem:[%s265 + $0x440] sm:$0xff] %v8127
        %8384 = vst [vmem:[%s265 + $0x448] sm:$0xff] %v8128
        %8385 = vst [vmem:[%s265 + $0x450] sm:$0xff] %v8129
        %8386 = vst [vmem:[%s265 + $0x458] sm:$0xff] %v8130
        %8387 = vst [vmem:[%s265 + $0x460] sm:$0xff] %v8131
        %8388 = vst [vmem:[%s265 + $0x468] sm:$0xff] %v8132
        %8389 = vst [vmem:[%s265 + $0x470] sm:$0xff] %v8133
        %8390 = vst [vmem:[%s265 + $0x478] sm:$0xff] %v8134
        %8391 = vst [vmem:[%s265 + $0x480] sm:$0xff] %v8135
        %8392 = vst [vmem:[%s265 + $0x488] sm:$0xff] %v8136
        %8393 = vst [vmem:[%s265 + $0x490] sm:$0xff] %v8137
        %8394 = vst [vmem:[%s265 + $0x498] sm:$0xff] %v8138
        %8395 = vst [vmem:[%s265 + $0x4a0] sm:$0xff] %v8139
        %8396 = vst [vmem:[%s265 + $0x4a8] sm:$0xff] %v8140
        %8397 = vst [vmem:[%s265 + $0x4b0] sm:$0xff] %v8141
        %8398 = vst [vmem:[%s265 + $0x4b8] sm:$0xff] %v8142
        %8399 = vst [vmem:[%s265 + $0x4c0] sm:$0xff] %v8143
        %8400 = vst [vmem:[%s265 + $0x4c8] sm:$0xff] %v8144
        %8401 = vst [vmem:[%s265 + $0x4d0] sm:$0xff] %v8145
        %8402 = vst [vmem:[%s265 + $0x4d8] sm:$0xff] %v8146
        %8403 = vst [vmem:[%s265 + $0x4e0] sm:$0xff] %v8147
        %8404 = vst [vmem:[%s265 + $0x4e8] sm:$0xff] %v8148
        %8405 = vst [vmem:[%s265 + $0x4f0] sm:$0xff] %v8149
        %8406 = vst [vmem:[%s265 + $0x4f8] sm:$0xff] %v8150
        %8407 = vst [vmem:[%s265 + $0x500] sm:$0xff] %v8151
        %8408 = vst [vmem:[%s265 + $0x508] sm:$0xff] %v8152
        %8409 = vst [vmem:[%s265 + $0x510] sm:$0xff] %v8153
        %8410 = vst [vmem:[%s265 + $0x518] sm:$0xff] %v8154
        %8411 = vst [vmem:[%s265 + $0x520] sm:$0xff] %v8155
        %8412 = vst [vmem:[%s265 + $0x528] sm:$0xff] %v8156
        %8413 = vst [vmem:[%s265 + $0x530] sm:$0xff] %v8157
        %8414 = vst [vmem:[%s265 + $0x538] sm:$0xff] %v8158
        %8415 = vst [vmem:[%s265 + $0x540] sm:$0xff] %v8159
        %8416 = vst [vmem:[%s265 + $0x548] sm:$0xff] %v8160
        %8417 = vst [vmem:[%s265 + $0x550] sm:$0xff] %v8161
        %8418 = vst [vmem:[%s265 + $0x558] sm:$0xff] %v8162
        %8419 = vst [vmem:[%s265 + $0x560] sm:$0xff] %v8163
        %8420 = vst [vmem:[%s265 + $0x568] sm:$0xff] %v8164
        %8421 = vst [vmem:[%s265 + $0x570] sm:$0xff] %v8165
        %8422 = vst [vmem:[%s265 + $0x578] sm:$0xff] %v8166
        %8423 = vst [vmem:[%s265 + $0x580] sm:$0xff] %v8167
        %8424 = vst [vmem:[%s265 + $0x588] sm:$0xff] %v8168
        %8425 = vst [vmem:[%s265 + $0x590] sm:$0xff] %v8169
        %8426 = vst [vmem:[%s265 + $0x598] sm:$0xff] %v8170
        %8427 = vst [vmem:[%s265 + $0x5a0] sm:$0xff] %v8171
        %8428 = vst [vmem:[%s265 + $0x5a8] sm:$0xff] %v8172
        %8429 = vst [vmem:[%s265 + $0x5b0] sm:$0xff] %v8173
        %8430 = vst [vmem:[%s265 + $0x5b8] sm:$0xff] %v8174
        %8431 = vst [vmem:[%s265 + $0x5c0] sm:$0xff] %v8175
        %8432 = vst [vmem:[%s265 + $0x5c8] sm:$0xff] %v8176
        %8433 = vst [vmem:[%s265 + $0x5d0] sm:$0xff] %v8177
        %8434 = vst [vmem:[%s265 + $0x5d8] sm:$0xff] %v8178
        %8435 = vst [vmem:[%s265 + $0x5e0] sm:$0xff] %v8179
        %8436 = vst [vmem:[%s265 + $0x5e8] sm:$0xff] %v8180
        %8437 = vst [vmem:[%s265 + $0x5f0] sm:$0xff] %v8181
        %8438 = vst [vmem:[%s265 + $0x5f8] sm:$0xff] %v8182
        %8439 = vst [vmem:[%s265 + $0x600] sm:$0xff] %v8183
        %8440 = vst [vmem:[%s265 + $0x608] sm:$0xff] %v8184
        %8441 = vst [vmem:[%s265 + $0x610] sm:$0xff] %v8185
        %8442 = vst [vmem:[%s265 + $0x618] sm:$0xff] %v8186
        %8443 = vst [vmem:[%s265 + $0x620] sm:$0xff] %v8187
        %8444 = vst [vmem:[%s265 + $0x628] sm:$0xff] %v8188
        %8445 = vst [vmem:[%s265 + $0x630] sm:$0xff] %v8189
        %8446 = vst [vmem:[%s265 + $0x638] sm:$0xff] %v8190
        %8447 = vst [vmem:[%s265 + $0x640] sm:$0xff] %v8191
        %8448 = vst [vmem:[%s265 + $0x648] sm:$0xff] %v8192
        %8449 = vst [vmem:[%s265 + $0x650] sm:$0xff] %v8193
        %8450 = vst [vmem:[%s265 + $0x658] sm:$0xff] %v8194
        %8451 = vst [vmem:[%s265 + $0x660] sm:$0xff] %v8195
        %8452 = vst [vmem:[%s265 + $0x668] sm:$0xff] %v8196
        %8453 = vst [vmem:[%s265 + $0x670] sm:$0xff] %v8197
        %8454 = vst [vmem:[%s265 + $0x678] sm:$0xff] %v8198
        %8455 = vst [vmem:[%s265 + $0x680] sm:$0xff] %v8199
        %8456 = vst [vmem:[%s265 + $0x688] sm:$0xff] %v8200
        %8457 = vst [vmem:[%s265 + $0x690] sm:$0xff] %v8201
        %8458 = vst [vmem:[%s265 + $0x698] sm:$0xff] %v8202
        %8459 = vst [vmem:[%s265 + $0x6a0] sm:$0xff] %v8203
        %8460 = vst [vmem:[%s265 + $0x6a8] sm:$0xff] %v8204
        %8461 = vst [vmem:[%s265 + $0x6b0] sm:$0xff] %v8205
        %8462 = vst [vmem:[%s265 + $0x6b8] sm:$0xff] %v8206
        %8463 = vst [vmem:[%s265 + $0x6c0] sm:$0xff] %v8207
        %8464 = vst [vmem:[%s265 + $0x6c8] sm:$0xff] %v8208
        %8465 = vst [vmem:[%s265 + $0x6d0] sm:$0xff] %v8209
        %8466 = vst [vmem:[%s265 + $0x6d8] sm:$0xff] %v8210
        %8467 = vst [vmem:[%s265 + $0x6e0] sm:$0xff] %v8211
        %8468 = vst [vmem:[%s265 + $0x6e8] sm:$0xff] %v8212
        %8469 = vst [vmem:[%s265 + $0x6f0] sm:$0xff] %v8213
        %8470 = vst [vmem:[%s265 + $0x6f8] sm:$0xff] %v8214
        %8471 = vst [vmem:[%s265 + $0x700] sm:$0xff] %v8215
        %8472 = vst [vmem:[%s265 + $0x708] sm:$0xff] %v8216
        %8473 = vst [vmem:[%s265 + $0x710] sm:$0xff] %v8217
        %8474 = vst [vmem:[%s265 + $0x718] sm:$0xff] %v8218
        %8475 = vst [vmem:[%s265 + $0x720] sm:$0xff] %v8219
        %8476 = vst [vmem:[%s265 + $0x728] sm:$0xff] %v8220
        %8477 = vst [vmem:[%s265 + $0x730] sm:$0xff] %v8221
        %8478 = vst [vmem:[%s265 + $0x738] sm:$0xff] %v8222
        %8479 = vst [vmem:[%s265 + $0x740] sm:$0xff] %v8223
        %8480 = vst [vmem:[%s265 + $0x748] sm:$0xff] %v8224
        %8481 = vst [vmem:[%s265 + $0x750] sm:$0xff] %v8225
        %8482 = vst [vmem:[%s265 + $0x758] sm:$0xff] %v8226
        %8483 = vst [vmem:[%s265 + $0x760] sm:$0xff] %v8227
        %8484 = vst [vmem:[%s265 + $0x768] sm:$0xff] %v8228
        %8485 = vst [vmem:[%s265 + $0x770] sm:$0xff] %v8229
        %8486 = vst [vmem:[%s265 + $0x778] sm:$0xff] %v8230
        %8487 = vst [vmem:[%s265 + $0x780] sm:$0xff] %v8231
        %8488 = vst [vmem:[%s265 + $0x788] sm:$0xff] %v8232
        %8489 = vst [vmem:[%s265 + $0x790] sm:$0xff] %v8233
        %8490 = vst [vmem:[%s265 + $0x798] sm:$0xff] %v8234
        %8491 = vst [vmem:[%s265 + $0x7a0] sm:$0xff] %v8235
        %8492 = vst [vmem:[%s265 + $0x7a8] sm:$0xff] %v8236
        %8493 = vst [vmem:[%s265 + $0x7b0] sm:$0xff] %v8237
        %8494 = vst [vmem:[%s265 + $0x7b8] sm:$0xff] %v8238
        %8495 = vst [vmem:[%s265 + $0x7c0] sm:$0xff] %v8239
        %8496 = vst [vmem:[%s265 + $0x7c8] sm:$0xff] %v8240
        %8497 = vst [vmem:[%s265 + $0x7d0] sm:$0xff] %v8241
        %8498 = vst [vmem:[%s265 + $0x7d8] sm:$0xff] %v8242
        %8499 = vst [vmem:[%s265 + $0x7e0] sm:$0xff] %v8243
        %8500 = vst [vmem:[%s265 + $0x7e8] sm:$0xff] %v8244
        %8501 = vst [vmem:[%s265 + $0x7f0] sm:$0xff] %v8245
        %8502 = vst [vmem:[%s265 + $0x7f8] sm:$0xff] %v8246
        %s8503 = sand.u32 %s103, 1
        %s8504 = scalar_lea.sflag [#allocation4], %s8503
        %s8505 = sand.u32 %s103, 1
        %s8506 = smul.addr %s8505, 8
        %s8507 = scalar_lea.vmem [#allocation7], %s8506
        %s8508 = sand.u32 %s131, 1
        %s8509 = scalar_lea.sflag [#allocation9], %s8508
        %s8510 = sand.u32 %s131, 1
        %s8511 = smul.addr %s8510, 2048
        %s8512 = scalar_lea.vmem [#allocation8], %s8511
        // Predicated region
        $region37: #{tpu_custom_call.1} parent=27 // pred_check
          %p8513 = pneg %p113
        $region38: #{tpu_custom_call.1} parent=27 // pred_check_branch
          %8515 = sbr.rel (%p8513) target = $region40
        $region39: #{tpu_custom_call.1} parent=27 // pred_region
          %s8517 = ssub.s32 128, 128
          %8518 = vsyncadd %s8504, %s8517
          %s8519 = smul.addr %s31, 2
          %s8520 = sadd.s32 %s32, %s8519
          %s8521 = smul.addr %s8520, 128
          %s8522 = scalar_lea.hbm %s2, %s8521
          %s8524 = sshll.u32 %s8507, 4
          %s8525 = int_to_ptr.vmem [resolvable:$true] %s8524
          %8527 = dma.vmem_to_hbm [thread:$0]  %s8525, 128, %s8522, %s8504
        $region40: #{tpu_custom_call.1} parent=27 // pred_fallthru
          _
        // Predicated region
        $region41: #{tpu_custom_call.1} parent=27 // pred_check
          %p8528 = pneg %p141
        $region42: #{tpu_custom_call.1} parent=27 // pred_check_branch
          %8530 = sbr.rel (%p8528) target = $region44
        $region43: #{tpu_custom_call.1} parent=27 // pred_region
          %s8531 = smul.u32 16, %s32
          %s8532 = ssub.s32 24, %s8531
          %p8533 = scmp.lt.s32.totalorder %s8532, 16
          %s8534 = scalar_select %p8533, %s8532, 16
          %s8535 = smul.u32 128, %s8534
          %s8536 = smul.u32 %s8535, 16
          %s8538 = ssub.s32 32768, %s8536
          %8539 = vsyncadd %s8509, %s8538
          %p8540 = scmp.ne.s32.totalorder 0, %s8536
          %s8541 = smul.addr %s8531, 16
          %s8542 = smul.addr %s31, 384
          %s8543 = sadd.s32 %s8541, %s8542
          %s8544 = smul.addr %s8543, 128
          %s8545 = scalar_lea.hbm %s3, %s8544
          %s8546 = smul.u32 128, %s8534
          %s8547 = sshll.u32 %s8512, 4
          %s8548 = int_to_ptr.vmem [resolvable:$true] %s8547
          %s8549 = sshll.u32 %s8546, 4
          %8553 = dma.vmem_to_hbm [thread:$0]  (%p8540), %s8548, %s8549, %s8545, %s8509, 2048, 2048, 128
        $region44: #{tpu_custom_call.1} parent=27 // pred_fallthru
          _
      $region28: #{tpu_custom_call.1} parent=5 // pred_fallthru
        _
      %p8554 = scmp.le.s32.totalorder 2, %s22
      // Predicated region
      $region45: #{tpu_custom_call.1} parent=5 // pred_check
        %p8555 = pneg %p8554
      $region46: #{tpu_custom_call.1} parent=5 // pred_check_branch
        %8557 = sbr.rel (%p8555) target = $region48
      $region47: #{tpu_custom_call.1} parent=5 // pred_region
        %s8558 = ssub.s32 %s22, 2
        // Predicated region
        $region49: #{tpu_custom_call.1} parent=47 // pred_check
          %p8559 = pneg %p119
        $region50: #{tpu_custom_call.1} parent=47 // pred_check_branch
          %8561 = sbr.rel (%p8559) target = $region52
        $region51: #{tpu_custom_call.1} parent=47 // pred_region
          %s8562 = sand.u32 %s104, 1
          %s8563 = scalar_lea.sflag [#allocation4], %s8562
          %s8564 = sand.u32 %s104, 1
          %s8565 = smul.addr %s8564, 8
          %s8566 = scalar_lea.vmem [#allocation7], %s8565
          %8567 = dma.done %s8563, 128
        $region52: #{tpu_custom_call.1} parent=47 // pred_fallthru
          _
        // Predicated region
        $region53: #{tpu_custom_call.1} parent=47 // pred_check
          %p8568 = pneg %p147
        $region54: #{tpu_custom_call.1} parent=47 // pred_check_branch
          %8570 = sbr.rel (%p8568) target = $region56
        $region55: #{tpu_custom_call.1} parent=47 // pred_region
          %s8571 = sand.u32 %s132, 1
          %s8572 = scalar_lea.sflag [#allocation9], %s8571
          %s8573 = sand.u32 %s132, 1
          %s8574 = smul.addr %s8573, 2048
          %s8575 = scalar_lea.vmem [#allocation8], %s8574
          %8576 = dma.done %s8572, 32768
        $region56: #{tpu_custom_call.1} parent=47 // pred_fallthru
          _
      $region48: #{tpu_custom_call.1} parent=5 // pred_fallthru
        _
    $region6: #{tpu_custom_call.1} parent=1 // loop_footer
      %s26 = sadd.s32 1, %s22
    $region7: #{tpu_custom_call.1} parent=1 // loop_footer_branch
      %21 = sbr.rel target = $region3
    $region8: #{tpu_custom_call.1} parent=1 // loop_exit
      _
    %8577 = vsyncpa [#allocation3], 1
    %s8578 = scalar_lea.sflag [#allocation3], 1
    %8579 = vsyncpa %s8578, 1
    %8580 = vsyncpa [#allocation6], 1
    %s8581 = scalar_lea.sflag [#allocation6], 1
    %8582 = vsyncpa %s8581, 1
    %8583 = vsyncpa [#allocation4], 1
    %s8584 = scalar_lea.sflag [#allocation4], 1
    %8585 = vsyncpa %s8584, 1
    %8586 = vsyncpa [#allocation9], 1
    %s8587 = scalar_lea.sflag [#allocation9], 1
    %8588 = vsyncpa %s8587, 1

</llo_original>
